<compile_context>
chip_gen: v5e
topology: v5e:2x2
jax: 0.10.0
libtpu: 0.0.40
codegen_flags: <defaults>
</compile_context>

<pallas_src>
import math
import numpy as np
import jax
import jax.numpy as jnp
from jax.experimental import pallas as pl
from jax.experimental.pallas import tpu as pltpu

# ----------------------------- model dims -----------------------------------
VOCAB = 50
EMB = 32          # args.embedding_dim
H1 = 64           # args.hidden_size (lstm2 input is hardcoded 128 = 2*H1)
H2 = 32           # lstm2 hidden (hardcoded in module)
D1 = 20           # dense1 out (hardcoded)
OUT = 4           # args.out_dim
B = 2             # batch
T = 8             # sequence length

HP = 128          # padded per-gate width (lane-aligned gate blocks)
G4 = 4 * HP       # 512 = padded gate row

# "late" weight slab (LSTM2 + dense, bf16, manually DMA'd behind LSTM1) row offsets
_WI2F = 0 * HP    # [256, 512]  LSTM2-fwd input weights
_WI2B = 2 * HP    # [256, 512]  LSTM2-bwd input weights
_WH2 = 4 * HP     # [128, 512]  LSTM2-fwd recurrent weights
_WD = 5 * HP      # [256, 512]  cols 0:128 dense1, rows _WD:_WD+128 cols 128:256 dense2
_LATE_ROWS = 7 * HP


# ----------------------------- Pallas kernel --------------------------------
def classifier_kernel(g1_ref,       # [T, 2B, 512] f32  LSTM1 gate pre-acts (x@Wi+b); rows 0:B fwd(t), B:2B bwd(T-1-t)
                      w_h1_ref,     # [256, 512]  bf16  LSTM1 recurrent weights, both dirs stacked
                      b_ref,        # [4, 512]    f32   {b2_fwd, b2_bwd, b_dense1(pad), b_dense2(pad)}
                      w_late_ref,   # [896, 512]  bf16  (HBM / pl.ANY) LSTM2 + dense weights
                      out_ref,      # [B, 128]    f32   lane-dense logits (cols 0:OUT real)
                      h1_scr,       # [T*B, 256]  f32   VMEM: LSTM1 outputs (fwd lanes 0:128, bwd 128:256)
                      w_late_vmem,  # [896, 512]  bf16  VMEM landing buffer for w_late_ref
                      dma_sem):     # DMA semaphore (1,)
    Tn, twoB, _ = g1_ref.shape
    Bn = twoB // 2

    # Late (LSTM2 + dense) weights are not needed until after LSTM1: overlap their
    # HBM->VMEM copy with the LSTM1 recurrence.
    late_cp = pltpu.make_async_copy(w_late_ref, w_late_vmem, dma_sem.at[0])
    late_cp.start()

    def mm(a, w):  # bf16 x bf16 -> f32 accumulate (native single-pass MXU path)
        return jnp.dot(a.astype(jnp.bfloat16), w, preferred_element_type=jnp.float32)

    def lstm_gates(gates, c):
        # PyTorch gate order i, f, g, o; each gate is an aligned 128-lane block.
        i = jax.nn.sigmoid(gates[:, 0 * HP:1 * HP])
        f = jax.nn.sigmoid(gates[:, 1 * HP:2 * HP])
        g = jnp.tanh(gates[:, 2 * HP:3 * HP])
        o = jax.nn.sigmoid(gates[:, 3 * HP:4 * HP])
        c_new = f * c + i * g
        return o * jnp.tanh(c_new), c_new

    # ---------------- LSTM1: both directions fused along sublanes ------------
    # State rows 0:B = forward, rows B:2B = backward.  One recurrent matmul per
    # step: block-diagonal LHS so fwd rows only hit Wh_fwd, bwd rows only Wh_bwd.
    is_fwd_row = jax.lax.broadcasted_iota(jnp.int32, (twoB, HP), 0) < Bn
    h = jnp.zeros((twoB, HP), jnp.float32)
    c = jnp.zeros((twoB, HP), jnp.float32)
    for t in range(Tn):
        if t == 0:
            gates = g1_ref[0]                        # zero initial state: h @ Wh == 0
        else:
            lhs = jnp.concatenate([jnp.where(is_fwd_row, h, 0.0),
                                   jnp.where(is_fwd_row, 0.0, h)], axis=1)   # [2B, 256]
            gates = g1_ref[t] + mm(lhs, w_h1_ref[...])
        h, c = lstm_gates(gates, c)
        # forward output is for sequence time t, backward output for time Tn-1-t
        h1_scr[t * Bn:(t + 1) * Bn, 0:HP] = h[0:Bn]
        h1_scr[(Tn - 1 - t) * Bn:(Tn - t) * Bn, HP:2 * HP] = h[Bn:twoB]

    # ---------------- LSTM2 ---------------------------------------------------
    late_cp.wait()
    h1_all = h1_scr[...]                                               # [T*B, 256]

    # All LSTM2-forward input projections in ONE K=256 matmul (+ bias, once).
    z2 = mm(h1_all, w_late_vmem[_WI2F:_WI2F + 2 * HP, :]) + b_ref[0:1, :]   # [T*B, 512]

    h2 = jnp.zeros((Bn, HP), jnp.float32)
    c2 = jnp.zeros((Bn, HP), jnp.float32)
    for t in range(Tn):
        g2 = z2[t * Bn:(t + 1) * Bn, :]
        if t > 0:                                    # zero initial state at t == 0
            g2 = g2 + mm(h2, w_late_vmem[_WH2:_WH2 + HP, :])
        h2, c2 = lstm_gates(g2, c2)

    # LSTM2 backward: the output at sequence time T-1 is that direction's FIRST
    # step, so with zero initial state the recurrent term vanishes exactly.
    g2b = (mm(h1_all[(Tn - 1) * Bn:Tn * Bn, :], w_late_vmem[_WI2B:_WI2B + 2 * HP, :])
           + b_ref[1:2, :])
    h2b, _ = lstm_gates(g2b, jnp.zeros((Bn, HP), jnp.float32))

    # ---------------- dense1 -> ReLU -> dense2 (lane-dense output) ------------
    d_in = jnp.concatenate([h2, h2b], axis=1)                          # [B, 256]
    d1 = jnp.maximum(mm(d_in, w_late_vmem[_WD:_WD + 2 * HP, 0:HP]) + b_ref[2:3, 0:HP],
                     0.0)                                              # [B, 128]
    out_ref[...] = mm(d1, w_late_vmem[_WD:_WD + HP, HP:2 * HP]) + b_ref[3:4, 0:HP]


# ----------------------------- wrapper ---------------------------------------
def classifier_forward(token_ids, packed):
    """token_ids: int32 [B, T]. Returns logits [B, OUT]."""
    Bn, Tn = token_ids.shape
    # LSTM1 input path: gather pre-folded (embedding @ Wi1 + bias) gate rows and
    # arrange them time-major, fwd rows first then time-reversed bwd rows.
    rows = jnp.take(packed["lstm1_in_table"], token_ids, axis=0)       # [B, T, 1024]
    g_fwd = jnp.transpose(rows[:, :, 0:G4], (1, 0, 2))                 # [T, B, 512]
    g_bwd = jnp.transpose(rows[:, ::-1, G4:2 * G4], (1, 0, 2))         # [T, B, 512]
    g1 = jnp.concatenate([g_fwd, g_bwd], axis=1)                       # [T, 2B, 512]

    out_padded = pl.pallas_call(
        classifier_kernel,
        out_shape=jax.ShapeDtypeStruct((Bn, HP), jnp.float32),
        in_specs=[
            pl.BlockSpec(memory_space=pltpu.MemorySpace.VMEM),         # g1
            pl.BlockSpec(memory_space=pltpu.MemorySpace.VMEM),         # w_h1
            pl.BlockSpec(memory_space=pltpu.MemorySpace.VMEM),         # bias
            pl.BlockSpec(memory_space=pl.ANY),                         # w_late (stays in HBM)
        ],
        scratch_shapes=[
            pltpu.VMEM((Tn * Bn, 2 * HP), jnp.float32),                # h1 history
            pltpu.VMEM((_LATE_ROWS, G4), jnp.bfloat16),                # late-weight landing buf
            pltpu.SemaphoreType.DMA((1,)),
        ],
    )(g1, packed["w_h1"], packed["bias"], packed["w_late"])
    return out_padded[:, :OUT]


# ----------------------------- parameter init (logical layout) --------------
def _uniform(key, shape, bound):
    return jax.random.uniform(key, shape, jnp.float32, -bound, bound)


def init_params(key):
    ks = jax.random.split(key, 24)
    p = {}
    p["embedding"] = jax.random.normal(ks[0], (VOCAB, EMB), jnp.float32)

    def lstm_dir(k0, k1, k2, k3, in_dim, hid):
        bnd = 1.0 / math.sqrt(hid)
        w_ih = _uniform(k0, (4 * hid, in_dim), bnd)
        w_hh = _uniform(k1, (4 * hid, hid), bnd)
        b_ih = _uniform(k2, (4 * hid,), bnd)
        b_hh = _uniform(k3, (4 * hid,), bnd)
        # logical layout: pre-transposed, combined bias as a [1, 4H] row
        return w_ih.T, w_hh.T, (b_ih + b_hh).reshape(1, 4 * hid)

    p["wi_f1"], p["wh_f1"], p["b_f1"] = lstm_dir(ks[1], ks[2], ks[3], ks[4], EMB, H1)
    p["wi_r1"], p["wh_r1"], p["b_r1"] = lstm_dir(ks[5], ks[6], ks[7], ks[8], EMB, H1)
    p["wi_f2"], p["wh_f2"], p["b_f2"] = lstm_dir(ks[9], ks[10], ks[11], ks[12], 2 * H1, H2)
    p["wi_r2"], p["wh_r2"], p["b_r2"] = lstm_dir(ks[13], ks[14], ks[15], ks[16], 2 * H1, H2)

    b1 = 1.0 / math.sqrt(2 * H2)
    p["w_d1"] = _uniform(ks[17], (D1, 2 * H2), b1).T          # [64, 20]
    p["b_d1"] = _uniform(ks[18], (D1,), b1).reshape(1, D1)
    b2 = 1.0 / math.sqrt(D1)
    p["w_d2"] = _uniform(ks[19], (OUT, D1), b2).T              # [20, OUT]
    p["b_d2"] = _uniform(ks[20], (OUT,), b2).reshape(1, OUT)
    return p


# ----------------------------- packing into padded kernel slabs -------------
def pack_params(p):
    def gate_pad_cols(w, h):
        # [in, 4h] -> [in, 4*HP]: each gate in its own 128-lane block, rest zero
        w = np.asarray(w, np.float32)
        out = np.zeros((w.shape[0], G4), np.float32)
        for g in range(4):
            out[:, g * HP:g * HP + h] = w[:, g * h:(g + 1) * h]
        return out

    def gate_pad_vec(b, h):
        b = np.asarray(b, np.float32).reshape(-1)
        out = np.zeros((G4,), np.float32)
        for g in range(4):
            out[g * HP:g * HP + h] = b[g * h:(g + 1) * h]
        return out

    def check_gate_padding(mat, real, name):
        blocks = np.asarray(mat).reshape(mat.shape[0], -1, HP)
        assert not blocks[:, :, real:].any(), f"non-zero gate padding in {name}"

    emb = np.asarray(p["embedding"], np.float32)                       # [VOCAB, EMB]

    # LSTM1 input path folded at pack time:
    #   table[v] = [ emb[v] @ Wi_fwd + b_fwd | emb[v] @ Wi_bwd + b_bwd ]   (gate-padded)
    tab_f = emb @ gate_pad_cols(p["wi_f1"], H1) + gate_pad_vec(p["b_f1"], H1)[None, :]
    tab_b = emb @ gate_pad_cols(p["wi_r1"], H1) + gate_pad_vec(p["b_r1"], H1)[None, :]
    lstm1_in_table = np.concatenate([tab_f, tab_b], axis=1)            # [VOCAB, 1024]

    # LSTM1 recurrent weights, both directions stacked for the block-diagonal LHS.
    w_h1 = np.zeros((2 * HP, G4), np.float32)                          # [256, 512]
    w_h1[0:H1, :] = gate_pad_cols(p["wh_f1"], H1)
    w_h1[HP:HP + H1, :] = gate_pad_cols(p["wh_r1"], H1)

    # LSTM2 input weights: rows 0:128 act on h1_fwd lanes, rows 128:256 on h1_bwd lanes.
    def wi2_slab(wi2):
        wi2 = gate_pad_cols(wi2, H2)                                   # [128, 512]
        out = np.zeros((2 * HP, G4), np.float32)
        out[0:H1, :] = wi2[0:H1]
        out[HP:HP + H1, :] = wi2[H1:2 * H1]
        return out

    wh2_slab = np.zeros((HP, G4), np.float32)
    wh2_slab[0:H2, :] = gate_pad_cols(p["wh_f2"], H2)

    wd1 = np.asarray(p["w_d1"], np.float32)                            # [64, 20]
    wd2 = np.asarray(p["w_d2"], np.float32)                            # [20, OUT]
    wd_slab = np.zeros((2 * HP, G4), np.float32)
    wd_slab[0:H2, 0:D1] = wd1[0:H2]                                    # dense1, h2_fwd rows
    wd_slab[HP:HP + H2, 0:D1] = wd1[H2:2 * H2]                         # dense1, h2_bwd rows
    wd_slab[0:D1, HP:HP + OUT] = wd2                                   # dense2 in cols 128:256

    w_late = np.zeros((_LATE_ROWS, G4), np.float32)                    # [896, 512]
    w_late[_WI2F:_WI2F + 2 * HP] = wi2_slab(p["wi_f2"])
    w_late[_WI2B:_WI2B + 2 * HP] = wi2_slab(p["wi_r2"])
    w_late[_WH2:_WH2 + HP] = wh2_slab
    w_late[_WD:_WD + 2 * HP] = wd_slab

    bias = np.zeros((4, G4), np.float32)
    bias[0] = gate_pad_vec(p["b_f2"], H2)
    bias[1] = gate_pad_vec(p["b_r2"], H2)
    bias[2, 0:D1] = np.asarray(p["b_d1"], np.float32).reshape(-1)
    bias[3, 0:OUT] = np.asarray(p["b_d2"], np.float32).reshape(-1)

    # Guard the zero-padding invariant the kernel's padded gate lanes depend on.
    check_gate_padding(lstm1_in_table, H1, "lstm1_in_table")
    check_gate_padding(w_h1, H1, "w_h1")
    check_gate_padding(w_late[_WI2F:_WH2 + HP], H2, "lstm2 weights")
    check_gate_padding(bias[0:2], H2, "lstm2 biases")

    return {"lstm1_in_table": jnp.asarray(lstm1_in_table, jnp.float32),
            "w_h1": jnp.asarray(w_h1, jnp.bfloat16),
            "bias": jnp.asarray(bias, jnp.float32),
            "w_late": jnp.asarray(w_late, jnp.bfloat16)}


# ----------------------------- pure-JAX reference ---------------------------
def reference_forward(token_ids, p):
    x = p["embedding"][token_ids].astype(jnp.float32)          # [B, T, EMB]

    def cell(x_t, h, c, wi, wh, b, H):
        g = x_t @ wi + h @ wh + b
        i = jax.nn.sigmoid(g[:, :H]); f = jax.nn.sigmoid(g[:, H:2 * H])
        gg = jnp.tanh(g[:, 2 * H:3 * H]); o = jax.nn.sigmoid(g[:, 3 * H:])
        c = f * c + i * gg
        return o * jnp.tanh(c), c

    def run_dir(seq, wi, wh, b, H, reverse):
        ts = range(seq.shape[1] - 1, -1, -1) if reverse else range(seq.shape[1])
        h = jnp.zeros((seq.shape[0], H)); c = h
        outs = [None] * seq.shape[1]
        for t in ts:
            h, c = cell(seq[:, t, :], h, c, wi, wh, b, H)
            outs[t] = h
        return jnp.stack(outs, axis=1)

    o1 = jnp.concatenate([run_dir(x, p["wi_f1"], p["wh_f1"], p["b_f1"], H1, False),
                          run_dir(x, p["wi_r1"], p["wh_r1"], p["b_r1"], H1, True)], -1)
    o2 = jnp.concatenate([run_dir(o1, p["wi_f2"], p["wh_f2"], p["b_f2"], H2, False),
                          run_dir(o1, p["wi_r2"], p["wh_r2"], p["b_r2"], H2, True)], -1)
    z = o2[:, -1, :]
    d1 = jnp.maximum(z @ p["w_d1"] + p["b_d1"], 0.0)
    return d1 @ p["w_d2"] + p["b_d2"]


# ----------------------------- main ------------------------------------------
if __name__ == "__main__":
    key = jax.random.PRNGKey(0)
    k_tok, k_par = jax.random.split(key)
    token_ids = jax.random.randint(k_tok, (B, T), 0, VOCAB, dtype=jnp.int32)
    params = init_params(k_par)
    packed = pack_params(params)

    logits = jax.jit(classifier_forward)(token_ids, packed)
    logits = jax.block_until_ready(logits)

    ref = reference_forward(token_ids, params)
    assert logits.shape == (B, OUT)
    # bf16 weight slabs vs. the f32 reference => loosened tolerance (expected ~1e-2).
    assert jnp.allclose(logits, ref, atol=5e-2, rtol=5e-2), (logits, ref)
    print("KERNEL_OK")
</pallas_src>

<mosaic_0001>
module attributes {stable_mosaic.version = 11 : i64} {
  func.func @classifier_kernel(%arg0: memref<8x4x512xf32, #tpu.memory_space<vmem>>, %arg1: memref<256x512xbf16, #tpu.memory_space<vmem>>, %arg2: memref<4x512xf32, #tpu.memory_space<vmem>>, %arg3: memref<896x512xbf16, #tpu.memory_space<any>>, %arg4: memref<2x128xf32, #tpu.memory_space<vmem>>, %arg5: memref<16x256xf32, #tpu.memory_space<vmem>>, %arg6: memref<896x512xbf16, #tpu.memory_space<vmem>>, %arg7: memref<1x!tpu.dma_semaphore, #tpu.memory_space<semaphore_mem>>) attributes {dimension_semantics = [], scalar_prefetch = 0 : i64, scratch_operands = 3 : i64, tpu.core_type = #tpu.core_type<tc>} {
    %c0_i32 = arith.constant 0 : i32
    %0 = tpu.memref_slice %arg7[%c0_i32] : memref<1x!tpu.dma_semaphore, #tpu.memory_space<semaphore_mem>> -> memref<1x!tpu.dma_semaphore, #tpu.memory_space<semaphore_mem>>
    %1 = tpu.memref_squeeze %0 : memref<1x!tpu.dma_semaphore, #tpu.memory_space<semaphore_mem>> -> memref<!tpu.dma_semaphore, #tpu.memory_space<semaphore_mem>>
    tpu.enqueue_dma source(%arg3 : memref<896x512xbf16, #tpu.memory_space<any>>) target(%arg6 : memref<896x512xbf16, #tpu.memory_space<vmem>>) target_semaphore(%1 : memref<!tpu.dma_semaphore, #tpu.memory_space<semaphore_mem>>)
    %2 = tpu.iota {dimensions = array<i32: 0>} : vector<4x128xi32>
    %c2_i32 = arith.constant 2 : i32
    %3 = vector.broadcast %c2_i32 : i32 to vector<4x128xi32>
    %4 = arith.cmpi slt, %2, %3 : vector<4x128xi32>
    %cst = arith.constant 0.000000e+00 : f32
    %5 = vector.broadcast %cst : f32 to vector<4x128xf32>
    %c0 = arith.constant 0 : index
    %c0_0 = arith.constant 0 : index
    %c0_1 = arith.constant 0 : index
    %6 = vector.load %arg0[%c0, %c0_0, %c0_1] : memref<8x4x512xf32, #tpu.memory_space<vmem>>, vector<1x4x512xf32>
    %7 = vector.shape_cast %6 : vector<1x4x512xf32> to vector<4x512xf32>
    %8 = vector.extract_strided_slice %7 {offsets = [0, 0], sizes = [4, 128], strides = [1, 1]} : vector<4x512xf32> to vector<4x128xf32>
    %9 = arith.negf %8 : vector<4x128xf32>
    %10 = math.exp %9 : vector<4x128xf32>
    %cst_2 = arith.constant 1.000000e+00 : f32
    %11 = vector.broadcast %cst_2 : f32 to vector<4x128xf32>
    %12 = arith.addf %11, %10 : vector<4x128xf32>
    %13 = arith.divf %11, %12 : vector<4x128xf32>
    %14 = vector.extract_strided_slice %7 {offsets = [0, 128], sizes = [4, 128], strides = [1, 1]} : vector<4x512xf32> to vector<4x128xf32>
    %15 = arith.negf %14 : vector<4x128xf32>
    %16 = math.exp %15 : vector<4x128xf32>
    %cst_3 = arith.constant 1.000000e+00 : f32
    %17 = vector.broadcast %cst_3 : f32 to vector<4x128xf32>
    %18 = arith.addf %17, %16 : vector<4x128xf32>
    %19 = arith.divf %17, %18 : vector<4x128xf32>
    %20 = vector.extract_strided_slice %7 {offsets = [0, 256], sizes = [4, 128], strides = [1, 1]} : vector<4x512xf32> to vector<4x128xf32>
    %21 = math.tanh %20 : vector<4x128xf32>
    %22 = vector.extract_strided_slice %7 {offsets = [0, 384], sizes = [4, 128], strides = [1, 1]} : vector<4x512xf32> to vector<4x128xf32>
    %23 = arith.negf %22 : vector<4x128xf32>
    %24 = math.exp %23 : vector<4x128xf32>
    %cst_4 = arith.constant 1.000000e+00 : f32
    %25 = vector.broadcast %cst_4 : f32 to vector<4x128xf32>
    %26 = arith.addf %25, %24 : vector<4x128xf32>
    %27 = arith.divf %25, %26 : vector<4x128xf32>
    %28 = arith.mulf %19, %5 : vector<4x128xf32>
    %29 = arith.mulf %13, %21 : vector<4x128xf32>
    %30 = arith.addf %28, %29 : vector<4x128xf32>
    %31 = math.tanh %30 : vector<4x128xf32>
    %32 = arith.mulf %27, %31 : vector<4x128xf32>
    %33 = vector.extract_strided_slice %32 {offsets = [0, 0], sizes = [2, 128], strides = [1, 1]} : vector<4x128xf32> to vector<2x128xf32>
    %c0_5 = arith.constant 0 : index
    %c0_6 = arith.constant 0 : index
    %34 = vector.load %arg5[%c0_5, %c0_6] : memref<16x256xf32, #tpu.memory_space<vmem>>, vector<2x128xf32>
    tpu.vector_store %arg5[%c0_5, %c0_6], %33 {strides = array<i32>} : memref<16x256xf32, #tpu.memory_space<vmem>>, vector<2x128xf32>,
    %35 = vector.extract_strided_slice %32 {offsets = [2, 0], sizes = [2, 128], strides = [1, 1]} : vector<4x128xf32> to vector<2x128xf32>
    %c14 = arith.constant 14 : index
    %c128 = arith.constant 128 : index
    %36 = vector.load %arg5[%c14, %c128] : memref<16x256xf32, #tpu.memory_space<vmem>>, vector<2x128xf32>
    tpu.vector_store %arg5[%c14, %c128], %35 {strides = array<i32>} : memref<16x256xf32, #tpu.memory_space<vmem>>, vector<2x128xf32>,
    %cst_7 = arith.constant 0.000000e+00 : f32
    %37 = vector.broadcast %cst_7 : f32 to vector<4x128xf32>
    %38 = arith.select %4, %32, %37 : vector<4x128xi1>, vector<4x128xf32>
    %cst_8 = arith.constant 0.000000e+00 : f32
    %39 = vector.broadcast %cst_8 : f32 to vector<4x128xf32>
    %40 = arith.select %4, %39, %32 : vector<4x128xi1>, vector<4x128xf32>
    %41 = tpu.concatenate %38, %40 in 1 : vector<4x128xf32>, vector<4x128xf32> -> vector<4x256xf32>
    %c1 = arith.constant 1 : index
    %c0_9 = arith.constant 0 : index
    %c0_10 = arith.constant 0 : index
    %42 = vector.load %arg0[%c1, %c0_9, %c0_10] : memref<8x4x512xf32, #tpu.memory_space<vmem>>, vector<1x4x512xf32>
    %43 = vector.shape_cast %42 : vector<1x4x512xf32> to vector<4x512xf32>
    %c0_11 = arith.constant 0 : index
    %c0_12 = arith.constant 0 : index
    %44 = vector.load %arg1[%c0_11, %c0_12] : memref<256x512xbf16, #tpu.memory_space<vmem>>, vector<256x512xbf16>
    %45 = arith.truncf %41 : vector<4x256xf32> to vector<4x256xbf16>
    %cst_13 = arith.constant dense<0.000000e+00> : vector<4x512xf32>
    %46 = tpu.matmul %45, %44, %cst_13 {dimension_numbers = #tpu.dot_dimension_numbers<[1], [0], [0], [1], [0, 0, 1, 1], [], []>} : vector<4x256xbf16>, vector<256x512xbf16>, vector<4x512xf32> -> vector<4x512xf32>
    %47 = arith.addf %43, %46 : vector<4x512xf32>
    %48 = vector.extract_strided_slice %47 {offsets = [0, 0], sizes = [4, 128], strides = [1, 1]} : vector<4x512xf32> to vector<4x128xf32>
    %49 = arith.negf %48 : vector<4x128xf32>
    %50 = math.exp %49 : vector<4x128xf32>
    %cst_14 = arith.constant 1.000000e+00 : f32
    %51 = vector.broadcast %cst_14 : f32 to vector<4x128xf32>
    %52 = arith.addf %51, %50 : vector<4x128xf32>
    %53 = arith.divf %51, %52 : vector<4x128xf32>
    %54 = vector.extract_strided_slice %47 {offsets = [0, 128], sizes = [4, 128], strides = [1, 1]} : vector<4x512xf32> to vector<4x128xf32>
    %55 = arith.negf %54 : vector<4x128xf32>
    %56 = math.exp %55 : vector<4x128xf32>
    %cst_15 = arith.constant 1.000000e+00 : f32
    %57 = vector.broadcast %cst_15 : f32 to vector<4x128xf32>
    %58 = arith.addf %57, %56 : vector<4x128xf32>
    %59 = arith.divf %57, %58 : vector<4x128xf32>
    %60 = vector.extract_strided_slice %47 {offsets = [0, 256], sizes = [4, 128], strides = [1, 1]} : vector<4x512xf32> to vector<4x128xf32>
    %61 = math.tanh %60 : vector<4x128xf32>
    %62 = vector.extract_strided_slice %47 {offsets = [0, 384], sizes = [4, 128], strides = [1, 1]} : vector<4x512xf32> to vector<4x128xf32>
    %63 = arith.negf %62 : vector<4x128xf32>
    %64 = math.exp %63 : vector<4x128xf32>
    %cst_16 = arith.constant 1.000000e+00 : f32
    %65 = vector.broadcast %cst_16 : f32 to vector<4x128xf32>
    %66 = arith.addf %65, %64 : vector<4x128xf32>
    %67 = arith.divf %65, %66 : vector<4x128xf32>
    %68 = arith.mulf %59, %30 : vector<4x128xf32>
    %69 = arith.mulf %53, %61 : vector<4x128xf32>
    %70 = arith.addf %68, %69 : vector<4x128xf32>
    %71 = math.tanh %70 : vector<4x128xf32>
    %72 = arith.mulf %67, %71 : vector<4x128xf32>
    %73 = vector.extract_strided_slice %72 {offsets = [0, 0], sizes = [2, 128], strides = [1, 1]} : vector<4x128xf32> to vector<2x128xf32>
    %c2 = arith.constant 2 : index
    %c0_17 = arith.constant 0 : index
    %74 = vector.load %arg5[%c2, %c0_17] : memref<16x256xf32, #tpu.memory_space<vmem>>, vector<2x128xf32>
    tpu.vector_store %arg5[%c2, %c0_17], %73 {strides = array<i32>} : memref<16x256xf32, #tpu.memory_space<vmem>>, vector<2x128xf32>,
    %75 = vector.extract_strided_slice %72 {offsets = [2, 0], sizes = [2, 128], strides = [1, 1]} : vector<4x128xf32> to vector<2x128xf32>
    %c12 = arith.constant 12 : index
    %c128_18 = arith.constant 128 : index
    %76 = vector.load %arg5[%c12, %c128_18] : memref<16x256xf32, #tpu.memory_space<vmem>>, vector<2x128xf32>
    tpu.vector_store %arg5[%c12, %c128_18], %75 {strides = array<i32>} : memref<16x256xf32, #tpu.memory_space<vmem>>, vector<2x128xf32>,
    %cst_19 = arith.constant 0.000000e+00 : f32
    %77 = vector.broadcast %cst_19 : f32 to vector<4x128xf32>
    %78 = arith.select %4, %72, %77 : vector<4x128xi1>, vector<4x128xf32>
    %cst_20 = arith.constant 0.000000e+00 : f32
    %79 = vector.broadcast %cst_20 : f32 to vector<4x128xf32>
    %80 = arith.select %4, %79, %72 : vector<4x128xi1>, vector<4x128xf32>
    %81 = tpu.concatenate %78, %80 in 1 : vector<4x128xf32>, vector<4x128xf32> -> vector<4x256xf32>
    %c2_21 = arith.constant 2 : index
    %c0_22 = arith.constant 0 : index
    %c0_23 = arith.constant 0 : index
    %82 = vector.load %arg0[%c2_21, %c0_22, %c0_23] : memref<8x4x512xf32, #tpu.memory_space<vmem>>, vector<1x4x512xf32>
    %83 = vector.shape_cast %82 : vector<1x4x512xf32> to vector<4x512xf32>
    %c0_24 = arith.constant 0 : index
    %c0_25 = arith.constant 0 : index
    %84 = vector.load %arg1[%c0_24, %c0_25] : memref<256x512xbf16, #tpu.memory_space<vmem>>, vector<256x512xbf16>
    %85 = arith.truncf %81 : vector<4x256xf32> to vector<4x256xbf16>
    %cst_26 = arith.constant dense<0.000000e+00> : vector<4x512xf32>
    %86 = tpu.matmul %85, %84, %cst_26 {dimension_numbers = #tpu.dot_dimension_numbers<[1], [0], [0], [1], [0, 0, 1, 1], [], []>} : vector<4x256xbf16>, vector<256x512xbf16>, vector<4x512xf32> -> vector<4x512xf32>
    %87 = arith.addf %83, %86 : vector<4x512xf32>
    %88 = vector.extract_strided_slice %87 {offsets = [0, 0], sizes = [4, 128], strides = [1, 1]} : vector<4x512xf32> to vector<4x128xf32>
    %89 = arith.negf %88 : vector<4x128xf32>
    %90 = math.exp %89 : vector<4x128xf32>
    %cst_27 = arith.constant 1.000000e+00 : f32
    %91 = vector.broadcast %cst_27 : f32 to vector<4x128xf32>
    %92 = arith.addf %91, %90 : vector<4x128xf32>
    %93 = arith.divf %91, %92 : vector<4x128xf32>
    %94 = vector.extract_strided_slice %87 {offsets = [0, 128], sizes = [4, 128], strides = [1, 1]} : vector<4x512xf32> to vector<4x128xf32>
    %95 = arith.negf %94 : vector<4x128xf32>
    %96 = math.exp %95 : vector<4x128xf32>
    %cst_28 = arith.constant 1.000000e+00 : f32
    %97 = vector.broadcast %cst_28 : f32 to vector<4x128xf32>
    %98 = arith.addf %97, %96 : vector<4x128xf32>
    %99 = arith.divf %97, %98 : vector<4x128xf32>
    %100 = vector.extract_strided_slice %87 {offsets = [0, 256], sizes = [4, 128], strides = [1, 1]} : vector<4x512xf32> to vector<4x128xf32>
    %101 = math.tanh %100 : vector<4x128xf32>
    %102 = vector.extract_strided_slice %87 {offsets = [0, 384], sizes = [4, 128], strides = [1, 1]} : vector<4x512xf32> to vector<4x128xf32>
    %103 = arith.negf %102 : vector<4x128xf32>
    %104 = math.exp %103 : vector<4x128xf32>
    %cst_29 = arith.constant 1.000000e+00 : f32
    %105 = vector.broadcast %cst_29 : f32 to vector<4x128xf32>
    %106 = arith.addf %105, %104 : vector<4x128xf32>
    %107 = arith.divf %105, %106 : vector<4x128xf32>
    %108 = arith.mulf %99, %70 : vector<4x128xf32>
    %109 = arith.mulf %93, %101 : vector<4x128xf32>
    %110 = arith.addf %108, %109 : vector<4x128xf32>
    %111 = math.tanh %110 : vector<4x128xf32>
    %112 = arith.mulf %107, %111 : vector<4x128xf32>
    %113 = vector.extract_strided_slice %112 {offsets = [0, 0], sizes = [2, 128], strides = [1, 1]} : vector<4x128xf32> to vector<2x128xf32>
    %c4 = arith.constant 4 : index
    %c0_30 = arith.constant 0 : index
    %114 = vector.load %arg5[%c4, %c0_30] : memref<16x256xf32, #tpu.memory_space<vmem>>, vector<2x128xf32>
    tpu.vector_store %arg5[%c4, %c0_30], %113 {strides = array<i32>} : memref<16x256xf32, #tpu.memory_space<vmem>>, vector<2x128xf32>,
    %115 = vector.extract_strided_slice %112 {offsets = [2, 0], sizes = [2, 128], strides = [1, 1]} : vector<4x128xf32> to vector<2x128xf32>
    %c10 = arith.constant 10 : index
    %c128_31 = arith.constant 128 : index
    %116 = vector.load %arg5[%c10, %c128_31] : memref<16x256xf32, #tpu.memory_space<vmem>>, vector<2x128xf32>
    tpu.vector_store %arg5[%c10, %c128_31], %115 {strides = array<i32>} : memref<16x256xf32, #tpu.memory_space<vmem>>, vector<2x128xf32>,
    %cst_32 = arith.constant 0.000000e+00 : f32
    %117 = vector.broadcast %cst_32 : f32 to vector<4x128xf32>
    %118 = arith.select %4, %112, %117 : vector<4x128xi1>, vector<4x128xf32>
    %cst_33 = arith.constant 0.000000e+00 : f32
    %119 = vector.broadcast %cst_33 : f32 to vector<4x128xf32>
    %120 = arith.select %4, %119, %112 : vector<4x128xi1>, vector<4x128xf32>
    %121 = tpu.concatenate %118, %120 in 1 : vector<4x128xf32>, vector<4x128xf32> -> vector<4x256xf32>
    %c3 = arith.constant 3 : index
    %c0_34 = arith.constant 0 : index
    %c0_35 = arith.constant 0 : index
    %122 = vector.load %arg0[%c3, %c0_34, %c0_35] : memref<8x4x512xf32, #tpu.memory_space<vmem>>, vector<1x4x512xf32>
    %123 = vector.shape_cast %122 : vector<1x4x512xf32> to vector<4x512xf32>
    %c0_36 = arith.constant 0 : index
    %c0_37 = arith.constant 0 : index
    %124 = vector.load %arg1[%c0_36, %c0_37] : memref<256x512xbf16, #tpu.memory_space<vmem>>, vector<256x512xbf16>
    %125 = arith.truncf %121 : vector<4x256xf32> to vector<4x256xbf16>
    %cst_38 = arith.constant dense<0.000000e+00> : vector<4x512xf32>
    %126 = tpu.matmul %125, %124, %cst_38 {dimension_numbers = #tpu.dot_dimension_numbers<[1], [0], [0], [1], [0, 0, 1, 1], [], []>} : vector<4x256xbf16>, vector<256x512xbf16>, vector<4x512xf32> -> vector<4x512xf32>
    %127 = arith.addf %123, %126 : vector<4x512xf32>
    %128 = vector.extract_strided_slice %127 {offsets = [0, 0], sizes = [4, 128], strides = [1, 1]} : vector<4x512xf32> to vector<4x128xf32>
    %129 = arith.negf %128 : vector<4x128xf32>
    %130 = math.exp %129 : vector<4x128xf32>
    %cst_39 = arith.constant 1.000000e+00 : f32
    %131 = vector.broadcast %cst_39 : f32 to vector<4x128xf32>
    %132 = arith.addf %131, %130 : vector<4x128xf32>
    %133 = arith.divf %131, %132 : vector<4x128xf32>
    %134 = vector.extract_strided_slice %127 {offsets = [0, 128], sizes = [4, 128], strides = [1, 1]} : vector<4x512xf32> to vector<4x128xf32>
    %135 = arith.negf %134 : vector<4x128xf32>
    %136 = math.exp %135 : vector<4x128xf32>
    %cst_40 = arith.constant 1.000000e+00 : f32
    %137 = vector.broadcast %cst_40 : f32 to vector<4x128xf32>
    %138 = arith.addf %137, %136 : vector<4x128xf32>
    %139 = arith.divf %137, %138 : vector<4x128xf32>
    %140 = vector.extract_strided_slice %127 {offsets = [0, 256], sizes = [4, 128], strides = [1, 1]} : vector<4x512xf32> to vector<4x128xf32>
    %141 = math.tanh %140 : vector<4x128xf32>
    %142 = vector.extract_strided_slice %127 {offsets = [0, 384], sizes = [4, 128], strides = [1, 1]} : vector<4x512xf32> to vector<4x128xf32>
    %143 = arith.negf %142 : vector<4x128xf32>
    %144 = math.exp %143 : vector<4x128xf32>
    %cst_41 = arith.constant 1.000000e+00 : f32
    %145 = vector.broadcast %cst_41 : f32 to vector<4x128xf32>
    %146 = arith.addf %145, %144 : vector<4x128xf32>
    %147 = arith.divf %145, %146 : vector<4x128xf32>
    %148 = arith.mulf %139, %110 : vector<4x128xf32>
    %149 = arith.mulf %133, %141 : vector<4x128xf32>
    %150 = arith.addf %148, %149 : vector<4x128xf32>
    %151 = math.tanh %150 : vector<4x128xf32>
    %152 = arith.mulf %147, %151 : vector<4x128xf32>
    %153 = vector.extract_strided_slice %152 {offsets = [0, 0], sizes = [2, 128], strides = [1, 1]} : vector<4x128xf32> to vector<2x128xf32>
    %c6 = arith.constant 6 : index
    %c0_42 = arith.constant 0 : index
    %154 = vector.load %arg5[%c6, %c0_42] : memref<16x256xf32, #tpu.memory_space<vmem>>, vector<2x128xf32>
    tpu.vector_store %arg5[%c6, %c0_42], %153 {strides = array<i32>} : memref<16x256xf32, #tpu.memory_space<vmem>>, vector<2x128xf32>,
    %155 = vector.extract_strided_slice %152 {offsets = [2, 0], sizes = [2, 128], strides = [1, 1]} : vector<4x128xf32> to vector<2x128xf32>
    %c8 = arith.constant 8 : index
    %c128_43 = arith.constant 128 : index
    %156 = vector.load %arg5[%c8, %c128_43] : memref<16x256xf32, #tpu.memory_space<vmem>>, vector<2x128xf32>
    tpu.vector_store %arg5[%c8, %c128_43], %155 {strides = array<i32>} : memref<16x256xf32, #tpu.memory_space<vmem>>, vector<2x128xf32>,
    %cst_44 = arith.constant 0.000000e+00 : f32
    %157 = vector.broadcast %cst_44 : f32 to vector<4x128xf32>
    %158 = arith.select %4, %152, %157 : vector<4x128xi1>, vector<4x128xf32>
    %cst_45 = arith.constant 0.000000e+00 : f32
    %159 = vector.broadcast %cst_45 : f32 to vector<4x128xf32>
    %160 = arith.select %4, %159, %152 : vector<4x128xi1>, vector<4x128xf32>
    %161 = tpu.concatenate %158, %160 in 1 : vector<4x128xf32>, vector<4x128xf32> -> vector<4x256xf32>
    %c4_46 = arith.constant 4 : index
    %c0_47 = arith.constant 0 : index
    %c0_48 = arith.constant 0 : index
    %162 = vector.load %arg0[%c4_46, %c0_47, %c0_48] : memref<8x4x512xf32, #tpu.memory_space<vmem>>, vector<1x4x512xf32>
    %163 = vector.shape_cast %162 : vector<1x4x512xf32> to vector<4x512xf32>
    %c0_49 = arith.constant 0 : index
    %c0_50 = arith.constant 0 : index
    %164 = vector.load %arg1[%c0_49, %c0_50] : memref<256x512xbf16, #tpu.memory_space<vmem>>, vector<256x512xbf16>
    %165 = arith.truncf %161 : vector<4x256xf32> to vector<4x256xbf16>
    %cst_51 = arith.constant dense<0.000000e+00> : vector<4x512xf32>
    %166 = tpu.matmul %165, %164, %cst_51 {dimension_numbers = #tpu.dot_dimension_numbers<[1], [0], [0], [1], [0, 0, 1, 1], [], []>} : vector<4x256xbf16>, vector<256x512xbf16>, vector<4x512xf32> -> vector<4x512xf32>
    %167 = arith.addf %163, %166 : vector<4x512xf32>
    %168 = vector.extract_strided_slice %167 {offsets = [0, 0], sizes = [4, 128], strides = [1, 1]} : vector<4x512xf32> to vector<4x128xf32>
    %169 = arith.negf %168 : vector<4x128xf32>
    %170 = math.exp %169 : vector<4x128xf32>
    %cst_52 = arith.constant 1.000000e+00 : f32
    %171 = vector.broadcast %cst_52 : f32 to vector<4x128xf32>
    %172 = arith.addf %171, %170 : vector<4x128xf32>
    %173 = arith.divf %171, %172 : vector<4x128xf32>
    %174 = vector.extract_strided_slice %167 {offsets = [0, 128], sizes = [4, 128], strides = [1, 1]} : vector<4x512xf32> to vector<4x128xf32>
    %175 = arith.negf %174 : vector<4x128xf32>
    %176 = math.exp %175 : vector<4x128xf32>
    %cst_53 = arith.constant 1.000000e+00 : f32
    %177 = vector.broadcast %cst_53 : f32 to vector<4x128xf32>
    %178 = arith.addf %177, %176 : vector<4x128xf32>
    %179 = arith.divf %177, %178 : vector<4x128xf32>
    %180 = vector.extract_strided_slice %167 {offsets = [0, 256], sizes = [4, 128], strides = [1, 1]} : vector<4x512xf32> to vector<4x128xf32>
    %181 = math.tanh %180 : vector<4x128xf32>
    %182 = vector.extract_strided_slice %167 {offsets = [0, 384], sizes = [4, 128], strides = [1, 1]} : vector<4x512xf32> to vector<4x128xf32>
    %183 = arith.negf %182 : vector<4x128xf32>
    %184 = math.exp %183 : vector<4x128xf32>
    %cst_54 = arith.constant 1.000000e+00 : f32
    %185 = vector.broadcast %cst_54 : f32 to vector<4x128xf32>
    %186 = arith.addf %185, %184 : vector<4x128xf32>
    %187 = arith.divf %185, %186 : vector<4x128xf32>
    %188 = arith.mulf %179, %150 : vector<4x128xf32>
    %189 = arith.mulf %173, %181 : vector<4x128xf32>
    %190 = arith.addf %188, %189 : vector<4x128xf32>
    %191 = math.tanh %190 : vector<4x128xf32>
    %192 = arith.mulf %187, %191 : vector<4x128xf32>
    %193 = vector.extract_strided_slice %192 {offsets = [0, 0], sizes = [2, 128], strides = [1, 1]} : vector<4x128xf32> to vector<2x128xf32>
    %c8_55 = arith.constant 8 : index
    %c0_56 = arith.constant 0 : index
    %194 = vector.load %arg5[%c8_55, %c0_56] : memref<16x256xf32, #tpu.memory_space<vmem>>, vector<2x128xf32>
    tpu.vector_store %arg5[%c8_55, %c0_56], %193 {strides = array<i32>} : memref<16x256xf32, #tpu.memory_space<vmem>>, vector<2x128xf32>,
    %195 = vector.extract_strided_slice %192 {offsets = [2, 0], sizes = [2, 128], strides = [1, 1]} : vector<4x128xf32> to vector<2x128xf32>
    %c6_57 = arith.constant 6 : index
    %c128_58 = arith.constant 128 : index
    %196 = vector.load %arg5[%c6_57, %c128_58] : memref<16x256xf32, #tpu.memory_space<vmem>>, vector<2x128xf32>
    tpu.vector_store %arg5[%c6_57, %c128_58], %195 {strides = array<i32>} : memref<16x256xf32, #tpu.memory_space<vmem>>, vector<2x128xf32>,
    %cst_59 = arith.constant 0.000000e+00 : f32
    %197 = vector.broadcast %cst_59 : f32 to vector<4x128xf32>
    %198 = arith.select %4, %192, %197 : vector<4x128xi1>, vector<4x128xf32>
    %cst_60 = arith.constant 0.000000e+00 : f32
    %199 = vector.broadcast %cst_60 : f32 to vector<4x128xf32>
    %200 = arith.select %4, %199, %192 : vector<4x128xi1>, vector<4x128xf32>
    %201 = tpu.concatenate %198, %200 in 1 : vector<4x128xf32>, vector<4x128xf32> -> vector<4x256xf32>
    %c5 = arith.constant 5 : index
    %c0_61 = arith.constant 0 : index
    %c0_62 = arith.constant 0 : index
    %202 = vector.load %arg0[%c5, %c0_61, %c0_62] : memref<8x4x512xf32, #tpu.memory_space<vmem>>, vector<1x4x512xf32>
    %203 = vector.shape_cast %202 : vector<1x4x512xf32> to vector<4x512xf32>
    %c0_63 = arith.constant 0 : index
    %c0_64 = arith.constant 0 : index
    %204 = vector.load %arg1[%c0_63, %c0_64] : memref<256x512xbf16, #tpu.memory_space<vmem>>, vector<256x512xbf16>
    %205 = arith.truncf %201 : vector<4x256xf32> to vector<4x256xbf16>
    %cst_65 = arith.constant dense<0.000000e+00> : vector<4x512xf32>
    %206 = tpu.matmul %205, %204, %cst_65 {dimension_numbers = #tpu.dot_dimension_numbers<[1], [0], [0], [1], [0, 0, 1, 1], [], []>} : vector<4x256xbf16>, vector<256x512xbf16>, vector<4x512xf32> -> vector<4x512xf32>
    %207 = arith.addf %203, %206 : vector<4x512xf32>
    %208 = vector.extract_strided_slice %207 {offsets = [0, 0], sizes = [4, 128], strides = [1, 1]} : vector<4x512xf32> to vector<4x128xf32>
    %209 = arith.negf %208 : vector<4x128xf32>
    %210 = math.exp %209 : vector<4x128xf32>
    %cst_66 = arith.constant 1.000000e+00 : f32
    %211 = vector.broadcast %cst_66 : f32 to vector<4x128xf32>
    %212 = arith.addf %211, %210 : vector<4x128xf32>
    %213 = arith.divf %211, %212 : vector<4x128xf32>
    %214 = vector.extract_strided_slice %207 {offsets = [0, 128], sizes = [4, 128], strides = [1, 1]} : vector<4x512xf32> to vector<4x128xf32>
    %215 = arith.negf %214 : vector<4x128xf32>
    %216 = math.exp %215 : vector<4x128xf32>
    %cst_67 = arith.constant 1.000000e+00 : f32
    %217 = vector.broadcast %cst_67 : f32 to vector<4x128xf32>
    %218 = arith.addf %217, %216 : vector<4x128xf32>
    %219 = arith.divf %217, %218 : vector<4x128xf32>
    %220 = vector.extract_strided_slice %207 {offsets = [0, 256], sizes = [4, 128], strides = [1, 1]} : vector<4x512xf32> to vector<4x128xf32>
    %221 = math.tanh %220 : vector<4x128xf32>
    %222 = vector.extract_strided_slice %207 {offsets = [0, 384], sizes = [4, 128], strides = [1, 1]} : vector<4x512xf32> to vector<4x128xf32>
    %223 = arith.negf %222 : vector<4x128xf32>
    %224 = math.exp %223 : vector<4x128xf32>
    %cst_68 = arith.constant 1.000000e+00 : f32
    %225 = vector.broadcast %cst_68 : f32 to vector<4x128xf32>
    %226 = arith.addf %225, %224 : vector<4x128xf32>
    %227 = arith.divf %225, %226 : vector<4x128xf32>
    %228 = arith.mulf %219, %190 : vector<4x128xf32>
    %229 = arith.mulf %213, %221 : vector<4x128xf32>
    %230 = arith.addf %228, %229 : vector<4x128xf32>
    %231 = math.tanh %230 : vector<4x128xf32>
    %232 = arith.mulf %227, %231 : vector<4x128xf32>
    %233 = vector.extract_strided_slice %232 {offsets = [0, 0], sizes = [2, 128], strides = [1, 1]} : vector<4x128xf32> to vector<2x128xf32>
    %c10_69 = arith.constant 10 : index
    %c0_70 = arith.constant 0 : index
    %234 = vector.load %arg5[%c10_69, %c0_70] : memref<16x256xf32, #tpu.memory_space<vmem>>, vector<2x128xf32>
    tpu.vector_store %arg5[%c10_69, %c0_70], %233 {strides = array<i32>} : memref<16x256xf32, #tpu.memory_space<vmem>>, vector<2x128xf32>,
    %235 = vector.extract_strided_slice %232 {offsets = [2, 0], sizes = [2, 128], strides = [1, 1]} : vector<4x128xf32> to vector<2x128xf32>
    %c4_71 = arith.constant 4 : index
    %c128_72 = arith.constant 128 : index
    %236 = vector.load %arg5[%c4_71, %c128_72] : memref<16x256xf32, #tpu.memory_space<vmem>>, vector<2x128xf32>
    tpu.vector_store %arg5[%c4_71, %c128_72], %235 {strides = array<i32>} : memref<16x256xf32, #tpu.memory_space<vmem>>, vector<2x128xf32>,
    %cst_73 = arith.constant 0.000000e+00 : f32
    %237 = vector.broadcast %cst_73 : f32 to vector<4x128xf32>
    %238 = arith.select %4, %232, %237 : vector<4x128xi1>, vector<4x128xf32>
    %cst_74 = arith.constant 0.000000e+00 : f32
    %239 = vector.broadcast %cst_74 : f32 to vector<4x128xf32>
    %240 = arith.select %4, %239, %232 : vector<4x128xi1>, vector<4x128xf32>
    %241 = tpu.concatenate %238, %240 in 1 : vector<4x128xf32>, vector<4x128xf32> -> vector<4x256xf32>
    %c6_75 = arith.constant 6 : index
    %c0_76 = arith.constant 0 : index
    %c0_77 = arith.constant 0 : index
    %242 = vector.load %arg0[%c6_75, %c0_76, %c0_77] : memref<8x4x512xf32, #tpu.memory_space<vmem>>, vector<1x4x512xf32>
    %243 = vector.shape_cast %242 : vector<1x4x512xf32> to vector<4x512xf32>
    %c0_78 = arith.constant 0 : index
    %c0_79 = arith.constant 0 : index
    %244 = vector.load %arg1[%c0_78, %c0_79] : memref<256x512xbf16, #tpu.memory_space<vmem>>, vector<256x512xbf16>
    %245 = arith.truncf %241 : vector<4x256xf32> to vector<4x256xbf16>
    %cst_80 = arith.constant dense<0.000000e+00> : vector<4x512xf32>
    %246 = tpu.matmul %245, %244, %cst_80 {dimension_numbers = #tpu.dot_dimension_numbers<[1], [0], [0], [1], [0, 0, 1, 1], [], []>} : vector<4x256xbf16>, vector<256x512xbf16>, vector<4x512xf32> -> vector<4x512xf32>
    %247 = arith.addf %243, %246 : vector<4x512xf32>
    %248 = vector.extract_strided_slice %247 {offsets = [0, 0], sizes = [4, 128], strides = [1, 1]} : vector<4x512xf32> to vector<4x128xf32>
    %249 = arith.negf %248 : vector<4x128xf32>
    %250 = math.exp %249 : vector<4x128xf32>
    %cst_81 = arith.constant 1.000000e+00 : f32
    %251 = vector.broadcast %cst_81 : f32 to vector<4x128xf32>
    %252 = arith.addf %251, %250 : vector<4x128xf32>
    %253 = arith.divf %251, %252 : vector<4x128xf32>
    %254 = vector.extract_strided_slice %247 {offsets = [0, 128], sizes = [4, 128], strides = [1, 1]} : vector<4x512xf32> to vector<4x128xf32>
    %255 = arith.negf %254 : vector<4x128xf32>
    %256 = math.exp %255 : vector<4x128xf32>
    %cst_82 = arith.constant 1.000000e+00 : f32
    %257 = vector.broadcast %cst_82 : f32 to vector<4x128xf32>
    %258 = arith.addf %257, %256 : vector<4x128xf32>
    %259 = arith.divf %257, %258 : vector<4x128xf32>
    %260 = vector.extract_strided_slice %247 {offsets = [0, 256], sizes = [4, 128], strides = [1, 1]} : vector<4x512xf32> to vector<4x128xf32>
    %261 = math.tanh %260 : vector<4x128xf32>
    %262 = vector.extract_strided_slice %247 {offsets = [0, 384], sizes = [4, 128], strides = [1, 1]} : vector<4x512xf32> to vector<4x128xf32>
    %263 = arith.negf %262 : vector<4x128xf32>
    %264 = math.exp %263 : vector<4x128xf32>
    %cst_83 = arith.constant 1.000000e+00 : f32
    %265 = vector.broadcast %cst_83 : f32 to vector<4x128xf32>
    %266 = arith.addf %265, %264 : vector<4x128xf32>
    %267 = arith.divf %265, %266 : vector<4x128xf32>
    %268 = arith.mulf %259, %230 : vector<4x128xf32>
    %269 = arith.mulf %253, %261 : vector<4x128xf32>
    %270 = arith.addf %268, %269 : vector<4x128xf32>
    %271 = math.tanh %270 : vector<4x128xf32>
    %272 = arith.mulf %267, %271 : vector<4x128xf32>
    %273 = vector.extract_strided_slice %272 {offsets = [0, 0], sizes = [2, 128], strides = [1, 1]} : vector<4x128xf32> to vector<2x128xf32>
    %c12_84 = arith.constant 12 : index
    %c0_85 = arith.constant 0 : index
    %274 = vector.load %arg5[%c12_84, %c0_85] : memref<16x256xf32, #tpu.memory_space<vmem>>, vector<2x128xf32>
    tpu.vector_store %arg5[%c12_84, %c0_85], %273 {strides = array<i32>} : memref<16x256xf32, #tpu.memory_space<vmem>>, vector<2x128xf32>,
    %275 = vector.extract_strided_slice %272 {offsets = [2, 0], sizes = [2, 128], strides = [1, 1]} : vector<4x128xf32> to vector<2x128xf32>
    %c2_86 = arith.constant 2 : index
    %c128_87 = arith.constant 128 : index
    %276 = vector.load %arg5[%c2_86, %c128_87] : memref<16x256xf32, #tpu.memory_space<vmem>>, vector<2x128xf32>
    tpu.vector_store %arg5[%c2_86, %c128_87], %275 {strides = array<i32>} : memref<16x256xf32, #tpu.memory_space<vmem>>, vector<2x128xf32>,
    %cst_88 = arith.constant 0.000000e+00 : f32
    %277 = vector.broadcast %cst_88 : f32 to vector<4x128xf32>
    %278 = arith.select %4, %272, %277 : vector<4x128xi1>, vector<4x128xf32>
    %cst_89 = arith.constant 0.000000e+00 : f32
    %279 = vector.broadcast %cst_89 : f32 to vector<4x128xf32>
    %280 = arith.select %4, %279, %272 : vector<4x128xi1>, vector<4x128xf32>
    %281 = tpu.concatenate %278, %280 in 1 : vector<4x128xf32>, vector<4x128xf32> -> vector<4x256xf32>
    %c7 = arith.constant 7 : index
    %c0_90 = arith.constant 0 : index
    %c0_91 = arith.constant 0 : index
    %282 = vector.load %arg0[%c7, %c0_90, %c0_91] : memref<8x4x512xf32, #tpu.memory_space<vmem>>, vector<1x4x512xf32>
    %283 = vector.shape_cast %282 : vector<1x4x512xf32> to vector<4x512xf32>
    %c0_92 = arith.constant 0 : index
    %c0_93 = arith.constant 0 : index
    %284 = vector.load %arg1[%c0_92, %c0_93] : memref<256x512xbf16, #tpu.memory_space<vmem>>, vector<256x512xbf16>
    %285 = arith.truncf %281 : vector<4x256xf32> to vector<4x256xbf16>
    %cst_94 = arith.constant dense<0.000000e+00> : vector<4x512xf32>
    %286 = tpu.matmul %285, %284, %cst_94 {dimension_numbers = #tpu.dot_dimension_numbers<[1], [0], [0], [1], [0, 0, 1, 1], [], []>} : vector<4x256xbf16>, vector<256x512xbf16>, vector<4x512xf32> -> vector<4x512xf32>
    %287 = arith.addf %283, %286 : vector<4x512xf32>
    %288 = vector.extract_strided_slice %287 {offsets = [0, 0], sizes = [4, 128], strides = [1, 1]} : vector<4x512xf32> to vector<4x128xf32>
    %289 = arith.negf %288 : vector<4x128xf32>
    %290 = math.exp %289 : vector<4x128xf32>
    %cst_95 = arith.constant 1.000000e+00 : f32
    %291 = vector.broadcast %cst_95 : f32 to vector<4x128xf32>
    %292 = arith.addf %291, %290 : vector<4x128xf32>
    %293 = arith.divf %291, %292 : vector<4x128xf32>
    %294 = vector.extract_strided_slice %287 {offsets = [0, 128], sizes = [4, 128], strides = [1, 1]} : vector<4x512xf32> to vector<4x128xf32>
    %295 = arith.negf %294 : vector<4x128xf32>
    %296 = math.exp %295 : vector<4x128xf32>
    %cst_96 = arith.constant 1.000000e+00 : f32
    %297 = vector.broadcast %cst_96 : f32 to vector<4x128xf32>
    %298 = arith.addf %297, %296 : vector<4x128xf32>
    %299 = arith.divf %297, %298 : vector<4x128xf32>
    %300 = vector.extract_strided_slice %287 {offsets = [0, 256], sizes = [4, 128], strides = [1, 1]} : vector<4x512xf32> to vector<4x128xf32>
    %301 = math.tanh %300 : vector<4x128xf32>
    %302 = vector.extract_strided_slice %287 {offsets = [0, 384], sizes = [4, 128], strides = [1, 1]} : vector<4x512xf32> to vector<4x128xf32>
    %303 = arith.negf %302 : vector<4x128xf32>
    %304 = math.exp %303 : vector<4x128xf32>
    %cst_97 = arith.constant 1.000000e+00 : f32
    %305 = vector.broadcast %cst_97 : f32 to vector<4x128xf32>
    %306 = arith.addf %305, %304 : vector<4x128xf32>
    %307 = arith.divf %305, %306 : vector<4x128xf32>
    %308 = arith.mulf %299, %270 : vector<4x128xf32>
    %309 = arith.mulf %293, %301 : vector<4x128xf32>
    %310 = arith.addf %308, %309 : vector<4x128xf32>
    %311 = math.tanh %310 : vector<4x128xf32>
    %312 = arith.mulf %307, %311 : vector<4x128xf32>
    %313 = vector.extract_strided_slice %312 {offsets = [0, 0], sizes = [2, 128], strides = [1, 1]} : vector<4x128xf32> to vector<2x128xf32>
    %c14_98 = arith.constant 14 : index
    %c0_99 = arith.constant 0 : index
    %314 = vector.load %arg5[%c14_98, %c0_99] : memref<16x256xf32, #tpu.memory_space<vmem>>, vector<2x128xf32>
    tpu.vector_store %arg5[%c14_98, %c0_99], %313 {strides = array<i32>} : memref<16x256xf32, #tpu.memory_space<vmem>>, vector<2x128xf32>,
    %315 = vector.extract_strided_slice %312 {offsets = [2, 0], sizes = [2, 128], strides = [1, 1]} : vector<4x128xf32> to vector<2x128xf32>
    %c0_100 = arith.constant 0 : index
    %c128_101 = arith.constant 128 : index
    %316 = vector.load %arg5[%c0_100, %c128_101] : memref<16x256xf32, #tpu.memory_space<vmem>>, vector<2x128xf32>
    tpu.vector_store %arg5[%c0_100, %c128_101], %315 {strides = array<i32>} : memref<16x256xf32, #tpu.memory_space<vmem>>, vector<2x128xf32>,
    %c0_i32_102 = arith.constant 0 : i32
    %317 = tpu.memref_slice %arg7[%c0_i32_102] : memref<1x!tpu.dma_semaphore, #tpu.memory_space<semaphore_mem>> -> memref<1x!tpu.dma_semaphore, #tpu.memory_space<semaphore_mem>>
    %318 = tpu.memref_squeeze %317 : memref<1x!tpu.dma_semaphore, #tpu.memory_space<semaphore_mem>> -> memref<!tpu.dma_semaphore, #tpu.memory_space<semaphore_mem>>
    tpu.wait_dma2 semaphore(%318 : memref<!tpu.dma_semaphore, #tpu.memory_space<semaphore_mem>>) src(%arg3 : memref<896x512xbf16, #tpu.memory_space<any>>) dst(%arg6 : memref<896x512xbf16, #tpu.memory_space<vmem>>)
    %c0_103 = arith.constant 0 : index
    %c0_104 = arith.constant 0 : index
    %319 = vector.load %arg5[%c0_103, %c0_104] : memref<16x256xf32, #tpu.memory_space<vmem>>, vector<16x256xf32>
    %c0_105 = arith.constant 0 : index
    %c0_106 = arith.constant 0 : index
    %320 = vector.load %arg6[%c0_105, %c0_106] : memref<896x512xbf16, #tpu.memory_space<vmem>>, vector<256x512xbf16>
    %321 = arith.truncf %319 : vector<16x256xf32> to vector<16x256xbf16>
    %cst_107 = arith.constant dense<0.000000e+00> : vector<16x512xf32>
    %322 = tpu.matmul %321, %320, %cst_107 {dimension_numbers = #tpu.dot_dimension_numbers<[1], [0], [0], [1], [0, 0, 1, 1], [], []>} : vector<16x256xbf16>, vector<256x512xbf16>, vector<16x512xf32> -> vector<16x512xf32>
    %c0_108 = arith.constant 0 : index
    %c0_109 = arith.constant 0 : index
    %323 = vector.load %arg2[%c0_108, %c0_109] : memref<4x512xf32, #tpu.memory_space<vmem>>, vector<1x512xf32>
    %324 = vector.broadcast %323 : vector<1x512xf32> to vector<16x512xf32>
    %325 = arith.addf %322, %324 : vector<16x512xf32>
    %cst_110 = arith.constant 0.000000e+00 : f32
    %326 = vector.broadcast %cst_110 : f32 to vector<2x128xf32>
    %327 = vector.extract_strided_slice %325 {offsets = [0, 0], sizes = [2, 512], strides = [1, 1]} : vector<16x512xf32> to vector<2x512xf32>
    %328 = vector.extract_strided_slice %327 {offsets = [0, 0], sizes = [2, 128], strides = [1, 1]} : vector<2x512xf32> to vector<2x128xf32>
    %329 = arith.negf %328 : vector<2x128xf32>
    %330 = math.exp %329 : vector<2x128xf32>
    %cst_111 = arith.constant 1.000000e+00 : f32
    %331 = vector.broadcast %cst_111 : f32 to vector<2x128xf32>
    %332 = arith.addf %331, %330 : vector<2x128xf32>
    %333 = arith.divf %331, %332 : vector<2x128xf32>
    %334 = vector.extract_strided_slice %327 {offsets = [0, 128], sizes = [2, 128], strides = [1, 1]} : vector<2x512xf32> to vector<2x128xf32>
    %335 = arith.negf %334 : vector<2x128xf32>
    %336 = math.exp %335 : vector<2x128xf32>
    %cst_112 = arith.constant 1.000000e+00 : f32
    %337 = vector.broadcast %cst_112 : f32 to vector<2x128xf32>
    %338 = arith.addf %337, %336 : vector<2x128xf32>
    %339 = arith.divf %337, %338 : vector<2x128xf32>
    %340 = vector.extract_strided_slice %327 {offsets = [0, 256], sizes = [2, 128], strides = [1, 1]} : vector<2x512xf32> to vector<2x128xf32>
    %341 = math.tanh %340 : vector<2x128xf32>
    %342 = vector.extract_strided_slice %327 {offsets = [0, 384], sizes = [2, 128], strides = [1, 1]} : vector<2x512xf32> to vector<2x128xf32>
    %343 = arith.negf %342 : vector<2x128xf32>
    %344 = math.exp %343 : vector<2x128xf32>
    %cst_113 = arith.constant 1.000000e+00 : f32
    %345 = vector.broadcast %cst_113 : f32 to vector<2x128xf32>
    %346 = arith.addf %345, %344 : vector<2x128xf32>
    %347 = arith.divf %345, %346 : vector<2x128xf32>
    %348 = arith.mulf %339, %326 : vector<2x128xf32>
    %349 = arith.mulf %333, %341 : vector<2x128xf32>
    %350 = arith.addf %348, %349 : vector<2x128xf32>
    %351 = math.tanh %350 : vector<2x128xf32>
    %352 = arith.mulf %347, %351 : vector<2x128xf32>
    %353 = vector.extract_strided_slice %325 {offsets = [2, 0], sizes = [2, 512], strides = [1, 1]} : vector<16x512xf32> to vector<2x512xf32>
    %c512 = arith.constant 512 : index
    %c0_114 = arith.constant 0 : index
    %354 = vector.load %arg6[%c512, %c0_114] : memref<896x512xbf16, #tpu.memory_space<vmem>>, vector<128x512xbf16>
    %355 = arith.truncf %352 : vector<2x128xf32> to vector<2x128xbf16>
    %cst_115 = arith.constant dense<0.000000e+00> : vector<2x512xf32>
    %356 = tpu.matmul %355, %354, %cst_115 {dimension_numbers = #tpu.dot_dimension_numbers<[1], [0], [0], [1], [0, 0, 1, 1], [], []>} : vector<2x128xbf16>, vector<128x512xbf16>, vector<2x512xf32> -> vector<2x512xf32>
    %357 = arith.addf %353, %356 : vector<2x512xf32>
    %358 = vector.extract_strided_slice %357 {offsets = [0, 0], sizes = [2, 128], strides = [1, 1]} : vector<2x512xf32> to vector<2x128xf32>
    %359 = arith.negf %358 : vector<2x128xf32>
    %360 = math.exp %359 : vector<2x128xf32>
    %cst_116 = arith.constant 1.000000e+00 : f32
    %361 = vector.broadcast %cst_116 : f32 to vector<2x128xf32>
    %362 = arith.addf %361, %360 : vector<2x128xf32>
    %363 = arith.divf %361, %362 : vector<2x128xf32>
    %364 = vector.extract_strided_slice %357 {offsets = [0, 128], sizes = [2, 128], strides = [1, 1]} : vector<2x512xf32> to vector<2x128xf32>
    %365 = arith.negf %364 : vector<2x128xf32>
    %366 = math.exp %365 : vector<2x128xf32>
    %cst_117 = arith.constant 1.000000e+00 : f32
    %367 = vector.broadcast %cst_117 : f32 to vector<2x128xf32>
    %368 = arith.addf %367, %366 : vector<2x128xf32>
    %369 = arith.divf %367, %368 : vector<2x128xf32>
    %370 = vector.extract_strided_slice %357 {offsets = [0, 256], sizes = [2, 128], strides = [1, 1]} : vector<2x512xf32> to vector<2x128xf32>
    %371 = math.tanh %370 : vector<2x128xf32>
    %372 = vector.extract_strided_slice %357 {offsets = [0, 384], sizes = [2, 128], strides = [1, 1]} : vector<2x512xf32> to vector<2x128xf32>
    %373 = arith.negf %372 : vector<2x128xf32>
    %374 = math.exp %373 : vector<2x128xf32>
    %cst_118 = arith.constant 1.000000e+00 : f32
    %375 = vector.broadcast %cst_118 : f32 to vector<2x128xf32>
    %376 = arith.addf %375, %374 : vector<2x128xf32>
    %377 = arith.divf %375, %376 : vector<2x128xf32>
    %378 = arith.mulf %369, %350 : vector<2x128xf32>
    %379 = arith.mulf %363, %371 : vector<2x128xf32>
    %380 = arith.addf %378, %379 : vector<2x128xf32>
    %381 = math.tanh %380 : vector<2x128xf32>
    %382 = arith.mulf %377, %381 : vector<2x128xf32>
    %383 = vector.extract_strided_slice %325 {offsets = [4, 0], sizes = [2, 512], strides = [1, 1]} : vector<16x512xf32> to vector<2x512xf32>
    %c512_119 = arith.constant 512 : index
    %c0_120 = arith.constant 0 : index
    %384 = vector.load %arg6[%c512_119, %c0_120] : memref<896x512xbf16, #tpu.memory_space<vmem>>, vector<128x512xbf16>
    %385 = arith.truncf %382 : vector<2x128xf32> to vector<2x128xbf16>
    %cst_121 = arith.constant dense<0.000000e+00> : vector<2x512xf32>
    %386 = tpu.matmul %385, %384, %cst_121 {dimension_numbers = #tpu.dot_dimension_numbers<[1], [0], [0], [1], [0, 0, 1, 1], [], []>} : vector<2x128xbf16>, vector<128x512xbf16>, vector<2x512xf32> -> vector<2x512xf32>
    %387 = arith.addf %383, %386 : vector<2x512xf32>
    %388 = vector.extract_strided_slice %387 {offsets = [0, 0], sizes = [2, 128], strides = [1, 1]} : vector<2x512xf32> to vector<2x128xf32>
    %389 = arith.negf %388 : vector<2x128xf32>
    %390 = math.exp %389 : vector<2x128xf32>
    %cst_122 = arith.constant 1.000000e+00 : f32
    %391 = vector.broadcast %cst_122 : f32 to vector<2x128xf32>
    %392 = arith.addf %391, %390 : vector<2x128xf32>
    %393 = arith.divf %391, %392 : vector<2x128xf32>
    %394 = vector.extract_strided_slice %387 {offsets = [0, 128], sizes = [2, 128], strides = [1, 1]} : vector<2x512xf32> to vector<2x128xf32>
    %395 = arith.negf %394 : vector<2x128xf32>
    %396 = math.exp %395 : vector<2x128xf32>
    %cst_123 = arith.constant 1.000000e+00 : f32
    %397 = vector.broadcast %cst_123 : f32 to vector<2x128xf32>
    %398 = arith.addf %397, %396 : vector<2x128xf32>
    %399 = arith.divf %397, %398 : vector<2x128xf32>
    %400 = vector.extract_strided_slice %387 {offsets = [0, 256], sizes = [2, 128], strides = [1, 1]} : vector<2x512xf32> to vector<2x128xf32>
    %401 = math.tanh %400 : vector<2x128xf32>
    %402 = vector.extract_strided_slice %387 {offsets = [0, 384], sizes = [2, 128], strides = [1, 1]} : vector<2x512xf32> to vector<2x128xf32>
    %403 = arith.negf %402 : vector<2x128xf32>
    %404 = math.exp %403 : vector<2x128xf32>
    %cst_124 = arith.constant 1.000000e+00 : f32
    %405 = vector.broadcast %cst_124 : f32 to vector<2x128xf32>
    %406 = arith.addf %405, %404 : vector<2x128xf32>
    %407 = arith.divf %405, %406 : vector<2x128xf32>
    %408 = arith.mulf %399, %380 : vector<2x128xf32>
    %409 = arith.mulf %393, %401 : vector<2x128xf32>
    %410 = arith.addf %408, %409 : vector<2x128xf32>
    %411 = math.tanh %410 : vector<2x128xf32>
    %412 = arith.mulf %407, %411 : vector<2x128xf32>
    %413 = vector.extract_strided_slice %325 {offsets = [6, 0], sizes = [2, 512], strides = [1, 1]} : vector<16x512xf32> to vector<2x512xf32>
    %c512_125 = arith.constant 512 : index
    %c0_126 = arith.constant 0 : index
    %414 = vector.load %arg6[%c512_125, %c0_126] : memref<896x512xbf16, #tpu.memory_space<vmem>>, vector<128x512xbf16>
    %415 = arith.truncf %412 : vector<2x128xf32> to vector<2x128xbf16>
    %cst_127 = arith.constant dense<0.000000e+00> : vector<2x512xf32>
    %416 = tpu.matmul %415, %414, %cst_127 {dimension_numbers = #tpu.dot_dimension_numbers<[1], [0], [0], [1], [0, 0, 1, 1], [], []>} : vector<2x128xbf16>, vector<128x512xbf16>, vector<2x512xf32> -> vector<2x512xf32>
    %417 = arith.addf %413, %416 : vector<2x512xf32>
    %418 = vector.extract_strided_slice %417 {offsets = [0, 0], sizes = [2, 128], strides = [1, 1]} : vector<2x512xf32> to vector<2x128xf32>
    %419 = arith.negf %418 : vector<2x128xf32>
    %420 = math.exp %419 : vector<2x128xf32>
    %cst_128 = arith.constant 1.000000e+00 : f32
    %421 = vector.broadcast %cst_128 : f32 to vector<2x128xf32>
    %422 = arith.addf %421, %420 : vector<2x128xf32>
    %423 = arith.divf %421, %422 : vector<2x128xf32>
    %424 = vector.extract_strided_slice %417 {offsets = [0, 128], sizes = [2, 128], strides = [1, 1]} : vector<2x512xf32> to vector<2x128xf32>
    %425 = arith.negf %424 : vector<2x128xf32>
    %426 = math.exp %425 : vector<2x128xf32>
    %cst_129 = arith.constant 1.000000e+00 : f32
    %427 = vector.broadcast %cst_129 : f32 to vector<2x128xf32>
    %428 = arith.addf %427, %426 : vector<2x128xf32>
    %429 = arith.divf %427, %428 : vector<2x128xf32>
    %430 = vector.extract_strided_slice %417 {offsets = [0, 256], sizes = [2, 128], strides = [1, 1]} : vector<2x512xf32> to vector<2x128xf32>
    %431 = math.tanh %430 : vector<2x128xf32>
    %432 = vector.extract_strided_slice %417 {offsets = [0, 384], sizes = [2, 128], strides = [1, 1]} : vector<2x512xf32> to vector<2x128xf32>
    %433 = arith.negf %432 : vector<2x128xf32>
    %434 = math.exp %433 : vector<2x128xf32>
    %cst_130 = arith.constant 1.000000e+00 : f32
    %435 = vector.broadcast %cst_130 : f32 to vector<2x128xf32>
    %436 = arith.addf %435, %434 : vector<2x128xf32>
    %437 = arith.divf %435, %436 : vector<2x128xf32>
    %438 = arith.mulf %429, %410 : vector<2x128xf32>
    %439 = arith.mulf %423, %431 : vector<2x128xf32>
    %440 = arith.addf %438, %439 : vector<2x128xf32>
    %441 = math.tanh %440 : vector<2x128xf32>
    %442 = arith.mulf %437, %441 : vector<2x128xf32>
    %443 = vector.extract_strided_slice %325 {offsets = [8, 0], sizes = [2, 512], strides = [1, 1]} : vector<16x512xf32> to vector<2x512xf32>
    %c512_131 = arith.constant 512 : index
    %c0_132 = arith.constant 0 : index
    %444 = vector.load %arg6[%c512_131, %c0_132] : memref<896x512xbf16, #tpu.memory_space<vmem>>, vector<128x512xbf16>
    %445 = arith.truncf %442 : vector<2x128xf32> to vector<2x128xbf16>
    %cst_133 = arith.constant dense<0.000000e+00> : vector<2x512xf32>
    %446 = tpu.matmul %445, %444, %cst_133 {dimension_numbers = #tpu.dot_dimension_numbers<[1], [0], [0], [1], [0, 0, 1, 1], [], []>} : vector<2x128xbf16>, vector<128x512xbf16>, vector<2x512xf32> -> vector<2x512xf32>
    %447 = arith.addf %443, %446 : vector<2x512xf32>
    %448 = vector.extract_strided_slice %447 {offsets = [0, 0], sizes = [2, 128], strides = [1, 1]} : vector<2x512xf32> to vector<2x128xf32>
    %449 = arith.negf %448 : vector<2x128xf32>
    %450 = math.exp %449 : vector<2x128xf32>
    %cst_134 = arith.constant 1.000000e+00 : f32
    %451 = vector.broadcast %cst_134 : f32 to vector<2x128xf32>
    %452 = arith.addf %451, %450 : vector<2x128xf32>
    %453 = arith.divf %451, %452 : vector<2x128xf32>
    %454 = vector.extract_strided_slice %447 {offsets = [0, 128], sizes = [2, 128], strides = [1, 1]} : vector<2x512xf32> to vector<2x128xf32>
    %455 = arith.negf %454 : vector<2x128xf32>
    %456 = math.exp %455 : vector<2x128xf32>
    %cst_135 = arith.constant 1.000000e+00 : f32
    %457 = vector.broadcast %cst_135 : f32 to vector<2x128xf32>
    %458 = arith.addf %457, %456 : vector<2x128xf32>
    %459 = arith.divf %457, %458 : vector<2x128xf32>
    %460 = vector.extract_strided_slice %447 {offsets = [0, 256], sizes = [2, 128], strides = [1, 1]} : vector<2x512xf32> to vector<2x128xf32>
    %461 = math.tanh %460 : vector<2x128xf32>
    %462 = vector.extract_strided_slice %447 {offsets = [0, 384], sizes = [2, 128], strides = [1, 1]} : vector<2x512xf32> to vector<2x128xf32>
    %463 = arith.negf %462 : vector<2x128xf32>
    %464 = math.exp %463 : vector<2x128xf32>
    %cst_136 = arith.constant 1.000000e+00 : f32
    %465 = vector.broadcast %cst_136 : f32 to vector<2x128xf32>
    %466 = arith.addf %465, %464 : vector<2x128xf32>
    %467 = arith.divf %465, %466 : vector<2x128xf32>
    %468 = arith.mulf %459, %440 : vector<2x128xf32>
    %469 = arith.mulf %453, %461 : vector<2x128xf32>
    %470 = arith.addf %468, %469 : vector<2x128xf32>
    %471 = math.tanh %470 : vector<2x128xf32>
    %472 = arith.mulf %467, %471 : vector<2x128xf32>
    %473 = vector.extract_strided_slice %325 {offsets = [10, 0], sizes = [2, 512], strides = [1, 1]} : vector<16x512xf32> to vector<2x512xf32>
    %c512_137 = arith.constant 512 : index
    %c0_138 = arith.constant 0 : index
    %474 = vector.load %arg6[%c512_137, %c0_138] : memref<896x512xbf16, #tpu.memory_space<vmem>>, vector<128x512xbf16>
    %475 = arith.truncf %472 : vector<2x128xf32> to vector<2x128xbf16>
    %cst_139 = arith.constant dense<0.000000e+00> : vector<2x512xf32>
    %476 = tpu.matmul %475, %474, %cst_139 {dimension_numbers = #tpu.dot_dimension_numbers<[1], [0], [0], [1], [0, 0, 1, 1], [], []>} : vector<2x128xbf16>, vector<128x512xbf16>, vector<2x512xf32> -> vector<2x512xf32>
    %477 = arith.addf %473, %476 : vector<2x512xf32>
    %478 = vector.extract_strided_slice %477 {offsets = [0, 0], sizes = [2, 128], strides = [1, 1]} : vector<2x512xf32> to vector<2x128xf32>
    %479 = arith.negf %478 : vector<2x128xf32>
    %480 = math.exp %479 : vector<2x128xf32>
    %cst_140 = arith.constant 1.000000e+00 : f32
    %481 = vector.broadcast %cst_140 : f32 to vector<2x128xf32>
    %482 = arith.addf %481, %480 : vector<2x128xf32>
    %483 = arith.divf %481, %482 : vector<2x128xf32>
    %484 = vector.extract_strided_slice %477 {offsets = [0, 128], sizes = [2, 128], strides = [1, 1]} : vector<2x512xf32> to vector<2x128xf32>
    %485 = arith.negf %484 : vector<2x128xf32>
    %486 = math.exp %485 : vector<2x128xf32>
    %cst_141 = arith.constant 1.000000e+00 : f32
    %487 = vector.broadcast %cst_141 : f32 to vector<2x128xf32>
    %488 = arith.addf %487, %486 : vector<2x128xf32>
    %489 = arith.divf %487, %488 : vector<2x128xf32>
    %490 = vector.extract_strided_slice %477 {offsets = [0, 256], sizes = [2, 128], strides = [1, 1]} : vector<2x512xf32> to vector<2x128xf32>
    %491 = math.tanh %490 : vector<2x128xf32>
    %492 = vector.extract_strided_slice %477 {offsets = [0, 384], sizes = [2, 128], strides = [1, 1]} : vector<2x512xf32> to vector<2x128xf32>
    %493 = arith.negf %492 : vector<2x128xf32>
    %494 = math.exp %493 : vector<2x128xf32>
    %cst_142 = arith.constant 1.000000e+00 : f32
    %495 = vector.broadcast %cst_142 : f32 to vector<2x128xf32>
    %496 = arith.addf %495, %494 : vector<2x128xf32>
    %497 = arith.divf %495, %496 : vector<2x128xf32>
    %498 = arith.mulf %489, %470 : vector<2x128xf32>
    %499 = arith.mulf %483, %491 : vector<2x128xf32>
    %500 = arith.addf %498, %499 : vector<2x128xf32>
    %501 = math.tanh %500 : vector<2x128xf32>
    %502 = arith.mulf %497, %501 : vector<2x128xf32>
    %503 = vector.extract_strided_slice %325 {offsets = [12, 0], sizes = [2, 512], strides = [1, 1]} : vector<16x512xf32> to vector<2x512xf32>
    %c512_143 = arith.constant 512 : index
    %c0_144 = arith.constant 0 : index
    %504 = vector.load %arg6[%c512_143, %c0_144] : memref<896x512xbf16, #tpu.memory_space<vmem>>, vector<128x512xbf16>
    %505 = arith.truncf %502 : vector<2x128xf32> to vector<2x128xbf16>
    %cst_145 = arith.constant dense<0.000000e+00> : vector<2x512xf32>
    %506 = tpu.matmul %505, %504, %cst_145 {dimension_numbers = #tpu.dot_dimension_numbers<[1], [0], [0], [1], [0, 0, 1, 1], [], []>} : vector<2x128xbf16>, vector<128x512xbf16>, vector<2x512xf32> -> vector<2x512xf32>
    %507 = arith.addf %503, %506 : vector<2x512xf32>
    %508 = vector.extract_strided_slice %507 {offsets = [0, 0], sizes = [2, 128], strides = [1, 1]} : vector<2x512xf32> to vector<2x128xf32>
    %509 = arith.negf %508 : vector<2x128xf32>
    %510 = math.exp %509 : vector<2x128xf32>
    %cst_146 = arith.constant 1.000000e+00 : f32
    %511 = vector.broadcast %cst_146 : f32 to vector<2x128xf32>
    %512 = arith.addf %511, %510 : vector<2x128xf32>
    %513 = arith.divf %511, %512 : vector<2x128xf32>
    %514 = vector.extract_strided_slice %507 {offsets = [0, 128], sizes = [2, 128], strides = [1, 1]} : vector<2x512xf32> to vector<2x128xf32>
    %515 = arith.negf %514 : vector<2x128xf32>
    %516 = math.exp %515 : vector<2x128xf32>
    %cst_147 = arith.constant 1.000000e+00 : f32
    %517 = vector.broadcast %cst_147 : f32 to vector<2x128xf32>
    %518 = arith.addf %517, %516 : vector<2x128xf32>
    %519 = arith.divf %517, %518 : vector<2x128xf32>
    %520 = vector.extract_strided_slice %507 {offsets = [0, 256], sizes = [2, 128], strides = [1, 1]} : vector<2x512xf32> to vector<2x128xf32>
    %521 = math.tanh %520 : vector<2x128xf32>
    %522 = vector.extract_strided_slice %507 {offsets = [0, 384], sizes = [2, 128], strides = [1, 1]} : vector<2x512xf32> to vector<2x128xf32>
    %523 = arith.negf %522 : vector<2x128xf32>
    %524 = math.exp %523 : vector<2x128xf32>
    %cst_148 = arith.constant 1.000000e+00 : f32
    %525 = vector.broadcast %cst_148 : f32 to vector<2x128xf32>
    %526 = arith.addf %525, %524 : vector<2x128xf32>
    %527 = arith.divf %525, %526 : vector<2x128xf32>
    %528 = arith.mulf %519, %500 : vector<2x128xf32>
    %529 = arith.mulf %513, %521 : vector<2x128xf32>
    %530 = arith.addf %528, %529 : vector<2x128xf32>
    %531 = math.tanh %530 : vector<2x128xf32>
    %532 = arith.mulf %527, %531 : vector<2x128xf32>
    %533 = vector.extract_strided_slice %325 {offsets = [14, 0], sizes = [2, 512], strides = [1, 1]} : vector<16x512xf32> to vector<2x512xf32>
    %c512_149 = arith.constant 512 : index
    %c0_150 = arith.constant 0 : index
    %534 = vector.load %arg6[%c512_149, %c0_150] : memref<896x512xbf16, #tpu.memory_space<vmem>>, vector<128x512xbf16>
    %535 = arith.truncf %532 : vector<2x128xf32> to vector<2x128xbf16>
    %cst_151 = arith.constant dense<0.000000e+00> : vector<2x512xf32>
    %536 = tpu.matmul %535, %534, %cst_151 {dimension_numbers = #tpu.dot_dimension_numbers<[1], [0], [0], [1], [0, 0, 1, 1], [], []>} : vector<2x128xbf16>, vector<128x512xbf16>, vector<2x512xf32> -> vector<2x512xf32>
    %537 = arith.addf %533, %536 : vector<2x512xf32>
    %538 = vector.extract_strided_slice %537 {offsets = [0, 0], sizes = [2, 128], strides = [1, 1]} : vector<2x512xf32> to vector<2x128xf32>
    %539 = arith.negf %538 : vector<2x128xf32>
    %540 = math.exp %539 : vector<2x128xf32>
    %cst_152 = arith.constant 1.000000e+00 : f32
    %541 = vector.broadcast %cst_152 : f32 to vector<2x128xf32>
    %542 = arith.addf %541, %540 : vector<2x128xf32>
    %543 = arith.divf %541, %542 : vector<2x128xf32>
    %544 = vector.extract_strided_slice %537 {offsets = [0, 128], sizes = [2, 128], strides = [1, 1]} : vector<2x512xf32> to vector<2x128xf32>
    %545 = arith.negf %544 : vector<2x128xf32>
    %546 = math.exp %545 : vector<2x128xf32>
    %cst_153 = arith.constant 1.000000e+00 : f32
    %547 = vector.broadcast %cst_153 : f32 to vector<2x128xf32>
    %548 = arith.addf %547, %546 : vector<2x128xf32>
    %549 = arith.divf %547, %548 : vector<2x128xf32>
    %550 = vector.extract_strided_slice %537 {offsets = [0, 256], sizes = [2, 128], strides = [1, 1]} : vector<2x512xf32> to vector<2x128xf32>
    %551 = math.tanh %550 : vector<2x128xf32>
    %552 = vector.extract_strided_slice %537 {offsets = [0, 384], sizes = [2, 128], strides = [1, 1]} : vector<2x512xf32> to vector<2x128xf32>
    %553 = arith.negf %552 : vector<2x128xf32>
    %554 = math.exp %553 : vector<2x128xf32>
    %cst_154 = arith.constant 1.000000e+00 : f32
    %555 = vector.broadcast %cst_154 : f32 to vector<2x128xf32>
    %556 = arith.addf %555, %554 : vector<2x128xf32>
    %557 = arith.divf %555, %556 : vector<2x128xf32>
    %558 = arith.mulf %549, %530 : vector<2x128xf32>
    %559 = arith.mulf %543, %551 : vector<2x128xf32>
    %560 = arith.addf %558, %559 : vector<2x128xf32>
    %561 = math.tanh %560 : vector<2x128xf32>
    %562 = arith.mulf %557, %561 : vector<2x128xf32>
    %563 = vector.extract_strided_slice %319 {offsets = [14, 0], sizes = [2, 256], strides = [1, 1]} : vector<16x256xf32> to vector<2x256xf32>
    %c256 = arith.constant 256 : index
    %c0_155 = arith.constant 0 : index
    %564 = vector.load %arg6[%c256, %c0_155] : memref<896x512xbf16, #tpu.memory_space<vmem>>, vector<256x512xbf16>
    %565 = arith.truncf %563 : vector<2x256xf32> to vector<2x256xbf16>
    %cst_156 = arith.constant dense<0.000000e+00> : vector<2x512xf32>
    %566 = tpu.matmul %565, %564, %cst_156 {dimension_numbers = #tpu.dot_dimension_numbers<[1], [0], [0], [1], [0, 0, 1, 1], [], []>} : vector<2x256xbf16>, vector<256x512xbf16>, vector<2x512xf32> -> vector<2x512xf32>
    %c1_157 = arith.constant 1 : index
    %c0_158 = arith.constant 0 : index
    %567 = vector.load %arg2[%c1_157, %c0_158] : memref<4x512xf32, #tpu.memory_space<vmem>>, vector<1x512xf32>
    %568 = vector.broadcast %567 : vector<1x512xf32> to vector<2x512xf32>
    %569 = arith.addf %566, %568 : vector<2x512xf32>
    %cst_159 = arith.constant 0.000000e+00 : f32
    %570 = vector.broadcast %cst_159 : f32 to vector<2x128xf32>
    %571 = vector.extract_strided_slice %569 {offsets = [0, 0], sizes = [2, 128], strides = [1, 1]} : vector<2x512xf32> to vector<2x128xf32>
    %572 = arith.negf %571 : vector<2x128xf32>
    %573 = math.exp %572 : vector<2x128xf32>
    %cst_160 = arith.constant 1.000000e+00 : f32
    %574 = vector.broadcast %cst_160 : f32 to vector<2x128xf32>
    %575 = arith.addf %574, %573 : vector<2x128xf32>
    %576 = arith.divf %574, %575 : vector<2x128xf32>
    %577 = vector.extract_strided_slice %569 {offsets = [0, 128], sizes = [2, 128], strides = [1, 1]} : vector<2x512xf32> to vector<2x128xf32>
    %578 = arith.negf %577 : vector<2x128xf32>
    %579 = math.exp %578 : vector<2x128xf32>
    %cst_161 = arith.constant 1.000000e+00 : f32
    %580 = vector.broadcast %cst_161 : f32 to vector<2x128xf32>
    %581 = arith.addf %580, %579 : vector<2x128xf32>
    %582 = arith.divf %580, %581 : vector<2x128xf32>
    %583 = vector.extract_strided_slice %569 {offsets = [0, 256], sizes = [2, 128], strides = [1, 1]} : vector<2x512xf32> to vector<2x128xf32>
    %584 = math.tanh %583 : vector<2x128xf32>
    %585 = vector.extract_strided_slice %569 {offsets = [0, 384], sizes = [2, 128], strides = [1, 1]} : vector<2x512xf32> to vector<2x128xf32>
    %586 = arith.negf %585 : vector<2x128xf32>
    %587 = math.exp %586 : vector<2x128xf32>
    %cst_162 = arith.constant 1.000000e+00 : f32
    %588 = vector.broadcast %cst_162 : f32 to vector<2x128xf32>
    %589 = arith.addf %588, %587 : vector<2x128xf32>
    %590 = arith.divf %588, %589 : vector<2x128xf32>
    %591 = arith.mulf %582, %570 : vector<2x128xf32>
    %592 = arith.mulf %576, %584 : vector<2x128xf32>
    %593 = arith.addf %591, %592 : vector<2x128xf32>
    %594 = math.tanh %593 : vector<2x128xf32>
    %595 = arith.mulf %590, %594 : vector<2x128xf32>
    %596 = tpu.concatenate %562, %595 in 1 : vector<2x128xf32>, vector<2x128xf32> -> vector<2x256xf32>
    %c640 = arith.constant 640 : index
    %c0_163 = arith.constant 0 : index
    %597 = vector.load %arg6[%c640, %c0_163] : memref<896x512xbf16, #tpu.memory_space<vmem>>, vector<256x128xbf16>
    %598 = arith.truncf %596 : vector<2x256xf32> to vector<2x256xbf16>
    %cst_164 = arith.constant dense<0.000000e+00> : vector<2x128xf32>
    %599 = tpu.matmul %598, %597, %cst_164 {dimension_numbers = #tpu.dot_dimension_numbers<[1], [0], [0], [1], [0, 0, 1, 1], [], []>} : vector<2x256xbf16>, vector<256x128xbf16>, vector<2x128xf32> -> vector<2x128xf32>
    %c2_165 = arith.constant 2 : index
    %c0_166 = arith.constant 0 : index
    %600 = vector.load %arg2[%c2_165, %c0_166] : memref<4x512xf32, #tpu.memory_space<vmem>>, vector<1x128xf32>
    %601 = vector.broadcast %600 : vector<1x128xf32> to vector<2x128xf32>
    %602 = arith.addf %599, %601 : vector<2x128xf32>
    %cst_167 = arith.constant 0.000000e+00 : f32
    %603 = vector.broadcast %cst_167 : f32 to vector<2x128xf32>
    %604 = arith.maximumf %602, %603 : vector<2x128xf32>
    %c640_168 = arith.constant 640 : index
    %c128_169 = arith.constant 128 : index
    %605 = vector.load %arg6[%c640_168, %c128_169] : memref<896x512xbf16, #tpu.memory_space<vmem>>, vector<128x128xbf16>
    %606 = arith.truncf %604 : vector<2x128xf32> to vector<2x128xbf16>
    %cst_170 = arith.constant dense<0.000000e+00> : vector<2x128xf32>
    %607 = tpu.matmul %606, %605, %cst_170 {dimension_numbers = #tpu.dot_dimension_numbers<[1], [0], [0], [1], [0, 0, 1, 1], [], []>} : vector<2x128xbf16>, vector<128x128xbf16>, vector<2x128xf32> -> vector<2x128xf32>
    %c3_171 = arith.constant 3 : index
    %c0_172 = arith.constant 0 : index
    %608 = vector.load %arg2[%c3_171, %c0_172] : memref<4x512xf32, #tpu.memory_space<vmem>>, vector<1x128xf32>
    %609 = vector.broadcast %608 : vector<1x128xf32> to vector<2x128xf32>
    %610 = arith.addf %607, %609 : vector<2x128xf32>
    %c0_173 = arith.constant 0 : index
    %c0_174 = arith.constant 0 : index
    %611 = vector.load %arg4[%c0_173, %c0_174] : memref<2x128xf32, #tpu.memory_space<vmem>>, vector<2x128xf32>
    tpu.vector_store %arg4[%c0_173, %c0_174], %610 {strides = array<i32>} : memref<2x128xf32, #tpu.memory_space<vmem>>, vector<2x128xf32>,
    return
  }
}

</mosaic_0001>

<llo_original>
// kernel: classifier_forward.1
$region0: #{classifier_forward.1}
  #allocation0 [shape = 'u32[]', space=smem, size = 0x4, offset = 0x4, fixed_abs, tag = 'smem constant byte address 0x4 - core index']
  #allocation1 [shape = 'u32[72,128]{1,0:T(1,128)}', space=vmem, size = 0x9000, scoped, tag = 'internal scratch']
  #allocation2 [shape = 'f32[16,256]{1,0:T(8,128)}', space=vmem, size = 0x4000, scoped, tag = 'scratch operand']
  #allocation3 [shape = 'bf16[896,512]{1,0:T(8,128)(2,1)}', space=vmem, size = 0xe0000, scoped, tag = 'scratch operand']
  #allocation4 [shape = 's32[1]{0}', space=sflag, size = 0x4, scoped, tag = 'scratch operand']
  #allocation9 [shape = 's32[]', space=sflag, size = 0x4, offset = 0, fixed_abs, tag = 'sflag constant byte address 0x0 - dummy sync flag']
  %s0 = inlined_call_operand.vmem [shape: f32[8,4,512], index: 0, kind: input, shape index: {}]
  %s1 = inlined_call_operand.hbm [shape: bf16[256,512], index: 1, kind: input, shape index: {}]
  %s2 = inlined_call_operand.vmem [shape: f32[4,512], index: 2, kind: input, shape index: {}]
  %s3 = inlined_call_operand.vmem [shape: bf16[896,512], index: 3, kind: input, shape index: {}]
  %s4 = inlined_call_operand.hbm [shape: f32[2,128], index: 4, kind: output, shape index: {}]
  %s5 = sld [smem:[#allocation0]]
  $region45: #{classifier_forward.1} parent=0
    _
  %s7 = ssub.s32 1, %s5
  %s8 = scalar_select 0, %s7, %s5
  $region1: #{classifier_forward.1} parent=0
    #allocation5 [shape = 'u8[262144]{0}', space=vmem, size = 0x40000, scoped, tag = 'input window, operand 1, single buffered']
    #allocation6 [shape = 's32[1]{0}', space=sflag, size = 0x4, scoped, tag = 'scoped memory for classifier_forward.1']
    #allocation7 [shape = 's32[1]{0}', space=sflag, size = 0x4, scoped, tag = 'scoped memory for classifier_forward.1']
    #allocation8 [shape = 'u8[1024]{0}', space=vmem, size = 0x400, scoped, tag = 'output window, operand 0, single buffered']
    %9 = vsyncpa [#allocation6], 0
    %10 = vsyncpa [#allocation7], 0
    // Predicated region
    $region2: #{classifier_forward.1} parent=1 // pred_check
      _
    $region3: #{classifier_forward.1} parent=1 // pred_check_branch
      %12 = sbr.rel (0) target = $region5
    $region4: #{classifier_forward.1} parent=1 // pred_region
      _
    $region5: #{classifier_forward.1} parent=1 // pred_fallthru
      _
    // Predicated region
    $region6: #{classifier_forward.1} parent=1 // pred_check
      _
    $region7: #{classifier_forward.1} parent=1 // pred_check_branch
      %14 = sbr.rel (0) target = $region9
    $region8: #{classifier_forward.1} parent=1 // pred_region
      %16 = vsyncadd [#allocation6], 0
      %s17 = sshll.u32 %s1, 4
      %s18 = int_to_ptr.hbm [resolvable:$true] %s17
      %s19 = sshll.u32 [#allocation5], 4
      %s20 = int_to_ptr.vmem [resolvable:$true] %s19
      %25 = dma.hbm_to_vmem [thread:$0]  %s18, 8192, %s20, [#allocation6], 256, 256, 16
    $region9: #{classifier_forward.1} parent=1 // pred_fallthru
      _
    // Predicated region
    $region10: #{classifier_forward.1} parent=1 // pred_check
      _
    $region11: #{classifier_forward.1} parent=1 // pred_check_branch
      %27 = sbr.rel (0) target = $region13
    $region12: #{classifier_forward.1} parent=1 // pred_region
      _
    $region13: #{classifier_forward.1} parent=1 // pred_fallthru
      _
    // Predicated region
    $region14: #{classifier_forward.1} parent=1 // pred_check
      _
    $region15: #{classifier_forward.1} parent=1 // pred_check_branch
      %29 = sbr.rel (0) target = $region17
    $region16: #{classifier_forward.1} parent=1 // pred_region
      %31 = dma.done [#allocation6], 8192
    $region17: #{classifier_forward.1} parent=1 // pred_fallthru
      _
    // Predicated region
    $region18: #{classifier_forward.1} parent=1 // pred_check
      _
    $region19: #{classifier_forward.1} parent=1 // pred_check_branch
      %33 = sbr.rel (0) target = $region21
    $region20: #{classifier_forward.1} parent=1 // pred_region
      loop: start=0, step=1, limit=1
      $region22: #{classifier_forward.1} parent=20 // loop_pre_header
        _
      $region23: #{classifier_forward.1} parent=20 // loop_header
        %s35 = sphi 0, %s39
        %p36 = scmp.ge.s32.totalorder %s35, 1
        %s40 = sphi %s3, %s3
        %s41 = sphi [#allocation3], [#allocation3]
      $region24: #{classifier_forward.1} parent=20 // loop_header_branch
        %38 = sbr.rel (%p36) target = $region28
      $region25: #{classifier_forward.1} parent=20 // loop_body
        %v42 = vld [vmem:[%s40] sm:$0xff]
        %43 = vst [vmem:[%s41] sm:$0xff] %v42
        %v44 = vld [vmem:[%s40 + $0x8] sm:$0xff]
        %45 = vst [vmem:[%s41 + $0x8] sm:$0xff] %v44
        %v46 = vld [vmem:[%s40 + $0x10] sm:$0xff]
        %47 = vst [vmem:[%s41 + $0x10] sm:$0xff] %v46
        %v48 = vld [vmem:[%s40 + $0x18] sm:$0xff]
        %49 = vst [vmem:[%s41 + $0x18] sm:$0xff] %v48
        %v50 = vld [vmem:[%s40 + $0x20] sm:$0xff]
        %51 = vst [vmem:[%s41 + $0x20] sm:$0xff] %v50
        %v52 = vld [vmem:[%s40 + $0x28] sm:$0xff]
        %53 = vst [vmem:[%s41 + $0x28] sm:$0xff] %v52
        %v54 = vld [vmem:[%s40 + $0x30] sm:$0xff]
        %55 = vst [vmem:[%s41 + $0x30] sm:$0xff] %v54
        %v56 = vld [vmem:[%s40 + $0x38] sm:$0xff]
        %57 = vst [vmem:[%s41 + $0x38] sm:$0xff] %v56
        %v58 = vld [vmem:[%s40 + $0x40] sm:$0xff]
        %59 = vst [vmem:[%s41 + $0x40] sm:$0xff] %v58
        %v60 = vld [vmem:[%s40 + $0x48] sm:$0xff]
        %61 = vst [vmem:[%s41 + $0x48] sm:$0xff] %v60
        %v62 = vld [vmem:[%s40 + $0x50] sm:$0xff]
        %63 = vst [vmem:[%s41 + $0x50] sm:$0xff] %v62
        %v64 = vld [vmem:[%s40 + $0x58] sm:$0xff]
        %65 = vst [vmem:[%s41 + $0x58] sm:$0xff] %v64
        %v66 = vld [vmem:[%s40 + $0x60] sm:$0xff]
        %67 = vst [vmem:[%s41 + $0x60] sm:$0xff] %v66
        %v68 = vld [vmem:[%s40 + $0x68] sm:$0xff]
        %69 = vst [vmem:[%s41 + $0x68] sm:$0xff] %v68
        %v70 = vld [vmem:[%s40 + $0x70] sm:$0xff]
        %71 = vst [vmem:[%s41 + $0x70] sm:$0xff] %v70
        %v72 = vld [vmem:[%s40 + $0x78] sm:$0xff]
        %73 = vst [vmem:[%s41 + $0x78] sm:$0xff] %v72
        %v74 = vld [vmem:[%s40 + $0x80] sm:$0xff]
        %75 = vst [vmem:[%s41 + $0x80] sm:$0xff] %v74
        %v76 = vld [vmem:[%s40 + $0x88] sm:$0xff]
        %77 = vst [vmem:[%s41 + $0x88] sm:$0xff] %v76
        %v78 = vld [vmem:[%s40 + $0x90] sm:$0xff]
        %79 = vst [vmem:[%s41 + $0x90] sm:$0xff] %v78
        %v80 = vld [vmem:[%s40 + $0x98] sm:$0xff]
        %81 = vst [vmem:[%s41 + $0x98] sm:$0xff] %v80
        %v82 = vld [vmem:[%s40 + $0xa0] sm:$0xff]
        %83 = vst [vmem:[%s41 + $0xa0] sm:$0xff] %v82
        %v84 = vld [vmem:[%s40 + $0xa8] sm:$0xff]
        %85 = vst [vmem:[%s41 + $0xa8] sm:$0xff] %v84
        %v86 = vld [vmem:[%s40 + $0xb0] sm:$0xff]
        %87 = vst [vmem:[%s41 + $0xb0] sm:$0xff] %v86
        %v88 = vld [vmem:[%s40 + $0xb8] sm:$0xff]
        %89 = vst [vmem:[%s41 + $0xb8] sm:$0xff] %v88
        %v90 = vld [vmem:[%s40 + $0xc0] sm:$0xff]
        %91 = vst [vmem:[%s41 + $0xc0] sm:$0xff] %v90
        %v92 = vld [vmem:[%s40 + $0xc8] sm:$0xff]
        %93 = vst [vmem:[%s41 + $0xc8] sm:$0xff] %v92
        %v94 = vld [vmem:[%s40 + $0xd0] sm:$0xff]
        %95 = vst [vmem:[%s41 + $0xd0] sm:$0xff] %v94
        %v96 = vld [vmem:[%s40 + $0xd8] sm:$0xff]
        %97 = vst [vmem:[%s41 + $0xd8] sm:$0xff] %v96
        %v98 = vld [vmem:[%s40 + $0xe0] sm:$0xff]
        %99 = vst [vmem:[%s41 + $0xe0] sm:$0xff] %v98
        %v100 = vld [vmem:[%s40 + $0xe8] sm:$0xff]
        %101 = vst [vmem:[%s41 + $0xe8] sm:$0xff] %v100
        %v102 = vld [vmem:[%s40 + $0xf0] sm:$0xff]
        %103 = vst [vmem:[%s41 + $0xf0] sm:$0xff] %v102
        %v104 = vld [vmem:[%s40 + $0xf8] sm:$0xff]
        %105 = vst [vmem:[%s41 + $0xf8] sm:$0xff] %v104
        %v106 = vld [vmem:[%s40 + $0x100] sm:$0xff]
        %107 = vst [vmem:[%s41 + $0x100] sm:$0xff] %v106
        %v108 = vld [vmem:[%s40 + $0x108] sm:$0xff]
        %109 = vst [vmem:[%s41 + $0x108] sm:$0xff] %v108
        %v110 = vld [vmem:[%s40 + $0x110] sm:$0xff]
        %111 = vst [vmem:[%s41 + $0x110] sm:$0xff] %v110
        %v112 = vld [vmem:[%s40 + $0x118] sm:$0xff]
        %113 = vst [vmem:[%s41 + $0x118] sm:$0xff] %v112
        %v114 = vld [vmem:[%s40 + $0x120] sm:$0xff]
        %115 = vst [vmem:[%s41 + $0x120] sm:$0xff] %v114
        %v116 = vld [vmem:[%s40 + $0x128] sm:$0xff]
        %117 = vst [vmem:[%s41 + $0x128] sm:$0xff] %v116
        %v118 = vld [vmem:[%s40 + $0x130] sm:$0xff]
        %119 = vst [vmem:[%s41 + $0x130] sm:$0xff] %v118
        %v120 = vld [vmem:[%s40 + $0x138] sm:$0xff]
        %121 = vst [vmem:[%s41 + $0x138] sm:$0xff] %v120
        %v122 = vld [vmem:[%s40 + $0x140] sm:$0xff]
        %123 = vst [vmem:[%s41 + $0x140] sm:$0xff] %v122
        %v124 = vld [vmem:[%s40 + $0x148] sm:$0xff]
        %125 = vst [vmem:[%s41 + $0x148] sm:$0xff] %v124
        %v126 = vld [vmem:[%s40 + $0x150] sm:$0xff]
        %127 = vst [vmem:[%s41 + $0x150] sm:$0xff] %v126
        %v128 = vld [vmem:[%s40 + $0x158] sm:$0xff]
        %129 = vst [vmem:[%s41 + $0x158] sm:$0xff] %v128
        %v130 = vld [vmem:[%s40 + $0x160] sm:$0xff]
        %131 = vst [vmem:[%s41 + $0x160] sm:$0xff] %v130
        %v132 = vld [vmem:[%s40 + $0x168] sm:$0xff]
        %133 = vst [vmem:[%s41 + $0x168] sm:$0xff] %v132
        %v134 = vld [vmem:[%s40 + $0x170] sm:$0xff]
        %135 = vst [vmem:[%s41 + $0x170] sm:$0xff] %v134
        %v136 = vld [vmem:[%s40 + $0x178] sm:$0xff]
        %137 = vst [vmem:[%s41 + $0x178] sm:$0xff] %v136
        %v138 = vld [vmem:[%s40 + $0x180] sm:$0xff]
        %139 = vst [vmem:[%s41 + $0x180] sm:$0xff] %v138
        %v140 = vld [vmem:[%s40 + $0x188] sm:$0xff]
        %141 = vst [vmem:[%s41 + $0x188] sm:$0xff] %v140
        %v142 = vld [vmem:[%s40 + $0x190] sm:$0xff]
        %143 = vst [vmem:[%s41 + $0x190] sm:$0xff] %v142
        %v144 = vld [vmem:[%s40 + $0x198] sm:$0xff]
        %145 = vst [vmem:[%s41 + $0x198] sm:$0xff] %v144
        %v146 = vld [vmem:[%s40 + $0x1a0] sm:$0xff]
        %147 = vst [vmem:[%s41 + $0x1a0] sm:$0xff] %v146
        %v148 = vld [vmem:[%s40 + $0x1a8] sm:$0xff]
        %149 = vst [vmem:[%s41 + $0x1a8] sm:$0xff] %v148
        %v150 = vld [vmem:[%s40 + $0x1b0] sm:$0xff]
        %151 = vst [vmem:[%s41 + $0x1b0] sm:$0xff] %v150
        %v152 = vld [vmem:[%s40 + $0x1b8] sm:$0xff]
        %153 = vst [vmem:[%s41 + $0x1b8] sm:$0xff] %v152
        %v154 = vld [vmem:[%s40 + $0x1c0] sm:$0xff]
        %155 = vst [vmem:[%s41 + $0x1c0] sm:$0xff] %v154
        %v156 = vld [vmem:[%s40 + $0x1c8] sm:$0xff]
        %157 = vst [vmem:[%s41 + $0x1c8] sm:$0xff] %v156
        %v158 = vld [vmem:[%s40 + $0x1d0] sm:$0xff]
        %159 = vst [vmem:[%s41 + $0x1d0] sm:$0xff] %v158
        %v160 = vld [vmem:[%s40 + $0x1d8] sm:$0xff]
        %161 = vst [vmem:[%s41 + $0x1d8] sm:$0xff] %v160
        %v162 = vld [vmem:[%s40 + $0x1e0] sm:$0xff]
        %163 = vst [vmem:[%s41 + $0x1e0] sm:$0xff] %v162
        %v164 = vld [vmem:[%s40 + $0x1e8] sm:$0xff]
        %165 = vst [vmem:[%s41 + $0x1e8] sm:$0xff] %v164
        %v166 = vld [vmem:[%s40 + $0x1f0] sm:$0xff]
        %167 = vst [vmem:[%s41 + $0x1f0] sm:$0xff] %v166
        %v168 = vld [vmem:[%s40 + $0x1f8] sm:$0xff]
        %169 = vst [vmem:[%s41 + $0x1f8] sm:$0xff] %v168
        %v170 = vld [vmem:[%s40 + $0x200] sm:$0xff]
        %171 = vst [vmem:[%s41 + $0x200] sm:$0xff] %v170
        %v172 = vld [vmem:[%s40 + $0x208] sm:$0xff]
        %173 = vst [vmem:[%s41 + $0x208] sm:$0xff] %v172
        %v174 = vld [vmem:[%s40 + $0x210] sm:$0xff]
        %175 = vst [vmem:[%s41 + $0x210] sm:$0xff] %v174
        %v176 = vld [vmem:[%s40 + $0x218] sm:$0xff]
        %177 = vst [vmem:[%s41 + $0x218] sm:$0xff] %v176
        %v178 = vld [vmem:[%s40 + $0x220] sm:$0xff]
        %179 = vst [vmem:[%s41 + $0x220] sm:$0xff] %v178
        %v180 = vld [vmem:[%s40 + $0x228] sm:$0xff]
        %181 = vst [vmem:[%s41 + $0x228] sm:$0xff] %v180
        %v182 = vld [vmem:[%s40 + $0x230] sm:$0xff]
        %183 = vst [vmem:[%s41 + $0x230] sm:$0xff] %v182
        %v184 = vld [vmem:[%s40 + $0x238] sm:$0xff]
        %185 = vst [vmem:[%s41 + $0x238] sm:$0xff] %v184
        %v186 = vld [vmem:[%s40 + $0x240] sm:$0xff]
        %187 = vst [vmem:[%s41 + $0x240] sm:$0xff] %v186
        %v188 = vld [vmem:[%s40 + $0x248] sm:$0xff]
        %189 = vst [vmem:[%s41 + $0x248] sm:$0xff] %v188
        %v190 = vld [vmem:[%s40 + $0x250] sm:$0xff]
        %191 = vst [vmem:[%s41 + $0x250] sm:$0xff] %v190
        %v192 = vld [vmem:[%s40 + $0x258] sm:$0xff]
        %193 = vst [vmem:[%s41 + $0x258] sm:$0xff] %v192
        %v194 = vld [vmem:[%s40 + $0x260] sm:$0xff]
        %195 = vst [vmem:[%s41 + $0x260] sm:$0xff] %v194
        %v196 = vld [vmem:[%s40 + $0x268] sm:$0xff]
        %197 = vst [vmem:[%s41 + $0x268] sm:$0xff] %v196
        %v198 = vld [vmem:[%s40 + $0x270] sm:$0xff]
        %199 = vst [vmem:[%s41 + $0x270] sm:$0xff] %v198
        %v200 = vld [vmem:[%s40 + $0x278] sm:$0xff]
        %201 = vst [vmem:[%s41 + $0x278] sm:$0xff] %v200
        %v202 = vld [vmem:[%s40 + $0x280] sm:$0xff]
        %203 = vst [vmem:[%s41 + $0x280] sm:$0xff] %v202
        %v204 = vld [vmem:[%s40 + $0x288] sm:$0xff]
        %205 = vst [vmem:[%s41 + $0x288] sm:$0xff] %v204
        %v206 = vld [vmem:[%s40 + $0x290] sm:$0xff]
        %207 = vst [vmem:[%s41 + $0x290] sm:$0xff] %v206
        %v208 = vld [vmem:[%s40 + $0x298] sm:$0xff]
        %209 = vst [vmem:[%s41 + $0x298] sm:$0xff] %v208
        %v210 = vld [vmem:[%s40 + $0x2a0] sm:$0xff]
        %211 = vst [vmem:[%s41 + $0x2a0] sm:$0xff] %v210
        %v212 = vld [vmem:[%s40 + $0x2a8] sm:$0xff]
        %213 = vst [vmem:[%s41 + $0x2a8] sm:$0xff] %v212
        %v214 = vld [vmem:[%s40 + $0x2b0] sm:$0xff]
        %215 = vst [vmem:[%s41 + $0x2b0] sm:$0xff] %v214
        %v216 = vld [vmem:[%s40 + $0x2b8] sm:$0xff]
        %217 = vst [vmem:[%s41 + $0x2b8] sm:$0xff] %v216
        %v218 = vld [vmem:[%s40 + $0x2c0] sm:$0xff]
        %219 = vst [vmem:[%s41 + $0x2c0] sm:$0xff] %v218
        %v220 = vld [vmem:[%s40 + $0x2c8] sm:$0xff]
        %221 = vst [vmem:[%s41 + $0x2c8] sm:$0xff] %v220
        %v222 = vld [vmem:[%s40 + $0x2d0] sm:$0xff]
        %223 = vst [vmem:[%s41 + $0x2d0] sm:$0xff] %v222
        %v224 = vld [vmem:[%s40 + $0x2d8] sm:$0xff]
        %225 = vst [vmem:[%s41 + $0x2d8] sm:$0xff] %v224
        %v226 = vld [vmem:[%s40 + $0x2e0] sm:$0xff]
        %227 = vst [vmem:[%s41 + $0x2e0] sm:$0xff] %v226
        %v228 = vld [vmem:[%s40 + $0x2e8] sm:$0xff]
        %229 = vst [vmem:[%s41 + $0x2e8] sm:$0xff] %v228
        %v230 = vld [vmem:[%s40 + $0x2f0] sm:$0xff]
        %231 = vst [vmem:[%s41 + $0x2f0] sm:$0xff] %v230
        %v232 = vld [vmem:[%s40 + $0x2f8] sm:$0xff]
        %233 = vst [vmem:[%s41 + $0x2f8] sm:$0xff] %v232
        %v234 = vld [vmem:[%s40 + $0x300] sm:$0xff]
        %235 = vst [vmem:[%s41 + $0x300] sm:$0xff] %v234
        %v236 = vld [vmem:[%s40 + $0x308] sm:$0xff]
        %237 = vst [vmem:[%s41 + $0x308] sm:$0xff] %v236
        %v238 = vld [vmem:[%s40 + $0x310] sm:$0xff]
        %239 = vst [vmem:[%s41 + $0x310] sm:$0xff] %v238
        %v240 = vld [vmem:[%s40 + $0x318] sm:$0xff]
        %241 = vst [vmem:[%s41 + $0x318] sm:$0xff] %v240
        %v242 = vld [vmem:[%s40 + $0x320] sm:$0xff]
        %243 = vst [vmem:[%s41 + $0x320] sm:$0xff] %v242
        %v244 = vld [vmem:[%s40 + $0x328] sm:$0xff]
        %245 = vst [vmem:[%s41 + $0x328] sm:$0xff] %v244
        %v246 = vld [vmem:[%s40 + $0x330] sm:$0xff]
        %247 = vst [vmem:[%s41 + $0x330] sm:$0xff] %v246
        %v248 = vld [vmem:[%s40 + $0x338] sm:$0xff]
        %249 = vst [vmem:[%s41 + $0x338] sm:$0xff] %v248
        %v250 = vld [vmem:[%s40 + $0x340] sm:$0xff]
        %251 = vst [vmem:[%s41 + $0x340] sm:$0xff] %v250
        %v252 = vld [vmem:[%s40 + $0x348] sm:$0xff]
        %253 = vst [vmem:[%s41 + $0x348] sm:$0xff] %v252
        %v254 = vld [vmem:[%s40 + $0x350] sm:$0xff]
        %255 = vst [vmem:[%s41 + $0x350] sm:$0xff] %v254
        %v256 = vld [vmem:[%s40 + $0x358] sm:$0xff]
        %257 = vst [vmem:[%s41 + $0x358] sm:$0xff] %v256
        %v258 = vld [vmem:[%s40 + $0x360] sm:$0xff]
        %259 = vst [vmem:[%s41 + $0x360] sm:$0xff] %v258
        %v260 = vld [vmem:[%s40 + $0x368] sm:$0xff]
        %261 = vst [vmem:[%s41 + $0x368] sm:$0xff] %v260
        %v262 = vld [vmem:[%s40 + $0x370] sm:$0xff]
        %263 = vst [vmem:[%s41 + $0x370] sm:$0xff] %v262
        %v264 = vld [vmem:[%s40 + $0x378] sm:$0xff]
        %265 = vst [vmem:[%s41 + $0x378] sm:$0xff] %v264
        %v266 = vld [vmem:[%s40 + $0x380] sm:$0xff]
        %267 = vst [vmem:[%s41 + $0x380] sm:$0xff] %v266
        %v268 = vld [vmem:[%s40 + $0x388] sm:$0xff]
        %269 = vst [vmem:[%s41 + $0x388] sm:$0xff] %v268
        %v270 = vld [vmem:[%s40 + $0x390] sm:$0xff]
        %271 = vst [vmem:[%s41 + $0x390] sm:$0xff] %v270
        %v272 = vld [vmem:[%s40 + $0x398] sm:$0xff]
        %273 = vst [vmem:[%s41 + $0x398] sm:$0xff] %v272
        %v274 = vld [vmem:[%s40 + $0x3a0] sm:$0xff]
        %275 = vst [vmem:[%s41 + $0x3a0] sm:$0xff] %v274
        %v276 = vld [vmem:[%s40 + $0x3a8] sm:$0xff]
        %277 = vst [vmem:[%s41 + $0x3a8] sm:$0xff] %v276
        %v278 = vld [vmem:[%s40 + $0x3b0] sm:$0xff]
        %279 = vst [vmem:[%s41 + $0x3b0] sm:$0xff] %v278
        %v280 = vld [vmem:[%s40 + $0x3b8] sm:$0xff]
        %281 = vst [vmem:[%s41 + $0x3b8] sm:$0xff] %v280
        %v282 = vld [vmem:[%s40 + $0x3c0] sm:$0xff]
        %283 = vst [vmem:[%s41 + $0x3c0] sm:$0xff] %v282
        %v284 = vld [vmem:[%s40 + $0x3c8] sm:$0xff]
        %285 = vst [vmem:[%s41 + $0x3c8] sm:$0xff] %v284
        %v286 = vld [vmem:[%s40 + $0x3d0] sm:$0xff]
        %287 = vst [vmem:[%s41 + $0x3d0] sm:$0xff] %v286
        %v288 = vld [vmem:[%s40 + $0x3d8] sm:$0xff]
        %289 = vst [vmem:[%s41 + $0x3d8] sm:$0xff] %v288
        %v290 = vld [vmem:[%s40 + $0x3e0] sm:$0xff]
        %291 = vst [vmem:[%s41 + $0x3e0] sm:$0xff] %v290
        %v292 = vld [vmem:[%s40 + $0x3e8] sm:$0xff]
        %293 = vst [vmem:[%s41 + $0x3e8] sm:$0xff] %v292
        %v294 = vld [vmem:[%s40 + $0x3f0] sm:$0xff]
        %295 = vst [vmem:[%s41 + $0x3f0] sm:$0xff] %v294
        %v296 = vld [vmem:[%s40 + $0x3f8] sm:$0xff]
        %297 = vst [vmem:[%s41 + $0x3f8] sm:$0xff] %v296
        %v298 = vld [vmem:[%s40 + $0x400] sm:$0xff]
        %299 = vst [vmem:[%s41 + $0x400] sm:$0xff] %v298
        %v300 = vld [vmem:[%s40 + $0x408] sm:$0xff]
        %301 = vst [vmem:[%s41 + $0x408] sm:$0xff] %v300
        %v302 = vld [vmem:[%s40 + $0x410] sm:$0xff]
        %303 = vst [vmem:[%s41 + $0x410] sm:$0xff] %v302
        %v304 = vld [vmem:[%s40 + $0x418] sm:$0xff]
        %305 = vst [vmem:[%s41 + $0x418] sm:$0xff] %v304
        %v306 = vld [vmem:[%s40 + $0x420] sm:$0xff]
        %307 = vst [vmem:[%s41 + $0x420] sm:$0xff] %v306
        %v308 = vld [vmem:[%s40 + $0x428] sm:$0xff]
        %309 = vst [vmem:[%s41 + $0x428] sm:$0xff] %v308
        %v310 = vld [vmem:[%s40 + $0x430] sm:$0xff]
        %311 = vst [vmem:[%s41 + $0x430] sm:$0xff] %v310
        %v312 = vld [vmem:[%s40 + $0x438] sm:$0xff]
        %313 = vst [vmem:[%s41 + $0x438] sm:$0xff] %v312
        %v314 = vld [vmem:[%s40 + $0x440] sm:$0xff]
        %315 = vst [vmem:[%s41 + $0x440] sm:$0xff] %v314
        %v316 = vld [vmem:[%s40 + $0x448] sm:$0xff]
        %317 = vst [vmem:[%s41 + $0x448] sm:$0xff] %v316
        %v318 = vld [vmem:[%s40 + $0x450] sm:$0xff]
        %319 = vst [vmem:[%s41 + $0x450] sm:$0xff] %v318
        %v320 = vld [vmem:[%s40 + $0x458] sm:$0xff]
        %321 = vst [vmem:[%s41 + $0x458] sm:$0xff] %v320
        %v322 = vld [vmem:[%s40 + $0x460] sm:$0xff]
        %323 = vst [vmem:[%s41 + $0x460] sm:$0xff] %v322
        %v324 = vld [vmem:[%s40 + $0x468] sm:$0xff]
        %325 = vst [vmem:[%s41 + $0x468] sm:$0xff] %v324
        %v326 = vld [vmem:[%s40 + $0x470] sm:$0xff]
        %327 = vst [vmem:[%s41 + $0x470] sm:$0xff] %v326
        %v328 = vld [vmem:[%s40 + $0x478] sm:$0xff]
        %329 = vst [vmem:[%s41 + $0x478] sm:$0xff] %v328
        %v330 = vld [vmem:[%s40 + $0x480] sm:$0xff]
        %331 = vst [vmem:[%s41 + $0x480] sm:$0xff] %v330
        %v332 = vld [vmem:[%s40 + $0x488] sm:$0xff]
        %333 = vst [vmem:[%s41 + $0x488] sm:$0xff] %v332
        %v334 = vld [vmem:[%s40 + $0x490] sm:$0xff]
        %335 = vst [vmem:[%s41 + $0x490] sm:$0xff] %v334
        %v336 = vld [vmem:[%s40 + $0x498] sm:$0xff]
        %337 = vst [vmem:[%s41 + $0x498] sm:$0xff] %v336
        %v338 = vld [vmem:[%s40 + $0x4a0] sm:$0xff]
        %339 = vst [vmem:[%s41 + $0x4a0] sm:$0xff] %v338
        %v340 = vld [vmem:[%s40 + $0x4a8] sm:$0xff]
        %341 = vst [vmem:[%s41 + $0x4a8] sm:$0xff] %v340
        %v342 = vld [vmem:[%s40 + $0x4b0] sm:$0xff]
        %343 = vst [vmem:[%s41 + $0x4b0] sm:$0xff] %v342
        %v344 = vld [vmem:[%s40 + $0x4b8] sm:$0xff]
        %345 = vst [vmem:[%s41 + $0x4b8] sm:$0xff] %v344
        %v346 = vld [vmem:[%s40 + $0x4c0] sm:$0xff]
        %347 = vst [vmem:[%s41 + $0x4c0] sm:$0xff] %v346
        %v348 = vld [vmem:[%s40 + $0x4c8] sm:$0xff]
        %349 = vst [vmem:[%s41 + $0x4c8] sm:$0xff] %v348
        %v350 = vld [vmem:[%s40 + $0x4d0] sm:$0xff]
        %351 = vst [vmem:[%s41 + $0x4d0] sm:$0xff] %v350
        %v352 = vld [vmem:[%s40 + $0x4d8] sm:$0xff]
        %353 = vst [vmem:[%s41 + $0x4d8] sm:$0xff] %v352
        %v354 = vld [vmem:[%s40 + $0x4e0] sm:$0xff]
        %355 = vst [vmem:[%s41 + $0x4e0] sm:$0xff] %v354
        %v356 = vld [vmem:[%s40 + $0x4e8] sm:$0xff]
        %357 = vst [vmem:[%s41 + $0x4e8] sm:$0xff] %v356
        %v358 = vld [vmem:[%s40 + $0x4f0] sm:$0xff]
        %359 = vst [vmem:[%s41 + $0x4f0] sm:$0xff] %v358
        %v360 = vld [vmem:[%s40 + $0x4f8] sm:$0xff]
        %361 = vst [vmem:[%s41 + $0x4f8] sm:$0xff] %v360
        %v362 = vld [vmem:[%s40 + $0x500] sm:$0xff]
        %363 = vst [vmem:[%s41 + $0x500] sm:$0xff] %v362
        %v364 = vld [vmem:[%s40 + $0x508] sm:$0xff]
        %365 = vst [vmem:[%s41 + $0x508] sm:$0xff] %v364
        %v366 = vld [vmem:[%s40 + $0x510] sm:$0xff]
        %367 = vst [vmem:[%s41 + $0x510] sm:$0xff] %v366
        %v368 = vld [vmem:[%s40 + $0x518] sm:$0xff]
        %369 = vst [vmem:[%s41 + $0x518] sm:$0xff] %v368
        %v370 = vld [vmem:[%s40 + $0x520] sm:$0xff]
        %371 = vst [vmem:[%s41 + $0x520] sm:$0xff] %v370
        %v372 = vld [vmem:[%s40 + $0x528] sm:$0xff]
        %373 = vst [vmem:[%s41 + $0x528] sm:$0xff] %v372
        %v374 = vld [vmem:[%s40 + $0x530] sm:$0xff]
        %375 = vst [vmem:[%s41 + $0x530] sm:$0xff] %v374
        %v376 = vld [vmem:[%s40 + $0x538] sm:$0xff]
        %377 = vst [vmem:[%s41 + $0x538] sm:$0xff] %v376
        %v378 = vld [vmem:[%s40 + $0x540] sm:$0xff]
        %379 = vst [vmem:[%s41 + $0x540] sm:$0xff] %v378
        %v380 = vld [vmem:[%s40 + $0x548] sm:$0xff]
        %381 = vst [vmem:[%s41 + $0x548] sm:$0xff] %v380
        %v382 = vld [vmem:[%s40 + $0x550] sm:$0xff]
        %383 = vst [vmem:[%s41 + $0x550] sm:$0xff] %v382
        %v384 = vld [vmem:[%s40 + $0x558] sm:$0xff]
        %385 = vst [vmem:[%s41 + $0x558] sm:$0xff] %v384
        %v386 = vld [vmem:[%s40 + $0x560] sm:$0xff]
        %387 = vst [vmem:[%s41 + $0x560] sm:$0xff] %v386
        %v388 = vld [vmem:[%s40 + $0x568] sm:$0xff]
        %389 = vst [vmem:[%s41 + $0x568] sm:$0xff] %v388
        %v390 = vld [vmem:[%s40 + $0x570] sm:$0xff]
        %391 = vst [vmem:[%s41 + $0x570] sm:$0xff] %v390
        %v392 = vld [vmem:[%s40 + $0x578] sm:$0xff]
        %393 = vst [vmem:[%s41 + $0x578] sm:$0xff] %v392
        %v394 = vld [vmem:[%s40 + $0x580] sm:$0xff]
        %395 = vst [vmem:[%s41 + $0x580] sm:$0xff] %v394
        %v396 = vld [vmem:[%s40 + $0x588] sm:$0xff]
        %397 = vst [vmem:[%s41 + $0x588] sm:$0xff] %v396
        %v398 = vld [vmem:[%s40 + $0x590] sm:$0xff]
        %399 = vst [vmem:[%s41 + $0x590] sm:$0xff] %v398
        %v400 = vld [vmem:[%s40 + $0x598] sm:$0xff]
        %401 = vst [vmem:[%s41 + $0x598] sm:$0xff] %v400
        %v402 = vld [vmem:[%s40 + $0x5a0] sm:$0xff]
        %403 = vst [vmem:[%s41 + $0x5a0] sm:$0xff] %v402
        %v404 = vld [vmem:[%s40 + $0x5a8] sm:$0xff]
        %405 = vst [vmem:[%s41 + $0x5a8] sm:$0xff] %v404
        %v406 = vld [vmem:[%s40 + $0x5b0] sm:$0xff]
        %407 = vst [vmem:[%s41 + $0x5b0] sm:$0xff] %v406
        %v408 = vld [vmem:[%s40 + $0x5b8] sm:$0xff]
        %409 = vst [vmem:[%s41 + $0x5b8] sm:$0xff] %v408
        %v410 = vld [vmem:[%s40 + $0x5c0] sm:$0xff]
        %411 = vst [vmem:[%s41 + $0x5c0] sm:$0xff] %v410
        %v412 = vld [vmem:[%s40 + $0x5c8] sm:$0xff]
        %413 = vst [vmem:[%s41 + $0x5c8] sm:$0xff] %v412
        %v414 = vld [vmem:[%s40 + $0x5d0] sm:$0xff]
        %415 = vst [vmem:[%s41 + $0x5d0] sm:$0xff] %v414
        %v416 = vld [vmem:[%s40 + $0x5d8] sm:$0xff]
        %417 = vst [vmem:[%s41 + $0x5d8] sm:$0xff] %v416
        %v418 = vld [vmem:[%s40 + $0x5e0] sm:$0xff]
        %419 = vst [vmem:[%s41 + $0x5e0] sm:$0xff] %v418
        %v420 = vld [vmem:[%s40 + $0x5e8] sm:$0xff]
        %421 = vst [vmem:[%s41 + $0x5e8] sm:$0xff] %v420
        %v422 = vld [vmem:[%s40 + $0x5f0] sm:$0xff]
        %423 = vst [vmem:[%s41 + $0x5f0] sm:$0xff] %v422
        %v424 = vld [vmem:[%s40 + $0x5f8] sm:$0xff]
        %425 = vst [vmem:[%s41 + $0x5f8] sm:$0xff] %v424
        %v426 = vld [vmem:[%s40 + $0x600] sm:$0xff]
        %427 = vst [vmem:[%s41 + $0x600] sm:$0xff] %v426
        %v428 = vld [vmem:[%s40 + $0x608] sm:$0xff]
        %429 = vst [vmem:[%s41 + $0x608] sm:$0xff] %v428
        %v430 = vld [vmem:[%s40 + $0x610] sm:$0xff]
        %431 = vst [vmem:[%s41 + $0x610] sm:$0xff] %v430
        %v432 = vld [vmem:[%s40 + $0x618] sm:$0xff]
        %433 = vst [vmem:[%s41 + $0x618] sm:$0xff] %v432
        %v434 = vld [vmem:[%s40 + $0x620] sm:$0xff]
        %435 = vst [vmem:[%s41 + $0x620] sm:$0xff] %v434
        %v436 = vld [vmem:[%s40 + $0x628] sm:$0xff]
        %437 = vst [vmem:[%s41 + $0x628] sm:$0xff] %v436
        %v438 = vld [vmem:[%s40 + $0x630] sm:$0xff]
        %439 = vst [vmem:[%s41 + $0x630] sm:$0xff] %v438
        %v440 = vld [vmem:[%s40 + $0x638] sm:$0xff]
        %441 = vst [vmem:[%s41 + $0x638] sm:$0xff] %v440
        %v442 = vld [vmem:[%s40 + $0x640] sm:$0xff]
        %443 = vst [vmem:[%s41 + $0x640] sm:$0xff] %v442
        %v444 = vld [vmem:[%s40 + $0x648] sm:$0xff]
        %445 = vst [vmem:[%s41 + $0x648] sm:$0xff] %v444
        %v446 = vld [vmem:[%s40 + $0x650] sm:$0xff]
        %447 = vst [vmem:[%s41 + $0x650] sm:$0xff] %v446
        %v448 = vld [vmem:[%s40 + $0x658] sm:$0xff]
        %449 = vst [vmem:[%s41 + $0x658] sm:$0xff] %v448
        %v450 = vld [vmem:[%s40 + $0x660] sm:$0xff]
        %451 = vst [vmem:[%s41 + $0x660] sm:$0xff] %v450
        %v452 = vld [vmem:[%s40 + $0x668] sm:$0xff]
        %453 = vst [vmem:[%s41 + $0x668] sm:$0xff] %v452
        %v454 = vld [vmem:[%s40 + $0x670] sm:$0xff]
        %455 = vst [vmem:[%s41 + $0x670] sm:$0xff] %v454
        %v456 = vld [vmem:[%s40 + $0x678] sm:$0xff]
        %457 = vst [vmem:[%s41 + $0x678] sm:$0xff] %v456
        %v458 = vld [vmem:[%s40 + $0x680] sm:$0xff]
        %459 = vst [vmem:[%s41 + $0x680] sm:$0xff] %v458
        %v460 = vld [vmem:[%s40 + $0x688] sm:$0xff]
        %461 = vst [vmem:[%s41 + $0x688] sm:$0xff] %v460
        %v462 = vld [vmem:[%s40 + $0x690] sm:$0xff]
        %463 = vst [vmem:[%s41 + $0x690] sm:$0xff] %v462
        %v464 = vld [vmem:[%s40 + $0x698] sm:$0xff]
        %465 = vst [vmem:[%s41 + $0x698] sm:$0xff] %v464
        %v466 = vld [vmem:[%s40 + $0x6a0] sm:$0xff]
        %467 = vst [vmem:[%s41 + $0x6a0] sm:$0xff] %v466
        %v468 = vld [vmem:[%s40 + $0x6a8] sm:$0xff]
        %469 = vst [vmem:[%s41 + $0x6a8] sm:$0xff] %v468
        %v470 = vld [vmem:[%s40 + $0x6b0] sm:$0xff]
        %471 = vst [vmem:[%s41 + $0x6b0] sm:$0xff] %v470
        %v472 = vld [vmem:[%s40 + $0x6b8] sm:$0xff]
        %473 = vst [vmem:[%s41 + $0x6b8] sm:$0xff] %v472
        %v474 = vld [vmem:[%s40 + $0x6c0] sm:$0xff]
        %475 = vst [vmem:[%s41 + $0x6c0] sm:$0xff] %v474
        %v476 = vld [vmem:[%s40 + $0x6c8] sm:$0xff]
        %477 = vst [vmem:[%s41 + $0x6c8] sm:$0xff] %v476
        %v478 = vld [vmem:[%s40 + $0x6d0] sm:$0xff]
        %479 = vst [vmem:[%s41 + $0x6d0] sm:$0xff] %v478
        %v480 = vld [vmem:[%s40 + $0x6d8] sm:$0xff]
        %481 = vst [vmem:[%s41 + $0x6d8] sm:$0xff] %v480
        %v482 = vld [vmem:[%s40 + $0x6e0] sm:$0xff]
        %483 = vst [vmem:[%s41 + $0x6e0] sm:$0xff] %v482
        %v484 = vld [vmem:[%s40 + $0x6e8] sm:$0xff]
        %485 = vst [vmem:[%s41 + $0x6e8] sm:$0xff] %v484
        %v486 = vld [vmem:[%s40 + $0x6f0] sm:$0xff]
        %487 = vst [vmem:[%s41 + $0x6f0] sm:$0xff] %v486
        %v488 = vld [vmem:[%s40 + $0x6f8] sm:$0xff]
        %489 = vst [vmem:[%s41 + $0x6f8] sm:$0xff] %v488
      $region26: #{classifier_forward.1} parent=20 // loop_footer
        %s39 = sadd.s32 1, %s35
      $region27: #{classifier_forward.1} parent=20 // loop_footer_branch
        %34 = sbr.rel target = $region23
      $region28: #{classifier_forward.1} parent=20 // loop_exit
        _
    $region21: #{classifier_forward.1} parent=1 // pred_fallthru
      _
    // Predicated region
    $region29: #{classifier_forward.1} parent=1 // pred_check
      _
    $region30: #{classifier_forward.1} parent=1 // pred_check_branch
      %491 = sbr.rel target = $region32
    $region31: #{classifier_forward.1} parent=1 // pred_region
      _
    $region32: #{classifier_forward.1} parent=1 // pred_fallthru
      _
    // Predicated region
    $region33: #{classifier_forward.1} parent=1 // pred_check
      _
    $region34: #{classifier_forward.1} parent=1 // pred_check_branch
      %494 = sbr.rel (0) target = $region36
    $region35: #{classifier_forward.1} parent=1 // pred_region
      %495 = vsyncadd [#allocation4], 28672
    $region36: #{classifier_forward.1} parent=1 // pred_fallthru
      _
    %v496 = vlaneseq
    %v497 = vshrl.u32 %v496, 7
    %vm498 = vcmp.lt.s32.totalorder %v497, 2
    %v499 = vld [vmem:[%s0] sm:$0xff]
    %v500 = vld [vmem:[%s0 + $0x8] sm:$0xff]
    %v501 = vxor.u32 %v499, 2147483648
    %v502 = vmul.f32 %v501, 1.442695
    %v503 = vpow.pop %v502
    %v504 = vadd.f32 %v503, 1.0
    %v505 = vrcp.pop %v504
    %v506 = vmul.f32 %v504, %v505
    %v507 = vsub.f32 1.0, %v506
    %v508 = vmul.f32 %v505, %v507
    %v509 = vadd.f32 %v505, %v508
    %vm510 = vweird.f32 %v504
    %vm511 = vweird.f32 %v505
    %vm512 = vmor %vm510, %vm511
    %v513 = vsel %vm512, %v505, %v509
    %v514 = vand.u32 2147483647, %v504
    %vm515 = vcmp.eq.f32.partialorder %v514, 8.507059e+37
    %v516 = vand.u32 %v504, 2147483648
    %v517 = vor.u32 1.1754944e-38, %v516
    %v518 = vsel %vm515, %v517, %v513
    %v519 = vmul.f32 1.0, %v518
    %v521 = vrot.slane %v499, 4
    %v523 = vxor.u32 %v521, 2147483648
    %v524 = vmul.f32 %v523, 1.442695
    %v525 = vpow.pop %v524
    %v526 = vadd.f32 %v525, 1.0
    %v527 = vrcp.pop %v526
    %v528 = vmul.f32 %v526, %v527
    %v529 = vsub.f32 1.0, %v528
    %v530 = vmul.f32 %v527, %v529
    %v531 = vadd.f32 %v527, %v530
    %vm532 = vweird.f32 %v526
    %vm533 = vweird.f32 %v527
    %vm534 = vmor %vm532, %vm533
    %v535 = vsel %vm534, %v527, %v531
    %v536 = vand.u32 2147483647, %v526
    %vm537 = vcmp.eq.f32.partialorder %v536, 8.507059e+37
    %v538 = vand.u32 %v526, 2147483648
    %v539 = vor.u32 1.1754944e-38, %v538
    %v540 = vsel %vm537, %v539, %v535
    %v541 = vmul.f32 1.0, %v540
    %v542 = vtanh.pop %v500
    %v544 = vrot.slane %v500, 4
    %v546 = vxor.u32 %v544, 2147483648
    %v547 = vmul.f32 %v546, 1.442695
    %v548 = vpow.pop %v547
    %v549 = vadd.f32 %v548, 1.0
    %v550 = vrcp.pop %v549
    %v551 = vmul.f32 %v549, %v550
    %v552 = vsub.f32 1.0, %v551
    %v553 = vmul.f32 %v550, %v552
    %v554 = vadd.f32 %v550, %v553
    %vm555 = vweird.f32 %v549
    %vm556 = vweird.f32 %v550
    %vm557 = vmor %vm555, %vm556
    %v558 = vsel %vm557, %v550, %v554
    %v559 = vand.u32 2147483647, %v549
    %vm560 = vcmp.eq.f32.partialorder %v559, 8.507059e+37
    %v561 = vand.u32 %v549, 2147483648
    %v562 = vor.u32 1.1754944e-38, %v561
    %v563 = vsel %vm560, %v562, %v558
    %v564 = vmul.f32 1.0, %v563
    %v565 = vmul.f32 %v541, 0.0
    %v566 = vmul.f32 %v519, %v542
    %v567 = vadd.f32 %v565, %v566
    %v568 = vtanh.pop %v567
    %v569 = vmul.f32 %v564, %v568
    %570 = vst [vmem:[#allocation2] sm:$0x3] %v569
    %s572 = scalar_lea.vmem [#allocation1], 1
    %573 = vst [vmem:[%s572] ss:$2 sm:$0xff] %v569
    %v574 = vld.sshfl [vmem:[#allocation1] sm:$0xff pattern:$0x75316420]
    %576 = vst [vmem:[#allocation2 + $0x18] sm:$0xc0] %v574
    %v577 = vsel %vm498, %v569, 0.0
    %v578 = vsel %vm498, 0.0, %v569
    %s579 = scalar_lea.vmem %s0, 16
    %v580 = vld [vmem:[%s579] sm:$0xff]
    %v581 = vld [vmem:[%s579 + $0x8] sm:$0xff]
    %v582 = vld [vmem:[#allocation5] sm:$0xff]
    %v583 = vld [vmem:[#allocation5 + $0x8] sm:$0xff]
    %v584 = vld [vmem:[#allocation5 + $0x10] sm:$0xff]
    %v585 = vld [vmem:[#allocation5 + $0x18] sm:$0xff]
    %v586 = vld [vmem:[#allocation5 + $0x20] sm:$0xff]
    %v587 = vld [vmem:[#allocation5 + $0x28] sm:$0xff]
    %v588 = vld [vmem:[#allocation5 + $0x30] sm:$0xff]
    %v589 = vld [vmem:[#allocation5 + $0x38] sm:$0xff]
    %v590 = vld [vmem:[#allocation5 + $0x40] sm:$0xff]
    %v591 = vld [vmem:[#allocation5 + $0x48] sm:$0xff]
    %v592 = vld [vmem:[#allocation5 + $0x50] sm:$0xff]
    %v593 = vld [vmem:[#allocation5 + $0x58] sm:$0xff]
    %v594 = vld [vmem:[#allocation5 + $0x60] sm:$0xff]
    %v595 = vld [vmem:[#allocation5 + $0x68] sm:$0xff]
    %v596 = vld [vmem:[#allocation5 + $0x70] sm:$0xff]
    %v597 = vld [vmem:[#allocation5 + $0x78] sm:$0xff]
    %v598 = vld [vmem:[#allocation5 + $0x80] sm:$0xff]
    %v599 = vld [vmem:[#allocation5 + $0x88] sm:$0xff]
    %v600 = vld [vmem:[#allocation5 + $0x90] sm:$0xff]
    %v601 = vld [vmem:[#allocation5 + $0x98] sm:$0xff]
    %v602 = vld [vmem:[#allocation5 + $0xa0] sm:$0xff]
    %v603 = vld [vmem:[#allocation5 + $0xa8] sm:$0xff]
    %v604 = vld [vmem:[#allocation5 + $0xb0] sm:$0xff]
    %v605 = vld [vmem:[#allocation5 + $0xb8] sm:$0xff]
    %v606 = vld [vmem:[#allocation5 + $0xc0] sm:$0xff]
    %v607 = vld [vmem:[#allocation5 + $0xc8] sm:$0xff]
    %v608 = vld [vmem:[#allocation5 + $0xd0] sm:$0xff]
    %v609 = vld [vmem:[#allocation5 + $0xd8] sm:$0xff]
    %v610 = vld [vmem:[#allocation5 + $0xe0] sm:$0xff]
    %v611 = vld [vmem:[#allocation5 + $0xe8] sm:$0xff]
    %v612 = vld [vmem:[#allocation5 + $0xf0] sm:$0xff]
    %v613 = vld [vmem:[#allocation5 + $0xf8] sm:$0xff]
    %v614 = vld [vmem:[#allocation5 + $0x100] sm:$0xff]
    %v615 = vld [vmem:[#allocation5 + $0x108] sm:$0xff]
    %v616 = vld [vmem:[#allocation5 + $0x110] sm:$0xff]
    %v617 = vld [vmem:[#allocation5 + $0x118] sm:$0xff]
    %v618 = vld [vmem:[#allocation5 + $0x120] sm:$0xff]
    %v619 = vld [vmem:[#allocation5 + $0x128] sm:$0xff]
    %v620 = vld [vmem:[#allocation5 + $0x130] sm:$0xff]
    %v621 = vld [vmem:[#allocation5 + $0x138] sm:$0xff]
    %v622 = vld [vmem:[#allocation5 + $0x140] sm:$0xff]
    %v623 = vld [vmem:[#allocation5 + $0x148] sm:$0xff]
    %v624 = vld [vmem:[#allocation5 + $0x150] sm:$0xff]
    %v625 = vld [vmem:[#allocation5 + $0x158] sm:$0xff]
    %v626 = vld [vmem:[#allocation5 + $0x160] sm:$0xff]
    %v627 = vld [vmem:[#allocation5 + $0x168] sm:$0xff]
    %v628 = vld [vmem:[#allocation5 + $0x170] sm:$0xff]
    %v629 = vld [vmem:[#allocation5 + $0x178] sm:$0xff]
    %v630 = vld [vmem:[#allocation5 + $0x180] sm:$0xff]
    %v631 = vld [vmem:[#allocation5 + $0x188] sm:$0xff]
    %v632 = vld [vmem:[#allocation5 + $0x190] sm:$0xff]
    %v633 = vld [vmem:[#allocation5 + $0x198] sm:$0xff]
    %v634 = vld [vmem:[#allocation5 + $0x1a0] sm:$0xff]
    %v635 = vld [vmem:[#allocation5 + $0x1a8] sm:$0xff]
    %v636 = vld [vmem:[#allocation5 + $0x1b0] sm:$0xff]
    %v637 = vld [vmem:[#allocation5 + $0x1b8] sm:$0xff]
    %v638 = vld [vmem:[#allocation5 + $0x1c0] sm:$0xff]
    %v639 = vld [vmem:[#allocation5 + $0x1c8] sm:$0xff]
    %v640 = vld [vmem:[#allocation5 + $0x1d0] sm:$0xff]
    %v641 = vld [vmem:[#allocation5 + $0x1d8] sm:$0xff]
    %v642 = vld [vmem:[#allocation5 + $0x1e0] sm:$0xff]
    %v643 = vld [vmem:[#allocation5 + $0x1e8] sm:$0xff]
    %v644 = vld [vmem:[#allocation5 + $0x1f0] sm:$0xff]
    %v645 = vld [vmem:[#allocation5 + $0x1f8] sm:$0xff]
    %v646 = vpack.c.bf16 %v577, %v577
    %v647 = vpack.c.bf16 %v578, %v578
    %v712 = vunpack.c.l.b16 %v582
    %v713 = vunpack.c.h.b16 %v582
    %v714 = vunpack.c.l.b16 %v583
    %v715 = vunpack.c.h.b16 %v583
    %v716 = vunpack.c.l.b16 %v584
    %v717 = vunpack.c.h.b16 %v584
    %v718 = vunpack.c.l.b16 %v585
    %v719 = vunpack.c.h.b16 %v585
    %v720 = vunpack.c.l.b16 %v586
    %v721 = vunpack.c.h.b16 %v586
    %v722 = vunpack.c.l.b16 %v587
    %v723 = vunpack.c.h.b16 %v587
    %v724 = vunpack.c.l.b16 %v588
    %v725 = vunpack.c.h.b16 %v588
    %v726 = vunpack.c.l.b16 %v589
    %v727 = vunpack.c.h.b16 %v589
    %v728 = vunpack.c.l.b16 %v590
    %v729 = vunpack.c.h.b16 %v590
    %v730 = vunpack.c.l.b16 %v591
    %v731 = vunpack.c.h.b16 %v591
    %v732 = vunpack.c.l.b16 %v592
    %v733 = vunpack.c.h.b16 %v592
    %v734 = vunpack.c.l.b16 %v593
    %v735 = vunpack.c.h.b16 %v593
    %v736 = vunpack.c.l.b16 %v594
    %v737 = vunpack.c.h.b16 %v594
    %v738 = vunpack.c.l.b16 %v595
    %v739 = vunpack.c.h.b16 %v595
    %v740 = vunpack.c.l.b16 %v596
    %v741 = vunpack.c.h.b16 %v596
    %v742 = vunpack.c.l.b16 %v597
    %v743 = vunpack.c.h.b16 %v597
    %v744 = vunpack.c.l.b16 %v598
    %v745 = vunpack.c.h.b16 %v598
    %v746 = vunpack.c.l.b16 %v599
    %v747 = vunpack.c.h.b16 %v599
    %v748 = vunpack.c.l.b16 %v600
    %v749 = vunpack.c.h.b16 %v600
    %v750 = vunpack.c.l.b16 %v601
    %v751 = vunpack.c.h.b16 %v601
    %v752 = vunpack.c.l.b16 %v602
    %v753 = vunpack.c.h.b16 %v602
    %v754 = vunpack.c.l.b16 %v603
    %v755 = vunpack.c.h.b16 %v603
    %v756 = vunpack.c.l.b16 %v604
    %v757 = vunpack.c.h.b16 %v604
    %v758 = vunpack.c.l.b16 %v605
    %v759 = vunpack.c.h.b16 %v605
    %v760 = vunpack.c.l.b16 %v606
    %v761 = vunpack.c.h.b16 %v606
    %v762 = vunpack.c.l.b16 %v607
    %v763 = vunpack.c.h.b16 %v607
    %v764 = vunpack.c.l.b16 %v608
    %v765 = vunpack.c.h.b16 %v608
    %v766 = vunpack.c.l.b16 %v609
    %v767 = vunpack.c.h.b16 %v609
    %v768 = vunpack.c.l.b16 %v610
    %v769 = vunpack.c.h.b16 %v610
    %v770 = vunpack.c.l.b16 %v611
    %v771 = vunpack.c.h.b16 %v611
    %v772 = vunpack.c.l.b16 %v612
    %v773 = vunpack.c.h.b16 %v612
    %v774 = vunpack.c.l.b16 %v613
    %v775 = vunpack.c.h.b16 %v613
    %v776 = vunpack.c.l.b16 %v614
    %v777 = vunpack.c.h.b16 %v614
    %v778 = vunpack.c.l.b16 %v615
    %v779 = vunpack.c.h.b16 %v615
    %v780 = vunpack.c.l.b16 %v616
    %v781 = vunpack.c.h.b16 %v616
    %v782 = vunpack.c.l.b16 %v617
    %v783 = vunpack.c.h.b16 %v617
    %v784 = vunpack.c.l.b16 %v618
    %v785 = vunpack.c.h.b16 %v618
    %v786 = vunpack.c.l.b16 %v619
    %v787 = vunpack.c.h.b16 %v619
    %v788 = vunpack.c.l.b16 %v620
    %v789 = vunpack.c.h.b16 %v620
    %v790 = vunpack.c.l.b16 %v621
    %v791 = vunpack.c.h.b16 %v621
    %v792 = vunpack.c.l.b16 %v622
    %v793 = vunpack.c.h.b16 %v622
    %v794 = vunpack.c.l.b16 %v623
    %v795 = vunpack.c.h.b16 %v623
    %v796 = vunpack.c.l.b16 %v624
    %v797 = vunpack.c.h.b16 %v624
    %v798 = vunpack.c.l.b16 %v625
    %v799 = vunpack.c.h.b16 %v625
    %v800 = vunpack.c.l.b16 %v626
    %v801 = vunpack.c.h.b16 %v626
    %v802 = vunpack.c.l.b16 %v627
    %v803 = vunpack.c.h.b16 %v627
    %v804 = vunpack.c.l.b16 %v628
    %v805 = vunpack.c.h.b16 %v628
    %v806 = vunpack.c.l.b16 %v629
    %v807 = vunpack.c.h.b16 %v629
    %v808 = vunpack.c.l.b16 %v630
    %v809 = vunpack.c.h.b16 %v630
    %v810 = vunpack.c.l.b16 %v631
    %v811 = vunpack.c.h.b16 %v631
    %v812 = vunpack.c.l.b16 %v632
    %v813 = vunpack.c.h.b16 %v632
    %v814 = vunpack.c.l.b16 %v633
    %v815 = vunpack.c.h.b16 %v633
    %v816 = vunpack.c.l.b16 %v634
    %v817 = vunpack.c.h.b16 %v634
    %v818 = vunpack.c.l.b16 %v635
    %v819 = vunpack.c.h.b16 %v635
    %v820 = vunpack.c.l.b16 %v636
    %v821 = vunpack.c.h.b16 %v636
    %v822 = vunpack.c.l.b16 %v637
    %v823 = vunpack.c.h.b16 %v637
    %v824 = vunpack.c.l.b16 %v638
    %v825 = vunpack.c.h.b16 %v638
    %v826 = vunpack.c.l.b16 %v639
    %v827 = vunpack.c.h.b16 %v639
    %v828 = vunpack.c.l.b16 %v640
    %v829 = vunpack.c.h.b16 %v640
    %v830 = vunpack.c.l.b16 %v641
    %v831 = vunpack.c.h.b16 %v641
    %v832 = vunpack.c.l.b16 %v642
    %v833 = vunpack.c.h.b16 %v642
    %v834 = vunpack.c.l.b16 %v643
    %v835 = vunpack.c.h.b16 %v643
    %v836 = vunpack.c.l.b16 %v644
    %v837 = vunpack.c.h.b16 %v644
    %v838 = vunpack.c.l.b16 %v645
    %v839 = vunpack.c.h.b16 %v645
    %v840 = vpack.c.b16 %v716, %v712
    %v841 = vpack.c.b16 %v717, %v713
    %v842 = vpack.c.b16 %v718, %v714
    %v843 = vpack.c.b16 %v719, %v715
    %v844 = vpack.c.b16 %v724, %v720
    %v845 = vpack.c.b16 %v725, %v721
    %v846 = vpack.c.b16 %v726, %v722
    %v847 = vpack.c.b16 %v727, %v723
    %v848 = vpack.c.b16 %v732, %v728
    %v849 = vpack.c.b16 %v733, %v729
    %v850 = vpack.c.b16 %v734, %v730
    %v851 = vpack.c.b16 %v735, %v731
    %v852 = vpack.c.b16 %v740, %v736
    %v853 = vpack.c.b16 %v741, %v737
    %v854 = vpack.c.b16 %v742, %v738
    %v855 = vpack.c.b16 %v743, %v739
    %v856 = vpack.c.b16 %v748, %v744
    %v857 = vpack.c.b16 %v749, %v745
    %v858 = vpack.c.b16 %v750, %v746
    %v859 = vpack.c.b16 %v751, %v747
    %v860 = vpack.c.b16 %v756, %v752
    %v861 = vpack.c.b16 %v757, %v753
    %v862 = vpack.c.b16 %v758, %v754
    %v863 = vpack.c.b16 %v759, %v755
    %v864 = vpack.c.b16 %v764, %v760
    %v865 = vpack.c.b16 %v765, %v761
    %v866 = vpack.c.b16 %v766, %v762
    %v867 = vpack.c.b16 %v767, %v763
    %v868 = vpack.c.b16 %v772, %v768
    %v869 = vpack.c.b16 %v773, %v769
    %v870 = vpack.c.b16 %v774, %v770
    %v871 = vpack.c.b16 %v775, %v771
    %v872 = vpack.c.b16 %v780, %v776
    %v873 = vpack.c.b16 %v781, %v777
    %v874 = vpack.c.b16 %v782, %v778
    %v875 = vpack.c.b16 %v783, %v779
    %v876 = vpack.c.b16 %v788, %v784
    %v877 = vpack.c.b16 %v789, %v785
    %v878 = vpack.c.b16 %v790, %v786
    %v879 = vpack.c.b16 %v791, %v787
    %v880 = vpack.c.b16 %v796, %v792
    %v881 = vpack.c.b16 %v797, %v793
    %v882 = vpack.c.b16 %v798, %v794
    %v883 = vpack.c.b16 %v799, %v795
    %v884 = vpack.c.b16 %v804, %v800
    %v885 = vpack.c.b16 %v805, %v801
    %v886 = vpack.c.b16 %v806, %v802
    %v887 = vpack.c.b16 %v807, %v803
    %v888 = vpack.c.b16 %v812, %v808
    %v889 = vpack.c.b16 %v813, %v809
    %v890 = vpack.c.b16 %v814, %v810
    %v891 = vpack.c.b16 %v815, %v811
    %v892 = vpack.c.b16 %v820, %v816
    %v893 = vpack.c.b16 %v821, %v817
    %v894 = vpack.c.b16 %v822, %v818
    %v895 = vpack.c.b16 %v823, %v819
    %v896 = vpack.c.b16 %v828, %v824
    %v897 = vpack.c.b16 %v829, %v825
    %v898 = vpack.c.b16 %v830, %v826
    %v899 = vpack.c.b16 %v831, %v827
    %v900 = vpack.c.b16 %v836, %v832
    %v901 = vpack.c.b16 %v837, %v833
    %v902 = vpack.c.b16 %v838, %v834
    %v903 = vpack.c.b16 %v839, %v835
    %968 = vmatpush.bf16.msra.mxu0 %v868
    %969 = vmatpush.bf16.msra.mxu0 %v864
    %970 = vmatpush.bf16.msra.mxu0 %v860
    %971 = vmatpush.bf16.msra.mxu0 %v856
    %972 = vmatpush.bf16.msra.mxu0 %v852
    %973 = vmatpush.bf16.msra.mxu0 %v848
    %974 = vmatpush.bf16.msra.mxu0 %v844
    %975 = vmatpush.bf16.msra.mxu0 %v840
    %976 = vmatmul.bf16.gmra.mxu0 %v646
    %v977 = vpop.f32.mrf.mxu0
    %v978 = vadd.f32 0.0, %v977
    %v979 = vpop.f32.mrf.mxu0
    %980 = vdwg.mxu0
    %981 = vmatpush.bf16.msra.mxu0 %v900
    %982 = vmatpush.bf16.msra.mxu0 %v896
    %983 = vmatpush.bf16.msra.mxu0 %v892
    %984 = vmatpush.bf16.msra.mxu0 %v888
    %985 = vmatpush.bf16.msra.mxu0 %v884
    %986 = vmatpush.bf16.msra.mxu0 %v880
    %987 = vmatpush.bf16.msra.mxu0 %v876
    %988 = vmatpush.bf16.msra.mxu0 %v872
    %989 = vmatmul.bf16.gmra.mxu0 %v647
    %v990 = vpop.f32.mrf.mxu0
    %v991 = vadd.f32 %v978, %v990
    %v992 = vpop.f32.mrf.mxu0
    %993 = vdwg.mxu0
    %994 = vmatpush.bf16.msra.mxu0 %v869
    %995 = vmatpush.bf16.msra.mxu0 %v865
    %996 = vmatpush.bf16.msra.mxu0 %v861
    %997 = vmatpush.bf16.msra.mxu0 %v857
    %998 = vmatpush.bf16.msra.mxu0 %v853
    %999 = vmatpush.bf16.msra.mxu0 %v849
    %1000 = vmatpush.bf16.msra.mxu0 %v845
    %1001 = vmatpush.bf16.msra.mxu0 %v841
    %1002 = vmatmul.bf16.gmra.mxu0 %v646
    %v1003 = vpop.f32.mrf.mxu0
    %v1004 = vadd.f32 0.0, %v1003
    %v1005 = vpop.f32.mrf.mxu0
    %1006 = vdwg.mxu0
    %1007 = vmatpush.bf16.msra.mxu0 %v901
    %1008 = vmatpush.bf16.msra.mxu0 %v897
    %1009 = vmatpush.bf16.msra.mxu0 %v893
    %1010 = vmatpush.bf16.msra.mxu0 %v889
    %1011 = vmatpush.bf16.msra.mxu0 %v885
    %1012 = vmatpush.bf16.msra.mxu0 %v881
    %1013 = vmatpush.bf16.msra.mxu0 %v877
    %1014 = vmatpush.bf16.msra.mxu0 %v873
    %1015 = vmatmul.bf16.gmra.mxu0 %v647
    %v1016 = vpop.f32.mrf.mxu0
    %v1017 = vadd.f32 %v1004, %v1016
    %v1018 = vpop.f32.mrf.mxu0
    %1019 = vdwg.mxu0
    %1020 = vmatpush.bf16.msra.mxu0 %v870
    %1021 = vmatpush.bf16.msra.mxu0 %v866
    %1022 = vmatpush.bf16.msra.mxu0 %v862
    %1023 = vmatpush.bf16.msra.mxu0 %v858
    %1024 = vmatpush.bf16.msra.mxu0 %v854
    %1025 = vmatpush.bf16.msra.mxu0 %v850
    %1026 = vmatpush.bf16.msra.mxu0 %v846
    %1027 = vmatpush.bf16.msra.mxu0 %v842
    %1028 = vmatmul.bf16.gmra.mxu0 %v646
    %v1029 = vpop.f32.mrf.mxu0
    %v1030 = vadd.f32 0.0, %v1029
    %v1031 = vpop.f32.mrf.mxu0
    %1032 = vdwg.mxu0
    %1033 = vmatpush.bf16.msra.mxu0 %v902
    %1034 = vmatpush.bf16.msra.mxu0 %v898
    %1035 = vmatpush.bf16.msra.mxu0 %v894
    %1036 = vmatpush.bf16.msra.mxu0 %v890
    %1037 = vmatpush.bf16.msra.mxu0 %v886
    %1038 = vmatpush.bf16.msra.mxu0 %v882
    %1039 = vmatpush.bf16.msra.mxu0 %v878
    %1040 = vmatpush.bf16.msra.mxu0 %v874
    %1041 = vmatmul.bf16.gmra.mxu0 %v647
    %v1042 = vpop.f32.mrf.mxu0
    %v1043 = vadd.f32 %v1030, %v1042
    %v1044 = vpop.f32.mrf.mxu0
    %1045 = vdwg.mxu0
    %1046 = vmatpush.bf16.msra.mxu0 %v871
    %1047 = vmatpush.bf16.msra.mxu0 %v867
    %1048 = vmatpush.bf16.msra.mxu0 %v863
    %1049 = vmatpush.bf16.msra.mxu0 %v859
    %1050 = vmatpush.bf16.msra.mxu0 %v855
    %1051 = vmatpush.bf16.msra.mxu0 %v851
    %1052 = vmatpush.bf16.msra.mxu0 %v847
    %1053 = vmatpush.bf16.msra.mxu0 %v843
    %1054 = vmatmul.bf16.gmra.mxu0 %v646
    %v1055 = vpop.f32.mrf.mxu0
    %v1056 = vadd.f32 0.0, %v1055
    %v1057 = vpop.f32.mrf.mxu0
    %1058 = vdwg.mxu0
    %1059 = vmatpush.bf16.msra.mxu0 %v903
    %1060 = vmatpush.bf16.msra.mxu0 %v899
    %1061 = vmatpush.bf16.msra.mxu0 %v895
    %1062 = vmatpush.bf16.msra.mxu0 %v891
    %1063 = vmatpush.bf16.msra.mxu0 %v887
    %1064 = vmatpush.bf16.msra.mxu0 %v883
    %1065 = vmatpush.bf16.msra.mxu0 %v879
    %1066 = vmatpush.bf16.msra.mxu0 %v875
    %1067 = vmatmul.bf16.gmra.mxu0 %v647
    %v1068 = vpop.f32.mrf.mxu0
    %v1069 = vadd.f32 %v1056, %v1068
    %v1070 = vpop.f32.mrf.mxu0
    %1071 = vdwg.mxu0
    %v1076 = vrot.slane %v1017, 4
    %v1077 = vrot.slane %v1069, 4
    %vm1078 = vcmask 1043456
    %v1079 = vsel %vm1078, %v991, %v1076
    %v1080 = vsel %vm1078, %v1043, %v1077
    %v1083 = vadd.f32 %v580, %v1079
    %v1084 = vadd.f32 %v581, %v1080
    %v1085 = vxor.u32 %v1083, 2147483648
    %v1086 = vmul.f32 %v1085, 1.442695
    %v1087 = vpow.pop %v1086
    %v1088 = vadd.f32 %v1087, 1.0
    %v1089 = vrcp.pop %v1088
    %v1090 = vmul.f32 %v1088, %v1089
    %v1091 = vsub.f32 1.0, %v1090
    %v1092 = vmul.f32 %v1089, %v1091
    %v1093 = vadd.f32 %v1089, %v1092
    %vm1094 = vweird.f32 %v1088
    %vm1095 = vweird.f32 %v1089
    %vm1096 = vmor %vm1094, %vm1095
    %v1097 = vsel %vm1096, %v1089, %v1093
    %v1098 = vand.u32 2147483647, %v1088
    %vm1099 = vcmp.eq.f32.partialorder %v1098, 8.507059e+37
    %v1100 = vand.u32 %v1088, 2147483648
    %v1101 = vor.u32 1.1754944e-38, %v1100
    %v1102 = vsel %vm1099, %v1101, %v1097
    %v1103 = vmul.f32 1.0, %v1102
    %v1105 = vrot.slane %v1083, 4
    %v1107 = vxor.u32 %v1105, 2147483648
    %v1108 = vmul.f32 %v1107, 1.442695
    %v1109 = vpow.pop %v1108
    %v1110 = vadd.f32 %v1109, 1.0
    %v1111 = vrcp.pop %v1110
    %v1112 = vmul.f32 %v1110, %v1111
    %v1113 = vsub.f32 1.0, %v1112
    %v1114 = vmul.f32 %v1111, %v1113
    %v1115 = vadd.f32 %v1111, %v1114
    %vm1116 = vweird.f32 %v1110
    %vm1117 = vweird.f32 %v1111
    %vm1118 = vmor %vm1116, %vm1117
    %v1119 = vsel %vm1118, %v1111, %v1115
    %v1120 = vand.u32 2147483647, %v1110
    %vm1121 = vcmp.eq.f32.partialorder %v1120, 8.507059e+37
    %v1122 = vand.u32 %v1110, 2147483648
    %v1123 = vor.u32 1.1754944e-38, %v1122
    %v1124 = vsel %vm1121, %v1123, %v1119
    %v1125 = vmul.f32 1.0, %v1124
    %v1126 = vtanh.pop %v1084
    %v1128 = vrot.slane %v1084, 4
    %v1130 = vxor.u32 %v1128, 2147483648
    %v1131 = vmul.f32 %v1130, 1.442695
    %v1132 = vpow.pop %v1131
    %v1133 = vadd.f32 %v1132, 1.0
    %v1134 = vrcp.pop %v1133
    %v1135 = vmul.f32 %v1133, %v1134
    %v1136 = vsub.f32 1.0, %v1135
    %v1137 = vmul.f32 %v1134, %v1136
    %v1138 = vadd.f32 %v1134, %v1137
    %vm1139 = vweird.f32 %v1133
    %vm1140 = vweird.f32 %v1134
    %vm1141 = vmor %vm1139, %vm1140
    %v1142 = vsel %vm1141, %v1134, %v1138
    %v1143 = vand.u32 2147483647, %v1133
    %vm1144 = vcmp.eq.f32.partialorder %v1143, 8.507059e+37
    %v1145 = vand.u32 %v1133, 2147483648
    %v1146 = vor.u32 1.1754944e-38, %v1145
    %v1147 = vsel %vm1144, %v1146, %v1142
    %v1148 = vmul.f32 1.0, %v1147
    %v1149 = vmul.f32 %v1125, %v567
    %v1150 = vmul.f32 %v1103, %v1126
    %v1151 = vadd.f32 %v1149, %v1150
    %v1152 = vtanh.pop %v1151
    %v1153 = vmul.f32 %v1148, %v1152
    %1155 = vst [vmem:[#allocation1] ss:$2 sm:$0xff] %v1153
    %v1156 = vld.sshfl [vmem:[#allocation1] sm:$0xff pattern:$0x75316420]
    %v1157 = vrot.slane %v1156, 6
    %1159 = vst [vmem:[#allocation2] sm:$0xc] %v1157
    %1160 = vst [vmem:[#allocation1] ss:$2 sm:$0xff] %v1153
    %v1161 = vld.sshfl [vmem:[#allocation1] sm:$0xff pattern:$0x75316420]
    %v1162 = vrot.slane %v1161, 6
    %1164 = vst [vmem:[#allocation2 + $0x18] sm:$0x30] %v1162
    %v1165 = vsel %vm498, %v1153, 0.0
    %v1166 = vsel %vm498, 0.0, %v1153
    %s1167 = scalar_lea.vmem %s0, 32
    %v1168 = vld [vmem:[%s1167] sm:$0xff]
    %v1169 = vld [vmem:[%s1167 + $0x8] sm:$0xff]
    %v1170 = vld [vmem:[#allocation5] sm:$0xff]
    %v1171 = vld [vmem:[#allocation5 + $0x8] sm:$0xff]
    %v1172 = vld [vmem:[#allocation5 + $0x10] sm:$0xff]
    %v1173 = vld [vmem:[#allocation5 + $0x18] sm:$0xff]
    %v1174 = vld [vmem:[#allocation5 + $0x20] sm:$0xff]
    %v1175 = vld [vmem:[#allocation5 + $0x28] sm:$0xff]
    %v1176 = vld [vmem:[#allocation5 + $0x30] sm:$0xff]
    %v1177 = vld [vmem:[#allocation5 + $0x38] sm:$0xff]
    %v1178 = vld [vmem:[#allocation5 + $0x40] sm:$0xff]
    %v1179 = vld [vmem:[#allocation5 + $0x48] sm:$0xff]
    %v1180 = vld [vmem:[#allocation5 + $0x50] sm:$0xff]
    %v1181 = vld [vmem:[#allocation5 + $0x58] sm:$0xff]
    %v1182 = vld [vmem:[#allocation5 + $0x60] sm:$0xff]
    %v1183 = vld [vmem:[#allocation5 + $0x68] sm:$0xff]
    %v1184 = vld [vmem:[#allocation5 + $0x70] sm:$0xff]
    %v1185 = vld [vmem:[#allocation5 + $0x78] sm:$0xff]
    %v1186 = vld [vmem:[#allocation5 + $0x80] sm:$0xff]
    %v1187 = vld [vmem:[#allocation5 + $0x88] sm:$0xff]
    %v1188 = vld [vmem:[#allocation5 + $0x90] sm:$0xff]
    %v1189 = vld [vmem:[#allocation5 + $0x98] sm:$0xff]
    %v1190 = vld [vmem:[#allocation5 + $0xa0] sm:$0xff]
    %v1191 = vld [vmem:[#allocation5 + $0xa8] sm:$0xff]
    %v1192 = vld [vmem:[#allocation5 + $0xb0] sm:$0xff]
    %v1193 = vld [vmem:[#allocation5 + $0xb8] sm:$0xff]
    %v1194 = vld [vmem:[#allocation5 + $0xc0] sm:$0xff]
    %v1195 = vld [vmem:[#allocation5 + $0xc8] sm:$0xff]
    %v1196 = vld [vmem:[#allocation5 + $0xd0] sm:$0xff]
    %v1197 = vld [vmem:[#allocation5 + $0xd8] sm:$0xff]
    %v1198 = vld [vmem:[#allocation5 + $0xe0] sm:$0xff]
    %v1199 = vld [vmem:[#allocation5 + $0xe8] sm:$0xff]
    %v1200 = vld [vmem:[#allocation5 + $0xf0] sm:$0xff]
    %v1201 = vld [vmem:[#allocation5 + $0xf8] sm:$0xff]
    %v1202 = vld [vmem:[#allocation5 + $0x100] sm:$0xff]
    %v1203 = vld [vmem:[#allocation5 + $0x108] sm:$0xff]
    %v1204 = vld [vmem:[#allocation5 + $0x110] sm:$0xff]
    %v1205 = vld [vmem:[#allocation5 + $0x118] sm:$0xff]
    %v1206 = vld [vmem:[#allocation5 + $0x120] sm:$0xff]
    %v1207 = vld [vmem:[#allocation5 + $0x128] sm:$0xff]
    %v1208 = vld [vmem:[#allocation5 + $0x130] sm:$0xff]
    %v1209 = vld [vmem:[#allocation5 + $0x138] sm:$0xff]
    %v1210 = vld [vmem:[#allocation5 + $0x140] sm:$0xff]
    %v1211 = vld [vmem:[#allocation5 + $0x148] sm:$0xff]
    %v1212 = vld [vmem:[#allocation5 + $0x150] sm:$0xff]
    %v1213 = vld [vmem:[#allocation5 + $0x158] sm:$0xff]
    %v1214 = vld [vmem:[#allocation5 + $0x160] sm:$0xff]
    %v1215 = vld [vmem:[#allocation5 + $0x168] sm:$0xff]
    %v1216 = vld [vmem:[#allocation5 + $0x170] sm:$0xff]
    %v1217 = vld [vmem:[#allocation5 + $0x178] sm:$0xff]
    %v1218 = vld [vmem:[#allocation5 + $0x180] sm:$0xff]
    %v1219 = vld [vmem:[#allocation5 + $0x188] sm:$0xff]
    %v1220 = vld [vmem:[#allocation5 + $0x190] sm:$0xff]
    %v1221 = vld [vmem:[#allocation5 + $0x198] sm:$0xff]
    %v1222 = vld [vmem:[#allocation5 + $0x1a0] sm:$0xff]
    %v1223 = vld [vmem:[#allocation5 + $0x1a8] sm:$0xff]
    %v1224 = vld [vmem:[#allocation5 + $0x1b0] sm:$0xff]
    %v1225 = vld [vmem:[#allocation5 + $0x1b8] sm:$0xff]
    %v1226 = vld [vmem:[#allocation5 + $0x1c0] sm:$0xff]
    %v1227 = vld [vmem:[#allocation5 + $0x1c8] sm:$0xff]
    %v1228 = vld [vmem:[#allocation5 + $0x1d0] sm:$0xff]
    %v1229 = vld [vmem:[#allocation5 + $0x1d8] sm:$0xff]
    %v1230 = vld [vmem:[#allocation5 + $0x1e0] sm:$0xff]
    %v1231 = vld [vmem:[#allocation5 + $0x1e8] sm:$0xff]
    %v1232 = vld [vmem:[#allocation5 + $0x1f0] sm:$0xff]
    %v1233 = vld [vmem:[#allocation5 + $0x1f8] sm:$0xff]
    %v1234 = vpack.c.bf16 %v1165, %v1165
    %v1235 = vpack.c.bf16 %v1166, %v1166
    %v1300 = vunpack.c.l.b16 %v1170
    %v1301 = vunpack.c.h.b16 %v1170
    %v1302 = vunpack.c.l.b16 %v1171
    %v1303 = vunpack.c.h.b16 %v1171
    %v1304 = vunpack.c.l.b16 %v1172
    %v1305 = vunpack.c.h.b16 %v1172
    %v1306 = vunpack.c.l.b16 %v1173
    %v1307 = vunpack.c.h.b16 %v1173
    %v1308 = vunpack.c.l.b16 %v1174
    %v1309 = vunpack.c.h.b16 %v1174
    %v1310 = vunpack.c.l.b16 %v1175
    %v1311 = vunpack.c.h.b16 %v1175
    %v1312 = vunpack.c.l.b16 %v1176
    %v1313 = vunpack.c.h.b16 %v1176
    %v1314 = vunpack.c.l.b16 %v1177
    %v1315 = vunpack.c.h.b16 %v1177
    %v1316 = vunpack.c.l.b16 %v1178
    %v1317 = vunpack.c.h.b16 %v1178
    %v1318 = vunpack.c.l.b16 %v1179
    %v1319 = vunpack.c.h.b16 %v1179
    %v1320 = vunpack.c.l.b16 %v1180
    %v1321 = vunpack.c.h.b16 %v1180
    %v1322 = vunpack.c.l.b16 %v1181
    %v1323 = vunpack.c.h.b16 %v1181
    %v1324 = vunpack.c.l.b16 %v1182
    %v1325 = vunpack.c.h.b16 %v1182
    %v1326 = vunpack.c.l.b16 %v1183
    %v1327 = vunpack.c.h.b16 %v1183
    %v1328 = vunpack.c.l.b16 %v1184
    %v1329 = vunpack.c.h.b16 %v1184
    %v1330 = vunpack.c.l.b16 %v1185
    %v1331 = vunpack.c.h.b16 %v1185
    %v1332 = vunpack.c.l.b16 %v1186
    %v1333 = vunpack.c.h.b16 %v1186
    %v1334 = vunpack.c.l.b16 %v1187
    %v1335 = vunpack.c.h.b16 %v1187
    %v1336 = vunpack.c.l.b16 %v1188
    %v1337 = vunpack.c.h.b16 %v1188
    %v1338 = vunpack.c.l.b16 %v1189
    %v1339 = vunpack.c.h.b16 %v1189
    %v1340 = vunpack.c.l.b16 %v1190
    %v1341 = vunpack.c.h.b16 %v1190
    %v1342 = vunpack.c.l.b16 %v1191
    %v1343 = vunpack.c.h.b16 %v1191
    %v1344 = vunpack.c.l.b16 %v1192
    %v1345 = vunpack.c.h.b16 %v1192
    %v1346 = vunpack.c.l.b16 %v1193
    %v1347 = vunpack.c.h.b16 %v1193
    %v1348 = vunpack.c.l.b16 %v1194
    %v1349 = vunpack.c.h.b16 %v1194
    %v1350 = vunpack.c.l.b16 %v1195
    %v1351 = vunpack.c.h.b16 %v1195
    %v1352 = vunpack.c.l.b16 %v1196
    %v1353 = vunpack.c.h.b16 %v1196
    %v1354 = vunpack.c.l.b16 %v1197
    %v1355 = vunpack.c.h.b16 %v1197
    %v1356 = vunpack.c.l.b16 %v1198
    %v1357 = vunpack.c.h.b16 %v1198
    %v1358 = vunpack.c.l.b16 %v1199
    %v1359 = vunpack.c.h.b16 %v1199
    %v1360 = vunpack.c.l.b16 %v1200
    %v1361 = vunpack.c.h.b16 %v1200
    %v1362 = vunpack.c.l.b16 %v1201
    %v1363 = vunpack.c.h.b16 %v1201
    %v1364 = vunpack.c.l.b16 %v1202
    %v1365 = vunpack.c.h.b16 %v1202
    %v1366 = vunpack.c.l.b16 %v1203
    %v1367 = vunpack.c.h.b16 %v1203
    %v1368 = vunpack.c.l.b16 %v1204
    %v1369 = vunpack.c.h.b16 %v1204
    %v1370 = vunpack.c.l.b16 %v1205
    %v1371 = vunpack.c.h.b16 %v1205
    %v1372 = vunpack.c.l.b16 %v1206
    %v1373 = vunpack.c.h.b16 %v1206
    %v1374 = vunpack.c.l.b16 %v1207
    %v1375 = vunpack.c.h.b16 %v1207
    %v1376 = vunpack.c.l.b16 %v1208
    %v1377 = vunpack.c.h.b16 %v1208
    %v1378 = vunpack.c.l.b16 %v1209
    %v1379 = vunpack.c.h.b16 %v1209
    %v1380 = vunpack.c.l.b16 %v1210
    %v1381 = vunpack.c.h.b16 %v1210
    %v1382 = vunpack.c.l.b16 %v1211
    %v1383 = vunpack.c.h.b16 %v1211
    %v1384 = vunpack.c.l.b16 %v1212
    %v1385 = vunpack.c.h.b16 %v1212
    %v1386 = vunpack.c.l.b16 %v1213
    %v1387 = vunpack.c.h.b16 %v1213
    %v1388 = vunpack.c.l.b16 %v1214
    %v1389 = vunpack.c.h.b16 %v1214
    %v1390 = vunpack.c.l.b16 %v1215
    %v1391 = vunpack.c.h.b16 %v1215
    %v1392 = vunpack.c.l.b16 %v1216
    %v1393 = vunpack.c.h.b16 %v1216
    %v1394 = vunpack.c.l.b16 %v1217
    %v1395 = vunpack.c.h.b16 %v1217
    %v1396 = vunpack.c.l.b16 %v1218
    %v1397 = vunpack.c.h.b16 %v1218
    %v1398 = vunpack.c.l.b16 %v1219
    %v1399 = vunpack.c.h.b16 %v1219
    %v1400 = vunpack.c.l.b16 %v1220
    %v1401 = vunpack.c.h.b16 %v1220
    %v1402 = vunpack.c.l.b16 %v1221
    %v1403 = vunpack.c.h.b16 %v1221
    %v1404 = vunpack.c.l.b16 %v1222
    %v1405 = vunpack.c.h.b16 %v1222
    %v1406 = vunpack.c.l.b16 %v1223
    %v1407 = vunpack.c.h.b16 %v1223
    %v1408 = vunpack.c.l.b16 %v1224
    %v1409 = vunpack.c.h.b16 %v1224
    %v1410 = vunpack.c.l.b16 %v1225
    %v1411 = vunpack.c.h.b16 %v1225
    %v1412 = vunpack.c.l.b16 %v1226
    %v1413 = vunpack.c.h.b16 %v1226
    %v1414 = vunpack.c.l.b16 %v1227
    %v1415 = vunpack.c.h.b16 %v1227
    %v1416 = vunpack.c.l.b16 %v1228
    %v1417 = vunpack.c.h.b16 %v1228
    %v1418 = vunpack.c.l.b16 %v1229
    %v1419 = vunpack.c.h.b16 %v1229
    %v1420 = vunpack.c.l.b16 %v1230
    %v1421 = vunpack.c.h.b16 %v1230
    %v1422 = vunpack.c.l.b16 %v1231
    %v1423 = vunpack.c.h.b16 %v1231
    %v1424 = vunpack.c.l.b16 %v1232
    %v1425 = vunpack.c.h.b16 %v1232
    %v1426 = vunpack.c.l.b16 %v1233
    %v1427 = vunpack.c.h.b16 %v1233
    %v1428 = vpack.c.b16 %v1304, %v1300
    %v1429 = vpack.c.b16 %v1305, %v1301
    %v1430 = vpack.c.b16 %v1306, %v1302
    %v1431 = vpack.c.b16 %v1307, %v1303
    %v1432 = vpack.c.b16 %v1312, %v1308
    %v1433 = vpack.c.b16 %v1313, %v1309
    %v1434 = vpack.c.b16 %v1314, %v1310
    %v1435 = vpack.c.b16 %v1315, %v1311
    %v1436 = vpack.c.b16 %v1320, %v1316
    %v1437 = vpack.c.b16 %v1321, %v1317
    %v1438 = vpack.c.b16 %v1322, %v1318
    %v1439 = vpack.c.b16 %v1323, %v1319
    %v1440 = vpack.c.b16 %v1328, %v1324
    %v1441 = vpack.c.b16 %v1329, %v1325
    %v1442 = vpack.c.b16 %v1330, %v1326
    %v1443 = vpack.c.b16 %v1331, %v1327
    %v1444 = vpack.c.b16 %v1336, %v1332
    %v1445 = vpack.c.b16 %v1337, %v1333
    %v1446 = vpack.c.b16 %v1338, %v1334
    %v1447 = vpack.c.b16 %v1339, %v1335
    %v1448 = vpack.c.b16 %v1344, %v1340
    %v1449 = vpack.c.b16 %v1345, %v1341
    %v1450 = vpack.c.b16 %v1346, %v1342
    %v1451 = vpack.c.b16 %v1347, %v1343
    %v1452 = vpack.c.b16 %v1352, %v1348
    %v1453 = vpack.c.b16 %v1353, %v1349
    %v1454 = vpack.c.b16 %v1354, %v1350
    %v1455 = vpack.c.b16 %v1355, %v1351
    %v1456 = vpack.c.b16 %v1360, %v1356
    %v1457 = vpack.c.b16 %v1361, %v1357
    %v1458 = vpack.c.b16 %v1362, %v1358
    %v1459 = vpack.c.b16 %v1363, %v1359
    %v1460 = vpack.c.b16 %v1368, %v1364
    %v1461 = vpack.c.b16 %v1369, %v1365
    %v1462 = vpack.c.b16 %v1370, %v1366
    %v1463 = vpack.c.b16 %v1371, %v1367
    %v1464 = vpack.c.b16 %v1376, %v1372
    %v1465 = vpack.c.b16 %v1377, %v1373
    %v1466 = vpack.c.b16 %v1378, %v1374
    %v1467 = vpack.c.b16 %v1379, %v1375
    %v1468 = vpack.c.b16 %v1384, %v1380
    %v1469 = vpack.c.b16 %v1385, %v1381
    %v1470 = vpack.c.b16 %v1386, %v1382
    %v1471 = vpack.c.b16 %v1387, %v1383
    %v1472 = vpack.c.b16 %v1392, %v1388
    %v1473 = vpack.c.b16 %v1393, %v1389
    %v1474 = vpack.c.b16 %v1394, %v1390
    %v1475 = vpack.c.b16 %v1395, %v1391
    %v1476 = vpack.c.b16 %v1400, %v1396
    %v1477 = vpack.c.b16 %v1401, %v1397
    %v1478 = vpack.c.b16 %v1402, %v1398
    %v1479 = vpack.c.b16 %v1403, %v1399
    %v1480 = vpack.c.b16 %v1408, %v1404
    %v1481 = vpack.c.b16 %v1409, %v1405
    %v1482 = vpack.c.b16 %v1410, %v1406
    %v1483 = vpack.c.b16 %v1411, %v1407
    %v1484 = vpack.c.b16 %v1416, %v1412
    %v1485 = vpack.c.b16 %v1417, %v1413
    %v1486 = vpack.c.b16 %v1418, %v1414
    %v1487 = vpack.c.b16 %v1419, %v1415
    %v1488 = vpack.c.b16 %v1424, %v1420
    %v1489 = vpack.c.b16 %v1425, %v1421
    %v1490 = vpack.c.b16 %v1426, %v1422
    %v1491 = vpack.c.b16 %v1427, %v1423
    %1556 = vmatpush.bf16.msra.mxu0 %v1456
    %1557 = vmatpush.bf16.msra.mxu0 %v1452
    %1558 = vmatpush.bf16.msra.mxu0 %v1448
    %1559 = vmatpush.bf16.msra.mxu0 %v1444
    %1560 = vmatpush.bf16.msra.mxu0 %v1440
    %1561 = vmatpush.bf16.msra.mxu0 %v1436
    %1562 = vmatpush.bf16.msra.mxu0 %v1432
    %1563 = vmatpush.bf16.msra.mxu0 %v1428
    %1564 = vmatmul.bf16.gmra.mxu0 %v1234
    %v1565 = vpop.f32.mrf.mxu0
    %v1566 = vadd.f32 0.0, %v1565
    %v1567 = vpop.f32.mrf.mxu0
    %1568 = vdwg.mxu0
    %1569 = vmatpush.bf16.msra.mxu0 %v1488
    %1570 = vmatpush.bf16.msra.mxu0 %v1484
    %1571 = vmatpush.bf16.msra.mxu0 %v1480
    %1572 = vmatpush.bf16.msra.mxu0 %v1476
    %1573 = vmatpush.bf16.msra.mxu0 %v1472
    %1574 = vmatpush.bf16.msra.mxu0 %v1468
    %1575 = vmatpush.bf16.msra.mxu0 %v1464
    %1576 = vmatpush.bf16.msra.mxu0 %v1460
    %1577 = vmatmul.bf16.gmra.mxu0 %v1235
    %v1578 = vpop.f32.mrf.mxu0
    %v1579 = vadd.f32 %v1566, %v1578
    %v1580 = vpop.f32.mrf.mxu0
    %1581 = vdwg.mxu0
    %1582 = vmatpush.bf16.msra.mxu0 %v1457
    %1583 = vmatpush.bf16.msra.mxu0 %v1453
    %1584 = vmatpush.bf16.msra.mxu0 %v1449
    %1585 = vmatpush.bf16.msra.mxu0 %v1445
    %1586 = vmatpush.bf16.msra.mxu0 %v1441
    %1587 = vmatpush.bf16.msra.mxu0 %v1437
    %1588 = vmatpush.bf16.msra.mxu0 %v1433
    %1589 = vmatpush.bf16.msra.mxu0 %v1429
    %1590 = vmatmul.bf16.gmra.mxu0 %v1234
    %v1591 = vpop.f32.mrf.mxu0
    %v1592 = vadd.f32 0.0, %v1591
    %v1593 = vpop.f32.mrf.mxu0
    %1594 = vdwg.mxu0
    %1595 = vmatpush.bf16.msra.mxu0 %v1489
    %1596 = vmatpush.bf16.msra.mxu0 %v1485
    %1597 = vmatpush.bf16.msra.mxu0 %v1481
    %1598 = vmatpush.bf16.msra.mxu0 %v1477
    %1599 = vmatpush.bf16.msra.mxu0 %v1473
    %1600 = vmatpush.bf16.msra.mxu0 %v1469
    %1601 = vmatpush.bf16.msra.mxu0 %v1465
    %1602 = vmatpush.bf16.msra.mxu0 %v1461
    %1603 = vmatmul.bf16.gmra.mxu0 %v1235
    %v1604 = vpop.f32.mrf.mxu0
    %v1605 = vadd.f32 %v1592, %v1604
    %v1606 = vpop.f32.mrf.mxu0
    %1607 = vdwg.mxu0
    %1608 = vmatpush.bf16.msra.mxu0 %v1458
    %1609 = vmatpush.bf16.msra.mxu0 %v1454
    %1610 = vmatpush.bf16.msra.mxu0 %v1450
    %1611 = vmatpush.bf16.msra.mxu0 %v1446
    %1612 = vmatpush.bf16.msra.mxu0 %v1442
    %1613 = vmatpush.bf16.msra.mxu0 %v1438
    %1614 = vmatpush.bf16.msra.mxu0 %v1434
    %1615 = vmatpush.bf16.msra.mxu0 %v1430
    %1616 = vmatmul.bf16.gmra.mxu0 %v1234
    %v1617 = vpop.f32.mrf.mxu0
    %v1618 = vadd.f32 0.0, %v1617
    %v1619 = vpop.f32.mrf.mxu0
    %1620 = vdwg.mxu0
    %1621 = vmatpush.bf16.msra.mxu0 %v1490
    %1622 = vmatpush.bf16.msra.mxu0 %v1486
    %1623 = vmatpush.bf16.msra.mxu0 %v1482
    %1624 = vmatpush.bf16.msra.mxu0 %v1478
    %1625 = vmatpush.bf16.msra.mxu0 %v1474
    %1626 = vmatpush.bf16.msra.mxu0 %v1470
    %1627 = vmatpush.bf16.msra.mxu0 %v1466
    %1628 = vmatpush.bf16.msra.mxu0 %v1462
    %1629 = vmatmul.bf16.gmra.mxu0 %v1235
    %v1630 = vpop.f32.mrf.mxu0
    %v1631 = vadd.f32 %v1618, %v1630
    %v1632 = vpop.f32.mrf.mxu0
    %1633 = vdwg.mxu0
    %1634 = vmatpush.bf16.msra.mxu0 %v1459
    %1635 = vmatpush.bf16.msra.mxu0 %v1455
    %1636 = vmatpush.bf16.msra.mxu0 %v1451
    %1637 = vmatpush.bf16.msra.mxu0 %v1447
    %1638 = vmatpush.bf16.msra.mxu0 %v1443
    %1639 = vmatpush.bf16.msra.mxu0 %v1439
    %1640 = vmatpush.bf16.msra.mxu0 %v1435
    %1641 = vmatpush.bf16.msra.mxu0 %v1431
    %1642 = vmatmul.bf16.gmra.mxu0 %v1234
    %v1643 = vpop.f32.mrf.mxu0
    %v1644 = vadd.f32 0.0, %v1643
    %v1645 = vpop.f32.mrf.mxu0
    %1646 = vdwg.mxu0
    %1647 = vmatpush.bf16.msra.mxu0 %v1491
    %1648 = vmatpush.bf16.msra.mxu0 %v1487
    %1649 = vmatpush.bf16.msra.mxu0 %v1483
    %1650 = vmatpush.bf16.msra.mxu0 %v1479
    %1651 = vmatpush.bf16.msra.mxu0 %v1475
    %1652 = vmatpush.bf16.msra.mxu0 %v1471
    %1653 = vmatpush.bf16.msra.mxu0 %v1467
    %1654 = vmatpush.bf16.msra.mxu0 %v1463
    %1655 = vmatmul.bf16.gmra.mxu0 %v1235
    %v1656 = vpop.f32.mrf.mxu0
    %v1657 = vadd.f32 %v1644, %v1656
    %v1658 = vpop.f32.mrf.mxu0
    %1659 = vdwg.mxu0
    %v1664 = vrot.slane %v1605, 4
    %v1665 = vrot.slane %v1657, 4
    %v1666 = vsel %vm1078, %v1579, %v1664
    %v1667 = vsel %vm1078, %v1631, %v1665
    %v1670 = vadd.f32 %v1168, %v1666
    %v1671 = vadd.f32 %v1169, %v1667
    %v1672 = vxor.u32 %v1670, 2147483648
    %v1673 = vmul.f32 %v1672, 1.442695
    %v1674 = vpow.pop %v1673
    %v1675 = vadd.f32 %v1674, 1.0
    %v1676 = vrcp.pop %v1675
    %v1677 = vmul.f32 %v1675, %v1676
    %v1678 = vsub.f32 1.0, %v1677
    %v1679 = vmul.f32 %v1676, %v1678
    %v1680 = vadd.f32 %v1676, %v1679
    %vm1681 = vweird.f32 %v1675
    %vm1682 = vweird.f32 %v1676
    %vm1683 = vmor %vm1681, %vm1682
    %v1684 = vsel %vm1683, %v1676, %v1680
    %v1685 = vand.u32 2147483647, %v1675
    %vm1686 = vcmp.eq.f32.partialorder %v1685, 8.507059e+37
    %v1687 = vand.u32 %v1675, 2147483648
    %v1688 = vor.u32 1.1754944e-38, %v1687
    %v1689 = vsel %vm1686, %v1688, %v1684
    %v1690 = vmul.f32 1.0, %v1689
    %v1692 = vrot.slane %v1670, 4
    %v1694 = vxor.u32 %v1692, 2147483648
    %v1695 = vmul.f32 %v1694, 1.442695
    %v1696 = vpow.pop %v1695
    %v1697 = vadd.f32 %v1696, 1.0
    %v1698 = vrcp.pop %v1697
    %v1699 = vmul.f32 %v1697, %v1698
    %v1700 = vsub.f32 1.0, %v1699
    %v1701 = vmul.f32 %v1698, %v1700
    %v1702 = vadd.f32 %v1698, %v1701
    %vm1703 = vweird.f32 %v1697
    %vm1704 = vweird.f32 %v1698
    %vm1705 = vmor %vm1703, %vm1704
    %v1706 = vsel %vm1705, %v1698, %v1702
    %v1707 = vand.u32 2147483647, %v1697
    %vm1708 = vcmp.eq.f32.partialorder %v1707, 8.507059e+37
    %v1709 = vand.u32 %v1697, 2147483648
    %v1710 = vor.u32 1.1754944e-38, %v1709
    %v1711 = vsel %vm1708, %v1710, %v1706
    %v1712 = vmul.f32 1.0, %v1711
    %v1713 = vtanh.pop %v1671
    %v1715 = vrot.slane %v1671, 4
    %v1717 = vxor.u32 %v1715, 2147483648
    %v1718 = vmul.f32 %v1717, 1.442695
    %v1719 = vpow.pop %v1718
    %v1720 = vadd.f32 %v1719, 1.0
    %v1721 = vrcp.pop %v1720
    %v1722 = vmul.f32 %v1720, %v1721
    %v1723 = vsub.f32 1.0, %v1722
    %v1724 = vmul.f32 %v1721, %v1723
    %v1725 = vadd.f32 %v1721, %v1724
    %vm1726 = vweird.f32 %v1720
    %vm1727 = vweird.f32 %v1721
    %vm1728 = vmor %vm1726, %vm1727
    %v1729 = vsel %vm1728, %v1721, %v1725
    %v1730 = vand.u32 2147483647, %v1720
    %vm1731 = vcmp.eq.f32.partialorder %v1730, 8.507059e+37
    %v1732 = vand.u32 %v1720, 2147483648
    %v1733 = vor.u32 1.1754944e-38, %v1732
    %v1734 = vsel %vm1731, %v1733, %v1729
    %v1735 = vmul.f32 1.0, %v1734
    %v1736 = vmul.f32 %v1712, %v1151
    %v1737 = vmul.f32 %v1690, %v1713
    %v1738 = vadd.f32 %v1736, %v1737
    %v1739 = vtanh.pop %v1738
    %v1740 = vmul.f32 %v1735, %v1739
    %s1742 = scalar_lea.vmem [#allocation1], 1
    %1743 = vst [vmem:[%s1742] ss:$2 sm:$0xff] %v1740
    %v1744 = vld.sshfl [vmem:[#allocation1] sm:$0xff pattern:$0x75316420]
    %1746 = vst [vmem:[#allocation2] sm:$0x30] %v1744
    %1747 = vst [vmem:[#allocation2 + $0x18] sm:$0xc] %v1740
    %v1748 = vsel %vm498, %v1740, 0.0
    %v1749 = vsel %vm498, 0.0, %v1740
    %s1750 = scalar_lea.vmem %s0, 48
    %v1751 = vld [vmem:[%s1750] sm:$0xff]
    %v1752 = vld [vmem:[%s1750 + $0x8] sm:$0xff]
    %v1753 = vld [vmem:[#allocation5] sm:$0xff]
    %v1754 = vld [vmem:[#allocation5 + $0x8] sm:$0xff]
    %v1755 = vld [vmem:[#allocation5 + $0x10] sm:$0xff]
    %v1756 = vld [vmem:[#allocation5 + $0x18] sm:$0xff]
    %v1757 = vld [vmem:[#allocation5 + $0x20] sm:$0xff]
    %v1758 = vld [vmem:[#allocation5 + $0x28] sm:$0xff]
    %v1759 = vld [vmem:[#allocation5 + $0x30] sm:$0xff]
    %v1760 = vld [vmem:[#allocation5 + $0x38] sm:$0xff]
    %v1761 = vld [vmem:[#allocation5 + $0x40] sm:$0xff]
    %v1762 = vld [vmem:[#allocation5 + $0x48] sm:$0xff]
    %v1763 = vld [vmem:[#allocation5 + $0x50] sm:$0xff]
    %v1764 = vld [vmem:[#allocation5 + $0x58] sm:$0xff]
    %v1765 = vld [vmem:[#allocation5 + $0x60] sm:$0xff]
    %v1766 = vld [vmem:[#allocation5 + $0x68] sm:$0xff]
    %v1767 = vld [vmem:[#allocation5 + $0x70] sm:$0xff]
    %v1768 = vld [vmem:[#allocation5 + $0x78] sm:$0xff]
    %v1769 = vld [vmem:[#allocation5 + $0x80] sm:$0xff]
    %v1770 = vld [vmem:[#allocation5 + $0x88] sm:$0xff]
    %v1771 = vld [vmem:[#allocation5 + $0x90] sm:$0xff]
    %v1772 = vld [vmem:[#allocation5 + $0x98] sm:$0xff]
    %v1773 = vld [vmem:[#allocation5 + $0xa0] sm:$0xff]
    %v1774 = vld [vmem:[#allocation5 + $0xa8] sm:$0xff]
    %v1775 = vld [vmem:[#allocation5 + $0xb0] sm:$0xff]
    %v1776 = vld [vmem:[#allocation5 + $0xb8] sm:$0xff]
    %v1777 = vld [vmem:[#allocation5 + $0xc0] sm:$0xff]
    %v1778 = vld [vmem:[#allocation5 + $0xc8] sm:$0xff]
    %v1779 = vld [vmem:[#allocation5 + $0xd0] sm:$0xff]
    %v1780 = vld [vmem:[#allocation5 + $0xd8] sm:$0xff]
    %v1781 = vld [vmem:[#allocation5 + $0xe0] sm:$0xff]
    %v1782 = vld [vmem:[#allocation5 + $0xe8] sm:$0xff]
    %v1783 = vld [vmem:[#allocation5 + $0xf0] sm:$0xff]
    %v1784 = vld [vmem:[#allocation5 + $0xf8] sm:$0xff]
    %v1785 = vld [vmem:[#allocation5 + $0x100] sm:$0xff]
    %v1786 = vld [vmem:[#allocation5 + $0x108] sm:$0xff]
    %v1787 = vld [vmem:[#allocation5 + $0x110] sm:$0xff]
    %v1788 = vld [vmem:[#allocation5 + $0x118] sm:$0xff]
    %v1789 = vld [vmem:[#allocation5 + $0x120] sm:$0xff]
    %v1790 = vld [vmem:[#allocation5 + $0x128] sm:$0xff]
    %v1791 = vld [vmem:[#allocation5 + $0x130] sm:$0xff]
    %v1792 = vld [vmem:[#allocation5 + $0x138] sm:$0xff]
    %v1793 = vld [vmem:[#allocation5 + $0x140] sm:$0xff]
    %v1794 = vld [vmem:[#allocation5 + $0x148] sm:$0xff]
    %v1795 = vld [vmem:[#allocation5 + $0x150] sm:$0xff]
    %v1796 = vld [vmem:[#allocation5 + $0x158] sm:$0xff]
    %v1797 = vld [vmem:[#allocation5 + $0x160] sm:$0xff]
    %v1798 = vld [vmem:[#allocation5 + $0x168] sm:$0xff]
    %v1799 = vld [vmem:[#allocation5 + $0x170] sm:$0xff]
    %v1800 = vld [vmem:[#allocation5 + $0x178] sm:$0xff]
    %v1801 = vld [vmem:[#allocation5 + $0x180] sm:$0xff]
    %v1802 = vld [vmem:[#allocation5 + $0x188] sm:$0xff]
    %v1803 = vld [vmem:[#allocation5 + $0x190] sm:$0xff]
    %v1804 = vld [vmem:[#allocation5 + $0x198] sm:$0xff]
    %v1805 = vld [vmem:[#allocation5 + $0x1a0] sm:$0xff]
    %v1806 = vld [vmem:[#allocation5 + $0x1a8] sm:$0xff]
    %v1807 = vld [vmem:[#allocation5 + $0x1b0] sm:$0xff]
    %v1808 = vld [vmem:[#allocation5 + $0x1b8] sm:$0xff]
    %v1809 = vld [vmem:[#allocation5 + $0x1c0] sm:$0xff]
    %v1810 = vld [vmem:[#allocation5 + $0x1c8] sm:$0xff]
    %v1811 = vld [vmem:[#allocation5 + $0x1d0] sm:$0xff]
    %v1812 = vld [vmem:[#allocation5 + $0x1d8] sm:$0xff]
    %v1813 = vld [vmem:[#allocation5 + $0x1e0] sm:$0xff]
    %v1814 = vld [vmem:[#allocation5 + $0x1e8] sm:$0xff]
    %v1815 = vld [vmem:[#allocation5 + $0x1f0] sm:$0xff]
    %v1816 = vld [vmem:[#allocation5 + $0x1f8] sm:$0xff]
    %v1817 = vpack.c.bf16 %v1748, %v1748
    %v1818 = vpack.c.bf16 %v1749, %v1749
    %v1883 = vunpack.c.l.b16 %v1753
    %v1884 = vunpack.c.h.b16 %v1753
    %v1885 = vunpack.c.l.b16 %v1754
    %v1886 = vunpack.c.h.b16 %v1754
    %v1887 = vunpack.c.l.b16 %v1755
    %v1888 = vunpack.c.h.b16 %v1755
    %v1889 = vunpack.c.l.b16 %v1756
    %v1890 = vunpack.c.h.b16 %v1756
    %v1891 = vunpack.c.l.b16 %v1757
    %v1892 = vunpack.c.h.b16 %v1757
    %v1893 = vunpack.c.l.b16 %v1758
    %v1894 = vunpack.c.h.b16 %v1758
    %v1895 = vunpack.c.l.b16 %v1759
    %v1896 = vunpack.c.h.b16 %v1759
    %v1897 = vunpack.c.l.b16 %v1760
    %v1898 = vunpack.c.h.b16 %v1760
    %v1899 = vunpack.c.l.b16 %v1761
    %v1900 = vunpack.c.h.b16 %v1761
    %v1901 = vunpack.c.l.b16 %v1762
    %v1902 = vunpack.c.h.b16 %v1762
    %v1903 = vunpack.c.l.b16 %v1763
    %v1904 = vunpack.c.h.b16 %v1763
    %v1905 = vunpack.c.l.b16 %v1764
    %v1906 = vunpack.c.h.b16 %v1764
    %v1907 = vunpack.c.l.b16 %v1765
    %v1908 = vunpack.c.h.b16 %v1765
    %v1909 = vunpack.c.l.b16 %v1766
    %v1910 = vunpack.c.h.b16 %v1766
    %v1911 = vunpack.c.l.b16 %v1767
    %v1912 = vunpack.c.h.b16 %v1767
    %v1913 = vunpack.c.l.b16 %v1768
    %v1914 = vunpack.c.h.b16 %v1768
    %v1915 = vunpack.c.l.b16 %v1769
    %v1916 = vunpack.c.h.b16 %v1769
    %v1917 = vunpack.c.l.b16 %v1770
    %v1918 = vunpack.c.h.b16 %v1770
    %v1919 = vunpack.c.l.b16 %v1771
    %v1920 = vunpack.c.h.b16 %v1771
    %v1921 = vunpack.c.l.b16 %v1772
    %v1922 = vunpack.c.h.b16 %v1772
    %v1923 = vunpack.c.l.b16 %v1773
    %v1924 = vunpack.c.h.b16 %v1773
    %v1925 = vunpack.c.l.b16 %v1774
    %v1926 = vunpack.c.h.b16 %v1774
    %v1927 = vunpack.c.l.b16 %v1775
    %v1928 = vunpack.c.h.b16 %v1775
    %v1929 = vunpack.c.l.b16 %v1776
    %v1930 = vunpack.c.h.b16 %v1776
    %v1931 = vunpack.c.l.b16 %v1777
    %v1932 = vunpack.c.h.b16 %v1777
    %v1933 = vunpack.c.l.b16 %v1778
    %v1934 = vunpack.c.h.b16 %v1778
    %v1935 = vunpack.c.l.b16 %v1779
    %v1936 = vunpack.c.h.b16 %v1779
    %v1937 = vunpack.c.l.b16 %v1780
    %v1938 = vunpack.c.h.b16 %v1780
    %v1939 = vunpack.c.l.b16 %v1781
    %v1940 = vunpack.c.h.b16 %v1781
    %v1941 = vunpack.c.l.b16 %v1782
    %v1942 = vunpack.c.h.b16 %v1782
    %v1943 = vunpack.c.l.b16 %v1783
    %v1944 = vunpack.c.h.b16 %v1783
    %v1945 = vunpack.c.l.b16 %v1784
    %v1946 = vunpack.c.h.b16 %v1784
    %v1947 = vunpack.c.l.b16 %v1785
    %v1948 = vunpack.c.h.b16 %v1785
    %v1949 = vunpack.c.l.b16 %v1786
    %v1950 = vunpack.c.h.b16 %v1786
    %v1951 = vunpack.c.l.b16 %v1787
    %v1952 = vunpack.c.h.b16 %v1787
    %v1953 = vunpack.c.l.b16 %v1788
    %v1954 = vunpack.c.h.b16 %v1788
    %v1955 = vunpack.c.l.b16 %v1789
    %v1956 = vunpack.c.h.b16 %v1789
    %v1957 = vunpack.c.l.b16 %v1790
    %v1958 = vunpack.c.h.b16 %v1790
    %v1959 = vunpack.c.l.b16 %v1791
    %v1960 = vunpack.c.h.b16 %v1791
    %v1961 = vunpack.c.l.b16 %v1792
    %v1962 = vunpack.c.h.b16 %v1792
    %v1963 = vunpack.c.l.b16 %v1793
    %v1964 = vunpack.c.h.b16 %v1793
    %v1965 = vunpack.c.l.b16 %v1794
    %v1966 = vunpack.c.h.b16 %v1794
    %v1967 = vunpack.c.l.b16 %v1795
    %v1968 = vunpack.c.h.b16 %v1795
    %v1969 = vunpack.c.l.b16 %v1796
    %v1970 = vunpack.c.h.b16 %v1796
    %v1971 = vunpack.c.l.b16 %v1797
    %v1972 = vunpack.c.h.b16 %v1797
    %v1973 = vunpack.c.l.b16 %v1798
    %v1974 = vunpack.c.h.b16 %v1798
    %v1975 = vunpack.c.l.b16 %v1799
    %v1976 = vunpack.c.h.b16 %v1799
    %v1977 = vunpack.c.l.b16 %v1800
    %v1978 = vunpack.c.h.b16 %v1800
    %v1979 = vunpack.c.l.b16 %v1801
    %v1980 = vunpack.c.h.b16 %v1801
    %v1981 = vunpack.c.l.b16 %v1802
    %v1982 = vunpack.c.h.b16 %v1802
    %v1983 = vunpack.c.l.b16 %v1803
    %v1984 = vunpack.c.h.b16 %v1803
    %v1985 = vunpack.c.l.b16 %v1804
    %v1986 = vunpack.c.h.b16 %v1804
    %v1987 = vunpack.c.l.b16 %v1805
    %v1988 = vunpack.c.h.b16 %v1805
    %v1989 = vunpack.c.l.b16 %v1806
    %v1990 = vunpack.c.h.b16 %v1806
    %v1991 = vunpack.c.l.b16 %v1807
    %v1992 = vunpack.c.h.b16 %v1807
    %v1993 = vunpack.c.l.b16 %v1808
    %v1994 = vunpack.c.h.b16 %v1808
    %v1995 = vunpack.c.l.b16 %v1809
    %v1996 = vunpack.c.h.b16 %v1809
    %v1997 = vunpack.c.l.b16 %v1810
    %v1998 = vunpack.c.h.b16 %v1810
    %v1999 = vunpack.c.l.b16 %v1811
    %v2000 = vunpack.c.h.b16 %v1811
    %v2001 = vunpack.c.l.b16 %v1812
    %v2002 = vunpack.c.h.b16 %v1812
    %v2003 = vunpack.c.l.b16 %v1813
    %v2004 = vunpack.c.h.b16 %v1813
    %v2005 = vunpack.c.l.b16 %v1814
    %v2006 = vunpack.c.h.b16 %v1814
    %v2007 = vunpack.c.l.b16 %v1815
    %v2008 = vunpack.c.h.b16 %v1815
    %v2009 = vunpack.c.l.b16 %v1816
    %v2010 = vunpack.c.h.b16 %v1816
    %v2011 = vpack.c.b16 %v1887, %v1883
    %v2012 = vpack.c.b16 %v1888, %v1884
    %v2013 = vpack.c.b16 %v1889, %v1885
    %v2014 = vpack.c.b16 %v1890, %v1886
    %v2015 = vpack.c.b16 %v1895, %v1891
    %v2016 = vpack.c.b16 %v1896, %v1892
    %v2017 = vpack.c.b16 %v1897, %v1893
    %v2018 = vpack.c.b16 %v1898, %v1894
    %v2019 = vpack.c.b16 %v1903, %v1899
    %v2020 = vpack.c.b16 %v1904, %v1900
    %v2021 = vpack.c.b16 %v1905, %v1901
    %v2022 = vpack.c.b16 %v1906, %v1902
    %v2023 = vpack.c.b16 %v1911, %v1907
    %v2024 = vpack.c.b16 %v1912, %v1908
    %v2025 = vpack.c.b16 %v1913, %v1909
    %v2026 = vpack.c.b16 %v1914, %v1910
    %v2027 = vpack.c.b16 %v1919, %v1915
    %v2028 = vpack.c.b16 %v1920, %v1916
    %v2029 = vpack.c.b16 %v1921, %v1917
    %v2030 = vpack.c.b16 %v1922, %v1918
    %v2031 = vpack.c.b16 %v1927, %v1923
    %v2032 = vpack.c.b16 %v1928, %v1924
    %v2033 = vpack.c.b16 %v1929, %v1925
    %v2034 = vpack.c.b16 %v1930, %v1926
    %v2035 = vpack.c.b16 %v1935, %v1931
    %v2036 = vpack.c.b16 %v1936, %v1932
    %v2037 = vpack.c.b16 %v1937, %v1933
    %v2038 = vpack.c.b16 %v1938, %v1934
    %v2039 = vpack.c.b16 %v1943, %v1939
    %v2040 = vpack.c.b16 %v1944, %v1940
    %v2041 = vpack.c.b16 %v1945, %v1941
    %v2042 = vpack.c.b16 %v1946, %v1942
    %v2043 = vpack.c.b16 %v1951, %v1947
    %v2044 = vpack.c.b16 %v1952, %v1948
    %v2045 = vpack.c.b16 %v1953, %v1949
    %v2046 = vpack.c.b16 %v1954, %v1950
    %v2047 = vpack.c.b16 %v1959, %v1955
    %v2048 = vpack.c.b16 %v1960, %v1956
    %v2049 = vpack.c.b16 %v1961, %v1957
    %v2050 = vpack.c.b16 %v1962, %v1958
    %v2051 = vpack.c.b16 %v1967, %v1963
    %v2052 = vpack.c.b16 %v1968, %v1964
    %v2053 = vpack.c.b16 %v1969, %v1965
    %v2054 = vpack.c.b16 %v1970, %v1966
    %v2055 = vpack.c.b16 %v1975, %v1971
    %v2056 = vpack.c.b16 %v1976, %v1972
    %v2057 = vpack.c.b16 %v1977, %v1973
    %v2058 = vpack.c.b16 %v1978, %v1974
    %v2059 = vpack.c.b16 %v1983, %v1979
    %v2060 = vpack.c.b16 %v1984, %v1980
    %v2061 = vpack.c.b16 %v1985, %v1981
    %v2062 = vpack.c.b16 %v1986, %v1982
    %v2063 = vpack.c.b16 %v1991, %v1987
    %v2064 = vpack.c.b16 %v1992, %v1988
    %v2065 = vpack.c.b16 %v1993, %v1989
    %v2066 = vpack.c.b16 %v1994, %v1990
    %v2067 = vpack.c.b16 %v1999, %v1995
    %v2068 = vpack.c.b16 %v2000, %v1996
    %v2069 = vpack.c.b16 %v2001, %v1997
    %v2070 = vpack.c.b16 %v2002, %v1998
    %v2071 = vpack.c.b16 %v2007, %v2003
    %v2072 = vpack.c.b16 %v2008, %v2004
    %v2073 = vpack.c.b16 %v2009, %v2005
    %v2074 = vpack.c.b16 %v2010, %v2006
    %2139 = vmatpush.bf16.msra.mxu0 %v2039
    %2140 = vmatpush.bf16.msra.mxu0 %v2035
    %2141 = vmatpush.bf16.msra.mxu0 %v2031
    %2142 = vmatpush.bf16.msra.mxu0 %v2027
    %2143 = vmatpush.bf16.msra.mxu0 %v2023
    %2144 = vmatpush.bf16.msra.mxu0 %v2019
    %2145 = vmatpush.bf16.msra.mxu0 %v2015
    %2146 = vmatpush.bf16.msra.mxu0 %v2011
    %2147 = vmatmul.bf16.gmra.mxu0 %v1817
    %v2148 = vpop.f32.mrf.mxu0
    %v2149 = vadd.f32 0.0, %v2148
    %v2150 = vpop.f32.mrf.mxu0
    %2151 = vdwg.mxu0
    %2152 = vmatpush.bf16.msra.mxu0 %v2071
    %2153 = vmatpush.bf16.msra.mxu0 %v2067
    %2154 = vmatpush.bf16.msra.mxu0 %v2063
    %2155 = vmatpush.bf16.msra.mxu0 %v2059
    %2156 = vmatpush.bf16.msra.mxu0 %v2055
    %2157 = vmatpush.bf16.msra.mxu0 %v2051
    %2158 = vmatpush.bf16.msra.mxu0 %v2047
    %2159 = vmatpush.bf16.msra.mxu0 %v2043
    %2160 = vmatmul.bf16.gmra.mxu0 %v1818
    %v2161 = vpop.f32.mrf.mxu0
    %v2162 = vadd.f32 %v2149, %v2161
    %v2163 = vpop.f32.mrf.mxu0
    %2164 = vdwg.mxu0
    %2165 = vmatpush.bf16.msra.mxu0 %v2040
    %2166 = vmatpush.bf16.msra.mxu0 %v2036
    %2167 = vmatpush.bf16.msra.mxu0 %v2032
    %2168 = vmatpush.bf16.msra.mxu0 %v2028
    %2169 = vmatpush.bf16.msra.mxu0 %v2024
    %2170 = vmatpush.bf16.msra.mxu0 %v2020
    %2171 = vmatpush.bf16.msra.mxu0 %v2016
    %2172 = vmatpush.bf16.msra.mxu0 %v2012
    %2173 = vmatmul.bf16.gmra.mxu0 %v1817
    %v2174 = vpop.f32.mrf.mxu0
    %v2175 = vadd.f32 0.0, %v2174
    %v2176 = vpop.f32.mrf.mxu0
    %2177 = vdwg.mxu0
    %2178 = vmatpush.bf16.msra.mxu0 %v2072
    %2179 = vmatpush.bf16.msra.mxu0 %v2068
    %2180 = vmatpush.bf16.msra.mxu0 %v2064
    %2181 = vmatpush.bf16.msra.mxu0 %v2060
    %2182 = vmatpush.bf16.msra.mxu0 %v2056
    %2183 = vmatpush.bf16.msra.mxu0 %v2052
    %2184 = vmatpush.bf16.msra.mxu0 %v2048
    %2185 = vmatpush.bf16.msra.mxu0 %v2044
    %2186 = vmatmul.bf16.gmra.mxu0 %v1818
    %v2187 = vpop.f32.mrf.mxu0
    %v2188 = vadd.f32 %v2175, %v2187
    %v2189 = vpop.f32.mrf.mxu0
    %2190 = vdwg.mxu0
    %2191 = vmatpush.bf16.msra.mxu0 %v2041
    %2192 = vmatpush.bf16.msra.mxu0 %v2037
    %2193 = vmatpush.bf16.msra.mxu0 %v2033
    %2194 = vmatpush.bf16.msra.mxu0 %v2029
    %2195 = vmatpush.bf16.msra.mxu0 %v2025
    %2196 = vmatpush.bf16.msra.mxu0 %v2021
    %2197 = vmatpush.bf16.msra.mxu0 %v2017
    %2198 = vmatpush.bf16.msra.mxu0 %v2013
    %2199 = vmatmul.bf16.gmra.mxu0 %v1817
    %v2200 = vpop.f32.mrf.mxu0
    %v2201 = vadd.f32 0.0, %v2200
    %v2202 = vpop.f32.mrf.mxu0
    %2203 = vdwg.mxu0
    %2204 = vmatpush.bf16.msra.mxu0 %v2073
    %2205 = vmatpush.bf16.msra.mxu0 %v2069
    %2206 = vmatpush.bf16.msra.mxu0 %v2065
    %2207 = vmatpush.bf16.msra.mxu0 %v2061
    %2208 = vmatpush.bf16.msra.mxu0 %v2057
    %2209 = vmatpush.bf16.msra.mxu0 %v2053
    %2210 = vmatpush.bf16.msra.mxu0 %v2049
    %2211 = vmatpush.bf16.msra.mxu0 %v2045
    %2212 = vmatmul.bf16.gmra.mxu0 %v1818
    %v2213 = vpop.f32.mrf.mxu0
    %v2214 = vadd.f32 %v2201, %v2213
    %v2215 = vpop.f32.mrf.mxu0
    %2216 = vdwg.mxu0
    %2217 = vmatpush.bf16.msra.mxu0 %v2042
    %2218 = vmatpush.bf16.msra.mxu0 %v2038
    %2219 = vmatpush.bf16.msra.mxu0 %v2034
    %2220 = vmatpush.bf16.msra.mxu0 %v2030
    %2221 = vmatpush.bf16.msra.mxu0 %v2026
    %2222 = vmatpush.bf16.msra.mxu0 %v2022
    %2223 = vmatpush.bf16.msra.mxu0 %v2018
    %2224 = vmatpush.bf16.msra.mxu0 %v2014
    %2225 = vmatmul.bf16.gmra.mxu0 %v1817
    %v2226 = vpop.f32.mrf.mxu0
    %v2227 = vadd.f32 0.0, %v2226
    %v2228 = vpop.f32.mrf.mxu0
    %2229 = vdwg.mxu0
    %2230 = vmatpush.bf16.msra.mxu0 %v2074
    %2231 = vmatpush.bf16.msra.mxu0 %v2070
    %2232 = vmatpush.bf16.msra.mxu0 %v2066
    %2233 = vmatpush.bf16.msra.mxu0 %v2062
    %2234 = vmatpush.bf16.msra.mxu0 %v2058
    %2235 = vmatpush.bf16.msra.mxu0 %v2054
    %2236 = vmatpush.bf16.msra.mxu0 %v2050
    %2237 = vmatpush.bf16.msra.mxu0 %v2046
    %2238 = vmatmul.bf16.gmra.mxu0 %v1818
    %v2239 = vpop.f32.mrf.mxu0
    %v2240 = vadd.f32 %v2227, %v2239
    %v2241 = vpop.f32.mrf.mxu0
    %2242 = vdwg.mxu0
    %v2247 = vrot.slane %v2188, 4
    %v2248 = vrot.slane %v2240, 4
    %v2249 = vsel %vm1078, %v2162, %v2247
    %v2250 = vsel %vm1078, %v2214, %v2248
    %v2253 = vadd.f32 %v1751, %v2249
    %v2254 = vadd.f32 %v1752, %v2250
    %v2255 = vxor.u32 %v2253, 2147483648
    %v2256 = vmul.f32 %v2255, 1.442695
    %v2257 = vpow.pop %v2256
    %v2258 = vadd.f32 %v2257, 1.0
    %v2259 = vrcp.pop %v2258
    %v2260 = vmul.f32 %v2258, %v2259
    %v2261 = vsub.f32 1.0, %v2260
    %v2262 = vmul.f32 %v2259, %v2261
    %v2263 = vadd.f32 %v2259, %v2262
    %vm2264 = vweird.f32 %v2258
    %vm2265 = vweird.f32 %v2259
    %vm2266 = vmor %vm2264, %vm2265
    %v2267 = vsel %vm2266, %v2259, %v2263
    %v2268 = vand.u32 2147483647, %v2258
    %vm2269 = vcmp.eq.f32.partialorder %v2268, 8.507059e+37
    %v2270 = vand.u32 %v2258, 2147483648
    %v2271 = vor.u32 1.1754944e-38, %v2270
    %v2272 = vsel %vm2269, %v2271, %v2267
    %v2273 = vmul.f32 1.0, %v2272
    %v2275 = vrot.slane %v2253, 4
    %v2277 = vxor.u32 %v2275, 2147483648
    %v2278 = vmul.f32 %v2277, 1.442695
    %v2279 = vpow.pop %v2278
    %v2280 = vadd.f32 %v2279, 1.0
    %v2281 = vrcp.pop %v2280
    %v2282 = vmul.f32 %v2280, %v2281
    %v2283 = vsub.f32 1.0, %v2282
    %v2284 = vmul.f32 %v2281, %v2283
    %v2285 = vadd.f32 %v2281, %v2284
    %vm2286 = vweird.f32 %v2280
    %vm2287 = vweird.f32 %v2281
    %vm2288 = vmor %vm2286, %vm2287
    %v2289 = vsel %vm2288, %v2281, %v2285
    %v2290 = vand.u32 2147483647, %v2280
    %vm2291 = vcmp.eq.f32.partialorder %v2290, 8.507059e+37
    %v2292 = vand.u32 %v2280, 2147483648
    %v2293 = vor.u32 1.1754944e-38, %v2292
    %v2294 = vsel %vm2291, %v2293, %v2289
    %v2295 = vmul.f32 1.0, %v2294
    %v2296 = vtanh.pop %v2254
    %v2298 = vrot.slane %v2254, 4
    %v2300 = vxor.u32 %v2298, 2147483648
    %v2301 = vmul.f32 %v2300, 1.442695
    %v2302 = vpow.pop %v2301
    %v2303 = vadd.f32 %v2302, 1.0
    %v2304 = vrcp.pop %v2303
    %v2305 = vmul.f32 %v2303, %v2304
    %v2306 = vsub.f32 1.0, %v2305
    %v2307 = vmul.f32 %v2304, %v2306
    %v2308 = vadd.f32 %v2304, %v2307
    %vm2309 = vweird.f32 %v2303
    %vm2310 = vweird.f32 %v2304
    %vm2311 = vmor %vm2309, %vm2310
    %v2312 = vsel %vm2311, %v2304, %v2308
    %v2313 = vand.u32 2147483647, %v2303
    %vm2314 = vcmp.eq.f32.partialorder %v2313, 8.507059e+37
    %v2315 = vand.u32 %v2303, 2147483648
    %v2316 = vor.u32 1.1754944e-38, %v2315
    %v2317 = vsel %vm2314, %v2316, %v2312
    %v2318 = vmul.f32 1.0, %v2317
    %v2319 = vmul.f32 %v2295, %v1738
    %v2320 = vmul.f32 %v2273, %v2296
    %v2321 = vadd.f32 %v2319, %v2320
    %v2322 = vtanh.pop %v2321
    %v2323 = vmul.f32 %v2318, %v2322
    %2325 = vst [vmem:[#allocation1] ss:$2 sm:$0xff] %v2323
    %v2326 = vld.sshfl [vmem:[#allocation1] sm:$0xff pattern:$0x75316420]
    %v2327 = vrot.slane %v2326, 2
    %2329 = vst [vmem:[#allocation2] sm:$0xc0] %v2327
    %2330 = vst [vmem:[#allocation1] ss:$2 sm:$0xff] %v2323
    %v2331 = vld.sshfl [vmem:[#allocation1] sm:$0xff pattern:$0x75316420]
    %v2332 = vrot.slane %v2331, 2
    %2334 = vst [vmem:[#allocation2 + $0x18] sm:$0x3] %v2332
    %v2335 = vsel %vm498, %v2323, 0.0
    %v2336 = vsel %vm498, 0.0, %v2323
    %s2337 = scalar_lea.vmem %s0, 64
    %v2338 = vld [vmem:[%s2337] sm:$0xff]
    %v2339 = vld [vmem:[%s2337 + $0x8] sm:$0xff]
    %v2340 = vld [vmem:[#allocation5] sm:$0xff]
    %v2341 = vld [vmem:[#allocation5 + $0x8] sm:$0xff]
    %v2342 = vld [vmem:[#allocation5 + $0x10] sm:$0xff]
    %v2343 = vld [vmem:[#allocation5 + $0x18] sm:$0xff]
    %v2344 = vld [vmem:[#allocation5 + $0x20] sm:$0xff]
    %v2345 = vld [vmem:[#allocation5 + $0x28] sm:$0xff]
    %v2346 = vld [vmem:[#allocation5 + $0x30] sm:$0xff]
    %v2347 = vld [vmem:[#allocation5 + $0x38] sm:$0xff]
    %v2348 = vld [vmem:[#allocation5 + $0x40] sm:$0xff]
    %v2349 = vld [vmem:[#allocation5 + $0x48] sm:$0xff]
    %v2350 = vld [vmem:[#allocation5 + $0x50] sm:$0xff]
    %v2351 = vld [vmem:[#allocation5 + $0x58] sm:$0xff]
    %v2352 = vld [vmem:[#allocation5 + $0x60] sm:$0xff]
    %v2353 = vld [vmem:[#allocation5 + $0x68] sm:$0xff]
    %v2354 = vld [vmem:[#allocation5 + $0x70] sm:$0xff]
    %v2355 = vld [vmem:[#allocation5 + $0x78] sm:$0xff]
    %v2356 = vld [vmem:[#allocation5 + $0x80] sm:$0xff]
    %v2357 = vld [vmem:[#allocation5 + $0x88] sm:$0xff]
    %v2358 = vld [vmem:[#allocation5 + $0x90] sm:$0xff]
    %v2359 = vld [vmem:[#allocation5 + $0x98] sm:$0xff]
    %v2360 = vld [vmem:[#allocation5 + $0xa0] sm:$0xff]
    %v2361 = vld [vmem:[#allocation5 + $0xa8] sm:$0xff]
    %v2362 = vld [vmem:[#allocation5 + $0xb0] sm:$0xff]
    %v2363 = vld [vmem:[#allocation5 + $0xb8] sm:$0xff]
    %v2364 = vld [vmem:[#allocation5 + $0xc0] sm:$0xff]
    %v2365 = vld [vmem:[#allocation5 + $0xc8] sm:$0xff]
    %v2366 = vld [vmem:[#allocation5 + $0xd0] sm:$0xff]
    %v2367 = vld [vmem:[#allocation5 + $0xd8] sm:$0xff]
    %v2368 = vld [vmem:[#allocation5 + $0xe0] sm:$0xff]
    %v2369 = vld [vmem:[#allocation5 + $0xe8] sm:$0xff]
    %v2370 = vld [vmem:[#allocation5 + $0xf0] sm:$0xff]
    %v2371 = vld [vmem:[#allocation5 + $0xf8] sm:$0xff]
    %v2372 = vld [vmem:[#allocation5 + $0x100] sm:$0xff]
    %v2373 = vld [vmem:[#allocation5 + $0x108] sm:$0xff]
    %v2374 = vld [vmem:[#allocation5 + $0x110] sm:$0xff]
    %v2375 = vld [vmem:[#allocation5 + $0x118] sm:$0xff]
    %v2376 = vld [vmem:[#allocation5 + $0x120] sm:$0xff]
    %v2377 = vld [vmem:[#allocation5 + $0x128] sm:$0xff]
    %v2378 = vld [vmem:[#allocation5 + $0x130] sm:$0xff]
    %v2379 = vld [vmem:[#allocation5 + $0x138] sm:$0xff]
    %v2380 = vld [vmem:[#allocation5 + $0x140] sm:$0xff]
    %v2381 = vld [vmem:[#allocation5 + $0x148] sm:$0xff]
    %v2382 = vld [vmem:[#allocation5 + $0x150] sm:$0xff]
    %v2383 = vld [vmem:[#allocation5 + $0x158] sm:$0xff]
    %v2384 = vld [vmem:[#allocation5 + $0x160] sm:$0xff]
    %v2385 = vld [vmem:[#allocation5 + $0x168] sm:$0xff]
    %v2386 = vld [vmem:[#allocation5 + $0x170] sm:$0xff]
    %v2387 = vld [vmem:[#allocation5 + $0x178] sm:$0xff]
    %v2388 = vld [vmem:[#allocation5 + $0x180] sm:$0xff]
    %v2389 = vld [vmem:[#allocation5 + $0x188] sm:$0xff]
    %v2390 = vld [vmem:[#allocation5 + $0x190] sm:$0xff]
    %v2391 = vld [vmem:[#allocation5 + $0x198] sm:$0xff]
    %v2392 = vld [vmem:[#allocation5 + $0x1a0] sm:$0xff]
    %v2393 = vld [vmem:[#allocation5 + $0x1a8] sm:$0xff]
    %v2394 = vld [vmem:[#allocation5 + $0x1b0] sm:$0xff]
    %v2395 = vld [vmem:[#allocation5 + $0x1b8] sm:$0xff]
    %v2396 = vld [vmem:[#allocation5 + $0x1c0] sm:$0xff]
    %v2397 = vld [vmem:[#allocation5 + $0x1c8] sm:$0xff]
    %v2398 = vld [vmem:[#allocation5 + $0x1d0] sm:$0xff]
    %v2399 = vld [vmem:[#allocation5 + $0x1d8] sm:$0xff]
    %v2400 = vld [vmem:[#allocation5 + $0x1e0] sm:$0xff]
    %v2401 = vld [vmem:[#allocation5 + $0x1e8] sm:$0xff]
    %v2402 = vld [vmem:[#allocation5 + $0x1f0] sm:$0xff]
    %v2403 = vld [vmem:[#allocation5 + $0x1f8] sm:$0xff]
    %v2404 = vpack.c.bf16 %v2335, %v2335
    %v2405 = vpack.c.bf16 %v2336, %v2336
    %v2470 = vunpack.c.l.b16 %v2340
    %v2471 = vunpack.c.h.b16 %v2340
    %v2472 = vunpack.c.l.b16 %v2341
    %v2473 = vunpack.c.h.b16 %v2341
    %v2474 = vunpack.c.l.b16 %v2342
    %v2475 = vunpack.c.h.b16 %v2342
    %v2476 = vunpack.c.l.b16 %v2343
    %v2477 = vunpack.c.h.b16 %v2343
    %v2478 = vunpack.c.l.b16 %v2344
    %v2479 = vunpack.c.h.b16 %v2344
    %v2480 = vunpack.c.l.b16 %v2345
    %v2481 = vunpack.c.h.b16 %v2345
    %v2482 = vunpack.c.l.b16 %v2346
    %v2483 = vunpack.c.h.b16 %v2346
    %v2484 = vunpack.c.l.b16 %v2347
    %v2485 = vunpack.c.h.b16 %v2347
    %v2486 = vunpack.c.l.b16 %v2348
    %v2487 = vunpack.c.h.b16 %v2348
    %v2488 = vunpack.c.l.b16 %v2349
    %v2489 = vunpack.c.h.b16 %v2349
    %v2490 = vunpack.c.l.b16 %v2350
    %v2491 = vunpack.c.h.b16 %v2350
    %v2492 = vunpack.c.l.b16 %v2351
    %v2493 = vunpack.c.h.b16 %v2351
    %v2494 = vunpack.c.l.b16 %v2352
    %v2495 = vunpack.c.h.b16 %v2352
    %v2496 = vunpack.c.l.b16 %v2353
    %v2497 = vunpack.c.h.b16 %v2353
    %v2498 = vunpack.c.l.b16 %v2354
    %v2499 = vunpack.c.h.b16 %v2354
    %v2500 = vunpack.c.l.b16 %v2355
    %v2501 = vunpack.c.h.b16 %v2355
    %v2502 = vunpack.c.l.b16 %v2356
    %v2503 = vunpack.c.h.b16 %v2356
    %v2504 = vunpack.c.l.b16 %v2357
    %v2505 = vunpack.c.h.b16 %v2357
    %v2506 = vunpack.c.l.b16 %v2358
    %v2507 = vunpack.c.h.b16 %v2358
    %v2508 = vunpack.c.l.b16 %v2359
    %v2509 = vunpack.c.h.b16 %v2359
    %v2510 = vunpack.c.l.b16 %v2360
    %v2511 = vunpack.c.h.b16 %v2360
    %v2512 = vunpack.c.l.b16 %v2361
    %v2513 = vunpack.c.h.b16 %v2361
    %v2514 = vunpack.c.l.b16 %v2362
    %v2515 = vunpack.c.h.b16 %v2362
    %v2516 = vunpack.c.l.b16 %v2363
    %v2517 = vunpack.c.h.b16 %v2363
    %v2518 = vunpack.c.l.b16 %v2364
    %v2519 = vunpack.c.h.b16 %v2364
    %v2520 = vunpack.c.l.b16 %v2365
    %v2521 = vunpack.c.h.b16 %v2365
    %v2522 = vunpack.c.l.b16 %v2366
    %v2523 = vunpack.c.h.b16 %v2366
    %v2524 = vunpack.c.l.b16 %v2367
    %v2525 = vunpack.c.h.b16 %v2367
    %v2526 = vunpack.c.l.b16 %v2368
    %v2527 = vunpack.c.h.b16 %v2368
    %v2528 = vunpack.c.l.b16 %v2369
    %v2529 = vunpack.c.h.b16 %v2369
    %v2530 = vunpack.c.l.b16 %v2370
    %v2531 = vunpack.c.h.b16 %v2370
    %v2532 = vunpack.c.l.b16 %v2371
    %v2533 = vunpack.c.h.b16 %v2371
    %v2534 = vunpack.c.l.b16 %v2372
    %v2535 = vunpack.c.h.b16 %v2372
    %v2536 = vunpack.c.l.b16 %v2373
    %v2537 = vunpack.c.h.b16 %v2373
    %v2538 = vunpack.c.l.b16 %v2374
    %v2539 = vunpack.c.h.b16 %v2374
    %v2540 = vunpack.c.l.b16 %v2375
    %v2541 = vunpack.c.h.b16 %v2375
    %v2542 = vunpack.c.l.b16 %v2376
    %v2543 = vunpack.c.h.b16 %v2376
    %v2544 = vunpack.c.l.b16 %v2377
    %v2545 = vunpack.c.h.b16 %v2377
    %v2546 = vunpack.c.l.b16 %v2378
    %v2547 = vunpack.c.h.b16 %v2378
    %v2548 = vunpack.c.l.b16 %v2379
    %v2549 = vunpack.c.h.b16 %v2379
    %v2550 = vunpack.c.l.b16 %v2380
    %v2551 = vunpack.c.h.b16 %v2380
    %v2552 = vunpack.c.l.b16 %v2381
    %v2553 = vunpack.c.h.b16 %v2381
    %v2554 = vunpack.c.l.b16 %v2382
    %v2555 = vunpack.c.h.b16 %v2382
    %v2556 = vunpack.c.l.b16 %v2383
    %v2557 = vunpack.c.h.b16 %v2383
    %v2558 = vunpack.c.l.b16 %v2384
    %v2559 = vunpack.c.h.b16 %v2384
    %v2560 = vunpack.c.l.b16 %v2385
    %v2561 = vunpack.c.h.b16 %v2385
    %v2562 = vunpack.c.l.b16 %v2386
    %v2563 = vunpack.c.h.b16 %v2386
    %v2564 = vunpack.c.l.b16 %v2387
    %v2565 = vunpack.c.h.b16 %v2387
    %v2566 = vunpack.c.l.b16 %v2388
    %v2567 = vunpack.c.h.b16 %v2388
    %v2568 = vunpack.c.l.b16 %v2389
    %v2569 = vunpack.c.h.b16 %v2389
    %v2570 = vunpack.c.l.b16 %v2390
    %v2571 = vunpack.c.h.b16 %v2390
    %v2572 = vunpack.c.l.b16 %v2391
    %v2573 = vunpack.c.h.b16 %v2391
    %v2574 = vunpack.c.l.b16 %v2392
    %v2575 = vunpack.c.h.b16 %v2392
    %v2576 = vunpack.c.l.b16 %v2393
    %v2577 = vunpack.c.h.b16 %v2393
    %v2578 = vunpack.c.l.b16 %v2394
    %v2579 = vunpack.c.h.b16 %v2394
    %v2580 = vunpack.c.l.b16 %v2395
    %v2581 = vunpack.c.h.b16 %v2395
    %v2582 = vunpack.c.l.b16 %v2396
    %v2583 = vunpack.c.h.b16 %v2396
    %v2584 = vunpack.c.l.b16 %v2397
    %v2585 = vunpack.c.h.b16 %v2397
    %v2586 = vunpack.c.l.b16 %v2398
    %v2587 = vunpack.c.h.b16 %v2398
    %v2588 = vunpack.c.l.b16 %v2399
    %v2589 = vunpack.c.h.b16 %v2399
    %v2590 = vunpack.c.l.b16 %v2400
    %v2591 = vunpack.c.h.b16 %v2400
    %v2592 = vunpack.c.l.b16 %v2401
    %v2593 = vunpack.c.h.b16 %v2401
    %v2594 = vunpack.c.l.b16 %v2402
    %v2595 = vunpack.c.h.b16 %v2402
    %v2596 = vunpack.c.l.b16 %v2403
    %v2597 = vunpack.c.h.b16 %v2403
    %v2598 = vpack.c.b16 %v2474, %v2470
    %v2599 = vpack.c.b16 %v2475, %v2471
    %v2600 = vpack.c.b16 %v2476, %v2472
    %v2601 = vpack.c.b16 %v2477, %v2473
    %v2602 = vpack.c.b16 %v2482, %v2478
    %v2603 = vpack.c.b16 %v2483, %v2479
    %v2604 = vpack.c.b16 %v2484, %v2480
    %v2605 = vpack.c.b16 %v2485, %v2481
    %v2606 = vpack.c.b16 %v2490, %v2486
    %v2607 = vpack.c.b16 %v2491, %v2487
    %v2608 = vpack.c.b16 %v2492, %v2488
    %v2609 = vpack.c.b16 %v2493, %v2489
    %v2610 = vpack.c.b16 %v2498, %v2494
    %v2611 = vpack.c.b16 %v2499, %v2495
    %v2612 = vpack.c.b16 %v2500, %v2496
    %v2613 = vpack.c.b16 %v2501, %v2497
    %v2614 = vpack.c.b16 %v2506, %v2502
    %v2615 = vpack.c.b16 %v2507, %v2503
    %v2616 = vpack.c.b16 %v2508, %v2504
    %v2617 = vpack.c.b16 %v2509, %v2505
    %v2618 = vpack.c.b16 %v2514, %v2510
    %v2619 = vpack.c.b16 %v2515, %v2511
    %v2620 = vpack.c.b16 %v2516, %v2512
    %v2621 = vpack.c.b16 %v2517, %v2513
    %v2622 = vpack.c.b16 %v2522, %v2518
    %v2623 = vpack.c.b16 %v2523, %v2519
    %v2624 = vpack.c.b16 %v2524, %v2520
    %v2625 = vpack.c.b16 %v2525, %v2521
    %v2626 = vpack.c.b16 %v2530, %v2526
    %v2627 = vpack.c.b16 %v2531, %v2527
    %v2628 = vpack.c.b16 %v2532, %v2528
    %v2629 = vpack.c.b16 %v2533, %v2529
    %v2630 = vpack.c.b16 %v2538, %v2534
    %v2631 = vpack.c.b16 %v2539, %v2535
    %v2632 = vpack.c.b16 %v2540, %v2536
    %v2633 = vpack.c.b16 %v2541, %v2537
    %v2634 = vpack.c.b16 %v2546, %v2542
    %v2635 = vpack.c.b16 %v2547, %v2543
    %v2636 = vpack.c.b16 %v2548, %v2544
    %v2637 = vpack.c.b16 %v2549, %v2545
    %v2638 = vpack.c.b16 %v2554, %v2550
    %v2639 = vpack.c.b16 %v2555, %v2551
    %v2640 = vpack.c.b16 %v2556, %v2552
    %v2641 = vpack.c.b16 %v2557, %v2553
    %v2642 = vpack.c.b16 %v2562, %v2558
    %v2643 = vpack.c.b16 %v2563, %v2559
    %v2644 = vpack.c.b16 %v2564, %v2560
    %v2645 = vpack.c.b16 %v2565, %v2561
    %v2646 = vpack.c.b16 %v2570, %v2566
    %v2647 = vpack.c.b16 %v2571, %v2567
    %v2648 = vpack.c.b16 %v2572, %v2568
    %v2649 = vpack.c.b16 %v2573, %v2569
    %v2650 = vpack.c.b16 %v2578, %v2574
    %v2651 = vpack.c.b16 %v2579, %v2575
    %v2652 = vpack.c.b16 %v2580, %v2576
    %v2653 = vpack.c.b16 %v2581, %v2577
    %v2654 = vpack.c.b16 %v2586, %v2582
    %v2655 = vpack.c.b16 %v2587, %v2583
    %v2656 = vpack.c.b16 %v2588, %v2584
    %v2657 = vpack.c.b16 %v2589, %v2585
    %v2658 = vpack.c.b16 %v2594, %v2590
    %v2659 = vpack.c.b16 %v2595, %v2591
    %v2660 = vpack.c.b16 %v2596, %v2592
    %v2661 = vpack.c.b16 %v2597, %v2593
    %2726 = vmatpush.bf16.msra.mxu0 %v2626
    %2727 = vmatpush.bf16.msra.mxu0 %v2622
    %2728 = vmatpush.bf16.msra.mxu0 %v2618
    %2729 = vmatpush.bf16.msra.mxu0 %v2614
    %2730 = vmatpush.bf16.msra.mxu0 %v2610
    %2731 = vmatpush.bf16.msra.mxu0 %v2606
    %2732 = vmatpush.bf16.msra.mxu0 %v2602
    %2733 = vmatpush.bf16.msra.mxu0 %v2598
    %2734 = vmatmul.bf16.gmra.mxu0 %v2404
    %v2735 = vpop.f32.mrf.mxu0
    %v2736 = vadd.f32 0.0, %v2735
    %v2737 = vpop.f32.mrf.mxu0
    %2738 = vdwg.mxu0
    %2739 = vmatpush.bf16.msra.mxu0 %v2658
    %2740 = vmatpush.bf16.msra.mxu0 %v2654
    %2741 = vmatpush.bf16.msra.mxu0 %v2650
    %2742 = vmatpush.bf16.msra.mxu0 %v2646
    %2743 = vmatpush.bf16.msra.mxu0 %v2642
    %2744 = vmatpush.bf16.msra.mxu0 %v2638
    %2745 = vmatpush.bf16.msra.mxu0 %v2634
    %2746 = vmatpush.bf16.msra.mxu0 %v2630
    %2747 = vmatmul.bf16.gmra.mxu0 %v2405
    %v2748 = vpop.f32.mrf.mxu0
    %v2749 = vadd.f32 %v2736, %v2748
    %v2750 = vpop.f32.mrf.mxu0
    %2751 = vdwg.mxu0
    %2752 = vmatpush.bf16.msra.mxu0 %v2627
    %2753 = vmatpush.bf16.msra.mxu0 %v2623
    %2754 = vmatpush.bf16.msra.mxu0 %v2619
    %2755 = vmatpush.bf16.msra.mxu0 %v2615
    %2756 = vmatpush.bf16.msra.mxu0 %v2611
    %2757 = vmatpush.bf16.msra.mxu0 %v2607
    %2758 = vmatpush.bf16.msra.mxu0 %v2603
    %2759 = vmatpush.bf16.msra.mxu0 %v2599
    %2760 = vmatmul.bf16.gmra.mxu0 %v2404
    %v2761 = vpop.f32.mrf.mxu0
    %v2762 = vadd.f32 0.0, %v2761
    %v2763 = vpop.f32.mrf.mxu0
    %2764 = vdwg.mxu0
    %2765 = vmatpush.bf16.msra.mxu0 %v2659
    %2766 = vmatpush.bf16.msra.mxu0 %v2655
    %2767 = vmatpush.bf16.msra.mxu0 %v2651
    %2768 = vmatpush.bf16.msra.mxu0 %v2647
    %2769 = vmatpush.bf16.msra.mxu0 %v2643
    %2770 = vmatpush.bf16.msra.mxu0 %v2639
    %2771 = vmatpush.bf16.msra.mxu0 %v2635
    %2772 = vmatpush.bf16.msra.mxu0 %v2631
    %2773 = vmatmul.bf16.gmra.mxu0 %v2405
    %v2774 = vpop.f32.mrf.mxu0
    %v2775 = vadd.f32 %v2762, %v2774
    %v2776 = vpop.f32.mrf.mxu0
    %2777 = vdwg.mxu0
    %2778 = vmatpush.bf16.msra.mxu0 %v2628
    %2779 = vmatpush.bf16.msra.mxu0 %v2624
    %2780 = vmatpush.bf16.msra.mxu0 %v2620
    %2781 = vmatpush.bf16.msra.mxu0 %v2616
    %2782 = vmatpush.bf16.msra.mxu0 %v2612
    %2783 = vmatpush.bf16.msra.mxu0 %v2608
    %2784 = vmatpush.bf16.msra.mxu0 %v2604
    %2785 = vmatpush.bf16.msra.mxu0 %v2600
    %2786 = vmatmul.bf16.gmra.mxu0 %v2404
    %v2787 = vpop.f32.mrf.mxu0
    %v2788 = vadd.f32 0.0, %v2787
    %v2789 = vpop.f32.mrf.mxu0
    %2790 = vdwg.mxu0
    %2791 = vmatpush.bf16.msra.mxu0 %v2660
    %2792 = vmatpush.bf16.msra.mxu0 %v2656
    %2793 = vmatpush.bf16.msra.mxu0 %v2652
    %2794 = vmatpush.bf16.msra.mxu0 %v2648
    %2795 = vmatpush.bf16.msra.mxu0 %v2644
    %2796 = vmatpush.bf16.msra.mxu0 %v2640
    %2797 = vmatpush.bf16.msra.mxu0 %v2636
    %2798 = vmatpush.bf16.msra.mxu0 %v2632
    %2799 = vmatmul.bf16.gmra.mxu0 %v2405
    %v2800 = vpop.f32.mrf.mxu0
    %v2801 = vadd.f32 %v2788, %v2800
    %v2802 = vpop.f32.mrf.mxu0
    %2803 = vdwg.mxu0
    %2804 = vmatpush.bf16.msra.mxu0 %v2629
    %2805 = vmatpush.bf16.msra.mxu0 %v2625
    %2806 = vmatpush.bf16.msra.mxu0 %v2621
    %2807 = vmatpush.bf16.msra.mxu0 %v2617
    %2808 = vmatpush.bf16.msra.mxu0 %v2613
    %2809 = vmatpush.bf16.msra.mxu0 %v2609
    %2810 = vmatpush.bf16.msra.mxu0 %v2605
    %2811 = vmatpush.bf16.msra.mxu0 %v2601
    %2812 = vmatmul.bf16.gmra.mxu0 %v2404
    %v2813 = vpop.f32.mrf.mxu0
    %v2814 = vadd.f32 0.0, %v2813
    %v2815 = vpop.f32.mrf.mxu0
    %2816 = vdwg.mxu0
    %2817 = vmatpush.bf16.msra.mxu0 %v2661
    %2818 = vmatpush.bf16.msra.mxu0 %v2657
    %2819 = vmatpush.bf16.msra.mxu0 %v2653
    %2820 = vmatpush.bf16.msra.mxu0 %v2649
    %2821 = vmatpush.bf16.msra.mxu0 %v2645
    %2822 = vmatpush.bf16.msra.mxu0 %v2641
    %2823 = vmatpush.bf16.msra.mxu0 %v2637
    %2824 = vmatpush.bf16.msra.mxu0 %v2633
    %2825 = vmatmul.bf16.gmra.mxu0 %v2405
    %v2826 = vpop.f32.mrf.mxu0
    %v2827 = vadd.f32 %v2814, %v2826
    %v2828 = vpop.f32.mrf.mxu0
    %2829 = vdwg.mxu0
    %v2834 = vrot.slane %v2775, 4
    %v2835 = vrot.slane %v2827, 4
    %v2836 = vsel %vm1078, %v2749, %v2834
    %v2837 = vsel %vm1078, %v2801, %v2835
    %v2840 = vadd.f32 %v2338, %v2836
    %v2841 = vadd.f32 %v2339, %v2837
    %v2842 = vxor.u32 %v2840, 2147483648
    %v2843 = vmul.f32 %v2842, 1.442695
    %v2844 = vpow.pop %v2843
    %v2845 = vadd.f32 %v2844, 1.0
    %v2846 = vrcp.pop %v2845
    %v2847 = vmul.f32 %v2845, %v2846
    %v2848 = vsub.f32 1.0, %v2847
    %v2849 = vmul.f32 %v2846, %v2848
    %v2850 = vadd.f32 %v2846, %v2849
    %vm2851 = vweird.f32 %v2845
    %vm2852 = vweird.f32 %v2846
    %vm2853 = vmor %vm2851, %vm2852
    %v2854 = vsel %vm2853, %v2846, %v2850
    %v2855 = vand.u32 2147483647, %v2845
    %vm2856 = vcmp.eq.f32.partialorder %v2855, 8.507059e+37
    %v2857 = vand.u32 %v2845, 2147483648
    %v2858 = vor.u32 1.1754944e-38, %v2857
    %v2859 = vsel %vm2856, %v2858, %v2854
    %v2860 = vmul.f32 1.0, %v2859
    %v2862 = vrot.slane %v2840, 4
    %v2864 = vxor.u32 %v2862, 2147483648
    %v2865 = vmul.f32 %v2864, 1.442695
    %v2866 = vpow.pop %v2865
    %v2867 = vadd.f32 %v2866, 1.0
    %v2868 = vrcp.pop %v2867
    %v2869 = vmul.f32 %v2867, %v2868
    %v2870 = vsub.f32 1.0, %v2869
    %v2871 = vmul.f32 %v2868, %v2870
    %v2872 = vadd.f32 %v2868, %v2871
    %vm2873 = vweird.f32 %v2867
    %vm2874 = vweird.f32 %v2868
    %vm2875 = vmor %vm2873, %vm2874
    %v2876 = vsel %vm2875, %v2868, %v2872
    %v2877 = vand.u32 2147483647, %v2867
    %vm2878 = vcmp.eq.f32.partialorder %v2877, 8.507059e+37
    %v2879 = vand.u32 %v2867, 2147483648
    %v2880 = vor.u32 1.1754944e-38, %v2879
    %v2881 = vsel %vm2878, %v2880, %v2876
    %v2882 = vmul.f32 1.0, %v2881
    %v2883 = vtanh.pop %v2841
    %v2885 = vrot.slane %v2841, 4
    %v2887 = vxor.u32 %v2885, 2147483648
    %v2888 = vmul.f32 %v2887, 1.442695
    %v2889 = vpow.pop %v2888
    %v2890 = vadd.f32 %v2889, 1.0
    %v2891 = vrcp.pop %v2890
    %v2892 = vmul.f32 %v2890, %v2891
    %v2893 = vsub.f32 1.0, %v2892
    %v2894 = vmul.f32 %v2891, %v2893
    %v2895 = vadd.f32 %v2891, %v2894
    %vm2896 = vweird.f32 %v2890
    %vm2897 = vweird.f32 %v2891
    %vm2898 = vmor %vm2896, %vm2897
    %v2899 = vsel %vm2898, %v2891, %v2895
    %v2900 = vand.u32 2147483647, %v2890
    %vm2901 = vcmp.eq.f32.partialorder %v2900, 8.507059e+37
    %v2902 = vand.u32 %v2890, 2147483648
    %v2903 = vor.u32 1.1754944e-38, %v2902
    %v2904 = vsel %vm2901, %v2903, %v2899
    %v2905 = vmul.f32 1.0, %v2904
    %v2906 = vmul.f32 %v2882, %v2321
    %v2907 = vmul.f32 %v2860, %v2883
    %v2908 = vadd.f32 %v2906, %v2907
    %v2909 = vtanh.pop %v2908
    %v2910 = vmul.f32 %v2905, %v2909
    %2911 = vst [vmem:[#allocation2 + $0x10] sm:$0x3] %v2910
    %s2913 = scalar_lea.vmem [#allocation1], 1
    %2914 = vst [vmem:[%s2913] ss:$2 sm:$0xff] %v2910
    %v2915 = vld.sshfl [vmem:[#allocation1] sm:$0xff pattern:$0x75316420]
    %2917 = vst [vmem:[#allocation2 + $0x8] sm:$0xc0] %v2915
    %v2918 = vsel %vm498, %v2910, 0.0
    %v2919 = vsel %vm498, 0.0, %v2910
    %s2920 = scalar_lea.vmem %s0, 80
    %v2921 = vld [vmem:[%s2920] sm:$0xff]
    %v2922 = vld [vmem:[%s2920 + $0x8] sm:$0xff]
    %v2923 = vld [vmem:[#allocation5] sm:$0xff]
    %v2924 = vld [vmem:[#allocation5 + $0x8] sm:$0xff]
    %v2925 = vld [vmem:[#allocation5 + $0x10] sm:$0xff]
    %v2926 = vld [vmem:[#allocation5 + $0x18] sm:$0xff]
    %v2927 = vld [vmem:[#allocation5 + $0x20] sm:$0xff]
    %v2928 = vld [vmem:[#allocation5 + $0x28] sm:$0xff]
    %v2929 = vld [vmem:[#allocation5 + $0x30] sm:$0xff]
    %v2930 = vld [vmem:[#allocation5 + $0x38] sm:$0xff]
    %v2931 = vld [vmem:[#allocation5 + $0x40] sm:$0xff]
    %v2932 = vld [vmem:[#allocation5 + $0x48] sm:$0xff]
    %v2933 = vld [vmem:[#allocation5 + $0x50] sm:$0xff]
    %v2934 = vld [vmem:[#allocation5 + $0x58] sm:$0xff]
    %v2935 = vld [vmem:[#allocation5 + $0x60] sm:$0xff]
    %v2936 = vld [vmem:[#allocation5 + $0x68] sm:$0xff]
    %v2937 = vld [vmem:[#allocation5 + $0x70] sm:$0xff]
    %v2938 = vld [vmem:[#allocation5 + $0x78] sm:$0xff]
    %v2939 = vld [vmem:[#allocation5 + $0x80] sm:$0xff]
    %v2940 = vld [vmem:[#allocation5 + $0x88] sm:$0xff]
    %v2941 = vld [vmem:[#allocation5 + $0x90] sm:$0xff]
    %v2942 = vld [vmem:[#allocation5 + $0x98] sm:$0xff]
    %v2943 = vld [vmem:[#allocation5 + $0xa0] sm:$0xff]
    %v2944 = vld [vmem:[#allocation5 + $0xa8] sm:$0xff]
    %v2945 = vld [vmem:[#allocation5 + $0xb0] sm:$0xff]
    %v2946 = vld [vmem:[#allocation5 + $0xb8] sm:$0xff]
    %v2947 = vld [vmem:[#allocation5 + $0xc0] sm:$0xff]
    %v2948 = vld [vmem:[#allocation5 + $0xc8] sm:$0xff]
    %v2949 = vld [vmem:[#allocation5 + $0xd0] sm:$0xff]
    %v2950 = vld [vmem:[#allocation5 + $0xd8] sm:$0xff]
    %v2951 = vld [vmem:[#allocation5 + $0xe0] sm:$0xff]
    %v2952 = vld [vmem:[#allocation5 + $0xe8] sm:$0xff]
    %v2953 = vld [vmem:[#allocation5 + $0xf0] sm:$0xff]
    %v2954 = vld [vmem:[#allocation5 + $0xf8] sm:$0xff]
    %v2955 = vld [vmem:[#allocation5 + $0x100] sm:$0xff]
    %v2956 = vld [vmem:[#allocation5 + $0x108] sm:$0xff]
    %v2957 = vld [vmem:[#allocation5 + $0x110] sm:$0xff]
    %v2958 = vld [vmem:[#allocation5 + $0x118] sm:$0xff]
    %v2959 = vld [vmem:[#allocation5 + $0x120] sm:$0xff]
    %v2960 = vld [vmem:[#allocation5 + $0x128] sm:$0xff]
    %v2961 = vld [vmem:[#allocation5 + $0x130] sm:$0xff]
    %v2962 = vld [vmem:[#allocation5 + $0x138] sm:$0xff]
    %v2963 = vld [vmem:[#allocation5 + $0x140] sm:$0xff]
    %v2964 = vld [vmem:[#allocation5 + $0x148] sm:$0xff]
    %v2965 = vld [vmem:[#allocation5 + $0x150] sm:$0xff]
    %v2966 = vld [vmem:[#allocation5 + $0x158] sm:$0xff]
    %v2967 = vld [vmem:[#allocation5 + $0x160] sm:$0xff]
    %v2968 = vld [vmem:[#allocation5 + $0x168] sm:$0xff]
    %v2969 = vld [vmem:[#allocation5 + $0x170] sm:$0xff]
    %v2970 = vld [vmem:[#allocation5 + $0x178] sm:$0xff]
    %v2971 = vld [vmem:[#allocation5 + $0x180] sm:$0xff]
    %v2972 = vld [vmem:[#allocation5 + $0x188] sm:$0xff]
    %v2973 = vld [vmem:[#allocation5 + $0x190] sm:$0xff]
    %v2974 = vld [vmem:[#allocation5 + $0x198] sm:$0xff]
    %v2975 = vld [vmem:[#allocation5 + $0x1a0] sm:$0xff]
    %v2976 = vld [vmem:[#allocation5 + $0x1a8] sm:$0xff]
    %v2977 = vld [vmem:[#allocation5 + $0x1b0] sm:$0xff]
    %v2978 = vld [vmem:[#allocation5 + $0x1b8] sm:$0xff]
    %v2979 = vld [vmem:[#allocation5 + $0x1c0] sm:$0xff]
    %v2980 = vld [vmem:[#allocation5 + $0x1c8] sm:$0xff]
    %v2981 = vld [vmem:[#allocation5 + $0x1d0] sm:$0xff]
    %v2982 = vld [vmem:[#allocation5 + $0x1d8] sm:$0xff]
    %v2983 = vld [vmem:[#allocation5 + $0x1e0] sm:$0xff]
    %v2984 = vld [vmem:[#allocation5 + $0x1e8] sm:$0xff]
    %v2985 = vld [vmem:[#allocation5 + $0x1f0] sm:$0xff]
    %v2986 = vld [vmem:[#allocation5 + $0x1f8] sm:$0xff]
    %v2987 = vpack.c.bf16 %v2918, %v2918
    %v2988 = vpack.c.bf16 %v2919, %v2919
    %v3053 = vunpack.c.l.b16 %v2923
    %v3054 = vunpack.c.h.b16 %v2923
    %v3055 = vunpack.c.l.b16 %v2924
    %v3056 = vunpack.c.h.b16 %v2924
    %v3057 = vunpack.c.l.b16 %v2925
    %v3058 = vunpack.c.h.b16 %v2925
    %v3059 = vunpack.c.l.b16 %v2926
    %v3060 = vunpack.c.h.b16 %v2926
    %v3061 = vunpack.c.l.b16 %v2927
    %v3062 = vunpack.c.h.b16 %v2927
    %v3063 = vunpack.c.l.b16 %v2928
    %v3064 = vunpack.c.h.b16 %v2928
    %v3065 = vunpack.c.l.b16 %v2929
    %v3066 = vunpack.c.h.b16 %v2929
    %v3067 = vunpack.c.l.b16 %v2930
    %v3068 = vunpack.c.h.b16 %v2930
    %v3069 = vunpack.c.l.b16 %v2931
    %v3070 = vunpack.c.h.b16 %v2931
    %v3071 = vunpack.c.l.b16 %v2932
    %v3072 = vunpack.c.h.b16 %v2932
    %v3073 = vunpack.c.l.b16 %v2933
    %v3074 = vunpack.c.h.b16 %v2933
    %v3075 = vunpack.c.l.b16 %v2934
    %v3076 = vunpack.c.h.b16 %v2934
    %v3077 = vunpack.c.l.b16 %v2935
    %v3078 = vunpack.c.h.b16 %v2935
    %v3079 = vunpack.c.l.b16 %v2936
    %v3080 = vunpack.c.h.b16 %v2936
    %v3081 = vunpack.c.l.b16 %v2937
    %v3082 = vunpack.c.h.b16 %v2937
    %v3083 = vunpack.c.l.b16 %v2938
    %v3084 = vunpack.c.h.b16 %v2938
    %v3085 = vunpack.c.l.b16 %v2939
    %v3086 = vunpack.c.h.b16 %v2939
    %v3087 = vunpack.c.l.b16 %v2940
    %v3088 = vunpack.c.h.b16 %v2940
    %v3089 = vunpack.c.l.b16 %v2941
    %v3090 = vunpack.c.h.b16 %v2941
    %v3091 = vunpack.c.l.b16 %v2942
    %v3092 = vunpack.c.h.b16 %v2942
    %v3093 = vunpack.c.l.b16 %v2943
    %v3094 = vunpack.c.h.b16 %v2943
    %v3095 = vunpack.c.l.b16 %v2944
    %v3096 = vunpack.c.h.b16 %v2944
    %v3097 = vunpack.c.l.b16 %v2945
    %v3098 = vunpack.c.h.b16 %v2945
    %v3099 = vunpack.c.l.b16 %v2946
    %v3100 = vunpack.c.h.b16 %v2946
    %v3101 = vunpack.c.l.b16 %v2947
    %v3102 = vunpack.c.h.b16 %v2947
    %v3103 = vunpack.c.l.b16 %v2948
    %v3104 = vunpack.c.h.b16 %v2948
    %v3105 = vunpack.c.l.b16 %v2949
    %v3106 = vunpack.c.h.b16 %v2949
    %v3107 = vunpack.c.l.b16 %v2950
    %v3108 = vunpack.c.h.b16 %v2950
    %v3109 = vunpack.c.l.b16 %v2951
    %v3110 = vunpack.c.h.b16 %v2951
    %v3111 = vunpack.c.l.b16 %v2952
    %v3112 = vunpack.c.h.b16 %v2952
    %v3113 = vunpack.c.l.b16 %v2953
    %v3114 = vunpack.c.h.b16 %v2953
    %v3115 = vunpack.c.l.b16 %v2954
    %v3116 = vunpack.c.h.b16 %v2954
    %v3117 = vunpack.c.l.b16 %v2955
    %v3118 = vunpack.c.h.b16 %v2955
    %v3119 = vunpack.c.l.b16 %v2956
    %v3120 = vunpack.c.h.b16 %v2956
    %v3121 = vunpack.c.l.b16 %v2957
    %v3122 = vunpack.c.h.b16 %v2957
    %v3123 = vunpack.c.l.b16 %v2958
    %v3124 = vunpack.c.h.b16 %v2958
    %v3125 = vunpack.c.l.b16 %v2959
    %v3126 = vunpack.c.h.b16 %v2959
    %v3127 = vunpack.c.l.b16 %v2960
    %v3128 = vunpack.c.h.b16 %v2960
    %v3129 = vunpack.c.l.b16 %v2961
    %v3130 = vunpack.c.h.b16 %v2961
    %v3131 = vunpack.c.l.b16 %v2962
    %v3132 = vunpack.c.h.b16 %v2962
    %v3133 = vunpack.c.l.b16 %v2963
    %v3134 = vunpack.c.h.b16 %v2963
    %v3135 = vunpack.c.l.b16 %v2964
    %v3136 = vunpack.c.h.b16 %v2964
    %v3137 = vunpack.c.l.b16 %v2965
    %v3138 = vunpack.c.h.b16 %v2965
    %v3139 = vunpack.c.l.b16 %v2966
    %v3140 = vunpack.c.h.b16 %v2966
    %v3141 = vunpack.c.l.b16 %v2967
    %v3142 = vunpack.c.h.b16 %v2967
    %v3143 = vunpack.c.l.b16 %v2968
    %v3144 = vunpack.c.h.b16 %v2968
    %v3145 = vunpack.c.l.b16 %v2969
    %v3146 = vunpack.c.h.b16 %v2969
    %v3147 = vunpack.c.l.b16 %v2970
    %v3148 = vunpack.c.h.b16 %v2970
    %v3149 = vunpack.c.l.b16 %v2971
    %v3150 = vunpack.c.h.b16 %v2971
    %v3151 = vunpack.c.l.b16 %v2972
    %v3152 = vunpack.c.h.b16 %v2972
    %v3153 = vunpack.c.l.b16 %v2973
    %v3154 = vunpack.c.h.b16 %v2973
    %v3155 = vunpack.c.l.b16 %v2974
    %v3156 = vunpack.c.h.b16 %v2974
    %v3157 = vunpack.c.l.b16 %v2975
    %v3158 = vunpack.c.h.b16 %v2975
    %v3159 = vunpack.c.l.b16 %v2976
    %v3160 = vunpack.c.h.b16 %v2976
    %v3161 = vunpack.c.l.b16 %v2977
    %v3162 = vunpack.c.h.b16 %v2977
    %v3163 = vunpack.c.l.b16 %v2978
    %v3164 = vunpack.c.h.b16 %v2978
    %v3165 = vunpack.c.l.b16 %v2979
    %v3166 = vunpack.c.h.b16 %v2979
    %v3167 = vunpack.c.l.b16 %v2980
    %v3168 = vunpack.c.h.b16 %v2980
    %v3169 = vunpack.c.l.b16 %v2981
    %v3170 = vunpack.c.h.b16 %v2981
    %v3171 = vunpack.c.l.b16 %v2982
    %v3172 = vunpack.c.h.b16 %v2982
    %v3173 = vunpack.c.l.b16 %v2983
    %v3174 = vunpack.c.h.b16 %v2983
    %v3175 = vunpack.c.l.b16 %v2984
    %v3176 = vunpack.c.h.b16 %v2984
    %v3177 = vunpack.c.l.b16 %v2985
    %v3178 = vunpack.c.h.b16 %v2985
    %v3179 = vunpack.c.l.b16 %v2986
    %v3180 = vunpack.c.h.b16 %v2986
    %v3181 = vpack.c.b16 %v3057, %v3053
    %v3182 = vpack.c.b16 %v3058, %v3054
    %v3183 = vpack.c.b16 %v3059, %v3055
    %v3184 = vpack.c.b16 %v3060, %v3056
    %v3185 = vpack.c.b16 %v3065, %v3061
    %v3186 = vpack.c.b16 %v3066, %v3062
    %v3187 = vpack.c.b16 %v3067, %v3063
    %v3188 = vpack.c.b16 %v3068, %v3064
    %v3189 = vpack.c.b16 %v3073, %v3069
    %v3190 = vpack.c.b16 %v3074, %v3070
    %v3191 = vpack.c.b16 %v3075, %v3071
    %v3192 = vpack.c.b16 %v3076, %v3072
    %v3193 = vpack.c.b16 %v3081, %v3077
    %v3194 = vpack.c.b16 %v3082, %v3078
    %v3195 = vpack.c.b16 %v3083, %v3079
    %v3196 = vpack.c.b16 %v3084, %v3080
    %v3197 = vpack.c.b16 %v3089, %v3085
    %v3198 = vpack.c.b16 %v3090, %v3086
    %v3199 = vpack.c.b16 %v3091, %v3087
    %v3200 = vpack.c.b16 %v3092, %v3088
    %v3201 = vpack.c.b16 %v3097, %v3093
    %v3202 = vpack.c.b16 %v3098, %v3094
    %v3203 = vpack.c.b16 %v3099, %v3095
    %v3204 = vpack.c.b16 %v3100, %v3096
    %v3205 = vpack.c.b16 %v3105, %v3101
    %v3206 = vpack.c.b16 %v3106, %v3102
    %v3207 = vpack.c.b16 %v3107, %v3103
    %v3208 = vpack.c.b16 %v3108, %v3104
    %v3209 = vpack.c.b16 %v3113, %v3109
    %v3210 = vpack.c.b16 %v3114, %v3110
    %v3211 = vpack.c.b16 %v3115, %v3111
    %v3212 = vpack.c.b16 %v3116, %v3112
    %v3213 = vpack.c.b16 %v3121, %v3117
    %v3214 = vpack.c.b16 %v3122, %v3118
    %v3215 = vpack.c.b16 %v3123, %v3119
    %v3216 = vpack.c.b16 %v3124, %v3120
    %v3217 = vpack.c.b16 %v3129, %v3125
    %v3218 = vpack.c.b16 %v3130, %v3126
    %v3219 = vpack.c.b16 %v3131, %v3127
    %v3220 = vpack.c.b16 %v3132, %v3128
    %v3221 = vpack.c.b16 %v3137, %v3133
    %v3222 = vpack.c.b16 %v3138, %v3134
    %v3223 = vpack.c.b16 %v3139, %v3135
    %v3224 = vpack.c.b16 %v3140, %v3136
    %v3225 = vpack.c.b16 %v3145, %v3141
    %v3226 = vpack.c.b16 %v3146, %v3142
    %v3227 = vpack.c.b16 %v3147, %v3143
    %v3228 = vpack.c.b16 %v3148, %v3144
    %v3229 = vpack.c.b16 %v3153, %v3149
    %v3230 = vpack.c.b16 %v3154, %v3150
    %v3231 = vpack.c.b16 %v3155, %v3151
    %v3232 = vpack.c.b16 %v3156, %v3152
    %v3233 = vpack.c.b16 %v3161, %v3157
    %v3234 = vpack.c.b16 %v3162, %v3158
    %v3235 = vpack.c.b16 %v3163, %v3159
    %v3236 = vpack.c.b16 %v3164, %v3160
    %v3237 = vpack.c.b16 %v3169, %v3165
    %v3238 = vpack.c.b16 %v3170, %v3166
    %v3239 = vpack.c.b16 %v3171, %v3167
    %v3240 = vpack.c.b16 %v3172, %v3168
    %v3241 = vpack.c.b16 %v3177, %v3173
    %v3242 = vpack.c.b16 %v3178, %v3174
    %v3243 = vpack.c.b16 %v3179, %v3175
    %v3244 = vpack.c.b16 %v3180, %v3176
    %3309 = vmatpush.bf16.msra.mxu0 %v3209
    %3310 = vmatpush.bf16.msra.mxu0 %v3205
    %3311 = vmatpush.bf16.msra.mxu0 %v3201
    %3312 = vmatpush.bf16.msra.mxu0 %v3197
    %3313 = vmatpush.bf16.msra.mxu0 %v3193
    %3314 = vmatpush.bf16.msra.mxu0 %v3189
    %3315 = vmatpush.bf16.msra.mxu0 %v3185
    %3316 = vmatpush.bf16.msra.mxu0 %v3181
    %3317 = vmatmul.bf16.gmra.mxu0 %v2987
    %v3318 = vpop.f32.mrf.mxu0
    %v3319 = vadd.f32 0.0, %v3318
    %v3320 = vpop.f32.mrf.mxu0
    %3321 = vdwg.mxu0
    %3322 = vmatpush.bf16.msra.mxu0 %v3241
    %3323 = vmatpush.bf16.msra.mxu0 %v3237
    %3324 = vmatpush.bf16.msra.mxu0 %v3233
    %3325 = vmatpush.bf16.msra.mxu0 %v3229
    %3326 = vmatpush.bf16.msra.mxu0 %v3225
    %3327 = vmatpush.bf16.msra.mxu0 %v3221
    %3328 = vmatpush.bf16.msra.mxu0 %v3217
    %3329 = vmatpush.bf16.msra.mxu0 %v3213
    %3330 = vmatmul.bf16.gmra.mxu0 %v2988
    %v3331 = vpop.f32.mrf.mxu0
    %v3332 = vadd.f32 %v3319, %v3331
    %v3333 = vpop.f32.mrf.mxu0
    %3334 = vdwg.mxu0
    %3335 = vmatpush.bf16.msra.mxu0 %v3210
    %3336 = vmatpush.bf16.msra.mxu0 %v3206
    %3337 = vmatpush.bf16.msra.mxu0 %v3202
    %3338 = vmatpush.bf16.msra.mxu0 %v3198
    %3339 = vmatpush.bf16.msra.mxu0 %v3194
    %3340 = vmatpush.bf16.msra.mxu0 %v3190
    %3341 = vmatpush.bf16.msra.mxu0 %v3186
    %3342 = vmatpush.bf16.msra.mxu0 %v3182
    %3343 = vmatmul.bf16.gmra.mxu0 %v2987
    %v3344 = vpop.f32.mrf.mxu0
    %v3345 = vadd.f32 0.0, %v3344
    %v3346 = vpop.f32.mrf.mxu0
    %3347 = vdwg.mxu0
    %3348 = vmatpush.bf16.msra.mxu0 %v3242
    %3349 = vmatpush.bf16.msra.mxu0 %v3238
    %3350 = vmatpush.bf16.msra.mxu0 %v3234
    %3351 = vmatpush.bf16.msra.mxu0 %v3230
    %3352 = vmatpush.bf16.msra.mxu0 %v3226
    %3353 = vmatpush.bf16.msra.mxu0 %v3222
    %3354 = vmatpush.bf16.msra.mxu0 %v3218
    %3355 = vmatpush.bf16.msra.mxu0 %v3214
    %3356 = vmatmul.bf16.gmra.mxu0 %v2988
    %v3357 = vpop.f32.mrf.mxu0
    %v3358 = vadd.f32 %v3345, %v3357
    %v3359 = vpop.f32.mrf.mxu0
    %3360 = vdwg.mxu0
    %3361 = vmatpush.bf16.msra.mxu0 %v3211
    %3362 = vmatpush.bf16.msra.mxu0 %v3207
    %3363 = vmatpush.bf16.msra.mxu0 %v3203
    %3364 = vmatpush.bf16.msra.mxu0 %v3199
    %3365 = vmatpush.bf16.msra.mxu0 %v3195
    %3366 = vmatpush.bf16.msra.mxu0 %v3191
    %3367 = vmatpush.bf16.msra.mxu0 %v3187
    %3368 = vmatpush.bf16.msra.mxu0 %v3183
    %3369 = vmatmul.bf16.gmra.mxu0 %v2987
    %v3370 = vpop.f32.mrf.mxu0
    %v3371 = vadd.f32 0.0, %v3370
    %v3372 = vpop.f32.mrf.mxu0
    %3373 = vdwg.mxu0
    %3374 = vmatpush.bf16.msra.mxu0 %v3243
    %3375 = vmatpush.bf16.msra.mxu0 %v3239
    %3376 = vmatpush.bf16.msra.mxu0 %v3235
    %3377 = vmatpush.bf16.msra.mxu0 %v3231
    %3378 = vmatpush.bf16.msra.mxu0 %v3227
    %3379 = vmatpush.bf16.msra.mxu0 %v3223
    %3380 = vmatpush.bf16.msra.mxu0 %v3219
    %3381 = vmatpush.bf16.msra.mxu0 %v3215
    %3382 = vmatmul.bf16.gmra.mxu0 %v2988
    %v3383 = vpop.f32.mrf.mxu0
    %v3384 = vadd.f32 %v3371, %v3383
    %v3385 = vpop.f32.mrf.mxu0
    %3386 = vdwg.mxu0
    %3387 = vmatpush.bf16.msra.mxu0 %v3212
    %3388 = vmatpush.bf16.msra.mxu0 %v3208
    %3389 = vmatpush.bf16.msra.mxu0 %v3204
    %3390 = vmatpush.bf16.msra.mxu0 %v3200
    %3391 = vmatpush.bf16.msra.mxu0 %v3196
    %3392 = vmatpush.bf16.msra.mxu0 %v3192
    %3393 = vmatpush.bf16.msra.mxu0 %v3188
    %3394 = vmatpush.bf16.msra.mxu0 %v3184
    %3395 = vmatmul.bf16.gmra.mxu0 %v2987
    %v3396 = vpop.f32.mrf.mxu0
    %v3397 = vadd.f32 0.0, %v3396
    %v3398 = vpop.f32.mrf.mxu0
    %3399 = vdwg.mxu0
    %3400 = vmatpush.bf16.msra.mxu0 %v3244
    %3401 = vmatpush.bf16.msra.mxu0 %v3240
    %3402 = vmatpush.bf16.msra.mxu0 %v3236
    %3403 = vmatpush.bf16.msra.mxu0 %v3232
    %3404 = vmatpush.bf16.msra.mxu0 %v3228
    %3405 = vmatpush.bf16.msra.mxu0 %v3224
    %3406 = vmatpush.bf16.msra.mxu0 %v3220
    %3407 = vmatpush.bf16.msra.mxu0 %v3216
    %3408 = vmatmul.bf16.gmra.mxu0 %v2988
    %v3409 = vpop.f32.mrf.mxu0
    %v3410 = vadd.f32 %v3397, %v3409
    %v3411 = vpop.f32.mrf.mxu0
    %3412 = vdwg.mxu0
    %v3417 = vrot.slane %v3358, 4
    %v3418 = vrot.slane %v3410, 4
    %v3419 = vsel %vm1078, %v3332, %v3417
    %v3420 = vsel %vm1078, %v3384, %v3418
    %v3423 = vadd.f32 %v2921, %v3419
    %v3424 = vadd.f32 %v2922, %v3420
    %v3425 = vxor.u32 %v3423, 2147483648
    %v3426 = vmul.f32 %v3425, 1.442695
    %v3427 = vpow.pop %v3426
    %v3428 = vadd.f32 %v3427, 1.0
    %v3429 = vrcp.pop %v3428
    %v3430 = vmul.f32 %v3428, %v3429
    %v3431 = vsub.f32 1.0, %v3430
    %v3432 = vmul.f32 %v3429, %v3431
    %v3433 = vadd.f32 %v3429, %v3432
    %vm3434 = vweird.f32 %v3428
    %vm3435 = vweird.f32 %v3429
    %vm3436 = vmor %vm3434, %vm3435
    %v3437 = vsel %vm3436, %v3429, %v3433
    %v3438 = vand.u32 2147483647, %v3428
    %vm3439 = vcmp.eq.f32.partialorder %v3438, 8.507059e+37
    %v3440 = vand.u32 %v3428, 2147483648
    %v3441 = vor.u32 1.1754944e-38, %v3440
    %v3442 = vsel %vm3439, %v3441, %v3437
    %v3443 = vmul.f32 1.0, %v3442
    %v3445 = vrot.slane %v3423, 4
    %v3447 = vxor.u32 %v3445, 2147483648
    %v3448 = vmul.f32 %v3447, 1.442695
    %v3449 = vpow.pop %v3448
    %v3450 = vadd.f32 %v3449, 1.0
    %v3451 = vrcp.pop %v3450
    %v3452 = vmul.f32 %v3450, %v3451
    %v3453 = vsub.f32 1.0, %v3452
    %v3454 = vmul.f32 %v3451, %v3453
    %v3455 = vadd.f32 %v3451, %v3454
    %vm3456 = vweird.f32 %v3450
    %vm3457 = vweird.f32 %v3451
    %vm3458 = vmor %vm3456, %vm3457
    %v3459 = vsel %vm3458, %v3451, %v3455
    %v3460 = vand.u32 2147483647, %v3450
    %vm3461 = vcmp.eq.f32.partialorder %v3460, 8.507059e+37
    %v3462 = vand.u32 %v3450, 2147483648
    %v3463 = vor.u32 1.1754944e-38, %v3462
    %v3464 = vsel %vm3461, %v3463, %v3459
    %v3465 = vmul.f32 1.0, %v3464
    %v3466 = vtanh.pop %v3424
    %v3468 = vrot.slane %v3424, 4
    %v3470 = vxor.u32 %v3468, 2147483648
    %v3471 = vmul.f32 %v3470, 1.442695
    %v3472 = vpow.pop %v3471
    %v3473 = vadd.f32 %v3472, 1.0
    %v3474 = vrcp.pop %v3473
    %v3475 = vmul.f32 %v3473, %v3474
    %v3476 = vsub.f32 1.0, %v3475
    %v3477 = vmul.f32 %v3474, %v3476
    %v3478 = vadd.f32 %v3474, %v3477
    %vm3479 = vweird.f32 %v3473
    %vm3480 = vweird.f32 %v3474
    %vm3481 = vmor %vm3479, %vm3480
    %v3482 = vsel %vm3481, %v3474, %v3478
    %v3483 = vand.u32 2147483647, %v3473
    %vm3484 = vcmp.eq.f32.partialorder %v3483, 8.507059e+37
    %v3485 = vand.u32 %v3473, 2147483648
    %v3486 = vor.u32 1.1754944e-38, %v3485
    %v3487 = vsel %vm3484, %v3486, %v3482
    %v3488 = vmul.f32 1.0, %v3487
    %v3489 = vmul.f32 %v3465, %v2908
    %v3490 = vmul.f32 %v3443, %v3466
    %v3491 = vadd.f32 %v3489, %v3490
    %v3492 = vtanh.pop %v3491
    %v3493 = vmul.f32 %v3488, %v3492
    %3495 = vst [vmem:[#allocation1] ss:$2 sm:$0xff] %v3493
    %v3496 = vld.sshfl [vmem:[#allocation1] sm:$0xff pattern:$0x75316420]
    %v3497 = vrot.slane %v3496, 6
    %3499 = vst [vmem:[#allocation2 + $0x10] sm:$0xc] %v3497
    %3500 = vst [vmem:[#allocation1] ss:$2 sm:$0xff] %v3493
    %v3501 = vld.sshfl [vmem:[#allocation1] sm:$0xff pattern:$0x75316420]
    %v3502 = vrot.slane %v3501, 6
    %3504 = vst [vmem:[#allocation2 + $0x8] sm:$0x30] %v3502
    %v3505 = vsel %vm498, %v3493, 0.0
    %v3506 = vsel %vm498, 0.0, %v3493
    %s3507 = scalar_lea.vmem %s0, 96
    %v3508 = vld [vmem:[%s3507] sm:$0xff]
    %v3509 = vld [vmem:[%s3507 + $0x8] sm:$0xff]
    %v3510 = vld [vmem:[#allocation5] sm:$0xff]
    %v3511 = vld [vmem:[#allocation5 + $0x8] sm:$0xff]
    %v3512 = vld [vmem:[#allocation5 + $0x10] sm:$0xff]
    %v3513 = vld [vmem:[#allocation5 + $0x18] sm:$0xff]
    %v3514 = vld [vmem:[#allocation5 + $0x20] sm:$0xff]
    %v3515 = vld [vmem:[#allocation5 + $0x28] sm:$0xff]
    %v3516 = vld [vmem:[#allocation5 + $0x30] sm:$0xff]
    %v3517 = vld [vmem:[#allocation5 + $0x38] sm:$0xff]
    %v3518 = vld [vmem:[#allocation5 + $0x40] sm:$0xff]
    %v3519 = vld [vmem:[#allocation5 + $0x48] sm:$0xff]
    %v3520 = vld [vmem:[#allocation5 + $0x50] sm:$0xff]
    %v3521 = vld [vmem:[#allocation5 + $0x58] sm:$0xff]
    %v3522 = vld [vmem:[#allocation5 + $0x60] sm:$0xff]
    %v3523 = vld [vmem:[#allocation5 + $0x68] sm:$0xff]
    %v3524 = vld [vmem:[#allocation5 + $0x70] sm:$0xff]
    %v3525 = vld [vmem:[#allocation5 + $0x78] sm:$0xff]
    %v3526 = vld [vmem:[#allocation5 + $0x80] sm:$0xff]
    %v3527 = vld [vmem:[#allocation5 + $0x88] sm:$0xff]
    %v3528 = vld [vmem:[#allocation5 + $0x90] sm:$0xff]
    %v3529 = vld [vmem:[#allocation5 + $0x98] sm:$0xff]
    %v3530 = vld [vmem:[#allocation5 + $0xa0] sm:$0xff]
    %v3531 = vld [vmem:[#allocation5 + $0xa8] sm:$0xff]
    %v3532 = vld [vmem:[#allocation5 + $0xb0] sm:$0xff]
    %v3533 = vld [vmem:[#allocation5 + $0xb8] sm:$0xff]
    %v3534 = vld [vmem:[#allocation5 + $0xc0] sm:$0xff]
    %v3535 = vld [vmem:[#allocation5 + $0xc8] sm:$0xff]
    %v3536 = vld [vmem:[#allocation5 + $0xd0] sm:$0xff]
    %v3537 = vld [vmem:[#allocation5 + $0xd8] sm:$0xff]
    %v3538 = vld [vmem:[#allocation5 + $0xe0] sm:$0xff]
    %v3539 = vld [vmem:[#allocation5 + $0xe8] sm:$0xff]
    %v3540 = vld [vmem:[#allocation5 + $0xf0] sm:$0xff]
    %v3541 = vld [vmem:[#allocation5 + $0xf8] sm:$0xff]
    %v3542 = vld [vmem:[#allocation5 + $0x100] sm:$0xff]
    %v3543 = vld [vmem:[#allocation5 + $0x108] sm:$0xff]
    %v3544 = vld [vmem:[#allocation5 + $0x110] sm:$0xff]
    %v3545 = vld [vmem:[#allocation5 + $0x118] sm:$0xff]
    %v3546 = vld [vmem:[#allocation5 + $0x120] sm:$0xff]
    %v3547 = vld [vmem:[#allocation5 + $0x128] sm:$0xff]
    %v3548 = vld [vmem:[#allocation5 + $0x130] sm:$0xff]
    %v3549 = vld [vmem:[#allocation5 + $0x138] sm:$0xff]
    %v3550 = vld [vmem:[#allocation5 + $0x140] sm:$0xff]
    %v3551 = vld [vmem:[#allocation5 + $0x148] sm:$0xff]
    %v3552 = vld [vmem:[#allocation5 + $0x150] sm:$0xff]
    %v3553 = vld [vmem:[#allocation5 + $0x158] sm:$0xff]
    %v3554 = vld [vmem:[#allocation5 + $0x160] sm:$0xff]
    %v3555 = vld [vmem:[#allocation5 + $0x168] sm:$0xff]
    %v3556 = vld [vmem:[#allocation5 + $0x170] sm:$0xff]
    %v3557 = vld [vmem:[#allocation5 + $0x178] sm:$0xff]
    %v3558 = vld [vmem:[#allocation5 + $0x180] sm:$0xff]
    %v3559 = vld [vmem:[#allocation5 + $0x188] sm:$0xff]
    %v3560 = vld [vmem:[#allocation5 + $0x190] sm:$0xff]
    %v3561 = vld [vmem:[#allocation5 + $0x198] sm:$0xff]
    %v3562 = vld [vmem:[#allocation5 + $0x1a0] sm:$0xff]
    %v3563 = vld [vmem:[#allocation5 + $0x1a8] sm:$0xff]
    %v3564 = vld [vmem:[#allocation5 + $0x1b0] sm:$0xff]
    %v3565 = vld [vmem:[#allocation5 + $0x1b8] sm:$0xff]
    %v3566 = vld [vmem:[#allocation5 + $0x1c0] sm:$0xff]
    %v3567 = vld [vmem:[#allocation5 + $0x1c8] sm:$0xff]
    %v3568 = vld [vmem:[#allocation5 + $0x1d0] sm:$0xff]
    %v3569 = vld [vmem:[#allocation5 + $0x1d8] sm:$0xff]
    %v3570 = vld [vmem:[#allocation5 + $0x1e0] sm:$0xff]
    %v3571 = vld [vmem:[#allocation5 + $0x1e8] sm:$0xff]
    %v3572 = vld [vmem:[#allocation5 + $0x1f0] sm:$0xff]
    %v3573 = vld [vmem:[#allocation5 + $0x1f8] sm:$0xff]
    %v3574 = vpack.c.bf16 %v3505, %v3505
    %v3575 = vpack.c.bf16 %v3506, %v3506
    %v3640 = vunpack.c.l.b16 %v3510
    %v3641 = vunpack.c.h.b16 %v3510
    %v3642 = vunpack.c.l.b16 %v3511
    %v3643 = vunpack.c.h.b16 %v3511
    %v3644 = vunpack.c.l.b16 %v3512
    %v3645 = vunpack.c.h.b16 %v3512
    %v3646 = vunpack.c.l.b16 %v3513
    %v3647 = vunpack.c.h.b16 %v3513
    %v3648 = vunpack.c.l.b16 %v3514
    %v3649 = vunpack.c.h.b16 %v3514
    %v3650 = vunpack.c.l.b16 %v3515
    %v3651 = vunpack.c.h.b16 %v3515
    %v3652 = vunpack.c.l.b16 %v3516
    %v3653 = vunpack.c.h.b16 %v3516
    %v3654 = vunpack.c.l.b16 %v3517
    %v3655 = vunpack.c.h.b16 %v3517
    %v3656 = vunpack.c.l.b16 %v3518
    %v3657 = vunpack.c.h.b16 %v3518
    %v3658 = vunpack.c.l.b16 %v3519
    %v3659 = vunpack.c.h.b16 %v3519
    %v3660 = vunpack.c.l.b16 %v3520
    %v3661 = vunpack.c.h.b16 %v3520
    %v3662 = vunpack.c.l.b16 %v3521
    %v3663 = vunpack.c.h.b16 %v3521
    %v3664 = vunpack.c.l.b16 %v3522
    %v3665 = vunpack.c.h.b16 %v3522
    %v3666 = vunpack.c.l.b16 %v3523
    %v3667 = vunpack.c.h.b16 %v3523
    %v3668 = vunpack.c.l.b16 %v3524
    %v3669 = vunpack.c.h.b16 %v3524
    %v3670 = vunpack.c.l.b16 %v3525
    %v3671 = vunpack.c.h.b16 %v3525
    %v3672 = vunpack.c.l.b16 %v3526
    %v3673 = vunpack.c.h.b16 %v3526
    %v3674 = vunpack.c.l.b16 %v3527
    %v3675 = vunpack.c.h.b16 %v3527
    %v3676 = vunpack.c.l.b16 %v3528
    %v3677 = vunpack.c.h.b16 %v3528
    %v3678 = vunpack.c.l.b16 %v3529
    %v3679 = vunpack.c.h.b16 %v3529
    %v3680 = vunpack.c.l.b16 %v3530
    %v3681 = vunpack.c.h.b16 %v3530
    %v3682 = vunpack.c.l.b16 %v3531
    %v3683 = vunpack.c.h.b16 %v3531
    %v3684 = vunpack.c.l.b16 %v3532
    %v3685 = vunpack.c.h.b16 %v3532
    %v3686 = vunpack.c.l.b16 %v3533
    %v3687 = vunpack.c.h.b16 %v3533
    %v3688 = vunpack.c.l.b16 %v3534
    %v3689 = vunpack.c.h.b16 %v3534
    %v3690 = vunpack.c.l.b16 %v3535
    %v3691 = vunpack.c.h.b16 %v3535
    %v3692 = vunpack.c.l.b16 %v3536
    %v3693 = vunpack.c.h.b16 %v3536
    %v3694 = vunpack.c.l.b16 %v3537
    %v3695 = vunpack.c.h.b16 %v3537
    %v3696 = vunpack.c.l.b16 %v3538
    %v3697 = vunpack.c.h.b16 %v3538
    %v3698 = vunpack.c.l.b16 %v3539
    %v3699 = vunpack.c.h.b16 %v3539
    %v3700 = vunpack.c.l.b16 %v3540
    %v3701 = vunpack.c.h.b16 %v3540
    %v3702 = vunpack.c.l.b16 %v3541
    %v3703 = vunpack.c.h.b16 %v3541
    %v3704 = vunpack.c.l.b16 %v3542
    %v3705 = vunpack.c.h.b16 %v3542
    %v3706 = vunpack.c.l.b16 %v3543
    %v3707 = vunpack.c.h.b16 %v3543
    %v3708 = vunpack.c.l.b16 %v3544
    %v3709 = vunpack.c.h.b16 %v3544
    %v3710 = vunpack.c.l.b16 %v3545
    %v3711 = vunpack.c.h.b16 %v3545
    %v3712 = vunpack.c.l.b16 %v3546
    %v3713 = vunpack.c.h.b16 %v3546
    %v3714 = vunpack.c.l.b16 %v3547
    %v3715 = vunpack.c.h.b16 %v3547
    %v3716 = vunpack.c.l.b16 %v3548
    %v3717 = vunpack.c.h.b16 %v3548
    %v3718 = vunpack.c.l.b16 %v3549
    %v3719 = vunpack.c.h.b16 %v3549
    %v3720 = vunpack.c.l.b16 %v3550
    %v3721 = vunpack.c.h.b16 %v3550
    %v3722 = vunpack.c.l.b16 %v3551
    %v3723 = vunpack.c.h.b16 %v3551
    %v3724 = vunpack.c.l.b16 %v3552
    %v3725 = vunpack.c.h.b16 %v3552
    %v3726 = vunpack.c.l.b16 %v3553
    %v3727 = vunpack.c.h.b16 %v3553
    %v3728 = vunpack.c.l.b16 %v3554
    %v3729 = vunpack.c.h.b16 %v3554
    %v3730 = vunpack.c.l.b16 %v3555
    %v3731 = vunpack.c.h.b16 %v3555
    %v3732 = vunpack.c.l.b16 %v3556
    %v3733 = vunpack.c.h.b16 %v3556
    %v3734 = vunpack.c.l.b16 %v3557
    %v3735 = vunpack.c.h.b16 %v3557
    %v3736 = vunpack.c.l.b16 %v3558
    %v3737 = vunpack.c.h.b16 %v3558
    %v3738 = vunpack.c.l.b16 %v3559
    %v3739 = vunpack.c.h.b16 %v3559
    %v3740 = vunpack.c.l.b16 %v3560
    %v3741 = vunpack.c.h.b16 %v3560
    %v3742 = vunpack.c.l.b16 %v3561
    %v3743 = vunpack.c.h.b16 %v3561
    %v3744 = vunpack.c.l.b16 %v3562
    %v3745 = vunpack.c.h.b16 %v3562
    %v3746 = vunpack.c.l.b16 %v3563
    %v3747 = vunpack.c.h.b16 %v3563
    %v3748 = vunpack.c.l.b16 %v3564
    %v3749 = vunpack.c.h.b16 %v3564
    %v3750 = vunpack.c.l.b16 %v3565
    %v3751 = vunpack.c.h.b16 %v3565
    %v3752 = vunpack.c.l.b16 %v3566
    %v3753 = vunpack.c.h.b16 %v3566
    %v3754 = vunpack.c.l.b16 %v3567
    %v3755 = vunpack.c.h.b16 %v3567
    %v3756 = vunpack.c.l.b16 %v3568
    %v3757 = vunpack.c.h.b16 %v3568
    %v3758 = vunpack.c.l.b16 %v3569
    %v3759 = vunpack.c.h.b16 %v3569
    %v3760 = vunpack.c.l.b16 %v3570
    %v3761 = vunpack.c.h.b16 %v3570
    %v3762 = vunpack.c.l.b16 %v3571
    %v3763 = vunpack.c.h.b16 %v3571
    %v3764 = vunpack.c.l.b16 %v3572
    %v3765 = vunpack.c.h.b16 %v3572
    %v3766 = vunpack.c.l.b16 %v3573
    %v3767 = vunpack.c.h.b16 %v3573
    %v3768 = vpack.c.b16 %v3644, %v3640
    %v3769 = vpack.c.b16 %v3645, %v3641
    %v3770 = vpack.c.b16 %v3646, %v3642
    %v3771 = vpack.c.b16 %v3647, %v3643
    %v3772 = vpack.c.b16 %v3652, %v3648
    %v3773 = vpack.c.b16 %v3653, %v3649
    %v3774 = vpack.c.b16 %v3654, %v3650
    %v3775 = vpack.c.b16 %v3655, %v3651
    %v3776 = vpack.c.b16 %v3660, %v3656
    %v3777 = vpack.c.b16 %v3661, %v3657
    %v3778 = vpack.c.b16 %v3662, %v3658
    %v3779 = vpack.c.b16 %v3663, %v3659
    %v3780 = vpack.c.b16 %v3668, %v3664
    %v3781 = vpack.c.b16 %v3669, %v3665
    %v3782 = vpack.c.b16 %v3670, %v3666
    %v3783 = vpack.c.b16 %v3671, %v3667
    %v3784 = vpack.c.b16 %v3676, %v3672
    %v3785 = vpack.c.b16 %v3677, %v3673
    %v3786 = vpack.c.b16 %v3678, %v3674
    %v3787 = vpack.c.b16 %v3679, %v3675
    %v3788 = vpack.c.b16 %v3684, %v3680
    %v3789 = vpack.c.b16 %v3685, %v3681
    %v3790 = vpack.c.b16 %v3686, %v3682
    %v3791 = vpack.c.b16 %v3687, %v3683
    %v3792 = vpack.c.b16 %v3692, %v3688
    %v3793 = vpack.c.b16 %v3693, %v3689
    %v3794 = vpack.c.b16 %v3694, %v3690
    %v3795 = vpack.c.b16 %v3695, %v3691
    %v3796 = vpack.c.b16 %v3700, %v3696
    %v3797 = vpack.c.b16 %v3701, %v3697
    %v3798 = vpack.c.b16 %v3702, %v3698
    %v3799 = vpack.c.b16 %v3703, %v3699
    %v3800 = vpack.c.b16 %v3708, %v3704
    %v3801 = vpack.c.b16 %v3709, %v3705
    %v3802 = vpack.c.b16 %v3710, %v3706
    %v3803 = vpack.c.b16 %v3711, %v3707
    %v3804 = vpack.c.b16 %v3716, %v3712
    %v3805 = vpack.c.b16 %v3717, %v3713
    %v3806 = vpack.c.b16 %v3718, %v3714
    %v3807 = vpack.c.b16 %v3719, %v3715
    %v3808 = vpack.c.b16 %v3724, %v3720
    %v3809 = vpack.c.b16 %v3725, %v3721
    %v3810 = vpack.c.b16 %v3726, %v3722
    %v3811 = vpack.c.b16 %v3727, %v3723
    %v3812 = vpack.c.b16 %v3732, %v3728
    %v3813 = vpack.c.b16 %v3733, %v3729
    %v3814 = vpack.c.b16 %v3734, %v3730
    %v3815 = vpack.c.b16 %v3735, %v3731
    %v3816 = vpack.c.b16 %v3740, %v3736
    %v3817 = vpack.c.b16 %v3741, %v3737
    %v3818 = vpack.c.b16 %v3742, %v3738
    %v3819 = vpack.c.b16 %v3743, %v3739
    %v3820 = vpack.c.b16 %v3748, %v3744
    %v3821 = vpack.c.b16 %v3749, %v3745
    %v3822 = vpack.c.b16 %v3750, %v3746
    %v3823 = vpack.c.b16 %v3751, %v3747
    %v3824 = vpack.c.b16 %v3756, %v3752
    %v3825 = vpack.c.b16 %v3757, %v3753
    %v3826 = vpack.c.b16 %v3758, %v3754
    %v3827 = vpack.c.b16 %v3759, %v3755
    %v3828 = vpack.c.b16 %v3764, %v3760
    %v3829 = vpack.c.b16 %v3765, %v3761
    %v3830 = vpack.c.b16 %v3766, %v3762
    %v3831 = vpack.c.b16 %v3767, %v3763
    %3896 = vmatpush.bf16.msra.mxu0 %v3796
    %3897 = vmatpush.bf16.msra.mxu0 %v3792
    %3898 = vmatpush.bf16.msra.mxu0 %v3788
    %3899 = vmatpush.bf16.msra.mxu0 %v3784
    %3900 = vmatpush.bf16.msra.mxu0 %v3780
    %3901 = vmatpush.bf16.msra.mxu0 %v3776
    %3902 = vmatpush.bf16.msra.mxu0 %v3772
    %3903 = vmatpush.bf16.msra.mxu0 %v3768
    %3904 = vmatmul.bf16.gmra.mxu0 %v3574
    %v3905 = vpop.f32.mrf.mxu0
    %v3906 = vadd.f32 0.0, %v3905
    %v3907 = vpop.f32.mrf.mxu0
    %3908 = vdwg.mxu0
    %3909 = vmatpush.bf16.msra.mxu0 %v3828
    %3910 = vmatpush.bf16.msra.mxu0 %v3824
    %3911 = vmatpush.bf16.msra.mxu0 %v3820
    %3912 = vmatpush.bf16.msra.mxu0 %v3816
    %3913 = vmatpush.bf16.msra.mxu0 %v3812
    %3914 = vmatpush.bf16.msra.mxu0 %v3808
    %3915 = vmatpush.bf16.msra.mxu0 %v3804
    %3916 = vmatpush.bf16.msra.mxu0 %v3800
    %3917 = vmatmul.bf16.gmra.mxu0 %v3575
    %v3918 = vpop.f32.mrf.mxu0
    %v3919 = vadd.f32 %v3906, %v3918
    %v3920 = vpop.f32.mrf.mxu0
    %3921 = vdwg.mxu0
    %3922 = vmatpush.bf16.msra.mxu0 %v3797
    %3923 = vmatpush.bf16.msra.mxu0 %v3793
    %3924 = vmatpush.bf16.msra.mxu0 %v3789
    %3925 = vmatpush.bf16.msra.mxu0 %v3785
    %3926 = vmatpush.bf16.msra.mxu0 %v3781
    %3927 = vmatpush.bf16.msra.mxu0 %v3777
    %3928 = vmatpush.bf16.msra.mxu0 %v3773
    %3929 = vmatpush.bf16.msra.mxu0 %v3769
    %3930 = vmatmul.bf16.gmra.mxu0 %v3574
    %v3931 = vpop.f32.mrf.mxu0
    %v3932 = vadd.f32 0.0, %v3931
    %v3933 = vpop.f32.mrf.mxu0
    %3934 = vdwg.mxu0
    %3935 = vmatpush.bf16.msra.mxu0 %v3829
    %3936 = vmatpush.bf16.msra.mxu0 %v3825
    %3937 = vmatpush.bf16.msra.mxu0 %v3821
    %3938 = vmatpush.bf16.msra.mxu0 %v3817
    %3939 = vmatpush.bf16.msra.mxu0 %v3813
    %3940 = vmatpush.bf16.msra.mxu0 %v3809
    %3941 = vmatpush.bf16.msra.mxu0 %v3805
    %3942 = vmatpush.bf16.msra.mxu0 %v3801
    %3943 = vmatmul.bf16.gmra.mxu0 %v3575
    %v3944 = vpop.f32.mrf.mxu0
    %v3945 = vadd.f32 %v3932, %v3944
    %v3946 = vpop.f32.mrf.mxu0
    %3947 = vdwg.mxu0
    %3948 = vmatpush.bf16.msra.mxu0 %v3798
    %3949 = vmatpush.bf16.msra.mxu0 %v3794
    %3950 = vmatpush.bf16.msra.mxu0 %v3790
    %3951 = vmatpush.bf16.msra.mxu0 %v3786
    %3952 = vmatpush.bf16.msra.mxu0 %v3782
    %3953 = vmatpush.bf16.msra.mxu0 %v3778
    %3954 = vmatpush.bf16.msra.mxu0 %v3774
    %3955 = vmatpush.bf16.msra.mxu0 %v3770
    %3956 = vmatmul.bf16.gmra.mxu0 %v3574
    %v3957 = vpop.f32.mrf.mxu0
    %v3958 = vadd.f32 0.0, %v3957
    %v3959 = vpop.f32.mrf.mxu0
    %3960 = vdwg.mxu0
    %3961 = vmatpush.bf16.msra.mxu0 %v3830
    %3962 = vmatpush.bf16.msra.mxu0 %v3826
    %3963 = vmatpush.bf16.msra.mxu0 %v3822
    %3964 = vmatpush.bf16.msra.mxu0 %v3818
    %3965 = vmatpush.bf16.msra.mxu0 %v3814
    %3966 = vmatpush.bf16.msra.mxu0 %v3810
    %3967 = vmatpush.bf16.msra.mxu0 %v3806
    %3968 = vmatpush.bf16.msra.mxu0 %v3802
    %3969 = vmatmul.bf16.gmra.mxu0 %v3575
    %v3970 = vpop.f32.mrf.mxu0
    %v3971 = vadd.f32 %v3958, %v3970
    %v3972 = vpop.f32.mrf.mxu0
    %3973 = vdwg.mxu0
    %3974 = vmatpush.bf16.msra.mxu0 %v3799
    %3975 = vmatpush.bf16.msra.mxu0 %v3795
    %3976 = vmatpush.bf16.msra.mxu0 %v3791
    %3977 = vmatpush.bf16.msra.mxu0 %v3787
    %3978 = vmatpush.bf16.msra.mxu0 %v3783
    %3979 = vmatpush.bf16.msra.mxu0 %v3779
    %3980 = vmatpush.bf16.msra.mxu0 %v3775
    %3981 = vmatpush.bf16.msra.mxu0 %v3771
    %3982 = vmatmul.bf16.gmra.mxu0 %v3574
    %v3983 = vpop.f32.mrf.mxu0
    %v3984 = vadd.f32 0.0, %v3983
    %v3985 = vpop.f32.mrf.mxu0
    %3986 = vdwg.mxu0
    %3987 = vmatpush.bf16.msra.mxu0 %v3831
    %3988 = vmatpush.bf16.msra.mxu0 %v3827
    %3989 = vmatpush.bf16.msra.mxu0 %v3823
    %3990 = vmatpush.bf16.msra.mxu0 %v3819
    %3991 = vmatpush.bf16.msra.mxu0 %v3815
    %3992 = vmatpush.bf16.msra.mxu0 %v3811
    %3993 = vmatpush.bf16.msra.mxu0 %v3807
    %3994 = vmatpush.bf16.msra.mxu0 %v3803
    %3995 = vmatmul.bf16.gmra.mxu0 %v3575
    %v3996 = vpop.f32.mrf.mxu0
    %v3997 = vadd.f32 %v3984, %v3996
    %v3998 = vpop.f32.mrf.mxu0
    %3999 = vdwg.mxu0
    %v4004 = vrot.slane %v3945, 4
    %v4005 = vrot.slane %v3997, 4
    %v4006 = vsel %vm1078, %v3919, %v4004
    %v4007 = vsel %vm1078, %v3971, %v4005
    %v4010 = vadd.f32 %v3508, %v4006
    %v4011 = vadd.f32 %v3509, %v4007
    %v4012 = vxor.u32 %v4010, 2147483648
    %v4013 = vmul.f32 %v4012, 1.442695
    %v4014 = vpow.pop %v4013
    %v4015 = vadd.f32 %v4014, 1.0
    %v4016 = vrcp.pop %v4015
    %v4017 = vmul.f32 %v4015, %v4016
    %v4018 = vsub.f32 1.0, %v4017
    %v4019 = vmul.f32 %v4016, %v4018
    %v4020 = vadd.f32 %v4016, %v4019
    %vm4021 = vweird.f32 %v4015
    %vm4022 = vweird.f32 %v4016
    %vm4023 = vmor %vm4021, %vm4022
    %v4024 = vsel %vm4023, %v4016, %v4020
    %v4025 = vand.u32 2147483647, %v4015
    %vm4026 = vcmp.eq.f32.partialorder %v4025, 8.507059e+37
    %v4027 = vand.u32 %v4015, 2147483648
    %v4028 = vor.u32 1.1754944e-38, %v4027
    %v4029 = vsel %vm4026, %v4028, %v4024
    %v4030 = vmul.f32 1.0, %v4029
    %v4032 = vrot.slane %v4010, 4
    %v4034 = vxor.u32 %v4032, 2147483648
    %v4035 = vmul.f32 %v4034, 1.442695
    %v4036 = vpow.pop %v4035
    %v4037 = vadd.f32 %v4036, 1.0
    %v4038 = vrcp.pop %v4037
    %v4039 = vmul.f32 %v4037, %v4038
    %v4040 = vsub.f32 1.0, %v4039
    %v4041 = vmul.f32 %v4038, %v4040
    %v4042 = vadd.f32 %v4038, %v4041
    %vm4043 = vweird.f32 %v4037
    %vm4044 = vweird.f32 %v4038
    %vm4045 = vmor %vm4043, %vm4044
    %v4046 = vsel %vm4045, %v4038, %v4042
    %v4047 = vand.u32 2147483647, %v4037
    %vm4048 = vcmp.eq.f32.partialorder %v4047, 8.507059e+37
    %v4049 = vand.u32 %v4037, 2147483648
    %v4050 = vor.u32 1.1754944e-38, %v4049
    %v4051 = vsel %vm4048, %v4050, %v4046
    %v4052 = vmul.f32 1.0, %v4051
    %v4053 = vtanh.pop %v4011
    %v4055 = vrot.slane %v4011, 4
    %v4057 = vxor.u32 %v4055, 2147483648
    %v4058 = vmul.f32 %v4057, 1.442695
    %v4059 = vpow.pop %v4058
    %v4060 = vadd.f32 %v4059, 1.0
    %v4061 = vrcp.pop %v4060
    %v4062 = vmul.f32 %v4060, %v4061
    %v4063 = vsub.f32 1.0, %v4062
    %v4064 = vmul.f32 %v4061, %v4063
    %v4065 = vadd.f32 %v4061, %v4064
    %vm4066 = vweird.f32 %v4060
    %vm4067 = vweird.f32 %v4061
    %vm4068 = vmor %vm4066, %vm4067
    %v4069 = vsel %vm4068, %v4061, %v4065
    %v4070 = vand.u32 2147483647, %v4060
    %vm4071 = vcmp.eq.f32.partialorder %v4070, 8.507059e+37
    %v4072 = vand.u32 %v4060, 2147483648
    %v4073 = vor.u32 1.1754944e-38, %v4072
    %v4074 = vsel %vm4071, %v4073, %v4069
    %v4075 = vmul.f32 1.0, %v4074
    %v4076 = vmul.f32 %v4052, %v3491
    %v4077 = vmul.f32 %v4030, %v4053
    %v4078 = vadd.f32 %v4076, %v4077
    %v4079 = vtanh.pop %v4078
    %v4080 = vmul.f32 %v4075, %v4079
    %s4082 = scalar_lea.vmem [#allocation1], 1
    %4083 = vst [vmem:[%s4082] ss:$2 sm:$0xff] %v4080
    %v4084 = vld.sshfl [vmem:[#allocation1] sm:$0xff pattern:$0x75316420]
    %4086 = vst [vmem:[#allocation2 + $0x10] sm:$0x30] %v4084
    %4087 = vst [vmem:[#allocation2 + $0x8] sm:$0xc] %v4080
    %v4088 = vsel %vm498, %v4080, 0.0
    %v4089 = vsel %vm498, 0.0, %v4080
    %s4090 = scalar_lea.vmem %s0, 112
    %v4091 = vld [vmem:[%s4090] sm:$0xff]
    %v4092 = vld [vmem:[%s4090 + $0x8] sm:$0xff]
    %v4093 = vld [vmem:[#allocation5] sm:$0xff]
    %v4094 = vld [vmem:[#allocation5 + $0x8] sm:$0xff]
    %v4095 = vld [vmem:[#allocation5 + $0x10] sm:$0xff]
    %v4096 = vld [vmem:[#allocation5 + $0x18] sm:$0xff]
    %v4097 = vld [vmem:[#allocation5 + $0x20] sm:$0xff]
    %v4098 = vld [vmem:[#allocation5 + $0x28] sm:$0xff]
    %v4099 = vld [vmem:[#allocation5 + $0x30] sm:$0xff]
    %v4100 = vld [vmem:[#allocation5 + $0x38] sm:$0xff]
    %v4101 = vld [vmem:[#allocation5 + $0x40] sm:$0xff]
    %v4102 = vld [vmem:[#allocation5 + $0x48] sm:$0xff]
    %v4103 = vld [vmem:[#allocation5 + $0x50] sm:$0xff]
    %v4104 = vld [vmem:[#allocation5 + $0x58] sm:$0xff]
    %v4105 = vld [vmem:[#allocation5 + $0x60] sm:$0xff]
    %v4106 = vld [vmem:[#allocation5 + $0x68] sm:$0xff]
    %v4107 = vld [vmem:[#allocation5 + $0x70] sm:$0xff]
    %v4108 = vld [vmem:[#allocation5 + $0x78] sm:$0xff]
    %v4109 = vld [vmem:[#allocation5 + $0x80] sm:$0xff]
    %v4110 = vld [vmem:[#allocation5 + $0x88] sm:$0xff]
    %v4111 = vld [vmem:[#allocation5 + $0x90] sm:$0xff]
    %v4112 = vld [vmem:[#allocation5 + $0x98] sm:$0xff]
    %v4113 = vld [vmem:[#allocation5 + $0xa0] sm:$0xff]
    %v4114 = vld [vmem:[#allocation5 + $0xa8] sm:$0xff]
    %v4115 = vld [vmem:[#allocation5 + $0xb0] sm:$0xff]
    %v4116 = vld [vmem:[#allocation5 + $0xb8] sm:$0xff]
    %v4117 = vld [vmem:[#allocation5 + $0xc0] sm:$0xff]
    %v4118 = vld [vmem:[#allocation5 + $0xc8] sm:$0xff]
    %v4119 = vld [vmem:[#allocation5 + $0xd0] sm:$0xff]
    %v4120 = vld [vmem:[#allocation5 + $0xd8] sm:$0xff]
    %v4121 = vld [vmem:[#allocation5 + $0xe0] sm:$0xff]
    %v4122 = vld [vmem:[#allocation5 + $0xe8] sm:$0xff]
    %v4123 = vld [vmem:[#allocation5 + $0xf0] sm:$0xff]
    %v4124 = vld [vmem:[#allocation5 + $0xf8] sm:$0xff]
    %v4125 = vld [vmem:[#allocation5 + $0x100] sm:$0xff]
    %v4126 = vld [vmem:[#allocation5 + $0x108] sm:$0xff]
    %v4127 = vld [vmem:[#allocation5 + $0x110] sm:$0xff]
    %v4128 = vld [vmem:[#allocation5 + $0x118] sm:$0xff]
    %v4129 = vld [vmem:[#allocation5 + $0x120] sm:$0xff]
    %v4130 = vld [vmem:[#allocation5 + $0x128] sm:$0xff]
    %v4131 = vld [vmem:[#allocation5 + $0x130] sm:$0xff]
    %v4132 = vld [vmem:[#allocation5 + $0x138] sm:$0xff]
    %v4133 = vld [vmem:[#allocation5 + $0x140] sm:$0xff]
    %v4134 = vld [vmem:[#allocation5 + $0x148] sm:$0xff]
    %v4135 = vld [vmem:[#allocation5 + $0x150] sm:$0xff]
    %v4136 = vld [vmem:[#allocation5 + $0x158] sm:$0xff]
    %v4137 = vld [vmem:[#allocation5 + $0x160] sm:$0xff]
    %v4138 = vld [vmem:[#allocation5 + $0x168] sm:$0xff]
    %v4139 = vld [vmem:[#allocation5 + $0x170] sm:$0xff]
    %v4140 = vld [vmem:[#allocation5 + $0x178] sm:$0xff]
    %v4141 = vld [vmem:[#allocation5 + $0x180] sm:$0xff]
    %v4142 = vld [vmem:[#allocation5 + $0x188] sm:$0xff]
    %v4143 = vld [vmem:[#allocation5 + $0x190] sm:$0xff]
    %v4144 = vld [vmem:[#allocation5 + $0x198] sm:$0xff]
    %v4145 = vld [vmem:[#allocation5 + $0x1a0] sm:$0xff]
    %v4146 = vld [vmem:[#allocation5 + $0x1a8] sm:$0xff]
    %v4147 = vld [vmem:[#allocation5 + $0x1b0] sm:$0xff]
    %v4148 = vld [vmem:[#allocation5 + $0x1b8] sm:$0xff]
    %v4149 = vld [vmem:[#allocation5 + $0x1c0] sm:$0xff]
    %v4150 = vld [vmem:[#allocation5 + $0x1c8] sm:$0xff]
    %v4151 = vld [vmem:[#allocation5 + $0x1d0] sm:$0xff]
    %v4152 = vld [vmem:[#allocation5 + $0x1d8] sm:$0xff]
    %v4153 = vld [vmem:[#allocation5 + $0x1e0] sm:$0xff]
    %v4154 = vld [vmem:[#allocation5 + $0x1e8] sm:$0xff]
    %v4155 = vld [vmem:[#allocation5 + $0x1f0] sm:$0xff]
    %v4156 = vld [vmem:[#allocation5 + $0x1f8] sm:$0xff]
    %v4157 = vpack.c.bf16 %v4088, %v4088
    %v4158 = vpack.c.bf16 %v4089, %v4089
    %v4223 = vunpack.c.l.b16 %v4093
    %v4224 = vunpack.c.h.b16 %v4093
    %v4225 = vunpack.c.l.b16 %v4094
    %v4226 = vunpack.c.h.b16 %v4094
    %v4227 = vunpack.c.l.b16 %v4095
    %v4228 = vunpack.c.h.b16 %v4095
    %v4229 = vunpack.c.l.b16 %v4096
    %v4230 = vunpack.c.h.b16 %v4096
    %v4231 = vunpack.c.l.b16 %v4097
    %v4232 = vunpack.c.h.b16 %v4097
    %v4233 = vunpack.c.l.b16 %v4098
    %v4234 = vunpack.c.h.b16 %v4098
    %v4235 = vunpack.c.l.b16 %v4099
    %v4236 = vunpack.c.h.b16 %v4099
    %v4237 = vunpack.c.l.b16 %v4100
    %v4238 = vunpack.c.h.b16 %v4100
    %v4239 = vunpack.c.l.b16 %v4101
    %v4240 = vunpack.c.h.b16 %v4101
    %v4241 = vunpack.c.l.b16 %v4102
    %v4242 = vunpack.c.h.b16 %v4102
    %v4243 = vunpack.c.l.b16 %v4103
    %v4244 = vunpack.c.h.b16 %v4103
    %v4245 = vunpack.c.l.b16 %v4104
    %v4246 = vunpack.c.h.b16 %v4104
    %v4247 = vunpack.c.l.b16 %v4105
    %v4248 = vunpack.c.h.b16 %v4105
    %v4249 = vunpack.c.l.b16 %v4106
    %v4250 = vunpack.c.h.b16 %v4106
    %v4251 = vunpack.c.l.b16 %v4107
    %v4252 = vunpack.c.h.b16 %v4107
    %v4253 = vunpack.c.l.b16 %v4108
    %v4254 = vunpack.c.h.b16 %v4108
    %v4255 = vunpack.c.l.b16 %v4109
    %v4256 = vunpack.c.h.b16 %v4109
    %v4257 = vunpack.c.l.b16 %v4110
    %v4258 = vunpack.c.h.b16 %v4110
    %v4259 = vunpack.c.l.b16 %v4111
    %v4260 = vunpack.c.h.b16 %v4111
    %v4261 = vunpack.c.l.b16 %v4112
    %v4262 = vunpack.c.h.b16 %v4112
    %v4263 = vunpack.c.l.b16 %v4113
    %v4264 = vunpack.c.h.b16 %v4113
    %v4265 = vunpack.c.l.b16 %v4114
    %v4266 = vunpack.c.h.b16 %v4114
    %v4267 = vunpack.c.l.b16 %v4115
    %v4268 = vunpack.c.h.b16 %v4115
    %v4269 = vunpack.c.l.b16 %v4116
    %v4270 = vunpack.c.h.b16 %v4116
    %v4271 = vunpack.c.l.b16 %v4117
    %v4272 = vunpack.c.h.b16 %v4117
    %v4273 = vunpack.c.l.b16 %v4118
    %v4274 = vunpack.c.h.b16 %v4118
    %v4275 = vunpack.c.l.b16 %v4119
    %v4276 = vunpack.c.h.b16 %v4119
    %v4277 = vunpack.c.l.b16 %v4120
    %v4278 = vunpack.c.h.b16 %v4120
    %v4279 = vunpack.c.l.b16 %v4121
    %v4280 = vunpack.c.h.b16 %v4121
    %v4281 = vunpack.c.l.b16 %v4122
    %v4282 = vunpack.c.h.b16 %v4122
    %v4283 = vunpack.c.l.b16 %v4123
    %v4284 = vunpack.c.h.b16 %v4123
    %v4285 = vunpack.c.l.b16 %v4124
    %v4286 = vunpack.c.h.b16 %v4124
    %v4287 = vunpack.c.l.b16 %v4125
    %v4288 = vunpack.c.h.b16 %v4125
    %v4289 = vunpack.c.l.b16 %v4126
    %v4290 = vunpack.c.h.b16 %v4126
    %v4291 = vunpack.c.l.b16 %v4127
    %v4292 = vunpack.c.h.b16 %v4127
    %v4293 = vunpack.c.l.b16 %v4128
    %v4294 = vunpack.c.h.b16 %v4128
    %v4295 = vunpack.c.l.b16 %v4129
    %v4296 = vunpack.c.h.b16 %v4129
    %v4297 = vunpack.c.l.b16 %v4130
    %v4298 = vunpack.c.h.b16 %v4130
    %v4299 = vunpack.c.l.b16 %v4131
    %v4300 = vunpack.c.h.b16 %v4131
    %v4301 = vunpack.c.l.b16 %v4132
    %v4302 = vunpack.c.h.b16 %v4132
    %v4303 = vunpack.c.l.b16 %v4133
    %v4304 = vunpack.c.h.b16 %v4133
    %v4305 = vunpack.c.l.b16 %v4134
    %v4306 = vunpack.c.h.b16 %v4134
    %v4307 = vunpack.c.l.b16 %v4135
    %v4308 = vunpack.c.h.b16 %v4135
    %v4309 = vunpack.c.l.b16 %v4136
    %v4310 = vunpack.c.h.b16 %v4136
    %v4311 = vunpack.c.l.b16 %v4137
    %v4312 = vunpack.c.h.b16 %v4137
    %v4313 = vunpack.c.l.b16 %v4138
    %v4314 = vunpack.c.h.b16 %v4138
    %v4315 = vunpack.c.l.b16 %v4139
    %v4316 = vunpack.c.h.b16 %v4139
    %v4317 = vunpack.c.l.b16 %v4140
    %v4318 = vunpack.c.h.b16 %v4140
    %v4319 = vunpack.c.l.b16 %v4141
    %v4320 = vunpack.c.h.b16 %v4141
    %v4321 = vunpack.c.l.b16 %v4142
    %v4322 = vunpack.c.h.b16 %v4142
    %v4323 = vunpack.c.l.b16 %v4143
    %v4324 = vunpack.c.h.b16 %v4143
    %v4325 = vunpack.c.l.b16 %v4144
    %v4326 = vunpack.c.h.b16 %v4144
    %v4327 = vunpack.c.l.b16 %v4145
    %v4328 = vunpack.c.h.b16 %v4145
    %v4329 = vunpack.c.l.b16 %v4146
    %v4330 = vunpack.c.h.b16 %v4146
    %v4331 = vunpack.c.l.b16 %v4147
    %v4332 = vunpack.c.h.b16 %v4147
    %v4333 = vunpack.c.l.b16 %v4148
    %v4334 = vunpack.c.h.b16 %v4148
    %v4335 = vunpack.c.l.b16 %v4149
    %v4336 = vunpack.c.h.b16 %v4149
    %v4337 = vunpack.c.l.b16 %v4150
    %v4338 = vunpack.c.h.b16 %v4150
    %v4339 = vunpack.c.l.b16 %v4151
    %v4340 = vunpack.c.h.b16 %v4151
    %v4341 = vunpack.c.l.b16 %v4152
    %v4342 = vunpack.c.h.b16 %v4152
    %v4343 = vunpack.c.l.b16 %v4153
    %v4344 = vunpack.c.h.b16 %v4153
    %v4345 = vunpack.c.l.b16 %v4154
    %v4346 = vunpack.c.h.b16 %v4154
    %v4347 = vunpack.c.l.b16 %v4155
    %v4348 = vunpack.c.h.b16 %v4155
    %v4349 = vunpack.c.l.b16 %v4156
    %v4350 = vunpack.c.h.b16 %v4156
    %v4351 = vpack.c.b16 %v4227, %v4223
    %v4352 = vpack.c.b16 %v4228, %v4224
    %v4353 = vpack.c.b16 %v4229, %v4225
    %v4354 = vpack.c.b16 %v4230, %v4226
    %v4355 = vpack.c.b16 %v4235, %v4231
    %v4356 = vpack.c.b16 %v4236, %v4232
    %v4357 = vpack.c.b16 %v4237, %v4233
    %v4358 = vpack.c.b16 %v4238, %v4234
    %v4359 = vpack.c.b16 %v4243, %v4239
    %v4360 = vpack.c.b16 %v4244, %v4240
    %v4361 = vpack.c.b16 %v4245, %v4241
    %v4362 = vpack.c.b16 %v4246, %v4242
    %v4363 = vpack.c.b16 %v4251, %v4247
    %v4364 = vpack.c.b16 %v4252, %v4248
    %v4365 = vpack.c.b16 %v4253, %v4249
    %v4366 = vpack.c.b16 %v4254, %v4250
    %v4367 = vpack.c.b16 %v4259, %v4255
    %v4368 = vpack.c.b16 %v4260, %v4256
    %v4369 = vpack.c.b16 %v4261, %v4257
    %v4370 = vpack.c.b16 %v4262, %v4258
    %v4371 = vpack.c.b16 %v4267, %v4263
    %v4372 = vpack.c.b16 %v4268, %v4264
    %v4373 = vpack.c.b16 %v4269, %v4265
    %v4374 = vpack.c.b16 %v4270, %v4266
    %v4375 = vpack.c.b16 %v4275, %v4271
    %v4376 = vpack.c.b16 %v4276, %v4272
    %v4377 = vpack.c.b16 %v4277, %v4273
    %v4378 = vpack.c.b16 %v4278, %v4274
    %v4379 = vpack.c.b16 %v4283, %v4279
    %v4380 = vpack.c.b16 %v4284, %v4280
    %v4381 = vpack.c.b16 %v4285, %v4281
    %v4382 = vpack.c.b16 %v4286, %v4282
    %v4383 = vpack.c.b16 %v4291, %v4287
    %v4384 = vpack.c.b16 %v4292, %v4288
    %v4385 = vpack.c.b16 %v4293, %v4289
    %v4386 = vpack.c.b16 %v4294, %v4290
    %v4387 = vpack.c.b16 %v4299, %v4295
    %v4388 = vpack.c.b16 %v4300, %v4296
    %v4389 = vpack.c.b16 %v4301, %v4297
    %v4390 = vpack.c.b16 %v4302, %v4298
    %v4391 = vpack.c.b16 %v4307, %v4303
    %v4392 = vpack.c.b16 %v4308, %v4304
    %v4393 = vpack.c.b16 %v4309, %v4305
    %v4394 = vpack.c.b16 %v4310, %v4306
    %v4395 = vpack.c.b16 %v4315, %v4311
    %v4396 = vpack.c.b16 %v4316, %v4312
    %v4397 = vpack.c.b16 %v4317, %v4313
    %v4398 = vpack.c.b16 %v4318, %v4314
    %v4399 = vpack.c.b16 %v4323, %v4319
    %v4400 = vpack.c.b16 %v4324, %v4320
    %v4401 = vpack.c.b16 %v4325, %v4321
    %v4402 = vpack.c.b16 %v4326, %v4322
    %v4403 = vpack.c.b16 %v4331, %v4327
    %v4404 = vpack.c.b16 %v4332, %v4328
    %v4405 = vpack.c.b16 %v4333, %v4329
    %v4406 = vpack.c.b16 %v4334, %v4330
    %v4407 = vpack.c.b16 %v4339, %v4335
    %v4408 = vpack.c.b16 %v4340, %v4336
    %v4409 = vpack.c.b16 %v4341, %v4337
    %v4410 = vpack.c.b16 %v4342, %v4338
    %v4411 = vpack.c.b16 %v4347, %v4343
    %v4412 = vpack.c.b16 %v4348, %v4344
    %v4413 = vpack.c.b16 %v4349, %v4345
    %v4414 = vpack.c.b16 %v4350, %v4346
    %4479 = vmatpush.bf16.msra.mxu0 %v4379
    %4480 = vmatpush.bf16.msra.mxu0 %v4375
    %4481 = vmatpush.bf16.msra.mxu0 %v4371
    %4482 = vmatpush.bf16.msra.mxu0 %v4367
    %4483 = vmatpush.bf16.msra.mxu0 %v4363
    %4484 = vmatpush.bf16.msra.mxu0 %v4359
    %4485 = vmatpush.bf16.msra.mxu0 %v4355
    %4486 = vmatpush.bf16.msra.mxu0 %v4351
    %4487 = vmatmul.bf16.gmra.mxu0 %v4157
    %v4488 = vpop.f32.mrf.mxu0
    %v4489 = vadd.f32 0.0, %v4488
    %v4490 = vpop.f32.mrf.mxu0
    %4491 = vdwg.mxu0
    %4492 = vmatpush.bf16.msra.mxu0 %v4411
    %4493 = vmatpush.bf16.msra.mxu0 %v4407
    %4494 = vmatpush.bf16.msra.mxu0 %v4403
    %4495 = vmatpush.bf16.msra.mxu0 %v4399
    %4496 = vmatpush.bf16.msra.mxu0 %v4395
    %4497 = vmatpush.bf16.msra.mxu0 %v4391
    %4498 = vmatpush.bf16.msra.mxu0 %v4387
    %4499 = vmatpush.bf16.msra.mxu0 %v4383
    %4500 = vmatmul.bf16.gmra.mxu0 %v4158
    %v4501 = vpop.f32.mrf.mxu0
    %v4502 = vadd.f32 %v4489, %v4501
    %v4503 = vpop.f32.mrf.mxu0
    %4504 = vdwg.mxu0
    %4505 = vmatpush.bf16.msra.mxu0 %v4380
    %4506 = vmatpush.bf16.msra.mxu0 %v4376
    %4507 = vmatpush.bf16.msra.mxu0 %v4372
    %4508 = vmatpush.bf16.msra.mxu0 %v4368
    %4509 = vmatpush.bf16.msra.mxu0 %v4364
    %4510 = vmatpush.bf16.msra.mxu0 %v4360
    %4511 = vmatpush.bf16.msra.mxu0 %v4356
    %4512 = vmatpush.bf16.msra.mxu0 %v4352
    %4513 = vmatmul.bf16.gmra.mxu0 %v4157
    %v4514 = vpop.f32.mrf.mxu0
    %v4515 = vadd.f32 0.0, %v4514
    %v4516 = vpop.f32.mrf.mxu0
    %4517 = vdwg.mxu0
    %4518 = vmatpush.bf16.msra.mxu0 %v4412
    %4519 = vmatpush.bf16.msra.mxu0 %v4408
    %4520 = vmatpush.bf16.msra.mxu0 %v4404
    %4521 = vmatpush.bf16.msra.mxu0 %v4400
    %4522 = vmatpush.bf16.msra.mxu0 %v4396
    %4523 = vmatpush.bf16.msra.mxu0 %v4392
    %4524 = vmatpush.bf16.msra.mxu0 %v4388
    %4525 = vmatpush.bf16.msra.mxu0 %v4384
    %4526 = vmatmul.bf16.gmra.mxu0 %v4158
    %v4527 = vpop.f32.mrf.mxu0
    %v4528 = vadd.f32 %v4515, %v4527
    %v4529 = vpop.f32.mrf.mxu0
    %4530 = vdwg.mxu0
    %4531 = vmatpush.bf16.msra.mxu0 %v4381
    %4532 = vmatpush.bf16.msra.mxu0 %v4377
    %4533 = vmatpush.bf16.msra.mxu0 %v4373
    %4534 = vmatpush.bf16.msra.mxu0 %v4369
    %4535 = vmatpush.bf16.msra.mxu0 %v4365
    %4536 = vmatpush.bf16.msra.mxu0 %v4361
    %4537 = vmatpush.bf16.msra.mxu0 %v4357
    %4538 = vmatpush.bf16.msra.mxu0 %v4353
    %4539 = vmatmul.bf16.gmra.mxu0 %v4157
    %v4540 = vpop.f32.mrf.mxu0
    %v4541 = vadd.f32 0.0, %v4540
    %v4542 = vpop.f32.mrf.mxu0
    %4543 = vdwg.mxu0
    %4544 = vmatpush.bf16.msra.mxu0 %v4413
    %4545 = vmatpush.bf16.msra.mxu0 %v4409
    %4546 = vmatpush.bf16.msra.mxu0 %v4405
    %4547 = vmatpush.bf16.msra.mxu0 %v4401
    %4548 = vmatpush.bf16.msra.mxu0 %v4397
    %4549 = vmatpush.bf16.msra.mxu0 %v4393
    %4550 = vmatpush.bf16.msra.mxu0 %v4389
    %4551 = vmatpush.bf16.msra.mxu0 %v4385
    %4552 = vmatmul.bf16.gmra.mxu0 %v4158
    %v4553 = vpop.f32.mrf.mxu0
    %v4554 = vadd.f32 %v4541, %v4553
    %v4555 = vpop.f32.mrf.mxu0
    %4556 = vdwg.mxu0
    %4557 = vmatpush.bf16.msra.mxu0 %v4382
    %4558 = vmatpush.bf16.msra.mxu0 %v4378
    %4559 = vmatpush.bf16.msra.mxu0 %v4374
    %4560 = vmatpush.bf16.msra.mxu0 %v4370
    %4561 = vmatpush.bf16.msra.mxu0 %v4366
    %4562 = vmatpush.bf16.msra.mxu0 %v4362
    %4563 = vmatpush.bf16.msra.mxu0 %v4358
    %4564 = vmatpush.bf16.msra.mxu0 %v4354
    %4565 = vmatmul.bf16.gmra.mxu0 %v4157
    %v4566 = vpop.f32.mrf.mxu0
    %v4567 = vadd.f32 0.0, %v4566
    %v4568 = vpop.f32.mrf.mxu0
    %4569 = vdwg.mxu0
    %4570 = vmatpush.bf16.msra.mxu0 %v4414
    %4571 = vmatpush.bf16.msra.mxu0 %v4410
    %4572 = vmatpush.bf16.msra.mxu0 %v4406
    %4573 = vmatpush.bf16.msra.mxu0 %v4402
    %4574 = vmatpush.bf16.msra.mxu0 %v4398
    %4575 = vmatpush.bf16.msra.mxu0 %v4394
    %4576 = vmatpush.bf16.msra.mxu0 %v4390
    %4577 = vmatpush.bf16.msra.mxu0 %v4386
    %4578 = vmatmul.bf16.gmra.mxu0 %v4158
    %v4579 = vpop.f32.mrf.mxu0
    %v4580 = vadd.f32 %v4567, %v4579
    %v4581 = vpop.f32.mrf.mxu0
    %4582 = vdwg.mxu0
    %v4587 = vrot.slane %v4528, 4
    %v4588 = vrot.slane %v4580, 4
    %v4589 = vsel %vm1078, %v4502, %v4587
    %v4590 = vsel %vm1078, %v4554, %v4588
    %v4593 = vadd.f32 %v4091, %v4589
    %v4594 = vadd.f32 %v4092, %v4590
    %v4595 = vxor.u32 %v4593, 2147483648
    %v4596 = vmul.f32 %v4595, 1.442695
    %v4597 = vpow.pop %v4596
    %v4598 = vadd.f32 %v4597, 1.0
    %v4599 = vrcp.pop %v4598
    %v4600 = vmul.f32 %v4598, %v4599
    %v4601 = vsub.f32 1.0, %v4600
    %v4602 = vmul.f32 %v4599, %v4601
    %v4603 = vadd.f32 %v4599, %v4602
    %vm4604 = vweird.f32 %v4598
    %vm4605 = vweird.f32 %v4599
    %vm4606 = vmor %vm4604, %vm4605
    %v4607 = vsel %vm4606, %v4599, %v4603
    %v4608 = vand.u32 2147483647, %v4598
    %vm4609 = vcmp.eq.f32.partialorder %v4608, 8.507059e+37
    %v4610 = vand.u32 %v4598, 2147483648
    %v4611 = vor.u32 1.1754944e-38, %v4610
    %v4612 = vsel %vm4609, %v4611, %v4607
    %v4613 = vmul.f32 1.0, %v4612
    %v4615 = vrot.slane %v4593, 4
    %v4617 = vxor.u32 %v4615, 2147483648
    %v4618 = vmul.f32 %v4617, 1.442695
    %v4619 = vpow.pop %v4618
    %v4620 = vadd.f32 %v4619, 1.0
    %v4621 = vrcp.pop %v4620
    %v4622 = vmul.f32 %v4620, %v4621
    %v4623 = vsub.f32 1.0, %v4622
    %v4624 = vmul.f32 %v4621, %v4623
    %v4625 = vadd.f32 %v4621, %v4624
    %vm4626 = vweird.f32 %v4620
    %vm4627 = vweird.f32 %v4621
    %vm4628 = vmor %vm4626, %vm4627
    %v4629 = vsel %vm4628, %v4621, %v4625
    %v4630 = vand.u32 2147483647, %v4620
    %vm4631 = vcmp.eq.f32.partialorder %v4630, 8.507059e+37
    %v4632 = vand.u32 %v4620, 2147483648
    %v4633 = vor.u32 1.1754944e-38, %v4632
    %v4634 = vsel %vm4631, %v4633, %v4629
    %v4635 = vmul.f32 1.0, %v4634
    %v4636 = vtanh.pop %v4594
    %v4638 = vrot.slane %v4594, 4
    %v4640 = vxor.u32 %v4638, 2147483648
    %v4641 = vmul.f32 %v4640, 1.442695
    %v4642 = vpow.pop %v4641
    %v4643 = vadd.f32 %v4642, 1.0
    %v4644 = vrcp.pop %v4643
    %v4645 = vmul.f32 %v4643, %v4644
    %v4646 = vsub.f32 1.0, %v4645
    %v4647 = vmul.f32 %v4644, %v4646
    %v4648 = vadd.f32 %v4644, %v4647
    %vm4649 = vweird.f32 %v4643
    %vm4650 = vweird.f32 %v4644
    %vm4651 = vmor %vm4649, %vm4650
    %v4652 = vsel %vm4651, %v4644, %v4648
    %v4653 = vand.u32 2147483647, %v4643
    %vm4654 = vcmp.eq.f32.partialorder %v4653, 8.507059e+37
    %v4655 = vand.u32 %v4643, 2147483648
    %v4656 = vor.u32 1.1754944e-38, %v4655
    %v4657 = vsel %vm4654, %v4656, %v4652
    %v4658 = vmul.f32 1.0, %v4657
    %v4659 = vmul.f32 %v4635, %v4078
    %v4660 = vmul.f32 %v4613, %v4636
    %v4661 = vadd.f32 %v4659, %v4660
    %v4662 = vtanh.pop %v4661
    %v4663 = vmul.f32 %v4658, %v4662
    %4665 = vst [vmem:[#allocation1] ss:$2 sm:$0xff] %v4663
    %v4666 = vld.sshfl [vmem:[#allocation1] sm:$0xff pattern:$0x75316420]
    %v4667 = vrot.slane %v4666, 2
    %4669 = vst [vmem:[#allocation2 + $0x10] sm:$0xc0] %v4667
    %4670 = vst [vmem:[#allocation1] ss:$2 sm:$0xff] %v4663
    %v4671 = vld.sshfl [vmem:[#allocation1] sm:$0xff pattern:$0x75316420]
    %v4672 = vrot.slane %v4671, 2
    %4674 = vst [vmem:[#allocation2 + $0x8] sm:$0x3] %v4672
    %s4675 = smul.u32 4, 112
    %s4676 = smul.u32 %s4675, 4
    %s4677 = sshll.u32 %s4676, 4
    %4678 = dma.done [#allocation4], %s4677
    %v4679 = vld [vmem:[#allocation2] sm:$0xff]
    %v4680 = vld [vmem:[#allocation2 + $0x8] sm:$0xff]
    %v4681 = vld [vmem:[#allocation2 + $0x10] sm:$0xff]
    %v4682 = vld [vmem:[#allocation2 + $0x18] sm:$0xff]
    %v4683 = vld [vmem:[#allocation3] sm:$0xff]
    %v4684 = vld [vmem:[#allocation3 + $0x8] sm:$0xff]
    %v4685 = vld [vmem:[#allocation3 + $0x10] sm:$0xff]
    %v4686 = vld [vmem:[#allocation3 + $0x18] sm:$0xff]
    %v4687 = vld [vmem:[#allocation3 + $0x20] sm:$0xff]
    %v4688 = vld [vmem:[#allocation3 + $0x28] sm:$0xff]
    %v4689 = vld [vmem:[#allocation3 + $0x30] sm:$0xff]
    %v4690 = vld [vmem:[#allocation3 + $0x38] sm:$0xff]
    %v4691 = vld [vmem:[#allocation3 + $0x40] sm:$0xff]
    %v4692 = vld [vmem:[#allocation3 + $0x48] sm:$0xff]
    %v4693 = vld [vmem:[#allocation3 + $0x50] sm:$0xff]
    %v4694 = vld [vmem:[#allocation3 + $0x58] sm:$0xff]
    %v4695 = vld [vmem:[#allocation3 + $0x60] sm:$0xff]
    %v4696 = vld [vmem:[#allocation3 + $0x68] sm:$0xff]
    %v4697 = vld [vmem:[#allocation3 + $0x70] sm:$0xff]
    %v4698 = vld [vmem:[#allocation3 + $0x78] sm:$0xff]
    %v4699 = vld [vmem:[#allocation3 + $0x80] sm:$0xff]
    %v4700 = vld [vmem:[#allocation3 + $0x88] sm:$0xff]
    %v4701 = vld [vmem:[#allocation3 + $0x90] sm:$0xff]
    %v4702 = vld [vmem:[#allocation3 + $0x98] sm:$0xff]
    %v4703 = vld [vmem:[#allocation3 + $0xa0] sm:$0xff]
    %v4704 = vld [vmem:[#allocation3 + $0xa8] sm:$0xff]
    %v4705 = vld [vmem:[#allocation3 + $0xb0] sm:$0xff]
    %v4706 = vld [vmem:[#allocation3 + $0xb8] sm:$0xff]
    %v4707 = vld [vmem:[#allocation3 + $0xc0] sm:$0xff]
    %v4708 = vld [vmem:[#allocation3 + $0xc8] sm:$0xff]
    %v4709 = vld [vmem:[#allocation3 + $0xd0] sm:$0xff]
    %v4710 = vld [vmem:[#allocation3 + $0xd8] sm:$0xff]
    %v4711 = vld [vmem:[#allocation3 + $0xe0] sm:$0xff]
    %v4712 = vld [vmem:[#allocation3 + $0xe8] sm:$0xff]
    %v4713 = vld [vmem:[#allocation3 + $0xf0] sm:$0xff]
    %v4714 = vld [vmem:[#allocation3 + $0xf8] sm:$0xff]
    %v4715 = vld [vmem:[#allocation3 + $0x100] sm:$0xff]
    %v4716 = vld [vmem:[#allocation3 + $0x108] sm:$0xff]
    %v4717 = vld [vmem:[#allocation3 + $0x110] sm:$0xff]
    %v4718 = vld [vmem:[#allocation3 + $0x118] sm:$0xff]
    %v4719 = vld [vmem:[#allocation3 + $0x120] sm:$0xff]
    %v4720 = vld [vmem:[#allocation3 + $0x128] sm:$0xff]
    %v4721 = vld [vmem:[#allocation3 + $0x130] sm:$0xff]
    %v4722 = vld [vmem:[#allocation3 + $0x138] sm:$0xff]
    %v4723 = vld [vmem:[#allocation3 + $0x140] sm:$0xff]
    %v4724 = vld [vmem:[#allocation3 + $0x148] sm:$0xff]
    %v4725 = vld [vmem:[#allocation3 + $0x150] sm:$0xff]
    %v4726 = vld [vmem:[#allocation3 + $0x158] sm:$0xff]
    %v4727 = vld [vmem:[#allocation3 + $0x160] sm:$0xff]
    %v4728 = vld [vmem:[#allocation3 + $0x168] sm:$0xff]
    %v4729 = vld [vmem:[#allocation3 + $0x170] sm:$0xff]
    %v4730 = vld [vmem:[#allocation3 + $0x178] sm:$0xff]
    %v4731 = vld [vmem:[#allocation3 + $0x180] sm:$0xff]
    %v4732 = vld [vmem:[#allocation3 + $0x188] sm:$0xff]
    %v4733 = vld [vmem:[#allocation3 + $0x190] sm:$0xff]
    %v4734 = vld [vmem:[#allocation3 + $0x198] sm:$0xff]
    %v4735 = vld [vmem:[#allocation3 + $0x1a0] sm:$0xff]
    %v4736 = vld [vmem:[#allocation3 + $0x1a8] sm:$0xff]
    %v4737 = vld [vmem:[#allocation3 + $0x1b0] sm:$0xff]
    %v4738 = vld [vmem:[#allocation3 + $0x1b8] sm:$0xff]
    %v4739 = vld [vmem:[#allocation3 + $0x1c0] sm:$0xff]
    %v4740 = vld [vmem:[#allocation3 + $0x1c8] sm:$0xff]
    %v4741 = vld [vmem:[#allocation3 + $0x1d0] sm:$0xff]
    %v4742 = vld [vmem:[#allocation3 + $0x1d8] sm:$0xff]
    %v4743 = vld [vmem:[#allocation3 + $0x1e0] sm:$0xff]
    %v4744 = vld [vmem:[#allocation3 + $0x1e8] sm:$0xff]
    %v4745 = vld [vmem:[#allocation3 + $0x1f0] sm:$0xff]
    %v4746 = vld [vmem:[#allocation3 + $0x1f8] sm:$0xff]
    %v4747 = vpack.c.bf16 %v4681, %v4679
    %v4748 = vpack.c.bf16 %v4682, %v4680
    %v4749 = vld [vmem:[%s2] ss:$4 sm:$0xf]
    %v4751 = vperm.slane %v4749, 0
    %v4752 = vperm.slane %v4749, 1
    %v4753 = vperm.slane %v4749, 2
    %v4754 = vperm.slane %v4749, 3
    %v4823 = vunpack.c.l.b16 %v4683
    %v4824 = vunpack.c.h.b16 %v4683
    %v4825 = vunpack.c.l.b16 %v4684
    %v4826 = vunpack.c.h.b16 %v4684
    %v4827 = vunpack.c.l.b16 %v4685
    %v4828 = vunpack.c.h.b16 %v4685
    %v4829 = vunpack.c.l.b16 %v4686
    %v4830 = vunpack.c.h.b16 %v4686
    %v4831 = vunpack.c.l.b16 %v4687
    %v4832 = vunpack.c.h.b16 %v4687
    %v4833 = vunpack.c.l.b16 %v4688
    %v4834 = vunpack.c.h.b16 %v4688
    %v4835 = vunpack.c.l.b16 %v4689
    %v4836 = vunpack.c.h.b16 %v4689
    %v4837 = vunpack.c.l.b16 %v4690
    %v4838 = vunpack.c.h.b16 %v4690
    %v4839 = vunpack.c.l.b16 %v4691
    %v4840 = vunpack.c.h.b16 %v4691
    %v4841 = vunpack.c.l.b16 %v4692
    %v4842 = vunpack.c.h.b16 %v4692
    %v4843 = vunpack.c.l.b16 %v4693
    %v4844 = vunpack.c.h.b16 %v4693
    %v4845 = vunpack.c.l.b16 %v4694
    %v4846 = vunpack.c.h.b16 %v4694
    %v4847 = vunpack.c.l.b16 %v4695
    %v4848 = vunpack.c.h.b16 %v4695
    %v4849 = vunpack.c.l.b16 %v4696
    %v4850 = vunpack.c.h.b16 %v4696
    %v4851 = vunpack.c.l.b16 %v4697
    %v4852 = vunpack.c.h.b16 %v4697
    %v4853 = vunpack.c.l.b16 %v4698
    %v4854 = vunpack.c.h.b16 %v4698
    %v4855 = vunpack.c.l.b16 %v4699
    %v4856 = vunpack.c.h.b16 %v4699
    %v4857 = vunpack.c.l.b16 %v4700
    %v4858 = vunpack.c.h.b16 %v4700
    %v4859 = vunpack.c.l.b16 %v4701
    %v4860 = vunpack.c.h.b16 %v4701
    %v4861 = vunpack.c.l.b16 %v4702
    %v4862 = vunpack.c.h.b16 %v4702
    %v4863 = vunpack.c.l.b16 %v4703
    %v4864 = vunpack.c.h.b16 %v4703
    %v4865 = vunpack.c.l.b16 %v4704
    %v4866 = vunpack.c.h.b16 %v4704
    %v4867 = vunpack.c.l.b16 %v4705
    %v4868 = vunpack.c.h.b16 %v4705
    %v4869 = vunpack.c.l.b16 %v4706
    %v4870 = vunpack.c.h.b16 %v4706
    %v4871 = vunpack.c.l.b16 %v4707
    %v4872 = vunpack.c.h.b16 %v4707
    %v4873 = vunpack.c.l.b16 %v4708
    %v4874 = vunpack.c.h.b16 %v4708
    %v4875 = vunpack.c.l.b16 %v4709
    %v4876 = vunpack.c.h.b16 %v4709
    %v4877 = vunpack.c.l.b16 %v4710
    %v4878 = vunpack.c.h.b16 %v4710
    %v4879 = vunpack.c.l.b16 %v4711
    %v4880 = vunpack.c.h.b16 %v4711
    %v4881 = vunpack.c.l.b16 %v4712
    %v4882 = vunpack.c.h.b16 %v4712
    %v4883 = vunpack.c.l.b16 %v4713
    %v4884 = vunpack.c.h.b16 %v4713
    %v4885 = vunpack.c.l.b16 %v4714
    %v4886 = vunpack.c.h.b16 %v4714
    %v4887 = vunpack.c.l.b16 %v4715
    %v4888 = vunpack.c.h.b16 %v4715
    %v4889 = vunpack.c.l.b16 %v4716
    %v4890 = vunpack.c.h.b16 %v4716
    %v4891 = vunpack.c.l.b16 %v4717
    %v4892 = vunpack.c.h.b16 %v4717
    %v4893 = vunpack.c.l.b16 %v4718
    %v4894 = vunpack.c.h.b16 %v4718
    %v4895 = vunpack.c.l.b16 %v4719
    %v4896 = vunpack.c.h.b16 %v4719
    %v4897 = vunpack.c.l.b16 %v4720
    %v4898 = vunpack.c.h.b16 %v4720
    %v4899 = vunpack.c.l.b16 %v4721
    %v4900 = vunpack.c.h.b16 %v4721
    %v4901 = vunpack.c.l.b16 %v4722
    %v4902 = vunpack.c.h.b16 %v4722
    %v4903 = vunpack.c.l.b16 %v4723
    %v4904 = vunpack.c.h.b16 %v4723
    %v4905 = vunpack.c.l.b16 %v4724
    %v4906 = vunpack.c.h.b16 %v4724
    %v4907 = vunpack.c.l.b16 %v4725
    %v4908 = vunpack.c.h.b16 %v4725
    %v4909 = vunpack.c.l.b16 %v4726
    %v4910 = vunpack.c.h.b16 %v4726
    %v4911 = vunpack.c.l.b16 %v4727
    %v4912 = vunpack.c.h.b16 %v4727
    %v4913 = vunpack.c.l.b16 %v4728
    %v4914 = vunpack.c.h.b16 %v4728
    %v4915 = vunpack.c.l.b16 %v4729
    %v4916 = vunpack.c.h.b16 %v4729
    %v4917 = vunpack.c.l.b16 %v4730
    %v4918 = vunpack.c.h.b16 %v4730
    %v4919 = vunpack.c.l.b16 %v4731
    %v4920 = vunpack.c.h.b16 %v4731
    %v4921 = vunpack.c.l.b16 %v4732
    %v4922 = vunpack.c.h.b16 %v4732
    %v4923 = vunpack.c.l.b16 %v4733
    %v4924 = vunpack.c.h.b16 %v4733
    %v4925 = vunpack.c.l.b16 %v4734
    %v4926 = vunpack.c.h.b16 %v4734
    %v4927 = vunpack.c.l.b16 %v4735
    %v4928 = vunpack.c.h.b16 %v4735
    %v4929 = vunpack.c.l.b16 %v4736
    %v4930 = vunpack.c.h.b16 %v4736
    %v4931 = vunpack.c.l.b16 %v4737
    %v4932 = vunpack.c.h.b16 %v4737
    %v4933 = vunpack.c.l.b16 %v4738
    %v4934 = vunpack.c.h.b16 %v4738
    %v4935 = vunpack.c.l.b16 %v4739
    %v4936 = vunpack.c.h.b16 %v4739
    %v4937 = vunpack.c.l.b16 %v4740
    %v4938 = vunpack.c.h.b16 %v4740
    %v4939 = vunpack.c.l.b16 %v4741
    %v4940 = vunpack.c.h.b16 %v4741
    %v4941 = vunpack.c.l.b16 %v4742
    %v4942 = vunpack.c.h.b16 %v4742
    %v4943 = vunpack.c.l.b16 %v4743
    %v4944 = vunpack.c.h.b16 %v4743
    %v4945 = vunpack.c.l.b16 %v4744
    %v4946 = vunpack.c.h.b16 %v4744
    %v4947 = vunpack.c.l.b16 %v4745
    %v4948 = vunpack.c.h.b16 %v4745
    %v4949 = vunpack.c.l.b16 %v4746
    %v4950 = vunpack.c.h.b16 %v4746
    %v4951 = vpack.c.b16 %v4827, %v4823
    %v4952 = vpack.c.b16 %v4828, %v4824
    %v4953 = vpack.c.b16 %v4829, %v4825
    %v4954 = vpack.c.b16 %v4830, %v4826
    %v4955 = vpack.c.b16 %v4835, %v4831
    %v4956 = vpack.c.b16 %v4836, %v4832
    %v4957 = vpack.c.b16 %v4837, %v4833
    %v4958 = vpack.c.b16 %v4838, %v4834
    %v4959 = vpack.c.b16 %v4843, %v4839
    %v4960 = vpack.c.b16 %v4844, %v4840
    %v4961 = vpack.c.b16 %v4845, %v4841
    %v4962 = vpack.c.b16 %v4846, %v4842
    %v4963 = vpack.c.b16 %v4851, %v4847
    %v4964 = vpack.c.b16 %v4852, %v4848
    %v4965 = vpack.c.b16 %v4853, %v4849
    %v4966 = vpack.c.b16 %v4854, %v4850
    %v4967 = vpack.c.b16 %v4859, %v4855
    %v4968 = vpack.c.b16 %v4860, %v4856
    %v4969 = vpack.c.b16 %v4861, %v4857
    %v4970 = vpack.c.b16 %v4862, %v4858
    %v4971 = vpack.c.b16 %v4867, %v4863
    %v4972 = vpack.c.b16 %v4868, %v4864
    %v4973 = vpack.c.b16 %v4869, %v4865
    %v4974 = vpack.c.b16 %v4870, %v4866
    %v4975 = vpack.c.b16 %v4875, %v4871
    %v4976 = vpack.c.b16 %v4876, %v4872
    %v4977 = vpack.c.b16 %v4877, %v4873
    %v4978 = vpack.c.b16 %v4878, %v4874
    %v4979 = vpack.c.b16 %v4883, %v4879
    %v4980 = vpack.c.b16 %v4884, %v4880
    %v4981 = vpack.c.b16 %v4885, %v4881
    %v4982 = vpack.c.b16 %v4886, %v4882
    %v4983 = vpack.c.b16 %v4891, %v4887
    %v4984 = vpack.c.b16 %v4892, %v4888
    %v4985 = vpack.c.b16 %v4893, %v4889
    %v4986 = vpack.c.b16 %v4894, %v4890
    %v4987 = vpack.c.b16 %v4899, %v4895
    %v4988 = vpack.c.b16 %v4900, %v4896
    %v4989 = vpack.c.b16 %v4901, %v4897
    %v4990 = vpack.c.b16 %v4902, %v4898
    %v4991 = vpack.c.b16 %v4907, %v4903
    %v4992 = vpack.c.b16 %v4908, %v4904
    %v4993 = vpack.c.b16 %v4909, %v4905
    %v4994 = vpack.c.b16 %v4910, %v4906
    %v4995 = vpack.c.b16 %v4915, %v4911
    %v4996 = vpack.c.b16 %v4916, %v4912
    %v4997 = vpack.c.b16 %v4917, %v4913
    %v4998 = vpack.c.b16 %v4918, %v4914
    %v4999 = vpack.c.b16 %v4923, %v4919
    %v5000 = vpack.c.b16 %v4924, %v4920
    %v5001 = vpack.c.b16 %v4925, %v4921
    %v5002 = vpack.c.b16 %v4926, %v4922
    %v5003 = vpack.c.b16 %v4931, %v4927
    %v5004 = vpack.c.b16 %v4932, %v4928
    %v5005 = vpack.c.b16 %v4933, %v4929
    %v5006 = vpack.c.b16 %v4934, %v4930
    %v5007 = vpack.c.b16 %v4939, %v4935
    %v5008 = vpack.c.b16 %v4940, %v4936
    %v5009 = vpack.c.b16 %v4941, %v4937
    %v5010 = vpack.c.b16 %v4942, %v4938
    %v5011 = vpack.c.b16 %v4947, %v4943
    %v5012 = vpack.c.b16 %v4948, %v4944
    %v5013 = vpack.c.b16 %v4949, %v4945
    %v5014 = vpack.c.b16 %v4950, %v4946
    %5079 = vmatpush.bf16.msra.mxu0 %v4979
    %5080 = vmatpush.bf16.msra.mxu0 %v4975
    %5081 = vmatpush.bf16.msra.mxu0 %v4971
    %5082 = vmatpush.bf16.msra.mxu0 %v4967
    %5083 = vmatpush.bf16.msra.mxu0 %v4963
    %5084 = vmatpush.bf16.msra.mxu0 %v4959
    %5085 = vmatpush.bf16.msra.mxu0 %v4955
    %5086 = vmatpush.bf16.msra.mxu0 %v4951
    %5087 = vmatmul.bf16.gmra.mxu0 %v4747
    %v5088 = vpop.f32.mrf.mxu0
    %v5089 = vadd.f32 %v4751, %v5088
    %v5090 = vpop.f32.mrf.mxu0
    %v5091 = vadd.f32 %v4751, %v5090
    %5092 = vdwg.mxu0
    %5093 = vmatpush.bf16.msra.mxu0 %v5011
    %5094 = vmatpush.bf16.msra.mxu0 %v5007
    %5095 = vmatpush.bf16.msra.mxu0 %v5003
    %5096 = vmatpush.bf16.msra.mxu0 %v4999
    %5097 = vmatpush.bf16.msra.mxu0 %v4995
    %5098 = vmatpush.bf16.msra.mxu0 %v4991
    %5099 = vmatpush.bf16.msra.mxu0 %v4987
    %5100 = vmatpush.bf16.msra.mxu0 %v4983
    %5101 = vmatmul.bf16.gmra.mxu0 %v4748
    %v5102 = vpop.f32.mrf.mxu0
    %v5103 = vadd.f32 %v5089, %v5102
    %v5104 = vpop.f32.mrf.mxu0
    %v5105 = vadd.f32 %v5091, %v5104
    %5106 = vdwg.mxu0
    %5107 = vmatpush.bf16.msra.mxu0 %v4980
    %5108 = vmatpush.bf16.msra.mxu0 %v4976
    %5109 = vmatpush.bf16.msra.mxu0 %v4972
    %5110 = vmatpush.bf16.msra.mxu0 %v4968
    %5111 = vmatpush.bf16.msra.mxu0 %v4964
    %5112 = vmatpush.bf16.msra.mxu0 %v4960
    %5113 = vmatpush.bf16.msra.mxu0 %v4956
    %5114 = vmatpush.bf16.msra.mxu0 %v4952
    %5115 = vmatmul.bf16.gmra.mxu0 %v4747
    %v5116 = vpop.f32.mrf.mxu0
    %v5117 = vadd.f32 %v4752, %v5116
    %v5118 = vpop.f32.mrf.mxu0
    %v5119 = vadd.f32 %v4752, %v5118
    %5120 = vdwg.mxu0
    %5121 = vmatpush.bf16.msra.mxu0 %v5012
    %5122 = vmatpush.bf16.msra.mxu0 %v5008
    %5123 = vmatpush.bf16.msra.mxu0 %v5004
    %5124 = vmatpush.bf16.msra.mxu0 %v5000
    %5125 = vmatpush.bf16.msra.mxu0 %v4996
    %5126 = vmatpush.bf16.msra.mxu0 %v4992
    %5127 = vmatpush.bf16.msra.mxu0 %v4988
    %5128 = vmatpush.bf16.msra.mxu0 %v4984
    %5129 = vmatmul.bf16.gmra.mxu0 %v4748
    %v5130 = vpop.f32.mrf.mxu0
    %v5131 = vadd.f32 %v5117, %v5130
    %v5132 = vpop.f32.mrf.mxu0
    %v5133 = vadd.f32 %v5119, %v5132
    %5134 = vdwg.mxu0
    %5135 = vmatpush.bf16.msra.mxu0 %v4981
    %5136 = vmatpush.bf16.msra.mxu0 %v4977
    %5137 = vmatpush.bf16.msra.mxu0 %v4973
    %5138 = vmatpush.bf16.msra.mxu0 %v4969
    %5139 = vmatpush.bf16.msra.mxu0 %v4965
    %5140 = vmatpush.bf16.msra.mxu0 %v4961
    %5141 = vmatpush.bf16.msra.mxu0 %v4957
    %5142 = vmatpush.bf16.msra.mxu0 %v4953
    %5143 = vmatmul.bf16.gmra.mxu0 %v4747
    %v5144 = vpop.f32.mrf.mxu0
    %v5145 = vadd.f32 %v4753, %v5144
    %v5146 = vpop.f32.mrf.mxu0
    %v5147 = vadd.f32 %v4753, %v5146
    %5148 = vdwg.mxu0
    %5149 = vmatpush.bf16.msra.mxu0 %v5013
    %5150 = vmatpush.bf16.msra.mxu0 %v5009
    %5151 = vmatpush.bf16.msra.mxu0 %v5005
    %5152 = vmatpush.bf16.msra.mxu0 %v5001
    %5153 = vmatpush.bf16.msra.mxu0 %v4997
    %5154 = vmatpush.bf16.msra.mxu0 %v4993
    %5155 = vmatpush.bf16.msra.mxu0 %v4989
    %5156 = vmatpush.bf16.msra.mxu0 %v4985
    %5157 = vmatmul.bf16.gmra.mxu0 %v4748
    %v5158 = vpop.f32.mrf.mxu0
    %v5159 = vadd.f32 %v5145, %v5158
    %v5160 = vpop.f32.mrf.mxu0
    %v5161 = vadd.f32 %v5147, %v5160
    %5162 = vdwg.mxu0
    %5163 = vmatpush.bf16.msra.mxu0 %v4982
    %5164 = vmatpush.bf16.msra.mxu0 %v4978
    %5165 = vmatpush.bf16.msra.mxu0 %v4974
    %5166 = vmatpush.bf16.msra.mxu0 %v4970
    %5167 = vmatpush.bf16.msra.mxu0 %v4966
    %5168 = vmatpush.bf16.msra.mxu0 %v4962
    %5169 = vmatpush.bf16.msra.mxu0 %v4958
    %5170 = vmatpush.bf16.msra.mxu0 %v4954
    %5171 = vmatmul.bf16.gmra.mxu0 %v4747
    %v5172 = vpop.f32.mrf.mxu0
    %v5173 = vadd.f32 %v4754, %v5172
    %v5174 = vpop.f32.mrf.mxu0
    %v5175 = vadd.f32 %v4754, %v5174
    %5176 = vdwg.mxu0
    %5177 = vmatpush.bf16.msra.mxu0 %v5014
    %5178 = vmatpush.bf16.msra.mxu0 %v5010
    %5179 = vmatpush.bf16.msra.mxu0 %v5006
    %5180 = vmatpush.bf16.msra.mxu0 %v5002
    %5181 = vmatpush.bf16.msra.mxu0 %v4998
    %5182 = vmatpush.bf16.msra.mxu0 %v4994
    %5183 = vmatpush.bf16.msra.mxu0 %v4990
    %5184 = vmatpush.bf16.msra.mxu0 %v4986
    %5185 = vmatmul.bf16.gmra.mxu0 %v4748
    %v5186 = vpop.f32.mrf.mxu0
    %v5187 = vadd.f32 %v5173, %v5186
    %v5188 = vpop.f32.mrf.mxu0
    %v5189 = vadd.f32 %v5175, %v5188
    %5190 = vdwg.mxu0
    %v5191 = vxor.u32 %v5103, 2147483648
    %v5192 = vmul.f32 %v5191, 1.442695
    %v5193 = vpow.pop %v5192
    %v5194 = vadd.f32 %v5193, 1.0
    %v5195 = vrcp.pop %v5194
    %v5196 = vmul.f32 %v5194, %v5195
    %v5197 = vsub.f32 1.0, %v5196
    %v5198 = vmul.f32 %v5195, %v5197
    %v5199 = vadd.f32 %v5195, %v5198
    %vm5200 = vweird.f32 %v5194
    %vm5201 = vweird.f32 %v5195
    %vm5202 = vmor %vm5200, %vm5201
    %v5203 = vsel %vm5202, %v5195, %v5199
    %v5204 = vand.u32 2147483647, %v5194
    %vm5205 = vcmp.eq.f32.partialorder %v5204, 8.507059e+37
    %v5206 = vand.u32 %v5194, 2147483648
    %v5207 = vor.u32 1.1754944e-38, %v5206
    %v5208 = vsel %vm5205, %v5207, %v5203
    %v5209 = vmul.f32 1.0, %v5208
    %v5210 = vxor.u32 %v5131, 2147483648
    %v5211 = vmul.f32 %v5210, 1.442695
    %v5212 = vpow.pop %v5211
    %v5213 = vadd.f32 %v5212, 1.0
    %v5214 = vrcp.pop %v5213
    %v5215 = vmul.f32 %v5213, %v5214
    %v5216 = vsub.f32 1.0, %v5215
    %v5217 = vmul.f32 %v5214, %v5216
    %v5218 = vadd.f32 %v5214, %v5217
    %vm5219 = vweird.f32 %v5213
    %vm5220 = vweird.f32 %v5214
    %vm5221 = vmor %vm5219, %vm5220
    %v5222 = vsel %vm5221, %v5214, %v5218
    %v5223 = vand.u32 2147483647, %v5213
    %vm5224 = vcmp.eq.f32.partialorder %v5223, 8.507059e+37
    %v5225 = vand.u32 %v5213, 2147483648
    %v5226 = vor.u32 1.1754944e-38, %v5225
    %v5227 = vsel %vm5224, %v5226, %v5222
    %v5228 = vmul.f32 1.0, %v5227
    %v5229 = vtanh.pop %v5159
    %v5230 = vxor.u32 %v5187, 2147483648
    %v5231 = vmul.f32 %v5230, 1.442695
    %v5232 = vpow.pop %v5231
    %v5233 = vadd.f32 %v5232, 1.0
    %v5234 = vrcp.pop %v5233
    %v5235 = vmul.f32 %v5233, %v5234
    %v5236 = vsub.f32 1.0, %v5235
    %v5237 = vmul.f32 %v5234, %v5236
    %v5238 = vadd.f32 %v5234, %v5237
    %vm5239 = vweird.f32 %v5233
    %vm5240 = vweird.f32 %v5234
    %vm5241 = vmor %vm5239, %vm5240
    %v5242 = vsel %vm5241, %v5234, %v5238
    %v5243 = vand.u32 2147483647, %v5233
    %vm5244 = vcmp.eq.f32.partialorder %v5243, 8.507059e+37
    %v5245 = vand.u32 %v5233, 2147483648
    %v5246 = vor.u32 1.1754944e-38, %v5245
    %v5247 = vsel %vm5244, %v5246, %v5242
    %v5248 = vmul.f32 1.0, %v5247
    %v5249 = vmul.f32 %v5228, 0.0
    %v5250 = vmul.f32 %v5209, %v5229
    %v5251 = vadd.f32 %v5249, %v5250
    %v5252 = vtanh.pop %v5251
    %v5253 = vmul.f32 %v5248, %v5252
    %v5254 = vld [vmem:[#allocation3 + $0x400] sm:$0xff]
    %v5255 = vld [vmem:[#allocation3 + $0x408] sm:$0xff]
    %v5256 = vld [vmem:[#allocation3 + $0x410] sm:$0xff]
    %v5257 = vld [vmem:[#allocation3 + $0x418] sm:$0xff]
    %v5258 = vld [vmem:[#allocation3 + $0x420] sm:$0xff]
    %v5259 = vld [vmem:[#allocation3 + $0x428] sm:$0xff]
    %v5260 = vld [vmem:[#allocation3 + $0x430] sm:$0xff]
    %v5261 = vld [vmem:[#allocation3 + $0x438] sm:$0xff]
    %v5262 = vld [vmem:[#allocation3 + $0x440] sm:$0xff]
    %v5263 = vld [vmem:[#allocation3 + $0x448] sm:$0xff]
    %v5264 = vld [vmem:[#allocation3 + $0x450] sm:$0xff]
    %v5265 = vld [vmem:[#allocation3 + $0x458] sm:$0xff]
    %v5266 = vld [vmem:[#allocation3 + $0x460] sm:$0xff]
    %v5267 = vld [vmem:[#allocation3 + $0x468] sm:$0xff]
    %v5268 = vld [vmem:[#allocation3 + $0x470] sm:$0xff]
    %v5269 = vld [vmem:[#allocation3 + $0x478] sm:$0xff]
    %v5270 = vld [vmem:[#allocation3 + $0x480] sm:$0xff]
    %v5271 = vld [vmem:[#allocation3 + $0x488] sm:$0xff]
    %v5272 = vld [vmem:[#allocation3 + $0x490] sm:$0xff]
    %v5273 = vld [vmem:[#allocation3 + $0x498] sm:$0xff]
    %v5274 = vld [vmem:[#allocation3 + $0x4a0] sm:$0xff]
    %v5275 = vld [vmem:[#allocation3 + $0x4a8] sm:$0xff]
    %v5276 = vld [vmem:[#allocation3 + $0x4b0] sm:$0xff]
    %v5277 = vld [vmem:[#allocation3 + $0x4b8] sm:$0xff]
    %v5278 = vld [vmem:[#allocation3 + $0x4c0] sm:$0xff]
    %v5279 = vld [vmem:[#allocation3 + $0x4c8] sm:$0xff]
    %v5280 = vld [vmem:[#allocation3 + $0x4d0] sm:$0xff]
    %v5281 = vld [vmem:[#allocation3 + $0x4d8] sm:$0xff]
    %v5282 = vld [vmem:[#allocation3 + $0x4e0] sm:$0xff]
    %v5283 = vld [vmem:[#allocation3 + $0x4e8] sm:$0xff]
    %v5284 = vld [vmem:[#allocation3 + $0x4f0] sm:$0xff]
    %v5285 = vld [vmem:[#allocation3 + $0x4f8] sm:$0xff]
    %v5286 = vpack.c.bf16 %v5253, %v5253
    %v5319 = vunpack.c.l.b16 %v5254
    %v5320 = vunpack.c.h.b16 %v5254
    %v5321 = vunpack.c.l.b16 %v5255
    %v5322 = vunpack.c.h.b16 %v5255
    %v5323 = vunpack.c.l.b16 %v5256
    %v5324 = vunpack.c.h.b16 %v5256
    %v5325 = vunpack.c.l.b16 %v5257
    %v5326 = vunpack.c.h.b16 %v5257
    %v5327 = vunpack.c.l.b16 %v5258
    %v5328 = vunpack.c.h.b16 %v5258
    %v5329 = vunpack.c.l.b16 %v5259
    %v5330 = vunpack.c.h.b16 %v5259
    %v5331 = vunpack.c.l.b16 %v5260
    %v5332 = vunpack.c.h.b16 %v5260
    %v5333 = vunpack.c.l.b16 %v5261
    %v5334 = vunpack.c.h.b16 %v5261
    %v5335 = vunpack.c.l.b16 %v5262
    %v5336 = vunpack.c.h.b16 %v5262
    %v5337 = vunpack.c.l.b16 %v5263
    %v5338 = vunpack.c.h.b16 %v5263
    %v5339 = vunpack.c.l.b16 %v5264
    %v5340 = vunpack.c.h.b16 %v5264
    %v5341 = vunpack.c.l.b16 %v5265
    %v5342 = vunpack.c.h.b16 %v5265
    %v5343 = vunpack.c.l.b16 %v5266
    %v5344 = vunpack.c.h.b16 %v5266
    %v5345 = vunpack.c.l.b16 %v5267
    %v5346 = vunpack.c.h.b16 %v5267
    %v5347 = vunpack.c.l.b16 %v5268
    %v5348 = vunpack.c.h.b16 %v5268
    %v5349 = vunpack.c.l.b16 %v5269
    %v5350 = vunpack.c.h.b16 %v5269
    %v5351 = vunpack.c.l.b16 %v5270
    %v5352 = vunpack.c.h.b16 %v5270
    %v5353 = vunpack.c.l.b16 %v5271
    %v5354 = vunpack.c.h.b16 %v5271
    %v5355 = vunpack.c.l.b16 %v5272
    %v5356 = vunpack.c.h.b16 %v5272
    %v5357 = vunpack.c.l.b16 %v5273
    %v5358 = vunpack.c.h.b16 %v5273
    %v5359 = vunpack.c.l.b16 %v5274
    %v5360 = vunpack.c.h.b16 %v5274
    %v5361 = vunpack.c.l.b16 %v5275
    %v5362 = vunpack.c.h.b16 %v5275
    %v5363 = vunpack.c.l.b16 %v5276
    %v5364 = vunpack.c.h.b16 %v5276
    %v5365 = vunpack.c.l.b16 %v5277
    %v5366 = vunpack.c.h.b16 %v5277
    %v5367 = vunpack.c.l.b16 %v5278
    %v5368 = vunpack.c.h.b16 %v5278
    %v5369 = vunpack.c.l.b16 %v5279
    %v5370 = vunpack.c.h.b16 %v5279
    %v5371 = vunpack.c.l.b16 %v5280
    %v5372 = vunpack.c.h.b16 %v5280
    %v5373 = vunpack.c.l.b16 %v5281
    %v5374 = vunpack.c.h.b16 %v5281
    %v5375 = vunpack.c.l.b16 %v5282
    %v5376 = vunpack.c.h.b16 %v5282
    %v5377 = vunpack.c.l.b16 %v5283
    %v5378 = vunpack.c.h.b16 %v5283
    %v5379 = vunpack.c.l.b16 %v5284
    %v5380 = vunpack.c.h.b16 %v5284
    %v5381 = vunpack.c.l.b16 %v5285
    %v5382 = vunpack.c.h.b16 %v5285
    %v5383 = vpack.c.b16 %v5323, %v5319
    %v5384 = vpack.c.b16 %v5324, %v5320
    %v5385 = vpack.c.b16 %v5325, %v5321
    %v5386 = vpack.c.b16 %v5326, %v5322
    %v5387 = vpack.c.b16 %v5331, %v5327
    %v5388 = vpack.c.b16 %v5332, %v5328
    %v5389 = vpack.c.b16 %v5333, %v5329
    %v5390 = vpack.c.b16 %v5334, %v5330
    %v5391 = vpack.c.b16 %v5339, %v5335
    %v5392 = vpack.c.b16 %v5340, %v5336
    %v5393 = vpack.c.b16 %v5341, %v5337
    %v5394 = vpack.c.b16 %v5342, %v5338
    %v5395 = vpack.c.b16 %v5347, %v5343
    %v5396 = vpack.c.b16 %v5348, %v5344
    %v5397 = vpack.c.b16 %v5349, %v5345
    %v5398 = vpack.c.b16 %v5350, %v5346
    %v5399 = vpack.c.b16 %v5355, %v5351
    %v5400 = vpack.c.b16 %v5356, %v5352
    %v5401 = vpack.c.b16 %v5357, %v5353
    %v5402 = vpack.c.b16 %v5358, %v5354
    %v5403 = vpack.c.b16 %v5363, %v5359
    %v5404 = vpack.c.b16 %v5364, %v5360
    %v5405 = vpack.c.b16 %v5365, %v5361
    %v5406 = vpack.c.b16 %v5366, %v5362
    %v5407 = vpack.c.b16 %v5371, %v5367
    %v5408 = vpack.c.b16 %v5372, %v5368
    %v5409 = vpack.c.b16 %v5373, %v5369
    %v5410 = vpack.c.b16 %v5374, %v5370
    %v5411 = vpack.c.b16 %v5379, %v5375
    %v5412 = vpack.c.b16 %v5380, %v5376
    %v5413 = vpack.c.b16 %v5381, %v5377
    %v5414 = vpack.c.b16 %v5382, %v5378
    %5447 = vmatpush.bf16.msra.mxu0 %v5411
    %5448 = vmatpush.bf16.msra.mxu0 %v5407
    %5449 = vmatpush.bf16.msra.mxu0 %v5403
    %5450 = vmatpush.bf16.msra.mxu0 %v5399
    %5451 = vmatpush.bf16.msra.mxu0 %v5395
    %5452 = vmatpush.bf16.msra.mxu0 %v5391
    %5453 = vmatpush.bf16.msra.mxu0 %v5387
    %5454 = vmatpush.bf16.msra.mxu0 %v5383
    %5455 = vmatmul.bf16.gmra.mxu0 %v5286
    %v5456 = vpop.f32.mrf.mxu0
    %v5457 = vadd.f32 0.0, %v5456
    %v5458 = vpop.f32.mrf.mxu0
    %5459 = vdwg.mxu0
    %5460 = vmatpush.bf16.msra.mxu0 %v5412
    %5461 = vmatpush.bf16.msra.mxu0 %v5408
    %5462 = vmatpush.bf16.msra.mxu0 %v5404
    %5463 = vmatpush.bf16.msra.mxu0 %v5400
    %5464 = vmatpush.bf16.msra.mxu0 %v5396
    %5465 = vmatpush.bf16.msra.mxu0 %v5392
    %5466 = vmatpush.bf16.msra.mxu0 %v5388
    %5467 = vmatpush.bf16.msra.mxu0 %v5384
    %5468 = vmatmul.bf16.gmra.mxu0 %v5286
    %v5469 = vpop.f32.mrf.mxu0
    %v5470 = vadd.f32 0.0, %v5469
    %v5471 = vpop.f32.mrf.mxu0
    %5472 = vdwg.mxu0
    %5473 = vmatpush.bf16.msra.mxu0 %v5413
    %5474 = vmatpush.bf16.msra.mxu0 %v5409
    %5475 = vmatpush.bf16.msra.mxu0 %v5405
    %5476 = vmatpush.bf16.msra.mxu0 %v5401
    %5477 = vmatpush.bf16.msra.mxu0 %v5397
    %5478 = vmatpush.bf16.msra.mxu0 %v5393
    %5479 = vmatpush.bf16.msra.mxu0 %v5389
    %5480 = vmatpush.bf16.msra.mxu0 %v5385
    %5481 = vmatmul.bf16.gmra.mxu0 %v5286
    %v5482 = vpop.f32.mrf.mxu0
    %v5483 = vadd.f32 0.0, %v5482
    %v5484 = vpop.f32.mrf.mxu0
    %5485 = vdwg.mxu0
    %5486 = vmatpush.bf16.msra.mxu0 %v5414
    %5487 = vmatpush.bf16.msra.mxu0 %v5410
    %5488 = vmatpush.bf16.msra.mxu0 %v5406
    %5489 = vmatpush.bf16.msra.mxu0 %v5402
    %5490 = vmatpush.bf16.msra.mxu0 %v5398
    %5491 = vmatpush.bf16.msra.mxu0 %v5394
    %5492 = vmatpush.bf16.msra.mxu0 %v5390
    %5493 = vmatpush.bf16.msra.mxu0 %v5386
    %5494 = vmatmul.bf16.gmra.mxu0 %v5286
    %v5495 = vpop.f32.mrf.mxu0
    %v5496 = vadd.f32 0.0, %v5495
    %v5497 = vpop.f32.mrf.mxu0
    %5498 = vdwg.mxu0
    %v5503 = vrot.slane %v5457, 6
    %v5504 = vrot.slane %v5470, 6
    %v5505 = vrot.slane %v5483, 6
    %v5506 = vrot.slane %v5496, 6
    %v5511 = vadd.f32 %v5103, %v5503
    %v5512 = vadd.f32 %v5131, %v5504
    %v5513 = vadd.f32 %v5159, %v5505
    %v5514 = vadd.f32 %v5187, %v5506
    %v5515 = vxor.u32 %v5511, 2147483648
    %v5516 = vmul.f32 %v5515, 1.442695
    %v5517 = vpow.pop %v5516
    %v5518 = vadd.f32 %v5517, 1.0
    %v5519 = vrcp.pop %v5518
    %v5520 = vmul.f32 %v5518, %v5519
    %v5521 = vsub.f32 1.0, %v5520
    %v5522 = vmul.f32 %v5519, %v5521
    %v5523 = vadd.f32 %v5519, %v5522
    %vm5524 = vweird.f32 %v5518
    %vm5525 = vweird.f32 %v5519
    %vm5526 = vmor %vm5524, %vm5525
    %v5527 = vsel %vm5526, %v5519, %v5523
    %v5528 = vand.u32 2147483647, %v5518
    %vm5529 = vcmp.eq.f32.partialorder %v5528, 8.507059e+37
    %v5530 = vand.u32 %v5518, 2147483648
    %v5531 = vor.u32 1.1754944e-38, %v5530
    %v5532 = vsel %vm5529, %v5531, %v5527
    %v5533 = vmul.f32 1.0, %v5532
    %v5534 = vxor.u32 %v5512, 2147483648
    %v5535 = vmul.f32 %v5534, 1.442695
    %v5536 = vpow.pop %v5535
    %v5537 = vadd.f32 %v5536, 1.0
    %v5538 = vrcp.pop %v5537
    %v5539 = vmul.f32 %v5537, %v5538
    %v5540 = vsub.f32 1.0, %v5539
    %v5541 = vmul.f32 %v5538, %v5540
    %v5542 = vadd.f32 %v5538, %v5541
    %vm5543 = vweird.f32 %v5537
    %vm5544 = vweird.f32 %v5538
    %vm5545 = vmor %vm5543, %vm5544
    %v5546 = vsel %vm5545, %v5538, %v5542
    %v5547 = vand.u32 2147483647, %v5537
    %vm5548 = vcmp.eq.f32.partialorder %v5547, 8.507059e+37
    %v5549 = vand.u32 %v5537, 2147483648
    %v5550 = vor.u32 1.1754944e-38, %v5549
    %v5551 = vsel %vm5548, %v5550, %v5546
    %v5552 = vmul.f32 1.0, %v5551
    %v5553 = vtanh.pop %v5513
    %v5554 = vxor.u32 %v5514, 2147483648
    %v5555 = vmul.f32 %v5554, 1.442695
    %v5556 = vpow.pop %v5555
    %v5557 = vadd.f32 %v5556, 1.0
    %v5558 = vrcp.pop %v5557
    %v5559 = vmul.f32 %v5557, %v5558
    %v5560 = vsub.f32 1.0, %v5559
    %v5561 = vmul.f32 %v5558, %v5560
    %v5562 = vadd.f32 %v5558, %v5561
    %vm5563 = vweird.f32 %v5557
    %vm5564 = vweird.f32 %v5558
    %vm5565 = vmor %vm5563, %vm5564
    %v5566 = vsel %vm5565, %v5558, %v5562
    %v5567 = vand.u32 2147483647, %v5557
    %vm5568 = vcmp.eq.f32.partialorder %v5567, 8.507059e+37
    %v5569 = vand.u32 %v5557, 2147483648
    %v5570 = vor.u32 1.1754944e-38, %v5569
    %v5571 = vsel %vm5568, %v5570, %v5566
    %v5572 = vmul.f32 1.0, %v5571
    %v5574 = vrot.slane %v5251, 6
    %v5576 = vmul.f32 %v5552, %v5574
    %v5577 = vmul.f32 %v5533, %v5553
    %v5578 = vadd.f32 %v5576, %v5577
    %v5579 = vtanh.pop %v5578
    %v5580 = vmul.f32 %v5572, %v5579
    %v5581 = vpack.c.bf16 %v5580, %v5580
    %v5583 = vrot.slane %v5581, 1
    %5585 = vmatpush.bf16.msra.mxu0 %v5411
    %5586 = vmatpush.bf16.msra.mxu0 %v5407
    %5587 = vmatpush.bf16.msra.mxu0 %v5403
    %5588 = vmatpush.bf16.msra.mxu0 %v5399
    %5589 = vmatpush.bf16.msra.mxu0 %v5395
    %5590 = vmatpush.bf16.msra.mxu0 %v5391
    %5591 = vmatpush.bf16.msra.mxu0 %v5387
    %5592 = vmatpush.bf16.msra.mxu0 %v5383
    %5593 = vmatmul.bf16.gmra.mxu0 %v5583
    %v5594 = vpop.f32.mrf.mxu0
    %v5595 = vadd.f32 0.0, %v5594
    %v5596 = vpop.f32.mrf.mxu0
    %5597 = vdwg.mxu0
    %5598 = vmatpush.bf16.msra.mxu0 %v5412
    %5599 = vmatpush.bf16.msra.mxu0 %v5408
    %5600 = vmatpush.bf16.msra.mxu0 %v5404
    %5601 = vmatpush.bf16.msra.mxu0 %v5400
    %5602 = vmatpush.bf16.msra.mxu0 %v5396
    %5603 = vmatpush.bf16.msra.mxu0 %v5392
    %5604 = vmatpush.bf16.msra.mxu0 %v5388
    %5605 = vmatpush.bf16.msra.mxu0 %v5384
    %5606 = vmatmul.bf16.gmra.mxu0 %v5583
    %v5607 = vpop.f32.mrf.mxu0
    %v5608 = vadd.f32 0.0, %v5607
    %v5609 = vpop.f32.mrf.mxu0
    %5610 = vdwg.mxu0
    %5611 = vmatpush.bf16.msra.mxu0 %v5413
    %5612 = vmatpush.bf16.msra.mxu0 %v5409
    %5613 = vmatpush.bf16.msra.mxu0 %v5405
    %5614 = vmatpush.bf16.msra.mxu0 %v5401
    %5615 = vmatpush.bf16.msra.mxu0 %v5397
    %5616 = vmatpush.bf16.msra.mxu0 %v5393
    %5617 = vmatpush.bf16.msra.mxu0 %v5389
    %5618 = vmatpush.bf16.msra.mxu0 %v5385
    %5619 = vmatmul.bf16.gmra.mxu0 %v5583
    %v5620 = vpop.f32.mrf.mxu0
    %v5621 = vadd.f32 0.0, %v5620
    %v5622 = vpop.f32.mrf.mxu0
    %5623 = vdwg.mxu0
    %5624 = vmatpush.bf16.msra.mxu0 %v5414
    %5625 = vmatpush.bf16.msra.mxu0 %v5410
    %5626 = vmatpush.bf16.msra.mxu0 %v5406
    %5627 = vmatpush.bf16.msra.mxu0 %v5402
    %5628 = vmatpush.bf16.msra.mxu0 %v5398
    %5629 = vmatpush.bf16.msra.mxu0 %v5394
    %5630 = vmatpush.bf16.msra.mxu0 %v5390
    %5631 = vmatpush.bf16.msra.mxu0 %v5386
    %5632 = vmatmul.bf16.gmra.mxu0 %v5583
    %v5633 = vpop.f32.mrf.mxu0
    %v5634 = vadd.f32 0.0, %v5633
    %v5635 = vpop.f32.mrf.mxu0
    %5636 = vdwg.mxu0
    %v5641 = vrot.slane %v5595, 4
    %v5642 = vrot.slane %v5608, 4
    %v5643 = vrot.slane %v5621, 4
    %v5644 = vrot.slane %v5634, 4
    %v5649 = vadd.f32 %v5103, %v5641
    %v5650 = vadd.f32 %v5131, %v5642
    %v5651 = vadd.f32 %v5159, %v5643
    %v5652 = vadd.f32 %v5187, %v5644
    %v5653 = vxor.u32 %v5649, 2147483648
    %v5654 = vmul.f32 %v5653, 1.442695
    %v5655 = vpow.pop %v5654
    %v5656 = vadd.f32 %v5655, 1.0
    %v5657 = vrcp.pop %v5656
    %v5658 = vmul.f32 %v5656, %v5657
    %v5659 = vsub.f32 1.0, %v5658
    %v5660 = vmul.f32 %v5657, %v5659
    %v5661 = vadd.f32 %v5657, %v5660
    %vm5662 = vweird.f32 %v5656
    %vm5663 = vweird.f32 %v5657
    %vm5664 = vmor %vm5662, %vm5663
    %v5665 = vsel %vm5664, %v5657, %v5661
    %v5666 = vand.u32 2147483647, %v5656
    %vm5667 = vcmp.eq.f32.partialorder %v5666, 8.507059e+37
    %v5668 = vand.u32 %v5656, 2147483648
    %v5669 = vor.u32 1.1754944e-38, %v5668
    %v5670 = vsel %vm5667, %v5669, %v5665
    %v5671 = vmul.f32 1.0, %v5670
    %v5672 = vxor.u32 %v5650, 2147483648
    %v5673 = vmul.f32 %v5672, 1.442695
    %v5674 = vpow.pop %v5673
    %v5675 = vadd.f32 %v5674, 1.0
    %v5676 = vrcp.pop %v5675
    %v5677 = vmul.f32 %v5675, %v5676
    %v5678 = vsub.f32 1.0, %v5677
    %v5679 = vmul.f32 %v5676, %v5678
    %v5680 = vadd.f32 %v5676, %v5679
    %vm5681 = vweird.f32 %v5675
    %vm5682 = vweird.f32 %v5676
    %vm5683 = vmor %vm5681, %vm5682
    %v5684 = vsel %vm5683, %v5676, %v5680
    %v5685 = vand.u32 2147483647, %v5675
    %vm5686 = vcmp.eq.f32.partialorder %v5685, 8.507059e+37
    %v5687 = vand.u32 %v5675, 2147483648
    %v5688 = vor.u32 1.1754944e-38, %v5687
    %v5689 = vsel %vm5686, %v5688, %v5684
    %v5690 = vmul.f32 1.0, %v5689
    %v5691 = vtanh.pop %v5651
    %v5692 = vxor.u32 %v5652, 2147483648
    %v5693 = vmul.f32 %v5692, 1.442695
    %v5694 = vpow.pop %v5693
    %v5695 = vadd.f32 %v5694, 1.0
    %v5696 = vrcp.pop %v5695
    %v5697 = vmul.f32 %v5695, %v5696
    %v5698 = vsub.f32 1.0, %v5697
    %v5699 = vmul.f32 %v5696, %v5698
    %v5700 = vadd.f32 %v5696, %v5699
    %vm5701 = vweird.f32 %v5695
    %vm5702 = vweird.f32 %v5696
    %vm5703 = vmor %vm5701, %vm5702
    %v5704 = vsel %vm5703, %v5696, %v5700
    %v5705 = vand.u32 2147483647, %v5695
    %vm5706 = vcmp.eq.f32.partialorder %v5705, 8.507059e+37
    %v5707 = vand.u32 %v5695, 2147483648
    %v5708 = vor.u32 1.1754944e-38, %v5707
    %v5709 = vsel %vm5706, %v5708, %v5704
    %v5710 = vmul.f32 1.0, %v5709
    %v5712 = vrot.slane %v5578, 6
    %v5714 = vmul.f32 %v5690, %v5712
    %v5715 = vmul.f32 %v5671, %v5691
    %v5716 = vadd.f32 %v5714, %v5715
    %v5717 = vtanh.pop %v5716
    %v5718 = vmul.f32 %v5710, %v5717
    %v5719 = vpack.c.bf16 %v5718, %v5718
    %v5721 = vrot.slane %v5719, 2
    %5723 = vmatpush.bf16.msra.mxu0 %v5411
    %5724 = vmatpush.bf16.msra.mxu0 %v5407
    %5725 = vmatpush.bf16.msra.mxu0 %v5403
    %5726 = vmatpush.bf16.msra.mxu0 %v5399
    %5727 = vmatpush.bf16.msra.mxu0 %v5395
    %5728 = vmatpush.bf16.msra.mxu0 %v5391
    %5729 = vmatpush.bf16.msra.mxu0 %v5387
    %5730 = vmatpush.bf16.msra.mxu0 %v5383
    %5731 = vmatmul.bf16.gmra.mxu0 %v5721
    %v5732 = vpop.f32.mrf.mxu0
    %v5733 = vadd.f32 0.0, %v5732
    %v5734 = vpop.f32.mrf.mxu0
    %5735 = vdwg.mxu0
    %5736 = vmatpush.bf16.msra.mxu0 %v5412
    %5737 = vmatpush.bf16.msra.mxu0 %v5408
    %5738 = vmatpush.bf16.msra.mxu0 %v5404
    %5739 = vmatpush.bf16.msra.mxu0 %v5400
    %5740 = vmatpush.bf16.msra.mxu0 %v5396
    %5741 = vmatpush.bf16.msra.mxu0 %v5392
    %5742 = vmatpush.bf16.msra.mxu0 %v5388
    %5743 = vmatpush.bf16.msra.mxu0 %v5384
    %5744 = vmatmul.bf16.gmra.mxu0 %v5721
    %v5745 = vpop.f32.mrf.mxu0
    %v5746 = vadd.f32 0.0, %v5745
    %v5747 = vpop.f32.mrf.mxu0
    %5748 = vdwg.mxu0
    %5749 = vmatpush.bf16.msra.mxu0 %v5413
    %5750 = vmatpush.bf16.msra.mxu0 %v5409
    %5751 = vmatpush.bf16.msra.mxu0 %v5405
    %5752 = vmatpush.bf16.msra.mxu0 %v5401
    %5753 = vmatpush.bf16.msra.mxu0 %v5397
    %5754 = vmatpush.bf16.msra.mxu0 %v5393
    %5755 = vmatpush.bf16.msra.mxu0 %v5389
    %5756 = vmatpush.bf16.msra.mxu0 %v5385
    %5757 = vmatmul.bf16.gmra.mxu0 %v5721
    %v5758 = vpop.f32.mrf.mxu0
    %v5759 = vadd.f32 0.0, %v5758
    %v5760 = vpop.f32.mrf.mxu0
    %5761 = vdwg.mxu0
    %5762 = vmatpush.bf16.msra.mxu0 %v5414
    %5763 = vmatpush.bf16.msra.mxu0 %v5410
    %5764 = vmatpush.bf16.msra.mxu0 %v5406
    %5765 = vmatpush.bf16.msra.mxu0 %v5402
    %5766 = vmatpush.bf16.msra.mxu0 %v5398
    %5767 = vmatpush.bf16.msra.mxu0 %v5394
    %5768 = vmatpush.bf16.msra.mxu0 %v5390
    %5769 = vmatpush.bf16.msra.mxu0 %v5386
    %5770 = vmatmul.bf16.gmra.mxu0 %v5721
    %v5771 = vpop.f32.mrf.mxu0
    %v5772 = vadd.f32 0.0, %v5771
    %v5773 = vpop.f32.mrf.mxu0
    %5774 = vdwg.mxu0
    %v5779 = vrot.slane %v5733, 2
    %v5780 = vrot.slane %v5746, 2
    %v5781 = vrot.slane %v5759, 2
    %v5782 = vrot.slane %v5772, 2
    %v5787 = vadd.f32 %v5103, %v5779
    %v5788 = vadd.f32 %v5131, %v5780
    %v5789 = vadd.f32 %v5159, %v5781
    %v5790 = vadd.f32 %v5187, %v5782
    %v5791 = vxor.u32 %v5787, 2147483648
    %v5792 = vmul.f32 %v5791, 1.442695
    %v5793 = vpow.pop %v5792
    %v5794 = vadd.f32 %v5793, 1.0
    %v5795 = vrcp.pop %v5794
    %v5796 = vmul.f32 %v5794, %v5795
    %v5797 = vsub.f32 1.0, %v5796
    %v5798 = vmul.f32 %v5795, %v5797
    %v5799 = vadd.f32 %v5795, %v5798
    %vm5800 = vweird.f32 %v5794
    %vm5801 = vweird.f32 %v5795
    %vm5802 = vmor %vm5800, %vm5801
    %v5803 = vsel %vm5802, %v5795, %v5799
    %v5804 = vand.u32 2147483647, %v5794
    %vm5805 = vcmp.eq.f32.partialorder %v5804, 8.507059e+37
    %v5806 = vand.u32 %v5794, 2147483648
    %v5807 = vor.u32 1.1754944e-38, %v5806
    %v5808 = vsel %vm5805, %v5807, %v5803
    %v5809 = vmul.f32 1.0, %v5808
    %v5810 = vxor.u32 %v5788, 2147483648
    %v5811 = vmul.f32 %v5810, 1.442695
    %v5812 = vpow.pop %v5811
    %v5813 = vadd.f32 %v5812, 1.0
    %v5814 = vrcp.pop %v5813
    %v5815 = vmul.f32 %v5813, %v5814
    %v5816 = vsub.f32 1.0, %v5815
    %v5817 = vmul.f32 %v5814, %v5816
    %v5818 = vadd.f32 %v5814, %v5817
    %vm5819 = vweird.f32 %v5813
    %vm5820 = vweird.f32 %v5814
    %vm5821 = vmor %vm5819, %vm5820
    %v5822 = vsel %vm5821, %v5814, %v5818
    %v5823 = vand.u32 2147483647, %v5813
    %vm5824 = vcmp.eq.f32.partialorder %v5823, 8.507059e+37
    %v5825 = vand.u32 %v5813, 2147483648
    %v5826 = vor.u32 1.1754944e-38, %v5825
    %v5827 = vsel %vm5824, %v5826, %v5822
    %v5828 = vmul.f32 1.0, %v5827
    %v5829 = vtanh.pop %v5789
    %v5830 = vxor.u32 %v5790, 2147483648
    %v5831 = vmul.f32 %v5830, 1.442695
    %v5832 = vpow.pop %v5831
    %v5833 = vadd.f32 %v5832, 1.0
    %v5834 = vrcp.pop %v5833
    %v5835 = vmul.f32 %v5833, %v5834
    %v5836 = vsub.f32 1.0, %v5835
    %v5837 = vmul.f32 %v5834, %v5836
    %v5838 = vadd.f32 %v5834, %v5837
    %vm5839 = vweird.f32 %v5833
    %vm5840 = vweird.f32 %v5834
    %vm5841 = vmor %vm5839, %vm5840
    %v5842 = vsel %vm5841, %v5834, %v5838
    %v5843 = vand.u32 2147483647, %v5833
    %vm5844 = vcmp.eq.f32.partialorder %v5843, 8.507059e+37
    %v5845 = vand.u32 %v5833, 2147483648
    %v5846 = vor.u32 1.1754944e-38, %v5845
    %v5847 = vsel %vm5844, %v5846, %v5842
    %v5848 = vmul.f32 1.0, %v5847
    %v5850 = vrot.slane %v5716, 6
    %v5852 = vmul.f32 %v5828, %v5850
    %v5853 = vmul.f32 %v5809, %v5829
    %v5854 = vadd.f32 %v5852, %v5853
    %v5855 = vtanh.pop %v5854
    %v5856 = vmul.f32 %v5848, %v5855
    %v5857 = vpack.c.bf16 %v5856, %v5856
    %v5859 = vrot.slane %v5857, 3
    %5861 = vmatpush.bf16.msra.mxu0 %v5411
    %5862 = vmatpush.bf16.msra.mxu0 %v5407
    %5863 = vmatpush.bf16.msra.mxu0 %v5403
    %5864 = vmatpush.bf16.msra.mxu0 %v5399
    %5865 = vmatpush.bf16.msra.mxu0 %v5395
    %5866 = vmatpush.bf16.msra.mxu0 %v5391
    %5867 = vmatpush.bf16.msra.mxu0 %v5387
    %5868 = vmatpush.bf16.msra.mxu0 %v5383
    %5869 = vmatmul.bf16.gmra.mxu0 %v5859
    %v5870 = vpop.f32.mrf.mxu0
    %v5871 = vadd.f32 0.0, %v5870
    %v5872 = vpop.f32.mrf.mxu0
    %5873 = vdwg.mxu0
    %5874 = vmatpush.bf16.msra.mxu0 %v5412
    %5875 = vmatpush.bf16.msra.mxu0 %v5408
    %5876 = vmatpush.bf16.msra.mxu0 %v5404
    %5877 = vmatpush.bf16.msra.mxu0 %v5400
    %5878 = vmatpush.bf16.msra.mxu0 %v5396
    %5879 = vmatpush.bf16.msra.mxu0 %v5392
    %5880 = vmatpush.bf16.msra.mxu0 %v5388
    %5881 = vmatpush.bf16.msra.mxu0 %v5384
    %5882 = vmatmul.bf16.gmra.mxu0 %v5859
    %v5883 = vpop.f32.mrf.mxu0
    %v5884 = vadd.f32 0.0, %v5883
    %v5885 = vpop.f32.mrf.mxu0
    %5886 = vdwg.mxu0
    %5887 = vmatpush.bf16.msra.mxu0 %v5413
    %5888 = vmatpush.bf16.msra.mxu0 %v5409
    %5889 = vmatpush.bf16.msra.mxu0 %v5405
    %5890 = vmatpush.bf16.msra.mxu0 %v5401
    %5891 = vmatpush.bf16.msra.mxu0 %v5397
    %5892 = vmatpush.bf16.msra.mxu0 %v5393
    %5893 = vmatpush.bf16.msra.mxu0 %v5389
    %5894 = vmatpush.bf16.msra.mxu0 %v5385
    %5895 = vmatmul.bf16.gmra.mxu0 %v5859
    %v5896 = vpop.f32.mrf.mxu0
    %v5897 = vadd.f32 0.0, %v5896
    %v5898 = vpop.f32.mrf.mxu0
    %5899 = vdwg.mxu0
    %5900 = vmatpush.bf16.msra.mxu0 %v5414
    %5901 = vmatpush.bf16.msra.mxu0 %v5410
    %5902 = vmatpush.bf16.msra.mxu0 %v5406
    %5903 = vmatpush.bf16.msra.mxu0 %v5402
    %5904 = vmatpush.bf16.msra.mxu0 %v5398
    %5905 = vmatpush.bf16.msra.mxu0 %v5394
    %5906 = vmatpush.bf16.msra.mxu0 %v5390
    %5907 = vmatpush.bf16.msra.mxu0 %v5386
    %5908 = vmatmul.bf16.gmra.mxu0 %v5859
    %v5909 = vpop.f32.mrf.mxu0
    %v5910 = vadd.f32 0.0, %v5909
    %v5911 = vpop.f32.mrf.mxu0
    %5912 = vdwg.mxu0
    %v5913 = vadd.f32 %v5105, %v5871
    %v5914 = vadd.f32 %v5133, %v5884
    %v5915 = vadd.f32 %v5161, %v5897
    %v5916 = vadd.f32 %v5189, %v5910
    %v5917 = vxor.u32 %v5913, 2147483648
    %v5918 = vmul.f32 %v5917, 1.442695
    %v5919 = vpow.pop %v5918
    %v5920 = vadd.f32 %v5919, 1.0
    %v5921 = vrcp.pop %v5920
    %v5922 = vmul.f32 %v5920, %v5921
    %v5923 = vsub.f32 1.0, %v5922
    %v5924 = vmul.f32 %v5921, %v5923
    %v5925 = vadd.f32 %v5921, %v5924
    %vm5926 = vweird.f32 %v5920
    %vm5927 = vweird.f32 %v5921
    %vm5928 = vmor %vm5926, %vm5927
    %v5929 = vsel %vm5928, %v5921, %v5925
    %v5930 = vand.u32 2147483647, %v5920
    %vm5931 = vcmp.eq.f32.partialorder %v5930, 8.507059e+37
    %v5932 = vand.u32 %v5920, 2147483648
    %v5933 = vor.u32 1.1754944e-38, %v5932
    %v5934 = vsel %vm5931, %v5933, %v5929
    %v5935 = vmul.f32 1.0, %v5934
    %v5936 = vxor.u32 %v5914, 2147483648
    %v5937 = vmul.f32 %v5936, 1.442695
    %v5938 = vpow.pop %v5937
    %v5939 = vadd.f32 %v5938, 1.0
    %v5940 = vrcp.pop %v5939
    %v5941 = vmul.f32 %v5939, %v5940
    %v5942 = vsub.f32 1.0, %v5941
    %v5943 = vmul.f32 %v5940, %v5942
    %v5944 = vadd.f32 %v5940, %v5943
    %vm5945 = vweird.f32 %v5939
    %vm5946 = vweird.f32 %v5940
    %vm5947 = vmor %vm5945, %vm5946
    %v5948 = vsel %vm5947, %v5940, %v5944
    %v5949 = vand.u32 2147483647, %v5939
    %vm5950 = vcmp.eq.f32.partialorder %v5949, 8.507059e+37
    %v5951 = vand.u32 %v5939, 2147483648
    %v5952 = vor.u32 1.1754944e-38, %v5951
    %v5953 = vsel %vm5950, %v5952, %v5948
    %v5954 = vmul.f32 1.0, %v5953
    %v5955 = vtanh.pop %v5915
    %v5956 = vxor.u32 %v5916, 2147483648
    %v5957 = vmul.f32 %v5956, 1.442695
    %v5958 = vpow.pop %v5957
    %v5959 = vadd.f32 %v5958, 1.0
    %v5960 = vrcp.pop %v5959
    %v5961 = vmul.f32 %v5959, %v5960
    %v5962 = vsub.f32 1.0, %v5961
    %v5963 = vmul.f32 %v5960, %v5962
    %v5964 = vadd.f32 %v5960, %v5963
    %vm5965 = vweird.f32 %v5959
    %vm5966 = vweird.f32 %v5960
    %vm5967 = vmor %vm5965, %vm5966
    %v5968 = vsel %vm5967, %v5960, %v5964
    %v5969 = vand.u32 2147483647, %v5959
    %vm5970 = vcmp.eq.f32.partialorder %v5969, 8.507059e+37
    %v5971 = vand.u32 %v5959, 2147483648
    %v5972 = vor.u32 1.1754944e-38, %v5971
    %v5973 = vsel %vm5970, %v5972, %v5968
    %v5974 = vmul.f32 1.0, %v5973
    %v5976 = vrot.slane %v5854, 6
    %v5978 = vmul.f32 %v5954, %v5976
    %v5979 = vmul.f32 %v5935, %v5955
    %v5980 = vadd.f32 %v5978, %v5979
    %v5981 = vtanh.pop %v5980
    %v5982 = vmul.f32 %v5974, %v5981
    %v5983 = vpack.c.bf16 %v5982, %v5982
    %5984 = vmatpush.bf16.msra.mxu0 %v5411
    %5985 = vmatpush.bf16.msra.mxu0 %v5407
    %5986 = vmatpush.bf16.msra.mxu0 %v5403
    %5987 = vmatpush.bf16.msra.mxu0 %v5399
    %5988 = vmatpush.bf16.msra.mxu0 %v5395
    %5989 = vmatpush.bf16.msra.mxu0 %v5391
    %5990 = vmatpush.bf16.msra.mxu0 %v5387
    %5991 = vmatpush.bf16.msra.mxu0 %v5383
    %5992 = vmatmul.bf16.gmra.mxu0 %v5983
    %v5993 = vpop.f32.mrf.mxu0
    %v5994 = vadd.f32 0.0, %v5993
    %v5995 = vpop.f32.mrf.mxu0
    %5996 = vdwg.mxu0
    %5997 = vmatpush.bf16.msra.mxu0 %v5412
    %5998 = vmatpush.bf16.msra.mxu0 %v5408
    %5999 = vmatpush.bf16.msra.mxu0 %v5404
    %6000 = vmatpush.bf16.msra.mxu0 %v5400
    %6001 = vmatpush.bf16.msra.mxu0 %v5396
    %6002 = vmatpush.bf16.msra.mxu0 %v5392
    %6003 = vmatpush.bf16.msra.mxu0 %v5388
    %6004 = vmatpush.bf16.msra.mxu0 %v5384
    %6005 = vmatmul.bf16.gmra.mxu0 %v5983
    %v6006 = vpop.f32.mrf.mxu0
    %v6007 = vadd.f32 0.0, %v6006
    %v6008 = vpop.f32.mrf.mxu0
    %6009 = vdwg.mxu0
    %6010 = vmatpush.bf16.msra.mxu0 %v5413
    %6011 = vmatpush.bf16.msra.mxu0 %v5409
    %6012 = vmatpush.bf16.msra.mxu0 %v5405
    %6013 = vmatpush.bf16.msra.mxu0 %v5401
    %6014 = vmatpush.bf16.msra.mxu0 %v5397
    %6015 = vmatpush.bf16.msra.mxu0 %v5393
    %6016 = vmatpush.bf16.msra.mxu0 %v5389
    %6017 = vmatpush.bf16.msra.mxu0 %v5385
    %6018 = vmatmul.bf16.gmra.mxu0 %v5983
    %v6019 = vpop.f32.mrf.mxu0
    %v6020 = vadd.f32 0.0, %v6019
    %v6021 = vpop.f32.mrf.mxu0
    %6022 = vdwg.mxu0
    %6023 = vmatpush.bf16.msra.mxu0 %v5414
    %6024 = vmatpush.bf16.msra.mxu0 %v5410
    %6025 = vmatpush.bf16.msra.mxu0 %v5406
    %6026 = vmatpush.bf16.msra.mxu0 %v5402
    %6027 = vmatpush.bf16.msra.mxu0 %v5398
    %6028 = vmatpush.bf16.msra.mxu0 %v5394
    %6029 = vmatpush.bf16.msra.mxu0 %v5390
    %6030 = vmatpush.bf16.msra.mxu0 %v5386
    %6031 = vmatmul.bf16.gmra.mxu0 %v5983
    %v6032 = vpop.f32.mrf.mxu0
    %v6033 = vadd.f32 0.0, %v6032
    %v6034 = vpop.f32.mrf.mxu0
    %6035 = vdwg.mxu0
    %v6040 = vrot.slane %v5994, 6
    %v6041 = vrot.slane %v6007, 6
    %v6042 = vrot.slane %v6020, 6
    %v6043 = vrot.slane %v6033, 6
    %v6048 = vadd.f32 %v5105, %v6040
    %v6049 = vadd.f32 %v5133, %v6041
    %v6050 = vadd.f32 %v5161, %v6042
    %v6051 = vadd.f32 %v5189, %v6043
    %v6052 = vxor.u32 %v6048, 2147483648
    %v6053 = vmul.f32 %v6052, 1.442695
    %v6054 = vpow.pop %v6053
    %v6055 = vadd.f32 %v6054, 1.0
    %v6056 = vrcp.pop %v6055
    %v6057 = vmul.f32 %v6055, %v6056
    %v6058 = vsub.f32 1.0, %v6057
    %v6059 = vmul.f32 %v6056, %v6058
    %v6060 = vadd.f32 %v6056, %v6059
    %vm6061 = vweird.f32 %v6055
    %vm6062 = vweird.f32 %v6056
    %vm6063 = vmor %vm6061, %vm6062
    %v6064 = vsel %vm6063, %v6056, %v6060
    %v6065 = vand.u32 2147483647, %v6055
    %vm6066 = vcmp.eq.f32.partialorder %v6065, 8.507059e+37
    %v6067 = vand.u32 %v6055, 2147483648
    %v6068 = vor.u32 1.1754944e-38, %v6067
    %v6069 = vsel %vm6066, %v6068, %v6064
    %v6070 = vmul.f32 1.0, %v6069
    %v6071 = vxor.u32 %v6049, 2147483648
    %v6072 = vmul.f32 %v6071, 1.442695
    %v6073 = vpow.pop %v6072
    %v6074 = vadd.f32 %v6073, 1.0
    %v6075 = vrcp.pop %v6074
    %v6076 = vmul.f32 %v6074, %v6075
    %v6077 = vsub.f32 1.0, %v6076
    %v6078 = vmul.f32 %v6075, %v6077
    %v6079 = vadd.f32 %v6075, %v6078
    %vm6080 = vweird.f32 %v6074
    %vm6081 = vweird.f32 %v6075
    %vm6082 = vmor %vm6080, %vm6081
    %v6083 = vsel %vm6082, %v6075, %v6079
    %v6084 = vand.u32 2147483647, %v6074
    %vm6085 = vcmp.eq.f32.partialorder %v6084, 8.507059e+37
    %v6086 = vand.u32 %v6074, 2147483648
    %v6087 = vor.u32 1.1754944e-38, %v6086
    %v6088 = vsel %vm6085, %v6087, %v6083
    %v6089 = vmul.f32 1.0, %v6088
    %v6090 = vtanh.pop %v6050
    %v6091 = vxor.u32 %v6051, 2147483648
    %v6092 = vmul.f32 %v6091, 1.442695
    %v6093 = vpow.pop %v6092
    %v6094 = vadd.f32 %v6093, 1.0
    %v6095 = vrcp.pop %v6094
    %v6096 = vmul.f32 %v6094, %v6095
    %v6097 = vsub.f32 1.0, %v6096
    %v6098 = vmul.f32 %v6095, %v6097
    %v6099 = vadd.f32 %v6095, %v6098
    %vm6100 = vweird.f32 %v6094
    %vm6101 = vweird.f32 %v6095
    %vm6102 = vmor %vm6100, %vm6101
    %v6103 = vsel %vm6102, %v6095, %v6099
    %v6104 = vand.u32 2147483647, %v6094
    %vm6105 = vcmp.eq.f32.partialorder %v6104, 8.507059e+37
    %v6106 = vand.u32 %v6094, 2147483648
    %v6107 = vor.u32 1.1754944e-38, %v6106
    %v6108 = vsel %vm6105, %v6107, %v6103
    %v6109 = vmul.f32 1.0, %v6108
    %v6111 = vrot.slane %v5980, 6
    %v6113 = vmul.f32 %v6089, %v6111
    %v6114 = vmul.f32 %v6070, %v6090
    %v6115 = vadd.f32 %v6113, %v6114
    %v6116 = vtanh.pop %v6115
    %v6117 = vmul.f32 %v6109, %v6116
    %v6118 = vpack.c.bf16 %v6117, %v6117
    %v6120 = vrot.slane %v6118, 1
    %6122 = vmatpush.bf16.msra.mxu0 %v5411
    %6123 = vmatpush.bf16.msra.mxu0 %v5407
    %6124 = vmatpush.bf16.msra.mxu0 %v5403
    %6125 = vmatpush.bf16.msra.mxu0 %v5399
    %6126 = vmatpush.bf16.msra.mxu0 %v5395
    %6127 = vmatpush.bf16.msra.mxu0 %v5391
    %6128 = vmatpush.bf16.msra.mxu0 %v5387
    %6129 = vmatpush.bf16.msra.mxu0 %v5383
    %6130 = vmatmul.bf16.gmra.mxu0 %v6120
    %v6131 = vpop.f32.mrf.mxu0
    %v6132 = vadd.f32 0.0, %v6131
    %v6133 = vpop.f32.mrf.mxu0
    %6134 = vdwg.mxu0
    %6135 = vmatpush.bf16.msra.mxu0 %v5412
    %6136 = vmatpush.bf16.msra.mxu0 %v5408
    %6137 = vmatpush.bf16.msra.mxu0 %v5404
    %6138 = vmatpush.bf16.msra.mxu0 %v5400
    %6139 = vmatpush.bf16.msra.mxu0 %v5396
    %6140 = vmatpush.bf16.msra.mxu0 %v5392
    %6141 = vmatpush.bf16.msra.mxu0 %v5388
    %6142 = vmatpush.bf16.msra.mxu0 %v5384
    %6143 = vmatmul.bf16.gmra.mxu0 %v6120
    %v6144 = vpop.f32.mrf.mxu0
    %v6145 = vadd.f32 0.0, %v6144
    %v6146 = vpop.f32.mrf.mxu0
    %6147 = vdwg.mxu0
    %6148 = vmatpush.bf16.msra.mxu0 %v5413
    %6149 = vmatpush.bf16.msra.mxu0 %v5409
    %6150 = vmatpush.bf16.msra.mxu0 %v5405
    %6151 = vmatpush.bf16.msra.mxu0 %v5401
    %6152 = vmatpush.bf16.msra.mxu0 %v5397
    %6153 = vmatpush.bf16.msra.mxu0 %v5393
    %6154 = vmatpush.bf16.msra.mxu0 %v5389
    %6155 = vmatpush.bf16.msra.mxu0 %v5385
    %6156 = vmatmul.bf16.gmra.mxu0 %v6120
    %v6157 = vpop.f32.mrf.mxu0
    %v6158 = vadd.f32 0.0, %v6157
    %v6159 = vpop.f32.mrf.mxu0
    %6160 = vdwg.mxu0
    %6161 = vmatpush.bf16.msra.mxu0 %v5414
    %6162 = vmatpush.bf16.msra.mxu0 %v5410
    %6163 = vmatpush.bf16.msra.mxu0 %v5406
    %6164 = vmatpush.bf16.msra.mxu0 %v5402
    %6165 = vmatpush.bf16.msra.mxu0 %v5398
    %6166 = vmatpush.bf16.msra.mxu0 %v5394
    %6167 = vmatpush.bf16.msra.mxu0 %v5390
    %6168 = vmatpush.bf16.msra.mxu0 %v5386
    %6169 = vmatmul.bf16.gmra.mxu0 %v6120
    %v6170 = vpop.f32.mrf.mxu0
    %v6171 = vadd.f32 0.0, %v6170
    %v6172 = vpop.f32.mrf.mxu0
    %6173 = vdwg.mxu0
    %v6178 = vrot.slane %v6132, 4
    %v6179 = vrot.slane %v6145, 4
    %v6180 = vrot.slane %v6158, 4
    %v6181 = vrot.slane %v6171, 4
    %v6186 = vadd.f32 %v5105, %v6178
    %v6187 = vadd.f32 %v5133, %v6179
    %v6188 = vadd.f32 %v5161, %v6180
    %v6189 = vadd.f32 %v5189, %v6181
    %v6190 = vxor.u32 %v6186, 2147483648
    %v6191 = vmul.f32 %v6190, 1.442695
    %v6192 = vpow.pop %v6191
    %v6193 = vadd.f32 %v6192, 1.0
    %v6194 = vrcp.pop %v6193
    %v6195 = vmul.f32 %v6193, %v6194
    %v6196 = vsub.f32 1.0, %v6195
    %v6197 = vmul.f32 %v6194, %v6196
    %v6198 = vadd.f32 %v6194, %v6197
    %vm6199 = vweird.f32 %v6193
    %vm6200 = vweird.f32 %v6194
    %vm6201 = vmor %vm6199, %vm6200
    %v6202 = vsel %vm6201, %v6194, %v6198
    %v6203 = vand.u32 2147483647, %v6193
    %vm6204 = vcmp.eq.f32.partialorder %v6203, 8.507059e+37
    %v6205 = vand.u32 %v6193, 2147483648
    %v6206 = vor.u32 1.1754944e-38, %v6205
    %v6207 = vsel %vm6204, %v6206, %v6202
    %v6208 = vmul.f32 1.0, %v6207
    %v6209 = vxor.u32 %v6187, 2147483648
    %v6210 = vmul.f32 %v6209, 1.442695
    %v6211 = vpow.pop %v6210
    %v6212 = vadd.f32 %v6211, 1.0
    %v6213 = vrcp.pop %v6212
    %v6214 = vmul.f32 %v6212, %v6213
    %v6215 = vsub.f32 1.0, %v6214
    %v6216 = vmul.f32 %v6213, %v6215
    %v6217 = vadd.f32 %v6213, %v6216
    %vm6218 = vweird.f32 %v6212
    %vm6219 = vweird.f32 %v6213
    %vm6220 = vmor %vm6218, %vm6219
    %v6221 = vsel %vm6220, %v6213, %v6217
    %v6222 = vand.u32 2147483647, %v6212
    %vm6223 = vcmp.eq.f32.partialorder %v6222, 8.507059e+37
    %v6224 = vand.u32 %v6212, 2147483648
    %v6225 = vor.u32 1.1754944e-38, %v6224
    %v6226 = vsel %vm6223, %v6225, %v6221
    %v6227 = vmul.f32 1.0, %v6226
    %v6228 = vtanh.pop %v6188
    %v6229 = vxor.u32 %v6189, 2147483648
    %v6230 = vmul.f32 %v6229, 1.442695
    %v6231 = vpow.pop %v6230
    %v6232 = vadd.f32 %v6231, 1.0
    %v6233 = vrcp.pop %v6232
    %v6234 = vmul.f32 %v6232, %v6233
    %v6235 = vsub.f32 1.0, %v6234
    %v6236 = vmul.f32 %v6233, %v6235
    %v6237 = vadd.f32 %v6233, %v6236
    %vm6238 = vweird.f32 %v6232
    %vm6239 = vweird.f32 %v6233
    %vm6240 = vmor %vm6238, %vm6239
    %v6241 = vsel %vm6240, %v6233, %v6237
    %v6242 = vand.u32 2147483647, %v6232
    %vm6243 = vcmp.eq.f32.partialorder %v6242, 8.507059e+37
    %v6244 = vand.u32 %v6232, 2147483648
    %v6245 = vor.u32 1.1754944e-38, %v6244
    %v6246 = vsel %vm6243, %v6245, %v6241
    %v6247 = vmul.f32 1.0, %v6246
    %v6249 = vrot.slane %v6115, 6
    %v6251 = vmul.f32 %v6227, %v6249
    %v6252 = vmul.f32 %v6208, %v6228
    %v6253 = vadd.f32 %v6251, %v6252
    %v6254 = vtanh.pop %v6253
    %v6255 = vmul.f32 %v6247, %v6254
    %v6256 = vpack.c.bf16 %v6255, %v6255
    %v6258 = vrot.slane %v6256, 2
    %6260 = vmatpush.bf16.msra.mxu0 %v5411
    %6261 = vmatpush.bf16.msra.mxu0 %v5407
    %6262 = vmatpush.bf16.msra.mxu0 %v5403
    %6263 = vmatpush.bf16.msra.mxu0 %v5399
    %6264 = vmatpush.bf16.msra.mxu0 %v5395
    %6265 = vmatpush.bf16.msra.mxu0 %v5391
    %6266 = vmatpush.bf16.msra.mxu0 %v5387
    %6267 = vmatpush.bf16.msra.mxu0 %v5383
    %6268 = vmatmul.bf16.gmra.mxu0 %v6258
    %v6269 = vpop.f32.mrf.mxu0
    %v6270 = vadd.f32 0.0, %v6269
    %v6271 = vpop.f32.mrf.mxu0
    %6272 = vdwg.mxu0
    %6273 = vmatpush.bf16.msra.mxu0 %v5412
    %6274 = vmatpush.bf16.msra.mxu0 %v5408
    %6275 = vmatpush.bf16.msra.mxu0 %v5404
    %6276 = vmatpush.bf16.msra.mxu0 %v5400
    %6277 = vmatpush.bf16.msra.mxu0 %v5396
    %6278 = vmatpush.bf16.msra.mxu0 %v5392
    %6279 = vmatpush.bf16.msra.mxu0 %v5388
    %6280 = vmatpush.bf16.msra.mxu0 %v5384
    %6281 = vmatmul.bf16.gmra.mxu0 %v6258
    %v6282 = vpop.f32.mrf.mxu0
    %v6283 = vadd.f32 0.0, %v6282
    %v6284 = vpop.f32.mrf.mxu0
    %6285 = vdwg.mxu0
    %6286 = vmatpush.bf16.msra.mxu0 %v5413
    %6287 = vmatpush.bf16.msra.mxu0 %v5409
    %6288 = vmatpush.bf16.msra.mxu0 %v5405
    %6289 = vmatpush.bf16.msra.mxu0 %v5401
    %6290 = vmatpush.bf16.msra.mxu0 %v5397
    %6291 = vmatpush.bf16.msra.mxu0 %v5393
    %6292 = vmatpush.bf16.msra.mxu0 %v5389
    %6293 = vmatpush.bf16.msra.mxu0 %v5385
    %6294 = vmatmul.bf16.gmra.mxu0 %v6258
    %v6295 = vpop.f32.mrf.mxu0
    %v6296 = vadd.f32 0.0, %v6295
    %v6297 = vpop.f32.mrf.mxu0
    %6298 = vdwg.mxu0
    %6299 = vmatpush.bf16.msra.mxu0 %v5414
    %6300 = vmatpush.bf16.msra.mxu0 %v5410
    %6301 = vmatpush.bf16.msra.mxu0 %v5406
    %6302 = vmatpush.bf16.msra.mxu0 %v5402
    %6303 = vmatpush.bf16.msra.mxu0 %v5398
    %6304 = vmatpush.bf16.msra.mxu0 %v5394
    %6305 = vmatpush.bf16.msra.mxu0 %v5390
    %6306 = vmatpush.bf16.msra.mxu0 %v5386
    %6307 = vmatmul.bf16.gmra.mxu0 %v6258
    %v6308 = vpop.f32.mrf.mxu0
    %v6309 = vadd.f32 0.0, %v6308
    %v6310 = vpop.f32.mrf.mxu0
    %6311 = vdwg.mxu0
    %v6316 = vrot.slane %v6270, 2
    %v6317 = vrot.slane %v6283, 2
    %v6318 = vrot.slane %v6296, 2
    %v6319 = vrot.slane %v6309, 2
    %v6324 = vadd.f32 %v5105, %v6316
    %v6325 = vadd.f32 %v5133, %v6317
    %v6326 = vadd.f32 %v5161, %v6318
    %v6327 = vadd.f32 %v5189, %v6319
    %v6328 = vxor.u32 %v6324, 2147483648
    %v6329 = vmul.f32 %v6328, 1.442695
    %v6330 = vpow.pop %v6329
    %v6331 = vadd.f32 %v6330, 1.0
    %v6332 = vrcp.pop %v6331
    %v6333 = vmul.f32 %v6331, %v6332
    %v6334 = vsub.f32 1.0, %v6333
    %v6335 = vmul.f32 %v6332, %v6334
    %v6336 = vadd.f32 %v6332, %v6335
    %vm6337 = vweird.f32 %v6331
    %vm6338 = vweird.f32 %v6332
    %vm6339 = vmor %vm6337, %vm6338
    %v6340 = vsel %vm6339, %v6332, %v6336
    %v6341 = vand.u32 2147483647, %v6331
    %vm6342 = vcmp.eq.f32.partialorder %v6341, 8.507059e+37
    %v6343 = vand.u32 %v6331, 2147483648
    %v6344 = vor.u32 1.1754944e-38, %v6343
    %v6345 = vsel %vm6342, %v6344, %v6340
    %v6346 = vmul.f32 1.0, %v6345
    %v6347 = vxor.u32 %v6325, 2147483648
    %v6348 = vmul.f32 %v6347, 1.442695
    %v6349 = vpow.pop %v6348
    %v6350 = vadd.f32 %v6349, 1.0
    %v6351 = vrcp.pop %v6350
    %v6352 = vmul.f32 %v6350, %v6351
    %v6353 = vsub.f32 1.0, %v6352
    %v6354 = vmul.f32 %v6351, %v6353
    %v6355 = vadd.f32 %v6351, %v6354
    %vm6356 = vweird.f32 %v6350
    %vm6357 = vweird.f32 %v6351
    %vm6358 = vmor %vm6356, %vm6357
    %v6359 = vsel %vm6358, %v6351, %v6355
    %v6360 = vand.u32 2147483647, %v6350
    %vm6361 = vcmp.eq.f32.partialorder %v6360, 8.507059e+37
    %v6362 = vand.u32 %v6350, 2147483648
    %v6363 = vor.u32 1.1754944e-38, %v6362
    %v6364 = vsel %vm6361, %v6363, %v6359
    %v6365 = vmul.f32 1.0, %v6364
    %v6366 = vtanh.pop %v6326
    %v6367 = vxor.u32 %v6327, 2147483648
    %v6368 = vmul.f32 %v6367, 1.442695
    %v6369 = vpow.pop %v6368
    %v6370 = vadd.f32 %v6369, 1.0
    %v6371 = vrcp.pop %v6370
    %v6372 = vmul.f32 %v6370, %v6371
    %v6373 = vsub.f32 1.0, %v6372
    %v6374 = vmul.f32 %v6371, %v6373
    %v6375 = vadd.f32 %v6371, %v6374
    %vm6376 = vweird.f32 %v6370
    %vm6377 = vweird.f32 %v6371
    %vm6378 = vmor %vm6376, %vm6377
    %v6379 = vsel %vm6378, %v6371, %v6375
    %v6380 = vand.u32 2147483647, %v6370
    %vm6381 = vcmp.eq.f32.partialorder %v6380, 8.507059e+37
    %v6382 = vand.u32 %v6370, 2147483648
    %v6383 = vor.u32 1.1754944e-38, %v6382
    %v6384 = vsel %vm6381, %v6383, %v6379
    %v6385 = vmul.f32 1.0, %v6384
    %v6387 = vrot.slane %v6253, 6
    %v6389 = vmul.f32 %v6365, %v6387
    %v6390 = vmul.f32 %v6346, %v6366
    %v6391 = vadd.f32 %v6389, %v6390
    %v6392 = vtanh.pop %v6391
    %v6393 = vmul.f32 %v6385, %v6392
    %v6394 = vld [vmem:[#allocation3 + $0x200] sm:$0xff]
    %v6395 = vld [vmem:[#allocation3 + $0x208] sm:$0xff]
    %v6396 = vld [vmem:[#allocation3 + $0x210] sm:$0xff]
    %v6397 = vld [vmem:[#allocation3 + $0x218] sm:$0xff]
    %v6398 = vld [vmem:[#allocation3 + $0x220] sm:$0xff]
    %v6399 = vld [vmem:[#allocation3 + $0x228] sm:$0xff]
    %v6400 = vld [vmem:[#allocation3 + $0x230] sm:$0xff]
    %v6401 = vld [vmem:[#allocation3 + $0x238] sm:$0xff]
    %v6402 = vld [vmem:[#allocation3 + $0x240] sm:$0xff]
    %v6403 = vld [vmem:[#allocation3 + $0x248] sm:$0xff]
    %v6404 = vld [vmem:[#allocation3 + $0x250] sm:$0xff]
    %v6405 = vld [vmem:[#allocation3 + $0x258] sm:$0xff]
    %v6406 = vld [vmem:[#allocation3 + $0x260] sm:$0xff]
    %v6407 = vld [vmem:[#allocation3 + $0x268] sm:$0xff]
    %v6408 = vld [vmem:[#allocation3 + $0x270] sm:$0xff]
    %v6409 = vld [vmem:[#allocation3 + $0x278] sm:$0xff]
    %v6410 = vld [vmem:[#allocation3 + $0x280] sm:$0xff]
    %v6411 = vld [vmem:[#allocation3 + $0x288] sm:$0xff]
    %v6412 = vld [vmem:[#allocation3 + $0x290] sm:$0xff]
    %v6413 = vld [vmem:[#allocation3 + $0x298] sm:$0xff]
    %v6414 = vld [vmem:[#allocation3 + $0x2a0] sm:$0xff]
    %v6415 = vld [vmem:[#allocation3 + $0x2a8] sm:$0xff]
    %v6416 = vld [vmem:[#allocation3 + $0x2b0] sm:$0xff]
    %v6417 = vld [vmem:[#allocation3 + $0x2b8] sm:$0xff]
    %v6418 = vld [vmem:[#allocation3 + $0x2c0] sm:$0xff]
    %v6419 = vld [vmem:[#allocation3 + $0x2c8] sm:$0xff]
    %v6420 = vld [vmem:[#allocation3 + $0x2d0] sm:$0xff]
    %v6421 = vld [vmem:[#allocation3 + $0x2d8] sm:$0xff]
    %v6422 = vld [vmem:[#allocation3 + $0x2e0] sm:$0xff]
    %v6423 = vld [vmem:[#allocation3 + $0x2e8] sm:$0xff]
    %v6424 = vld [vmem:[#allocation3 + $0x2f0] sm:$0xff]
    %v6425 = vld [vmem:[#allocation3 + $0x2f8] sm:$0xff]
    %v6426 = vld [vmem:[#allocation3 + $0x300] sm:$0xff]
    %v6427 = vld [vmem:[#allocation3 + $0x308] sm:$0xff]
    %v6428 = vld [vmem:[#allocation3 + $0x310] sm:$0xff]
    %v6429 = vld [vmem:[#allocation3 + $0x318] sm:$0xff]
    %v6430 = vld [vmem:[#allocation3 + $0x320] sm:$0xff]
    %v6431 = vld [vmem:[#allocation3 + $0x328] sm:$0xff]
    %v6432 = vld [vmem:[#allocation3 + $0x330] sm:$0xff]
    %v6433 = vld [vmem:[#allocation3 + $0x338] sm:$0xff]
    %v6434 = vld [vmem:[#allocation3 + $0x340] sm:$0xff]
    %v6435 = vld [vmem:[#allocation3 + $0x348] sm:$0xff]
    %v6436 = vld [vmem:[#allocation3 + $0x350] sm:$0xff]
    %v6437 = vld [vmem:[#allocation3 + $0x358] sm:$0xff]
    %v6438 = vld [vmem:[#allocation3 + $0x360] sm:$0xff]
    %v6439 = vld [vmem:[#allocation3 + $0x368] sm:$0xff]
    %v6440 = vld [vmem:[#allocation3 + $0x370] sm:$0xff]
    %v6441 = vld [vmem:[#allocation3 + $0x378] sm:$0xff]
    %v6442 = vld [vmem:[#allocation3 + $0x380] sm:$0xff]
    %v6443 = vld [vmem:[#allocation3 + $0x388] sm:$0xff]
    %v6444 = vld [vmem:[#allocation3 + $0x390] sm:$0xff]
    %v6445 = vld [vmem:[#allocation3 + $0x398] sm:$0xff]
    %v6446 = vld [vmem:[#allocation3 + $0x3a0] sm:$0xff]
    %v6447 = vld [vmem:[#allocation3 + $0x3a8] sm:$0xff]
    %v6448 = vld [vmem:[#allocation3 + $0x3b0] sm:$0xff]
    %v6449 = vld [vmem:[#allocation3 + $0x3b8] sm:$0xff]
    %v6450 = vld [vmem:[#allocation3 + $0x3c0] sm:$0xff]
    %v6451 = vld [vmem:[#allocation3 + $0x3c8] sm:$0xff]
    %v6452 = vld [vmem:[#allocation3 + $0x3d0] sm:$0xff]
    %v6453 = vld [vmem:[#allocation3 + $0x3d8] sm:$0xff]
    %v6454 = vld [vmem:[#allocation3 + $0x3e0] sm:$0xff]
    %v6455 = vld [vmem:[#allocation3 + $0x3e8] sm:$0xff]
    %v6456 = vld [vmem:[#allocation3 + $0x3f0] sm:$0xff]
    %v6457 = vld [vmem:[#allocation3 + $0x3f8] sm:$0xff]
    %v6458 = vpack.c.bf16 %v4681, %v4681
    %v6459 = vpack.c.bf16 %v4682, %v4682
    %s6460 = scalar_lea.vmem %s2, 1
    %v6461 = vld [vmem:[%s6460] ss:$4 sm:$0xf]
    %v6463 = vperm.slane %v6461, 0
    %v6464 = vperm.slane %v6461, 1
    %v6465 = vperm.slane %v6461, 2
    %v6466 = vperm.slane %v6461, 3
    %v6473 = vrot.slane %v6458, 3
    %v6474 = vrot.slane %v6459, 3
    %v6541 = vunpack.c.l.b16 %v6394
    %v6542 = vunpack.c.h.b16 %v6394
    %v6543 = vunpack.c.l.b16 %v6395
    %v6544 = vunpack.c.h.b16 %v6395
    %v6545 = vunpack.c.l.b16 %v6396
    %v6546 = vunpack.c.h.b16 %v6396
    %v6547 = vunpack.c.l.b16 %v6397
    %v6548 = vunpack.c.h.b16 %v6397
    %v6549 = vunpack.c.l.b16 %v6398
    %v6550 = vunpack.c.h.b16 %v6398
    %v6551 = vunpack.c.l.b16 %v6399
    %v6552 = vunpack.c.h.b16 %v6399
    %v6553 = vunpack.c.l.b16 %v6400
    %v6554 = vunpack.c.h.b16 %v6400
    %v6555 = vunpack.c.l.b16 %v6401
    %v6556 = vunpack.c.h.b16 %v6401
    %v6557 = vunpack.c.l.b16 %v6402
    %v6558 = vunpack.c.h.b16 %v6402
    %v6559 = vunpack.c.l.b16 %v6403
    %v6560 = vunpack.c.h.b16 %v6403
    %v6561 = vunpack.c.l.b16 %v6404
    %v6562 = vunpack.c.h.b16 %v6404
    %v6563 = vunpack.c.l.b16 %v6405
    %v6564 = vunpack.c.h.b16 %v6405
    %v6565 = vunpack.c.l.b16 %v6406
    %v6566 = vunpack.c.h.b16 %v6406
    %v6567 = vunpack.c.l.b16 %v6407
    %v6568 = vunpack.c.h.b16 %v6407
    %v6569 = vunpack.c.l.b16 %v6408
    %v6570 = vunpack.c.h.b16 %v6408
    %v6571 = vunpack.c.l.b16 %v6409
    %v6572 = vunpack.c.h.b16 %v6409
    %v6573 = vunpack.c.l.b16 %v6410
    %v6574 = vunpack.c.h.b16 %v6410
    %v6575 = vunpack.c.l.b16 %v6411
    %v6576 = vunpack.c.h.b16 %v6411
    %v6577 = vunpack.c.l.b16 %v6412
    %v6578 = vunpack.c.h.b16 %v6412
    %v6579 = vunpack.c.l.b16 %v6413
    %v6580 = vunpack.c.h.b16 %v6413
    %v6581 = vunpack.c.l.b16 %v6414
    %v6582 = vunpack.c.h.b16 %v6414
    %v6583 = vunpack.c.l.b16 %v6415
    %v6584 = vunpack.c.h.b16 %v6415
    %v6585 = vunpack.c.l.b16 %v6416
    %v6586 = vunpack.c.h.b16 %v6416
    %v6587 = vunpack.c.l.b16 %v6417
    %v6588 = vunpack.c.h.b16 %v6417
    %v6589 = vunpack.c.l.b16 %v6418
    %v6590 = vunpack.c.h.b16 %v6418
    %v6591 = vunpack.c.l.b16 %v6419
    %v6592 = vunpack.c.h.b16 %v6419
    %v6593 = vunpack.c.l.b16 %v6420
    %v6594 = vunpack.c.h.b16 %v6420
    %v6595 = vunpack.c.l.b16 %v6421
    %v6596 = vunpack.c.h.b16 %v6421
    %v6597 = vunpack.c.l.b16 %v6422
    %v6598 = vunpack.c.h.b16 %v6422
    %v6599 = vunpack.c.l.b16 %v6423
    %v6600 = vunpack.c.h.b16 %v6423
    %v6601 = vunpack.c.l.b16 %v6424
    %v6602 = vunpack.c.h.b16 %v6424
    %v6603 = vunpack.c.l.b16 %v6425
    %v6604 = vunpack.c.h.b16 %v6425
    %v6605 = vunpack.c.l.b16 %v6426
    %v6606 = vunpack.c.h.b16 %v6426
    %v6607 = vunpack.c.l.b16 %v6427
    %v6608 = vunpack.c.h.b16 %v6427
    %v6609 = vunpack.c.l.b16 %v6428
    %v6610 = vunpack.c.h.b16 %v6428
    %v6611 = vunpack.c.l.b16 %v6429
    %v6612 = vunpack.c.h.b16 %v6429
    %v6613 = vunpack.c.l.b16 %v6430
    %v6614 = vunpack.c.h.b16 %v6430
    %v6615 = vunpack.c.l.b16 %v6431
    %v6616 = vunpack.c.h.b16 %v6431
    %v6617 = vunpack.c.l.b16 %v6432
    %v6618 = vunpack.c.h.b16 %v6432
    %v6619 = vunpack.c.l.b16 %v6433
    %v6620 = vunpack.c.h.b16 %v6433
    %v6621 = vunpack.c.l.b16 %v6434
    %v6622 = vunpack.c.h.b16 %v6434
    %v6623 = vunpack.c.l.b16 %v6435
    %v6624 = vunpack.c.h.b16 %v6435
    %v6625 = vunpack.c.l.b16 %v6436
    %v6626 = vunpack.c.h.b16 %v6436
    %v6627 = vunpack.c.l.b16 %v6437
    %v6628 = vunpack.c.h.b16 %v6437
    %v6629 = vunpack.c.l.b16 %v6438
    %v6630 = vunpack.c.h.b16 %v6438
    %v6631 = vunpack.c.l.b16 %v6439
    %v6632 = vunpack.c.h.b16 %v6439
    %v6633 = vunpack.c.l.b16 %v6440
    %v6634 = vunpack.c.h.b16 %v6440
    %v6635 = vunpack.c.l.b16 %v6441
    %v6636 = vunpack.c.h.b16 %v6441
    %v6637 = vunpack.c.l.b16 %v6442
    %v6638 = vunpack.c.h.b16 %v6442
    %v6639 = vunpack.c.l.b16 %v6443
    %v6640 = vunpack.c.h.b16 %v6443
    %v6641 = vunpack.c.l.b16 %v6444
    %v6642 = vunpack.c.h.b16 %v6444
    %v6643 = vunpack.c.l.b16 %v6445
    %v6644 = vunpack.c.h.b16 %v6445
    %v6645 = vunpack.c.l.b16 %v6446
    %v6646 = vunpack.c.h.b16 %v6446
    %v6647 = vunpack.c.l.b16 %v6447
    %v6648 = vunpack.c.h.b16 %v6447
    %v6649 = vunpack.c.l.b16 %v6448
    %v6650 = vunpack.c.h.b16 %v6448
    %v6651 = vunpack.c.l.b16 %v6449
    %v6652 = vunpack.c.h.b16 %v6449
    %v6653 = vunpack.c.l.b16 %v6450
    %v6654 = vunpack.c.h.b16 %v6450
    %v6655 = vunpack.c.l.b16 %v6451
    %v6656 = vunpack.c.h.b16 %v6451
    %v6657 = vunpack.c.l.b16 %v6452
    %v6658 = vunpack.c.h.b16 %v6452
    %v6659 = vunpack.c.l.b16 %v6453
    %v6660 = vunpack.c.h.b16 %v6453
    %v6661 = vunpack.c.l.b16 %v6454
    %v6662 = vunpack.c.h.b16 %v6454
    %v6663 = vunpack.c.l.b16 %v6455
    %v6664 = vunpack.c.h.b16 %v6455
    %v6665 = vunpack.c.l.b16 %v6456
    %v6666 = vunpack.c.h.b16 %v6456
    %v6667 = vunpack.c.l.b16 %v6457
    %v6668 = vunpack.c.h.b16 %v6457
    %v6669 = vpack.c.b16 %v6545, %v6541
    %v6670 = vpack.c.b16 %v6546, %v6542
    %v6671 = vpack.c.b16 %v6547, %v6543
    %v6672 = vpack.c.b16 %v6548, %v6544
    %v6673 = vpack.c.b16 %v6553, %v6549
    %v6674 = vpack.c.b16 %v6554, %v6550
    %v6675 = vpack.c.b16 %v6555, %v6551
    %v6676 = vpack.c.b16 %v6556, %v6552
    %v6677 = vpack.c.b16 %v6561, %v6557
    %v6678 = vpack.c.b16 %v6562, %v6558
    %v6679 = vpack.c.b16 %v6563, %v6559
    %v6680 = vpack.c.b16 %v6564, %v6560
    %v6681 = vpack.c.b16 %v6569, %v6565
    %v6682 = vpack.c.b16 %v6570, %v6566
    %v6683 = vpack.c.b16 %v6571, %v6567
    %v6684 = vpack.c.b16 %v6572, %v6568
    %v6685 = vpack.c.b16 %v6577, %v6573
    %v6686 = vpack.c.b16 %v6578, %v6574
    %v6687 = vpack.c.b16 %v6579, %v6575
    %v6688 = vpack.c.b16 %v6580, %v6576
    %v6689 = vpack.c.b16 %v6585, %v6581
    %v6690 = vpack.c.b16 %v6586, %v6582
    %v6691 = vpack.c.b16 %v6587, %v6583
    %v6692 = vpack.c.b16 %v6588, %v6584
    %v6693 = vpack.c.b16 %v6593, %v6589
    %v6694 = vpack.c.b16 %v6594, %v6590
    %v6695 = vpack.c.b16 %v6595, %v6591
    %v6696 = vpack.c.b16 %v6596, %v6592
    %v6697 = vpack.c.b16 %v6601, %v6597
    %v6698 = vpack.c.b16 %v6602, %v6598
    %v6699 = vpack.c.b16 %v6603, %v6599
    %v6700 = vpack.c.b16 %v6604, %v6600
    %v6701 = vpack.c.b16 %v6609, %v6605
    %v6702 = vpack.c.b16 %v6610, %v6606
    %v6703 = vpack.c.b16 %v6611, %v6607
    %v6704 = vpack.c.b16 %v6612, %v6608
    %v6705 = vpack.c.b16 %v6617, %v6613
    %v6706 = vpack.c.b16 %v6618, %v6614
    %v6707 = vpack.c.b16 %v6619, %v6615
    %v6708 = vpack.c.b16 %v6620, %v6616
    %v6709 = vpack.c.b16 %v6625, %v6621
    %v6710 = vpack.c.b16 %v6626, %v6622
    %v6711 = vpack.c.b16 %v6627, %v6623
    %v6712 = vpack.c.b16 %v6628, %v6624
    %v6713 = vpack.c.b16 %v6633, %v6629
    %v6714 = vpack.c.b16 %v6634, %v6630
    %v6715 = vpack.c.b16 %v6635, %v6631
    %v6716 = vpack.c.b16 %v6636, %v6632
    %v6717 = vpack.c.b16 %v6641, %v6637
    %v6718 = vpack.c.b16 %v6642, %v6638
    %v6719 = vpack.c.b16 %v6643, %v6639
    %v6720 = vpack.c.b16 %v6644, %v6640
    %v6721 = vpack.c.b16 %v6649, %v6645
    %v6722 = vpack.c.b16 %v6650, %v6646
    %v6723 = vpack.c.b16 %v6651, %v6647
    %v6724 = vpack.c.b16 %v6652, %v6648
    %v6725 = vpack.c.b16 %v6657, %v6653
    %v6726 = vpack.c.b16 %v6658, %v6654
    %v6727 = vpack.c.b16 %v6659, %v6655
    %v6728 = vpack.c.b16 %v6660, %v6656
    %v6729 = vpack.c.b16 %v6665, %v6661
    %v6730 = vpack.c.b16 %v6666, %v6662
    %v6731 = vpack.c.b16 %v6667, %v6663
    %v6732 = vpack.c.b16 %v6668, %v6664
    %6797 = vmatpush.bf16.msra.mxu0 %v6697
    %6798 = vmatpush.bf16.msra.mxu0 %v6693
    %6799 = vmatpush.bf16.msra.mxu0 %v6689
    %6800 = vmatpush.bf16.msra.mxu0 %v6685
    %6801 = vmatpush.bf16.msra.mxu0 %v6681
    %6802 = vmatpush.bf16.msra.mxu0 %v6677
    %6803 = vmatpush.bf16.msra.mxu0 %v6673
    %6804 = vmatpush.bf16.msra.mxu0 %v6669
    %6805 = vmatmul.bf16.gmra.mxu0 %v6473
    %v6806 = vpop.f32.mrf.mxu0
    %v6807 = vadd.f32 %v6463, %v6806
    %v6808 = vpop.f32.mrf.mxu0
    %6809 = vdwg.mxu0
    %6810 = vmatpush.bf16.msra.mxu0 %v6729
    %6811 = vmatpush.bf16.msra.mxu0 %v6725
    %6812 = vmatpush.bf16.msra.mxu0 %v6721
    %6813 = vmatpush.bf16.msra.mxu0 %v6717
    %6814 = vmatpush.bf16.msra.mxu0 %v6713
    %6815 = vmatpush.bf16.msra.mxu0 %v6709
    %6816 = vmatpush.bf16.msra.mxu0 %v6705
    %6817 = vmatpush.bf16.msra.mxu0 %v6701
    %6818 = vmatmul.bf16.gmra.mxu0 %v6474
    %v6819 = vpop.f32.mrf.mxu0
    %v6820 = vadd.f32 %v6807, %v6819
    %v6821 = vpop.f32.mrf.mxu0
    %6822 = vdwg.mxu0
    %6823 = vmatpush.bf16.msra.mxu0 %v6698
    %6824 = vmatpush.bf16.msra.mxu0 %v6694
    %6825 = vmatpush.bf16.msra.mxu0 %v6690
    %6826 = vmatpush.bf16.msra.mxu0 %v6686
    %6827 = vmatpush.bf16.msra.mxu0 %v6682
    %6828 = vmatpush.bf16.msra.mxu0 %v6678
    %6829 = vmatpush.bf16.msra.mxu0 %v6674
    %6830 = vmatpush.bf16.msra.mxu0 %v6670
    %6831 = vmatmul.bf16.gmra.mxu0 %v6473
    %v6832 = vpop.f32.mrf.mxu0
    %v6833 = vadd.f32 %v6464, %v6832
    %v6834 = vpop.f32.mrf.mxu0
    %6835 = vdwg.mxu0
    %6836 = vmatpush.bf16.msra.mxu0 %v6730
    %6837 = vmatpush.bf16.msra.mxu0 %v6726
    %6838 = vmatpush.bf16.msra.mxu0 %v6722
    %6839 = vmatpush.bf16.msra.mxu0 %v6718
    %6840 = vmatpush.bf16.msra.mxu0 %v6714
    %6841 = vmatpush.bf16.msra.mxu0 %v6710
    %6842 = vmatpush.bf16.msra.mxu0 %v6706
    %6843 = vmatpush.bf16.msra.mxu0 %v6702
    %6844 = vmatmul.bf16.gmra.mxu0 %v6474
    %v6845 = vpop.f32.mrf.mxu0
    %v6846 = vadd.f32 %v6833, %v6845
    %v6847 = vpop.f32.mrf.mxu0
    %6848 = vdwg.mxu0
    %6849 = vmatpush.bf16.msra.mxu0 %v6699
    %6850 = vmatpush.bf16.msra.mxu0 %v6695
    %6851 = vmatpush.bf16.msra.mxu0 %v6691
    %6852 = vmatpush.bf16.msra.mxu0 %v6687
    %6853 = vmatpush.bf16.msra.mxu0 %v6683
    %6854 = vmatpush.bf16.msra.mxu0 %v6679
    %6855 = vmatpush.bf16.msra.mxu0 %v6675
    %6856 = vmatpush.bf16.msra.mxu0 %v6671
    %6857 = vmatmul.bf16.gmra.mxu0 %v6473
    %v6858 = vpop.f32.mrf.mxu0
    %v6859 = vadd.f32 %v6465, %v6858
    %v6860 = vpop.f32.mrf.mxu0
    %6861 = vdwg.mxu0
    %6862 = vmatpush.bf16.msra.mxu0 %v6731
    %6863 = vmatpush.bf16.msra.mxu0 %v6727
    %6864 = vmatpush.bf16.msra.mxu0 %v6723
    %6865 = vmatpush.bf16.msra.mxu0 %v6719
    %6866 = vmatpush.bf16.msra.mxu0 %v6715
    %6867 = vmatpush.bf16.msra.mxu0 %v6711
    %6868 = vmatpush.bf16.msra.mxu0 %v6707
    %6869 = vmatpush.bf16.msra.mxu0 %v6703
    %6870 = vmatmul.bf16.gmra.mxu0 %v6474
    %v6871 = vpop.f32.mrf.mxu0
    %v6872 = vadd.f32 %v6859, %v6871
    %v6873 = vpop.f32.mrf.mxu0
    %6874 = vdwg.mxu0
    %6875 = vmatpush.bf16.msra.mxu0 %v6700
    %6876 = vmatpush.bf16.msra.mxu0 %v6696
    %6877 = vmatpush.bf16.msra.mxu0 %v6692
    %6878 = vmatpush.bf16.msra.mxu0 %v6688
    %6879 = vmatpush.bf16.msra.mxu0 %v6684
    %6880 = vmatpush.bf16.msra.mxu0 %v6680
    %6881 = vmatpush.bf16.msra.mxu0 %v6676
    %6882 = vmatpush.bf16.msra.mxu0 %v6672
    %6883 = vmatmul.bf16.gmra.mxu0 %v6473
    %v6884 = vpop.f32.mrf.mxu0
    %v6885 = vadd.f32 %v6466, %v6884
    %v6886 = vpop.f32.mrf.mxu0
    %6887 = vdwg.mxu0
    %6888 = vmatpush.bf16.msra.mxu0 %v6732
    %6889 = vmatpush.bf16.msra.mxu0 %v6728
    %6890 = vmatpush.bf16.msra.mxu0 %v6724
    %6891 = vmatpush.bf16.msra.mxu0 %v6720
    %6892 = vmatpush.bf16.msra.mxu0 %v6716
    %6893 = vmatpush.bf16.msra.mxu0 %v6712
    %6894 = vmatpush.bf16.msra.mxu0 %v6708
    %6895 = vmatpush.bf16.msra.mxu0 %v6704
    %6896 = vmatmul.bf16.gmra.mxu0 %v6474
    %v6897 = vpop.f32.mrf.mxu0
    %v6898 = vadd.f32 %v6885, %v6897
    %v6899 = vpop.f32.mrf.mxu0
    %6900 = vdwg.mxu0
    %v6901 = vxor.u32 %v6820, 2147483648
    %v6902 = vmul.f32 %v6901, 1.442695
    %v6903 = vpow.pop %v6902
    %v6904 = vadd.f32 %v6903, 1.0
    %v6905 = vrcp.pop %v6904
    %v6906 = vmul.f32 %v6904, %v6905
    %v6907 = vsub.f32 1.0, %v6906
    %v6908 = vmul.f32 %v6905, %v6907
    %v6909 = vadd.f32 %v6905, %v6908
    %vm6910 = vweird.f32 %v6904
    %vm6911 = vweird.f32 %v6905
    %vm6912 = vmor %vm6910, %vm6911
    %v6913 = vsel %vm6912, %v6905, %v6909
    %v6914 = vand.u32 2147483647, %v6904
    %vm6915 = vcmp.eq.f32.partialorder %v6914, 8.507059e+37
    %v6916 = vand.u32 %v6904, 2147483648
    %v6917 = vor.u32 1.1754944e-38, %v6916
    %v6918 = vsel %vm6915, %v6917, %v6913
    %v6919 = vmul.f32 1.0, %v6918
    %v6920 = vxor.u32 %v6846, 2147483648
    %v6921 = vmul.f32 %v6920, 1.442695
    %v6922 = vpow.pop %v6921
    %v6923 = vadd.f32 %v6922, 1.0
    %v6924 = vrcp.pop %v6923
    %v6925 = vmul.f32 %v6923, %v6924
    %v6926 = vsub.f32 1.0, %v6925
    %v6927 = vmul.f32 %v6924, %v6926
    %v6928 = vadd.f32 %v6924, %v6927
    %vm6929 = vweird.f32 %v6923
    %vm6930 = vweird.f32 %v6924
    %vm6931 = vmor %vm6929, %vm6930
    %v6932 = vsel %vm6931, %v6924, %v6928
    %v6933 = vand.u32 2147483647, %v6923
    %vm6934 = vcmp.eq.f32.partialorder %v6933, 8.507059e+37
    %v6935 = vand.u32 %v6923, 2147483648
    %v6936 = vor.u32 1.1754944e-38, %v6935
    %v6937 = vsel %vm6934, %v6936, %v6932
    %v6938 = vmul.f32 1.0, %v6937
    %v6939 = vtanh.pop %v6872
    %v6940 = vxor.u32 %v6898, 2147483648
    %v6941 = vmul.f32 %v6940, 1.442695
    %v6942 = vpow.pop %v6941
    %v6943 = vadd.f32 %v6942, 1.0
    %v6944 = vrcp.pop %v6943
    %v6945 = vmul.f32 %v6943, %v6944
    %v6946 = vsub.f32 1.0, %v6945
    %v6947 = vmul.f32 %v6944, %v6946
    %v6948 = vadd.f32 %v6944, %v6947
    %vm6949 = vweird.f32 %v6943
    %vm6950 = vweird.f32 %v6944
    %vm6951 = vmor %vm6949, %vm6950
    %v6952 = vsel %vm6951, %v6944, %v6948
    %v6953 = vand.u32 2147483647, %v6943
    %vm6954 = vcmp.eq.f32.partialorder %v6953, 8.507059e+37
    %v6955 = vand.u32 %v6943, 2147483648
    %v6956 = vor.u32 1.1754944e-38, %v6955
    %v6957 = vsel %vm6954, %v6956, %v6952
    %v6958 = vmul.f32 1.0, %v6957
    %v6959 = vmul.f32 %v6938, 0.0
    %v6960 = vmul.f32 %v6919, %v6939
    %v6961 = vadd.f32 %v6959, %v6960
    %v6962 = vtanh.pop %v6961
    %v6963 = vmul.f32 %v6958, %v6962
    %v6965 = vrot.slane %v6963, 2
    %v6967 = vld [vmem:[#allocation3 + $0x500] sm:$0xf]
    %v6968 = vld [vmem:[#allocation3 + $0x510] sm:$0xf]
    %v6969 = vld [vmem:[#allocation3 + $0x520] sm:$0xf]
    %v6970 = vld [vmem:[#allocation3 + $0x530] sm:$0xf]
    %v6971 = vld [vmem:[#allocation3 + $0x540] sm:$0xf]
    %v6972 = vld [vmem:[#allocation3 + $0x550] sm:$0xf]
    %v6973 = vld [vmem:[#allocation3 + $0x560] sm:$0xf]
    %v6974 = vld [vmem:[#allocation3 + $0x570] sm:$0xf]
    %v6975 = vld [vmem:[#allocation3 + $0x580] sm:$0xf]
    %v6976 = vld [vmem:[#allocation3 + $0x590] sm:$0xf]
    %v6977 = vld [vmem:[#allocation3 + $0x5a0] sm:$0xf]
    %v6978 = vld [vmem:[#allocation3 + $0x5b0] sm:$0xf]
    %v6979 = vld [vmem:[#allocation3 + $0x5c0] sm:$0xf]
    %v6980 = vld [vmem:[#allocation3 + $0x5d0] sm:$0xf]
    %v6981 = vld [vmem:[#allocation3 + $0x5e0] sm:$0xf]
    %v6982 = vld [vmem:[#allocation3 + $0x5f0] sm:$0xf]
    %v6983 = vld [vmem:[#allocation3 + $0x600] sm:$0xf]
    %v6984 = vld [vmem:[#allocation3 + $0x610] sm:$0xf]
    %v6985 = vld [vmem:[#allocation3 + $0x620] sm:$0xf]
    %v6986 = vld [vmem:[#allocation3 + $0x630] sm:$0xf]
    %v6987 = vld [vmem:[#allocation3 + $0x640] sm:$0xf]
    %v6988 = vld [vmem:[#allocation3 + $0x650] sm:$0xf]
    %v6989 = vld [vmem:[#allocation3 + $0x660] sm:$0xf]
    %v6990 = vld [vmem:[#allocation3 + $0x670] sm:$0xf]
    %v6991 = vld [vmem:[#allocation3 + $0x680] sm:$0xf]
    %v6992 = vld [vmem:[#allocation3 + $0x690] sm:$0xf]
    %v6993 = vld [vmem:[#allocation3 + $0x6a0] sm:$0xf]
    %v6994 = vld [vmem:[#allocation3 + $0x6b0] sm:$0xf]
    %v6995 = vld [vmem:[#allocation3 + $0x6c0] sm:$0xf]
    %v6996 = vld [vmem:[#allocation3 + $0x6d0] sm:$0xf]
    %v6997 = vld [vmem:[#allocation3 + $0x6e0] sm:$0xf]
    %v6998 = vld [vmem:[#allocation3 + $0x6f0] sm:$0xf]
    %v6999 = vpack.c.bf16 %v6393, %v6393
    %v7000 = vpack.c.bf16 %v6965, %v6965
    %v7001 = vld [vmem:[%s2 + $0x2] sm:$0x1]
    %v7002 = vperm.slane %v7001, 0
    %v7005 = vrot.slane %v6999, 3
    %v7006 = vrot.slane %v7000, 3
    %v7041 = vunpack.c.l.b16 %v6967
    %v7042 = vunpack.c.l.b16 %v6968
    %v7043 = vunpack.c.l.b16 %v6969
    %v7044 = vunpack.c.l.b16 %v6970
    %v7045 = vunpack.c.l.b16 %v6971
    %v7046 = vunpack.c.l.b16 %v6972
    %v7047 = vunpack.c.l.b16 %v6973
    %v7048 = vunpack.c.l.b16 %v6974
    %v7049 = vunpack.c.l.b16 %v6975
    %v7050 = vunpack.c.l.b16 %v6976
    %v7051 = vunpack.c.l.b16 %v6977
    %v7052 = vunpack.c.l.b16 %v6978
    %v7053 = vunpack.c.l.b16 %v6979
    %v7054 = vunpack.c.l.b16 %v6980
    %v7055 = vunpack.c.l.b16 %v6981
    %v7056 = vunpack.c.l.b16 %v6982
    %v7057 = vunpack.c.l.b16 %v6983
    %v7058 = vunpack.c.l.b16 %v6984
    %v7059 = vunpack.c.l.b16 %v6985
    %v7060 = vunpack.c.l.b16 %v6986
    %v7061 = vunpack.c.l.b16 %v6987
    %v7062 = vunpack.c.l.b16 %v6988
    %v7063 = vunpack.c.l.b16 %v6989
    %v7064 = vunpack.c.l.b16 %v6990
    %v7065 = vunpack.c.l.b16 %v6991
    %v7066 = vunpack.c.l.b16 %v6992
    %v7067 = vunpack.c.l.b16 %v6993
    %v7068 = vunpack.c.l.b16 %v6994
    %v7069 = vunpack.c.l.b16 %v6995
    %v7070 = vunpack.c.l.b16 %v6996
    %v7071 = vunpack.c.l.b16 %v6997
    %v7072 = vunpack.c.l.b16 %v6998
    %v7073 = vpack.c.b16 %v7042, %v7041
    %v7074 = vpack.c.b16 %v7044, %v7043
    %v7075 = vpack.c.b16 %v7046, %v7045
    %v7076 = vpack.c.b16 %v7048, %v7047
    %v7077 = vpack.c.b16 %v7050, %v7049
    %v7078 = vpack.c.b16 %v7052, %v7051
    %v7079 = vpack.c.b16 %v7054, %v7053
    %v7080 = vpack.c.b16 %v7056, %v7055
    %v7081 = vpack.c.b16 %v7058, %v7057
    %v7082 = vpack.c.b16 %v7060, %v7059
    %v7083 = vpack.c.b16 %v7062, %v7061
    %v7084 = vpack.c.b16 %v7064, %v7063
    %v7085 = vpack.c.b16 %v7066, %v7065
    %v7086 = vpack.c.b16 %v7068, %v7067
    %v7087 = vpack.c.b16 %v7070, %v7069
    %v7088 = vpack.c.b16 %v7072, %v7071
    %7105 = vmatpush.bf16.msra.mxu0 %v7080
    %7106 = vmatpush.bf16.msra.mxu0 %v7079
    %7107 = vmatpush.bf16.msra.mxu0 %v7078
    %7108 = vmatpush.bf16.msra.mxu0 %v7077
    %7109 = vmatpush.bf16.msra.mxu0 %v7076
    %7110 = vmatpush.bf16.msra.mxu0 %v7075
    %7111 = vmatpush.bf16.msra.mxu0 %v7074
    %7112 = vmatpush.bf16.msra.mxu0 %v7073
    %7113 = vmatmul.bf16.gmra.mxu0 %v7005
    %v7114 = vpop.f32.mrf.mxu0
    %v7115 = vadd.f32 %v7002, %v7114
    %v7116 = vpop.f32.mrf.mxu0
    %7117 = vdwg.mxu0
    %7118 = vmatpush.bf16.msra.mxu0 %v7088
    %7119 = vmatpush.bf16.msra.mxu0 %v7087
    %7120 = vmatpush.bf16.msra.mxu0 %v7086
    %7121 = vmatpush.bf16.msra.mxu0 %v7085
    %7122 = vmatpush.bf16.msra.mxu0 %v7084
    %7123 = vmatpush.bf16.msra.mxu0 %v7083
    %7124 = vmatpush.bf16.msra.mxu0 %v7082
    %7125 = vmatpush.bf16.msra.mxu0 %v7081
    %7126 = vmatmul.bf16.gmra.mxu0 %v7006
    %v7127 = vpop.f32.mrf.mxu0
    %v7128 = vadd.f32 %v7115, %v7127
    %v7129 = vpop.f32.mrf.mxu0
    %7130 = vdwg.mxu0
    %v7131 = vmax.f32 %v7128, 0.0
    %v7132 = vld [vmem:[#allocation3 + $0x504] sm:$0xf]
    %v7133 = vld [vmem:[#allocation3 + $0x514] sm:$0xf]
    %v7134 = vld [vmem:[#allocation3 + $0x524] sm:$0xf]
    %v7135 = vld [vmem:[#allocation3 + $0x534] sm:$0xf]
    %v7136 = vld [vmem:[#allocation3 + $0x544] sm:$0xf]
    %v7137 = vld [vmem:[#allocation3 + $0x554] sm:$0xf]
    %v7138 = vld [vmem:[#allocation3 + $0x564] sm:$0xf]
    %v7139 = vld [vmem:[#allocation3 + $0x574] sm:$0xf]
    %v7140 = vld [vmem:[#allocation3 + $0x584] sm:$0xf]
    %v7141 = vld [vmem:[#allocation3 + $0x594] sm:$0xf]
    %v7142 = vld [vmem:[#allocation3 + $0x5a4] sm:$0xf]
    %v7143 = vld [vmem:[#allocation3 + $0x5b4] sm:$0xf]
    %v7144 = vld [vmem:[#allocation3 + $0x5c4] sm:$0xf]
    %v7145 = vld [vmem:[#allocation3 + $0x5d4] sm:$0xf]
    %v7146 = vld [vmem:[#allocation3 + $0x5e4] sm:$0xf]
    %v7147 = vld [vmem:[#allocation3 + $0x5f4] sm:$0xf]
    %v7148 = vpack.c.bf16 %v7131, %v7131
    %v7149 = vld [vmem:[%s2 + $0x3] sm:$0x1]
    %v7150 = vperm.slane %v7149, 0
    %v7167 = vunpack.c.l.b16 %v7132
    %v7168 = vunpack.c.l.b16 %v7133
    %v7169 = vunpack.c.l.b16 %v7134
    %v7170 = vunpack.c.l.b16 %v7135
    %v7171 = vunpack.c.l.b16 %v7136
    %v7172 = vunpack.c.l.b16 %v7137
    %v7173 = vunpack.c.l.b16 %v7138
    %v7174 = vunpack.c.l.b16 %v7139
    %v7175 = vunpack.c.l.b16 %v7140
    %v7176 = vunpack.c.l.b16 %v7141
    %v7177 = vunpack.c.l.b16 %v7142
    %v7178 = vunpack.c.l.b16 %v7143
    %v7179 = vunpack.c.l.b16 %v7144
    %v7180 = vunpack.c.l.b16 %v7145
    %v7181 = vunpack.c.l.b16 %v7146
    %v7182 = vunpack.c.l.b16 %v7147
    %v7183 = vpack.c.b16 %v7168, %v7167
    %v7184 = vpack.c.b16 %v7170, %v7169
    %v7185 = vpack.c.b16 %v7172, %v7171
    %v7186 = vpack.c.b16 %v7174, %v7173
    %v7187 = vpack.c.b16 %v7176, %v7175
    %v7188 = vpack.c.b16 %v7178, %v7177
    %v7189 = vpack.c.b16 %v7180, %v7179
    %v7190 = vpack.c.b16 %v7182, %v7181
    %7199 = vmatpush.bf16.msra.mxu0 %v7190
    %7200 = vmatpush.bf16.msra.mxu0 %v7189
    %7201 = vmatpush.bf16.msra.mxu0 %v7188
    %7202 = vmatpush.bf16.msra.mxu0 %v7187
    %7203 = vmatpush.bf16.msra.mxu0 %v7186
    %7204 = vmatpush.bf16.msra.mxu0 %v7185
    %7205 = vmatpush.bf16.msra.mxu0 %v7184
    %7206 = vmatpush.bf16.msra.mxu0 %v7183
    %7207 = vmatmul.bf16.gmra.mxu0 %v7148
    %v7208 = vpop.f32.mrf.mxu0
    %v7209 = vadd.f32 %v7150, %v7208
    %v7210 = vpop.f32.mrf.mxu0
    %7211 = vdwg.mxu0
    %7212 = vst [vmem:[#allocation8] sm:$0x3] %v7209
    // Predicated region
    $region37: #{classifier_forward.1} parent=1 // pred_check
      _
    $region38: #{classifier_forward.1} parent=1 // pred_check_branch
      %7214 = sbr.rel (0) target = $region40
    $region39: #{classifier_forward.1} parent=1 // pred_region
      %7216 = vsyncadd [#allocation7], 0
      %s7218 = sshll.u32 [#allocation8], 4
      %s7219 = int_to_ptr.vmem [resolvable:$true] %s7218
      %s7220 = sshll.u32 %s4, 4
      %s7221 = int_to_ptr.hbm [resolvable:$true] %s7220
      %7223 = dma.vmem_to_hbm [thread:$0]  %s7219, 32, %s7221, [#allocation7]
    $region40: #{classifier_forward.1} parent=1 // pred_fallthru
      _
    // Predicated region
    $region41: #{classifier_forward.1} parent=1 // pred_check
      _
    $region42: #{classifier_forward.1} parent=1 // pred_check_branch
      %7225 = sbr.rel (0) target = $region44
    $region43: #{classifier_forward.1} parent=1 // pred_region
      %7227 = dma.done [#allocation7], 32
    $region44: #{classifier_forward.1} parent=1 // pred_fallthru
      _
    %7228 = vsyncpa [#allocation6], 1
    %7229 = vsyncpa [#allocation7], 1
  %7230 = vsyncmov [#allocation4]
  %s7231 = vpop.sfrf %7230
  %p7232 = scmp.eq.s32.totalorder %s7231, 0
  %p7233 = pneg %p7232
  %7235 = shalt.err (%p7233)

</llo_original>
